<compile_context>
chip_gen: v5e
topology: v5e:2x2
jax: 0.10.0
libtpu: 0.0.40
codegen_flags: <defaults>
</compile_context>

<pallas_src>
import jax
import jax.numpy as jnp
import numpy as np
from jax.experimental import pallas as pl
from jax.experimental.pallas import tpu as pltpu

_EPS = 1e-5   # PyTorch nn.LayerNorm default


def _make_kernel(Bt, H, W, hid):
    N = H * W

    def _ln(v, g, b):
        # single-sweep LayerNorm (the two reductions are independent)
        mu = jnp.mean(v, axis=-1, keepdims=True)
        ms = jnp.mean(v * v, axis=-1, keepdims=True)
        var = jnp.maximum(ms - mu * mu, 0.0)
        return (v - mu) * jax.lax.rsqrt(var + _EPS) * g + b

    def kernel(x_ref, w1_ref, b1_ref, g0_ref, be0_ref,
               dw1w_ref, dw1b_ref, g1_ref, be1_ref,
               cw2_ref, dw2b_ref, g2_ref, be2_ref,
               g3_ref, be3_ref,
               w2_ref, b2_ref, g4_ref, be4_ref,
               o_ref, pad_ref, tok_ref):
        # ---- fc1 over the whole batch block (bf16 MXU, f32 acc) ----
        x = x_ref[...].reshape(Bt * N, -1)                    # (Bt*N, C) bf16
        h = jnp.dot(x, w1_ref[...], preferred_element_type=jnp.float32)
        h = h + b1_ref[...]
        h = _ln(h, g0_ref[...], be0_ref[...])
        h = jnp.maximum(h, 0.0)                               # act1
        tok_ref[...] = h                                      # (Bt*N, hid) f32

        # ---- zero only the spatial-halo border strips (per grid step, so it
        #      stays correct however the "parallel" axis is split across TCs;
        #      the interior is fully overwritten below) ----
        zrow = jnp.zeros((1, W + 2, hid), jnp.float32)
        zcol = jnp.zeros((H + 2, 1, hid), jnp.float32)
        pad_ref[0:1, :, :] = zrow
        pad_ref[H + 1:H + 2, :, :] = zrow
        pad_ref[:, 0:1, :] = zcol
        pad_ref[:, W + 1:W + 2, :] = zcol

        dw1w = dw1w_ref[...]                                  # (3, 3, hid)
        cw2 = cw2_ref[...]                                    # (9, 7, hid)

        # ---- conv section, one image at a time (bounded vreg live set) ----
        # NOTE: at hid >= 256 also chunk the channel dim in 128-lane groups /
        # switch the tap loops to lax.fori_loop with small unroll.
        for b in range(Bt):
            img = tok_ref[b * N:(b + 1) * N, :].reshape(H, W, hid)

            # depthwise 3x3 (groups = hid) + conv bias + residual, norm1
            pad_ref[1:H + 1, 1:W + 1, :] = img
            parts = [jnp.zeros((H, W, hid), jnp.float32) for _ in range(3)]
            for dj in range(3):
                col = pad_ref[:, dj:dj + W, :]                # (H+2, W, hid)
                for di in range(3):
                    parts[di] = parts[di] + col[di:di + H] * dw1w[di:di + 1, dj:dj + 1, :]
            x1 = parts[0] + parts[1] + parts[2] + dw1b_ref[...] + img
            x1 = _ln(x1, g1_ref[...], be1_ref[...])

            # grouped 3x3 (groups = hid//4) + conv bias + residual, norm2
            #   out[..,c] = sum_{di,dj,d} x1p[..+di, ..+dj, c+d] * cw2[3di+dj, d+3, c]
            # channel offset d realized by a lane roll; wrapped / cross-group
            # offsets carry zero weight in cw2, so the circular roll is exact.
            pad_ref[1:H + 1, 1:W + 1, :] = x1
            parts = [jnp.zeros((H, W, hid), jnp.float32) for _ in range(3)]
            for dj in range(3):
                col = pad_ref[:, dj:dj + W, :]                # (H+2, W, hid)
                for j in range(7):
                    colj = col if j == 3 else pltpu.roll(
                        col, shift=(3 - j) % hid, axis=2)
                    for di in range(3):
                        t = 3 * di + dj
                        parts[di] = parts[di] + colj[di:di + H] * cw2[t:t + 1, j:j + 1, :]
            x2 = parts[0] + parts[1] + parts[2] + dw2b_ref[...] + x1
            x2 = _ln(x2, g2_ref[...], be2_ref[...])
            x2 = x2 + img                                     # += x (post-act1 features)
            x2 = _ln(x2, g3_ref[...], be3_ref[...])
            x2 = jnp.maximum(x2, 0.0)                         # act2
            tok_ref[b * N:(b + 1) * N, :] = x2.reshape(N, hid)

        # ---- fc2 over the whole batch block (bf16 MXU) -> norm4 -> relu ----
        y = jnp.dot(tok_ref[...].astype(jnp.bfloat16), w2_ref[...],
                    preferred_element_type=jnp.float32) + b2_ref[...]
        y = _ln(y, g4_ref[...], be4_ref[...])
        y = jnp.maximum(y, 0.0)                               # act3
        o_ref[...] = y.reshape(Bt, N, -1).astype(o_ref.dtype)

    return kernel


def _compact_grouped_weights(dw2_torch, hid):
    """torch (hid, 4, 3, 3) grouped-conv weight -> compact (9, 7, hid) taps.

    cw[3*di+dj, d+3, c] = W[c, (c%4)+d, di, dj] if 0 <= (c%4)+d <= 3 else 0,
    so out[c] = sum_{tap, d} x[c+d] * cw[tap, d+3, c]; offsets that leave the
    group of 4 (or would wrap around the channel axis) carry zero weight.
    """
    c = jnp.arange(hid)
    k = (c % 4)[None, :] + (jnp.arange(7) - 3)[:, None]      # (7, hid)
    valid = (k >= 0) & (k <= 3)
    w_sel = dw2_torch[c[None, :], jnp.clip(k, 0, 3)]         # (7, hid, 3, 3)
    w_sel = jnp.where(valid[:, :, None, None], w_sel, 0.0)
    return jnp.transpose(w_sel, (2, 3, 0, 1)).reshape(9, 7, hid)


def mlp_enhance_dw(x, params, H, W, block_b=2):
    B, N, C = x.shape
    hid = params["w1"].shape[1]
    out_f = params["w2"].shape[1]
    assert N == H * W and hid % 4 == 0
    Bt = block_b if (block_b and B % block_b == 0) else 1

    # Wrapper-side prep (cheap, outside the kernel):
    #   * x and fc weights pre-cast to bf16 (halves DMA bytes / VMEM residency)
    #   * depthwise weight -> (3, 3, hid); grouped conv -> compact (9, 7, hid)
    w1 = params["w1"].astype(jnp.bfloat16)
    w2 = params["w2"].astype(jnp.bfloat16)
    dw1w = jnp.transpose(params["dw1_torch"][:, 0], (1, 2, 0))
    cw2 = _compact_grouped_weights(params["dw2_torch"], hid)
    xb = x.astype(jnp.bfloat16)

    ordered = [
        w1, params["b1"], params["g0"], params["be0"],
        dw1w, params["dw1b"], params["g1"], params["be1"],
        cw2, params["dw2b"], params["g2"], params["be2"],
        params["g3"], params["be3"],
        w2, params["b2"], params["g4"], params["be4"],
    ]

    def full_spec(p):
        # Constant across the grid.  On v7x (64 MiB VMEM) consider
        # pipeline_mode=pl.Buffered(1) here to single-buffer the weights.
        nd = p.ndim
        return pl.BlockSpec(p.shape, lambda b, _nd=nd: (0,) * _nd)

    in_specs = [pl.BlockSpec((Bt, N, C), lambda b: (b, 0, 0))]
    in_specs += [full_spec(p) for p in ordered]
    # NOTE: out_f < 128 implies lane-masked output stores; pad out_f to 128
    # wrapper-side if that matters at production sizes.
    out_specs = pl.BlockSpec((Bt, N, out_f), lambda b: (b, 0, 0))

    return pl.pallas_call(
        _make_kernel(Bt, H, W, hid),
        out_shape=jax.ShapeDtypeStruct((B, N, out_f), jnp.float32),
        grid_spec=pltpu.PrefetchScalarGridSpec(
            num_scalar_prefetch=0,
            grid=(B // Bt,),
            in_specs=in_specs,
            out_specs=out_specs,
            scratch_shapes=[
                pltpu.VMEM((H + 2, W + 2, hid), jnp.float32),   # padded image
                pltpu.VMEM((Bt * N, hid), jnp.float32),         # token buffer
            ],
        ),
        compiler_params=pltpu.CompilerParams(
            dimension_semantics=("parallel",)),
    )(xb, *ordered)


def init_params(key, C, hid, out_f):
    ks = jax.random.split(key, 18)
    p = {}
    p["w1"] = 0.2 * jax.random.normal(ks[0], (C, hid), jnp.float32)
    p["b1"] = 0.05 * jax.random.normal(ks[1], (1, hid), jnp.float32)
    p["g0"] = 1.0 + 0.1 * jax.random.normal(ks[2], (1, hid), jnp.float32)
    p["be0"] = 0.05 * jax.random.normal(ks[3], (1, hid), jnp.float32)

    # depth_conv1: torch weight (hid, 1, 3, 3), groups = hid
    p["dw1_torch"] = 0.2 * jax.random.normal(ks[4], (hid, 1, 3, 3), jnp.float32)
    p["dw1b"] = 0.05 * jax.random.normal(ks[5], (1, hid), jnp.float32)
    p["g1"] = 1.0 + 0.1 * jax.random.normal(ks[6], (1, hid), jnp.float32)
    p["be1"] = 0.05 * jax.random.normal(ks[7], (1, hid), jnp.float32)

    # depth_conv2: torch weight (hid, 4, 3, 3), groups = hid // 4
    p["dw2_torch"] = 0.2 * jax.random.normal(ks[8], (hid, 4, 3, 3), jnp.float32)
    p["dw2b"] = 0.05 * jax.random.normal(ks[9], (1, hid), jnp.float32)
    p["g2"] = 1.0 + 0.1 * jax.random.normal(ks[10], (1, hid), jnp.float32)
    p["be2"] = 0.05 * jax.random.normal(ks[11], (1, hid), jnp.float32)
    p["g3"] = 1.0 + 0.1 * jax.random.normal(ks[12], (1, hid), jnp.float32)
    p["be3"] = 0.05 * jax.random.normal(ks[13], (1, hid), jnp.float32)

    p["w2"] = 0.2 * jax.random.normal(ks[14], (hid, out_f), jnp.float32)
    p["b2"] = 0.05 * jax.random.normal(ks[15], (1, out_f), jnp.float32)
    p["g4"] = 1.0 + 0.1 * jax.random.normal(ks[16], (1, out_f), jnp.float32)
    p["be4"] = 0.05 * jax.random.normal(ks[17], (1, out_f), jnp.float32)
    return p


def reference(x, params, H, W):
    """Pure-JAX (XLA) reference mirroring the PyTorch forward, channels-last."""
    B, N, C = x.shape
    hid = params["w1"].shape[1]

    def ln(v, g, b):
        mu = v.mean(-1, keepdims=True)
        var = ((v - mu) ** 2).mean(-1, keepdims=True)
        return (v - mu) / jnp.sqrt(var + _EPS) * g + b

    h = x @ params["w1"] + params["b1"]
    h = ln(h, params["g0"], params["be0"])
    h = jnp.maximum(h, 0.0)
    img = h.reshape(B, H, W, hid)

    w1c = jnp.transpose(params["dw1_torch"], (2, 3, 1, 0))   # (3,3,1,hid) HWIO
    x1 = jax.lax.conv_general_dilated(
        img, w1c, window_strides=(1, 1), padding="SAME",
        dimension_numbers=("NHWC", "HWIO", "NHWC"), feature_group_count=hid)
    x1 = x1 + params["dw1b"] + img
    x1 = ln(x1, params["g1"], params["be1"])

    w2c = jnp.transpose(params["dw2_torch"], (2, 3, 1, 0))   # (3,3,4,hid) HWIO
    x2 = jax.lax.conv_general_dilated(
        x1, w2c, window_strides=(1, 1), padding="SAME",
        dimension_numbers=("NHWC", "HWIO", "NHWC"), feature_group_count=hid // 4)
    x2 = x2 + params["dw2b"] + x1
    x2 = ln(x2, params["g2"], params["be2"])
    x2 = x2 + img
    x2 = ln(x2, params["g3"], params["be3"])
    x2 = jnp.maximum(x2, 0.0).reshape(B, N, hid)

    y = x2 @ params["w2"] + params["b2"]
    y = ln(y, params["g4"], params["be4"])
    return jnp.maximum(y, 0.0)


if __name__ == "__main__":
    # The forward implies hidden_features = 2*C (reshape to 2*C channels).
    # Lane/sublane-friendly demo: hid = 128 (one lane tile), W = 8, and a
    # batch-blocked grid (Bt = 2, grid = (2,)) so the pipeline has >1 step.
    B, C, H, W = 4, 64, 8, 8
    N = H * W
    hid = 2 * C
    out_f = C

    key = jax.random.PRNGKey(0)
    kx, kp = jax.random.split(key)
    x = jax.random.normal(kx, (B, N, C), jnp.float32)
    params = init_params(kp, C, hid, out_f)

    out = jax.block_until_ready(mlp_enhance_dw(x, params, H, W, block_b=2))
    ref = jax.block_until_ready(reference(x, params, H, W))

    # fc1/fc2 run with bf16 MXU inputs inside the kernel (and x is pre-cast to
    # bf16), so compare against the f32 reference with a bf16-level tolerance.
    np.testing.assert_allclose(np.asarray(out), np.asarray(ref),
                               atol=5e-2, rtol=5e-2)
    print("KERNEL_OK")
</pallas_src>

<mosaic_0001>
module attributes {stable_mosaic.version = 11 : i64} {
  func.func @kernel(%arg0: i32, %arg1: memref<2x64x64xbf16, #tpu.memory_space<vmem>>, %arg2: memref<64x128xbf16, #tpu.memory_space<vmem>>, %arg3: memref<1x128xf32, #tpu.memory_space<vmem>>, %arg4: memref<1x128xf32, #tpu.memory_space<vmem>>, %arg5: memref<1x128xf32, #tpu.memory_space<vmem>>, %arg6: memref<3x3x128xf32, #tpu.memory_space<vmem>>, %arg7: memref<1x128xf32, #tpu.memory_space<vmem>>, %arg8: memref<1x128xf32, #tpu.memory_space<vmem>>, %arg9: memref<1x128xf32, #tpu.memory_space<vmem>>, %arg10: memref<9x7x128xf32, #tpu.memory_space<vmem>>, %arg11: memref<1x128xf32, #tpu.memory_space<vmem>>, %arg12: memref<1x128xf32, #tpu.memory_space<vmem>>, %arg13: memref<1x128xf32, #tpu.memory_space<vmem>>, %arg14: memref<1x128xf32, #tpu.memory_space<vmem>>, %arg15: memref<1x128xf32, #tpu.memory_space<vmem>>, %arg16: memref<128x64xbf16, #tpu.memory_space<vmem>>, %arg17: memref<1x64xf32, #tpu.memory_space<vmem>>, %arg18: memref<1x64xf32, #tpu.memory_space<vmem>>, %arg19: memref<1x64xf32, #tpu.memory_space<vmem>>, %arg20: memref<2x64x64xf32, #tpu.memory_space<vmem>>, %arg21: memref<10x10x128xf32, #tpu.memory_space<vmem>>, %arg22: memref<128x128xf32, #tpu.memory_space<vmem>>) attributes {dimension_semantics = [#tpu.dimension_semantics<parallel>], iteration_bounds = array<i64: 2>, scalar_prefetch = 0 : i64, scratch_operands = 2 : i64, tpu.core_type = #tpu.core_type<tc>, window_params = [{transform_indices = @transform_0, window_bounds = array<i64: 2, 64, 64>}, {pipeline_mode = #tpu.pipeline_mode<synchronous>, transform_indices = @transform_1, window_bounds = array<i64: 64, 128>}, {pipeline_mode = #tpu.pipeline_mode<synchronous>, transform_indices = @transform_2, window_bounds = array<i64: 1, 128>}, {pipeline_mode = #tpu.pipeline_mode<synchronous>, transform_indices = @transform_3, window_bounds = array<i64: 1, 128>}, {pipeline_mode = #tpu.pipeline_mode<synchronous>, transform_indices = @transform_4, window_bounds = array<i64: 1, 128>}, {pipeline_mode = #tpu.pipeline_mode<synchronous>, transform_indices = @transform_5, window_bounds = array<i64: 3, 3, 128>}, {pipeline_mode = #tpu.pipeline_mode<synchronous>, transform_indices = @transform_6, window_bounds = array<i64: 1, 128>}, {pipeline_mode = #tpu.pipeline_mode<synchronous>, transform_indices = @transform_7, window_bounds = array<i64: 1, 128>}, {pipeline_mode = #tpu.pipeline_mode<synchronous>, transform_indices = @transform_8, window_bounds = array<i64: 1, 128>}, {pipeline_mode = #tpu.pipeline_mode<synchronous>, transform_indices = @transform_9, window_bounds = array<i64: 9, 7, 128>}, {pipeline_mode = #tpu.pipeline_mode<synchronous>, transform_indices = @transform_10, window_bounds = array<i64: 1, 128>}, {pipeline_mode = #tpu.pipeline_mode<synchronous>, transform_indices = @transform_11, window_bounds = array<i64: 1, 128>}, {pipeline_mode = #tpu.pipeline_mode<synchronous>, transform_indices = @transform_12, window_bounds = array<i64: 1, 128>}, {pipeline_mode = #tpu.pipeline_mode<synchronous>, transform_indices = @transform_13, window_bounds = array<i64: 1, 128>}, {pipeline_mode = #tpu.pipeline_mode<synchronous>, transform_indices = @transform_14, window_bounds = array<i64: 1, 128>}, {pipeline_mode = #tpu.pipeline_mode<synchronous>, transform_indices = @transform_15, window_bounds = array<i64: 128, 64>}, {pipeline_mode = #tpu.pipeline_mode<synchronous>, transform_indices = @transform_16, window_bounds = array<i64: 1, 64>}, {pipeline_mode = #tpu.pipeline_mode<synchronous>, transform_indices = @transform_17, window_bounds = array<i64: 1, 64>}, {pipeline_mode = #tpu.pipeline_mode<synchronous>, transform_indices = @transform_18, window_bounds = array<i64: 1, 64>}, {transform_indices = @transform_19, window_bounds = array<i64: 2, 64, 64>}]} {
    %c0 = arith.constant 0 : index
    %c0_0 = arith.constant 0 : index
    %c0_1 = arith.constant 0 : index
    %0 = vector.load %arg1[%c0, %c0_0, %c0_1] : memref<2x64x64xbf16, #tpu.memory_space<vmem>>, vector<2x64x64xbf16>
    %1 = vector.shape_cast %0 : vector<2x64x64xbf16> to vector<128x64xbf16>
    %c0_2 = arith.constant 0 : index
    %c0_3 = arith.constant 0 : index
    %2 = vector.load %arg2[%c0_2, %c0_3] : memref<64x128xbf16, #tpu.memory_space<vmem>>, vector<64x128xbf16>
    %cst = arith.constant dense<0.000000e+00> : vector<128x128xf32>
    %3 = tpu.matmul %1, %2, %cst {dimension_numbers = #tpu.dot_dimension_numbers<[1], [0], [0], [1], [0, 0, 1, 1], [], []>} : vector<128x64xbf16>, vector<64x128xbf16>, vector<128x128xf32> -> vector<128x128xf32>
    %c0_4 = arith.constant 0 : index
    %c0_5 = arith.constant 0 : index
    %4 = vector.load %arg3[%c0_4, %c0_5] : memref<1x128xf32, #tpu.memory_space<vmem>>, vector<1x128xf32>
    %5 = vector.broadcast %4 : vector<1x128xf32> to vector<128x128xf32>
    %6 = arith.addf %3, %5 : vector<128x128xf32>
    %c0_6 = arith.constant 0 : index
    %c0_7 = arith.constant 0 : index
    %7 = vector.load %arg4[%c0_6, %c0_7] : memref<1x128xf32, #tpu.memory_space<vmem>>, vector<1x128xf32>
    %c0_8 = arith.constant 0 : index
    %c0_9 = arith.constant 0 : index
    %8 = vector.load %arg5[%c0_8, %c0_9] : memref<1x128xf32, #tpu.memory_space<vmem>>, vector<1x128xf32>
    %cst_10 = arith.constant dense<0.000000e+00> : vector<128xf32>
    %9 = vector.multi_reduction <add>, %6, %cst_10 [1] : vector<128x128xf32> to vector<128xf32>
    %10 = vector.shape_cast %9 : vector<128xf32> to vector<128x1xf32>
    %cst_11 = arith.constant 1.280000e+02 : f32
    %11 = vector.broadcast %cst_11 : f32 to vector<128x1xf32>
    %12 = arith.divf %10, %11 : vector<128x1xf32>
    %13 = arith.mulf %6, %6 : vector<128x128xf32>
    %cst_12 = arith.constant dense<0.000000e+00> : vector<128xf32>
    %14 = vector.multi_reduction <add>, %13, %cst_12 [1] : vector<128x128xf32> to vector<128xf32>
    %15 = vector.shape_cast %14 : vector<128xf32> to vector<128x1xf32>
    %cst_13 = arith.constant 1.280000e+02 : f32
    %16 = vector.broadcast %cst_13 : f32 to vector<128x1xf32>
    %17 = arith.divf %15, %16 : vector<128x1xf32>
    %18 = arith.mulf %12, %12 : vector<128x1xf32>
    %19 = arith.subf %17, %18 : vector<128x1xf32>
    %cst_14 = arith.constant 0.000000e+00 : f32
    %20 = vector.broadcast %cst_14 : f32 to vector<128x1xf32>
    %21 = arith.maximumf %19, %20 : vector<128x1xf32>
    %22 = vector.broadcast %12 : vector<128x1xf32> to vector<128x128xf32>
    %23 = arith.subf %6, %22 : vector<128x128xf32>
    %cst_15 = arith.constant 9.99999974E-6 : f32
    %24 = vector.broadcast %cst_15 : f32 to vector<128x1xf32>
    %25 = arith.addf %21, %24 : vector<128x1xf32>
    %26 = math.rsqrt %25 : vector<128x1xf32>
    %27 = vector.broadcast %26 : vector<128x1xf32> to vector<128x128xf32>
    %28 = arith.mulf %23, %27 : vector<128x128xf32>
    %29 = vector.broadcast %7 : vector<1x128xf32> to vector<128x128xf32>
    %30 = arith.mulf %28, %29 : vector<128x128xf32>
    %31 = vector.broadcast %8 : vector<1x128xf32> to vector<128x128xf32>
    %32 = arith.addf %30, %31 : vector<128x128xf32>
    %cst_16 = arith.constant 0.000000e+00 : f32
    %33 = vector.broadcast %cst_16 : f32 to vector<128x128xf32>
    %34 = arith.maximumf %32, %33 : vector<128x128xf32>
    %c0_17 = arith.constant 0 : index
    %c0_18 = arith.constant 0 : index
    %35 = vector.load %arg22[%c0_17, %c0_18] : memref<128x128xf32, #tpu.memory_space<vmem>>, vector<128x128xf32>
    tpu.vector_store %arg22[%c0_17, %c0_18], %34 {strides = array<i32>} : memref<128x128xf32, #tpu.memory_space<vmem>>, vector<128x128xf32>,
    %cst_19 = arith.constant 0.000000e+00 : f32
    %36 = vector.broadcast %cst_19 : f32 to vector<1x10x128xf32>
    %cst_20 = arith.constant 0.000000e+00 : f32
    %37 = vector.broadcast %cst_20 : f32 to vector<10x1x128xf32>
    %c0_21 = arith.constant 0 : index
    %c0_22 = arith.constant 0 : index
    %c0_23 = arith.constant 0 : index
    %38 = vector.load %arg21[%c0_21, %c0_22, %c0_23] : memref<10x10x128xf32, #tpu.memory_space<vmem>>, vector<1x10x128xf32>
    tpu.vector_store %arg21[%c0_21, %c0_22, %c0_23], %36 {strides = array<i32>} : memref<10x10x128xf32, #tpu.memory_space<vmem>>, vector<1x10x128xf32>,
    %c9 = arith.constant 9 : index
    %c0_24 = arith.constant 0 : index
    %c0_25 = arith.constant 0 : index
    %39 = vector.load %arg21[%c9, %c0_24, %c0_25] : memref<10x10x128xf32, #tpu.memory_space<vmem>>, vector<1x10x128xf32>
    tpu.vector_store %arg21[%c9, %c0_24, %c0_25], %36 {strides = array<i32>} : memref<10x10x128xf32, #tpu.memory_space<vmem>>, vector<1x10x128xf32>,
    %c0_26 = arith.constant 0 : index
    %c0_27 = arith.constant 0 : index
    %c0_28 = arith.constant 0 : index
    %40 = vector.load %arg21[%c0_26, %c0_27, %c0_28] : memref<10x10x128xf32, #tpu.memory_space<vmem>>, vector<10x1x128xf32>
    tpu.vector_store %arg21[%c0_26, %c0_27, %c0_28], %37 {strides = array<i32>} : memref<10x10x128xf32, #tpu.memory_space<vmem>>, vector<10x1x128xf32>,
    %c0_29 = arith.constant 0 : index
    %c9_30 = arith.constant 9 : index
    %c0_31 = arith.constant 0 : index
    %41 = vector.load %arg21[%c0_29, %c9_30, %c0_31] : memref<10x10x128xf32, #tpu.memory_space<vmem>>, vector<10x1x128xf32>
    tpu.vector_store %arg21[%c0_29, %c9_30, %c0_31], %37 {strides = array<i32>} : memref<10x10x128xf32, #tpu.memory_space<vmem>>, vector<10x1x128xf32>,
    %c0_32 = arith.constant 0 : index
    %c0_33 = arith.constant 0 : index
    %c0_34 = arith.constant 0 : index
    %42 = vector.load %arg6[%c0_32, %c0_33, %c0_34] : memref<3x3x128xf32, #tpu.memory_space<vmem>>, vector<3x3x128xf32>
    %c0_35 = arith.constant 0 : index
    %c0_36 = arith.constant 0 : index
    %c0_37 = arith.constant 0 : index
    %43 = vector.load %arg10[%c0_35, %c0_36, %c0_37] : memref<9x7x128xf32, #tpu.memory_space<vmem>>, vector<9x7x128xf32>
    %c0_38 = arith.constant 0 : index
    %c0_39 = arith.constant 0 : index
    %44 = vector.load %arg22[%c0_38, %c0_39] : memref<128x128xf32, #tpu.memory_space<vmem>>, vector<64x128xf32>
    %45 = vector.shape_cast %44 : vector<64x128xf32> to vector<8x8x128xf32>
    %c1 = arith.constant 1 : index
    %c1_40 = arith.constant 1 : index
    %c0_41 = arith.constant 0 : index
    %46 = vector.load %arg21[%c1, %c1_40, %c0_41] : memref<10x10x128xf32, #tpu.memory_space<vmem>>, vector<8x8x128xf32>
    tpu.vector_store %arg21[%c1, %c1_40, %c0_41], %45 {strides = array<i32>} : memref<10x10x128xf32, #tpu.memory_space<vmem>>, vector<8x8x128xf32>,
    %cst_42 = arith.constant 0.000000e+00 : f32
    %47 = vector.broadcast %cst_42 : f32 to vector<8x8x128xf32>
    %cst_43 = arith.constant 0.000000e+00 : f32
    %48 = vector.broadcast %cst_43 : f32 to vector<8x8x128xf32>
    %cst_44 = arith.constant 0.000000e+00 : f32
    %49 = vector.broadcast %cst_44 : f32 to vector<8x8x128xf32>
    %c0_45 = arith.constant 0 : index
    %c0_46 = arith.constant 0 : index
    %c0_47 = arith.constant 0 : index
    %50 = vector.load %arg21[%c0_45, %c0_46, %c0_47] : memref<10x10x128xf32, #tpu.memory_space<vmem>>, vector<10x8x128xf32>
    %51 = vector.extract_strided_slice %50 {offsets = [0, 0, 0], sizes = [8, 8, 128], strides = [1, 1, 1]} : vector<10x8x128xf32> to vector<8x8x128xf32>
    %52 = vector.extract_strided_slice %42 {offsets = [0, 0, 0], sizes = [1, 1, 128], strides = [1, 1, 1]} : vector<3x3x128xf32> to vector<1x1x128xf32>
    %53 = vector.broadcast %52 : vector<1x1x128xf32> to vector<8x8x128xf32>
    %54 = arith.mulf %51, %53 : vector<8x8x128xf32>
    %55 = arith.addf %47, %54 : vector<8x8x128xf32>
    %56 = vector.extract_strided_slice %50 {offsets = [1, 0, 0], sizes = [8, 8, 128], strides = [1, 1, 1]} : vector<10x8x128xf32> to vector<8x8x128xf32>
    %57 = vector.extract_strided_slice %42 {offsets = [1, 0, 0], sizes = [1, 1, 128], strides = [1, 1, 1]} : vector<3x3x128xf32> to vector<1x1x128xf32>
    %58 = vector.broadcast %57 : vector<1x1x128xf32> to vector<8x8x128xf32>
    %59 = arith.mulf %56, %58 : vector<8x8x128xf32>
    %60 = arith.addf %48, %59 : vector<8x8x128xf32>
    %61 = vector.extract_strided_slice %50 {offsets = [2, 0, 0], sizes = [8, 8, 128], strides = [1, 1, 1]} : vector<10x8x128xf32> to vector<8x8x128xf32>
    %62 = vector.extract_strided_slice %42 {offsets = [2, 0, 0], sizes = [1, 1, 128], strides = [1, 1, 1]} : vector<3x3x128xf32> to vector<1x1x128xf32>
    %63 = vector.broadcast %62 : vector<1x1x128xf32> to vector<8x8x128xf32>
    %64 = arith.mulf %61, %63 : vector<8x8x128xf32>
    %65 = arith.addf %49, %64 : vector<8x8x128xf32>
    %c0_48 = arith.constant 0 : index
    %c1_49 = arith.constant 1 : index
    %c0_50 = arith.constant 0 : index
    %66 = vector.load %arg21[%c0_48, %c1_49, %c0_50] : memref<10x10x128xf32, #tpu.memory_space<vmem>>, vector<10x8x128xf32>
    %67 = vector.extract_strided_slice %66 {offsets = [0, 0, 0], sizes = [8, 8, 128], strides = [1, 1, 1]} : vector<10x8x128xf32> to vector<8x8x128xf32>
    %68 = vector.extract_strided_slice %42 {offsets = [0, 1, 0], sizes = [1, 1, 128], strides = [1, 1, 1]} : vector<3x3x128xf32> to vector<1x1x128xf32>
    %69 = vector.broadcast %68 : vector<1x1x128xf32> to vector<8x8x128xf32>
    %70 = arith.mulf %67, %69 : vector<8x8x128xf32>
    %71 = arith.addf %55, %70 : vector<8x8x128xf32>
    %72 = vector.extract_strided_slice %66 {offsets = [1, 0, 0], sizes = [8, 8, 128], strides = [1, 1, 1]} : vector<10x8x128xf32> to vector<8x8x128xf32>
    %73 = vector.extract_strided_slice %42 {offsets = [1, 1, 0], sizes = [1, 1, 128], strides = [1, 1, 1]} : vector<3x3x128xf32> to vector<1x1x128xf32>
    %74 = vector.broadcast %73 : vector<1x1x128xf32> to vector<8x8x128xf32>
    %75 = arith.mulf %72, %74 : vector<8x8x128xf32>
    %76 = arith.addf %60, %75 : vector<8x8x128xf32>
    %77 = vector.extract_strided_slice %66 {offsets = [2, 0, 0], sizes = [8, 8, 128], strides = [1, 1, 1]} : vector<10x8x128xf32> to vector<8x8x128xf32>
    %78 = vector.extract_strided_slice %42 {offsets = [2, 1, 0], sizes = [1, 1, 128], strides = [1, 1, 1]} : vector<3x3x128xf32> to vector<1x1x128xf32>
    %79 = vector.broadcast %78 : vector<1x1x128xf32> to vector<8x8x128xf32>
    %80 = arith.mulf %77, %79 : vector<8x8x128xf32>
    %81 = arith.addf %65, %80 : vector<8x8x128xf32>
    %c0_51 = arith.constant 0 : index
    %c2 = arith.constant 2 : index
    %c0_52 = arith.constant 0 : index
    %82 = vector.load %arg21[%c0_51, %c2, %c0_52] : memref<10x10x128xf32, #tpu.memory_space<vmem>>, vector<10x8x128xf32>
    %83 = vector.extract_strided_slice %82 {offsets = [0, 0, 0], sizes = [8, 8, 128], strides = [1, 1, 1]} : vector<10x8x128xf32> to vector<8x8x128xf32>
    %84 = vector.extract_strided_slice %42 {offsets = [0, 2, 0], sizes = [1, 1, 128], strides = [1, 1, 1]} : vector<3x3x128xf32> to vector<1x1x128xf32>
    %85 = vector.broadcast %84 : vector<1x1x128xf32> to vector<8x8x128xf32>
    %86 = arith.mulf %83, %85 : vector<8x8x128xf32>
    %87 = arith.addf %71, %86 : vector<8x8x128xf32>
    %88 = vector.extract_strided_slice %82 {offsets = [1, 0, 0], sizes = [8, 8, 128], strides = [1, 1, 1]} : vector<10x8x128xf32> to vector<8x8x128xf32>
    %89 = vector.extract_strided_slice %42 {offsets = [1, 2, 0], sizes = [1, 1, 128], strides = [1, 1, 1]} : vector<3x3x128xf32> to vector<1x1x128xf32>
    %90 = vector.broadcast %89 : vector<1x1x128xf32> to vector<8x8x128xf32>
    %91 = arith.mulf %88, %90 : vector<8x8x128xf32>
    %92 = arith.addf %76, %91 : vector<8x8x128xf32>
    %93 = vector.extract_strided_slice %82 {offsets = [2, 0, 0], sizes = [8, 8, 128], strides = [1, 1, 1]} : vector<10x8x128xf32> to vector<8x8x128xf32>
    %94 = vector.extract_strided_slice %42 {offsets = [2, 2, 0], sizes = [1, 1, 128], strides = [1, 1, 1]} : vector<3x3x128xf32> to vector<1x1x128xf32>
    %95 = vector.broadcast %94 : vector<1x1x128xf32> to vector<8x8x128xf32>
    %96 = arith.mulf %93, %95 : vector<8x8x128xf32>
    %97 = arith.addf %81, %96 : vector<8x8x128xf32>
    %98 = arith.addf %87, %92 : vector<8x8x128xf32>
    %99 = arith.addf %98, %97 : vector<8x8x128xf32>
    %c0_53 = arith.constant 0 : index
    %c0_54 = arith.constant 0 : index
    %100 = vector.load %arg7[%c0_53, %c0_54] : memref<1x128xf32, #tpu.memory_space<vmem>>, vector<1x128xf32>
    %101 = vector.shape_cast %100 : vector<1x128xf32> to vector<1x1x128xf32>
    %102 = vector.broadcast %101 : vector<1x1x128xf32> to vector<8x8x128xf32>
    %103 = arith.addf %99, %102 : vector<8x8x128xf32>
    %104 = arith.addf %103, %45 : vector<8x8x128xf32>
    %c0_55 = arith.constant 0 : index
    %c0_56 = arith.constant 0 : index
    %105 = vector.load %arg8[%c0_55, %c0_56] : memref<1x128xf32, #tpu.memory_space<vmem>>, vector<1x128xf32>
    %c0_57 = arith.constant 0 : index
    %c0_58 = arith.constant 0 : index
    %106 = vector.load %arg9[%c0_57, %c0_58] : memref<1x128xf32, #tpu.memory_space<vmem>>, vector<1x128xf32>
    %cst_59 = arith.constant dense<0.000000e+00> : vector<8x8xf32>
    %107 = vector.multi_reduction <add>, %104, %cst_59 [2] : vector<8x8x128xf32> to vector<8x8xf32>
    %108 = vector.shape_cast %107 : vector<8x8xf32> to vector<8x8x1xf32>
    %cst_60 = arith.constant 1.280000e+02 : f32
    %109 = vector.broadcast %cst_60 : f32 to vector<8x8x1xf32>
    %110 = arith.divf %108, %109 : vector<8x8x1xf32>
    %111 = arith.mulf %104, %104 : vector<8x8x128xf32>
    %cst_61 = arith.constant dense<0.000000e+00> : vector<8x8xf32>
    %112 = vector.multi_reduction <add>, %111, %cst_61 [2] : vector<8x8x128xf32> to vector<8x8xf32>
    %113 = vector.shape_cast %112 : vector<8x8xf32> to vector<8x8x1xf32>
    %cst_62 = arith.constant 1.280000e+02 : f32
    %114 = vector.broadcast %cst_62 : f32 to vector<8x8x1xf32>
    %115 = arith.divf %113, %114 : vector<8x8x1xf32>
    %116 = arith.mulf %110, %110 : vector<8x8x1xf32>
    %117 = arith.subf %115, %116 : vector<8x8x1xf32>
    %cst_63 = arith.constant 0.000000e+00 : f32
    %118 = vector.broadcast %cst_63 : f32 to vector<8x8x1xf32>
    %119 = arith.maximumf %117, %118 : vector<8x8x1xf32>
    %120 = vector.broadcast %110 : vector<8x8x1xf32> to vector<8x8x128xf32>
    %121 = arith.subf %104, %120 : vector<8x8x128xf32>
    %cst_64 = arith.constant 9.99999974E-6 : f32
    %122 = vector.broadcast %cst_64 : f32 to vector<8x8x1xf32>
    %123 = arith.addf %119, %122 : vector<8x8x1xf32>
    %124 = math.rsqrt %123 : vector<8x8x1xf32>
    %125 = vector.broadcast %124 : vector<8x8x1xf32> to vector<8x8x128xf32>
    %126 = arith.mulf %121, %125 : vector<8x8x128xf32>
    %127 = vector.shape_cast %105 : vector<1x128xf32> to vector<1x1x128xf32>
    %128 = vector.broadcast %127 : vector<1x1x128xf32> to vector<8x8x128xf32>
    %129 = arith.mulf %126, %128 : vector<8x8x128xf32>
    %130 = vector.shape_cast %106 : vector<1x128xf32> to vector<1x1x128xf32>
    %131 = vector.broadcast %130 : vector<1x1x128xf32> to vector<8x8x128xf32>
    %132 = arith.addf %129, %131 : vector<8x8x128xf32>
    %c1_65 = arith.constant 1 : index
    %c1_66 = arith.constant 1 : index
    %c0_67 = arith.constant 0 : index
    %133 = vector.load %arg21[%c1_65, %c1_66, %c0_67] : memref<10x10x128xf32, #tpu.memory_space<vmem>>, vector<8x8x128xf32>
    tpu.vector_store %arg21[%c1_65, %c1_66, %c0_67], %132 {strides = array<i32>} : memref<10x10x128xf32, #tpu.memory_space<vmem>>, vector<8x8x128xf32>,
    %cst_68 = arith.constant 0.000000e+00 : f32
    %134 = vector.broadcast %cst_68 : f32 to vector<8x8x128xf32>
    %cst_69 = arith.constant 0.000000e+00 : f32
    %135 = vector.broadcast %cst_69 : f32 to vector<8x8x128xf32>
    %cst_70 = arith.constant 0.000000e+00 : f32
    %136 = vector.broadcast %cst_70 : f32 to vector<8x8x128xf32>
    %c0_71 = arith.constant 0 : index
    %c0_72 = arith.constant 0 : index
    %c0_73 = arith.constant 0 : index
    %137 = vector.load %arg21[%c0_71, %c0_72, %c0_73] : memref<10x10x128xf32, #tpu.memory_space<vmem>>, vector<10x8x128xf32>
    %c3_i32 = arith.constant 3 : i32
    %138 = tpu.dynamic_rotate %137 by %c3_i32 dim 2 : vector<10x8x128xf32>, i32 -> vector<10x8x128xf32>
    %139 = vector.extract_strided_slice %138 {offsets = [0, 0, 0], sizes = [8, 8, 128], strides = [1, 1, 1]} : vector<10x8x128xf32> to vector<8x8x128xf32>
    %140 = vector.extract_strided_slice %43 {offsets = [0, 0, 0], sizes = [1, 1, 128], strides = [1, 1, 1]} : vector<9x7x128xf32> to vector<1x1x128xf32>
    %141 = vector.broadcast %140 : vector<1x1x128xf32> to vector<8x8x128xf32>
    %142 = arith.mulf %139, %141 : vector<8x8x128xf32>
    %143 = arith.addf %134, %142 : vector<8x8x128xf32>
    %144 = vector.extract_strided_slice %138 {offsets = [1, 0, 0], sizes = [8, 8, 128], strides = [1, 1, 1]} : vector<10x8x128xf32> to vector<8x8x128xf32>
    %145 = vector.extract_strided_slice %43 {offsets = [3, 0, 0], sizes = [1, 1, 128], strides = [1, 1, 1]} : vector<9x7x128xf32> to vector<1x1x128xf32>
    %146 = vector.broadcast %145 : vector<1x1x128xf32> to vector<8x8x128xf32>
    %147 = arith.mulf %144, %146 : vector<8x8x128xf32>
    %148 = arith.addf %135, %147 : vector<8x8x128xf32>
    %149 = vector.extract_strided_slice %138 {offsets = [2, 0, 0], sizes = [8, 8, 128], strides = [1, 1, 1]} : vector<10x8x128xf32> to vector<8x8x128xf32>
    %150 = vector.extract_strided_slice %43 {offsets = [6, 0, 0], sizes = [1, 1, 128], strides = [1, 1, 1]} : vector<9x7x128xf32> to vector<1x1x128xf32>
    %151 = vector.broadcast %150 : vector<1x1x128xf32> to vector<8x8x128xf32>
    %152 = arith.mulf %149, %151 : vector<8x8x128xf32>
    %153 = arith.addf %136, %152 : vector<8x8x128xf32>
    %c2_i32 = arith.constant 2 : i32
    %154 = tpu.dynamic_rotate %137 by %c2_i32 dim 2 : vector<10x8x128xf32>, i32 -> vector<10x8x128xf32>
    %155 = vector.extract_strided_slice %154 {offsets = [0, 0, 0], sizes = [8, 8, 128], strides = [1, 1, 1]} : vector<10x8x128xf32> to vector<8x8x128xf32>
    %156 = vector.extract_strided_slice %43 {offsets = [0, 1, 0], sizes = [1, 1, 128], strides = [1, 1, 1]} : vector<9x7x128xf32> to vector<1x1x128xf32>
    %157 = vector.broadcast %156 : vector<1x1x128xf32> to vector<8x8x128xf32>
    %158 = arith.mulf %155, %157 : vector<8x8x128xf32>
    %159 = arith.addf %143, %158 : vector<8x8x128xf32>
    %160 = vector.extract_strided_slice %154 {offsets = [1, 0, 0], sizes = [8, 8, 128], strides = [1, 1, 1]} : vector<10x8x128xf32> to vector<8x8x128xf32>
    %161 = vector.extract_strided_slice %43 {offsets = [3, 1, 0], sizes = [1, 1, 128], strides = [1, 1, 1]} : vector<9x7x128xf32> to vector<1x1x128xf32>
    %162 = vector.broadcast %161 : vector<1x1x128xf32> to vector<8x8x128xf32>
    %163 = arith.mulf %160, %162 : vector<8x8x128xf32>
    %164 = arith.addf %148, %163 : vector<8x8x128xf32>
    %165 = vector.extract_strided_slice %154 {offsets = [2, 0, 0], sizes = [8, 8, 128], strides = [1, 1, 1]} : vector<10x8x128xf32> to vector<8x8x128xf32>
    %166 = vector.extract_strided_slice %43 {offsets = [6, 1, 0], sizes = [1, 1, 128], strides = [1, 1, 1]} : vector<9x7x128xf32> to vector<1x1x128xf32>
    %167 = vector.broadcast %166 : vector<1x1x128xf32> to vector<8x8x128xf32>
    %168 = arith.mulf %165, %167 : vector<8x8x128xf32>
    %169 = arith.addf %153, %168 : vector<8x8x128xf32>
    %c1_i32 = arith.constant 1 : i32
    %170 = tpu.dynamic_rotate %137 by %c1_i32 dim 2 : vector<10x8x128xf32>, i32 -> vector<10x8x128xf32>
    %171 = vector.extract_strided_slice %170 {offsets = [0, 0, 0], sizes = [8, 8, 128], strides = [1, 1, 1]} : vector<10x8x128xf32> to vector<8x8x128xf32>
    %172 = vector.extract_strided_slice %43 {offsets = [0, 2, 0], sizes = [1, 1, 128], strides = [1, 1, 1]} : vector<9x7x128xf32> to vector<1x1x128xf32>
    %173 = vector.broadcast %172 : vector<1x1x128xf32> to vector<8x8x128xf32>
    %174 = arith.mulf %171, %173 : vector<8x8x128xf32>
    %175 = arith.addf %159, %174 : vector<8x8x128xf32>
    %176 = vector.extract_strided_slice %170 {offsets = [1, 0, 0], sizes = [8, 8, 128], strides = [1, 1, 1]} : vector<10x8x128xf32> to vector<8x8x128xf32>
    %177 = vector.extract_strided_slice %43 {offsets = [3, 2, 0], sizes = [1, 1, 128], strides = [1, 1, 1]} : vector<9x7x128xf32> to vector<1x1x128xf32>
    %178 = vector.broadcast %177 : vector<1x1x128xf32> to vector<8x8x128xf32>
    %179 = arith.mulf %176, %178 : vector<8x8x128xf32>
    %180 = arith.addf %164, %179 : vector<8x8x128xf32>
    %181 = vector.extract_strided_slice %170 {offsets = [2, 0, 0], sizes = [8, 8, 128], strides = [1, 1, 1]} : vector<10x8x128xf32> to vector<8x8x128xf32>
    %182 = vector.extract_strided_slice %43 {offsets = [6, 2, 0], sizes = [1, 1, 128], strides = [1, 1, 1]} : vector<9x7x128xf32> to vector<1x1x128xf32>
    %183 = vector.broadcast %182 : vector<1x1x128xf32> to vector<8x8x128xf32>
    %184 = arith.mulf %181, %183 : vector<8x8x128xf32>
    %185 = arith.addf %169, %184 : vector<8x8x128xf32>
    %186 = vector.extract_strided_slice %137 {offsets = [0, 0, 0], sizes = [8, 8, 128], strides = [1, 1, 1]} : vector<10x8x128xf32> to vector<8x8x128xf32>
    %187 = vector.extract_strided_slice %43 {offsets = [0, 3, 0], sizes = [1, 1, 128], strides = [1, 1, 1]} : vector<9x7x128xf32> to vector<1x1x128xf32>
    %188 = vector.broadcast %187 : vector<1x1x128xf32> to vector<8x8x128xf32>
    %189 = arith.mulf %186, %188 : vector<8x8x128xf32>
    %190 = arith.addf %175, %189 : vector<8x8x128xf32>
    %191 = vector.extract_strided_slice %137 {offsets = [1, 0, 0], sizes = [8, 8, 128], strides = [1, 1, 1]} : vector<10x8x128xf32> to vector<8x8x128xf32>
    %192 = vector.extract_strided_slice %43 {offsets = [3, 3, 0], sizes = [1, 1, 128], strides = [1, 1, 1]} : vector<9x7x128xf32> to vector<1x1x128xf32>
    %193 = vector.broadcast %192 : vector<1x1x128xf32> to vector<8x8x128xf32>
    %194 = arith.mulf %191, %193 : vector<8x8x128xf32>
    %195 = arith.addf %180, %194 : vector<8x8x128xf32>
    %196 = vector.extract_strided_slice %137 {offsets = [2, 0, 0], sizes = [8, 8, 128], strides = [1, 1, 1]} : vector<10x8x128xf32> to vector<8x8x128xf32>
    %197 = vector.extract_strided_slice %43 {offsets = [6, 3, 0], sizes = [1, 1, 128], strides = [1, 1, 1]} : vector<9x7x128xf32> to vector<1x1x128xf32>
    %198 = vector.broadcast %197 : vector<1x1x128xf32> to vector<8x8x128xf32>
    %199 = arith.mulf %196, %198 : vector<8x8x128xf32>
    %200 = arith.addf %185, %199 : vector<8x8x128xf32>
    %c127_i32 = arith.constant 127 : i32
    %201 = tpu.dynamic_rotate %137 by %c127_i32 dim 2 : vector<10x8x128xf32>, i32 -> vector<10x8x128xf32>
    %202 = vector.extract_strided_slice %201 {offsets = [0, 0, 0], sizes = [8, 8, 128], strides = [1, 1, 1]} : vector<10x8x128xf32> to vector<8x8x128xf32>
    %203 = vector.extract_strided_slice %43 {offsets = [0, 4, 0], sizes = [1, 1, 128], strides = [1, 1, 1]} : vector<9x7x128xf32> to vector<1x1x128xf32>
    %204 = vector.broadcast %203 : vector<1x1x128xf32> to vector<8x8x128xf32>
    %205 = arith.mulf %202, %204 : vector<8x8x128xf32>
    %206 = arith.addf %190, %205 : vector<8x8x128xf32>
    %207 = vector.extract_strided_slice %201 {offsets = [1, 0, 0], sizes = [8, 8, 128], strides = [1, 1, 1]} : vector<10x8x128xf32> to vector<8x8x128xf32>
    %208 = vector.extract_strided_slice %43 {offsets = [3, 4, 0], sizes = [1, 1, 128], strides = [1, 1, 1]} : vector<9x7x128xf32> to vector<1x1x128xf32>
    %209 = vector.broadcast %208 : vector<1x1x128xf32> to vector<8x8x128xf32>
    %210 = arith.mulf %207, %209 : vector<8x8x128xf32>
    %211 = arith.addf %195, %210 : vector<8x8x128xf32>
    %212 = vector.extract_strided_slice %201 {offsets = [2, 0, 0], sizes = [8, 8, 128], strides = [1, 1, 1]} : vector<10x8x128xf32> to vector<8x8x128xf32>
    %213 = vector.extract_strided_slice %43 {offsets = [6, 4, 0], sizes = [1, 1, 128], strides = [1, 1, 1]} : vector<9x7x128xf32> to vector<1x1x128xf32>
    %214 = vector.broadcast %213 : vector<1x1x128xf32> to vector<8x8x128xf32>
    %215 = arith.mulf %212, %214 : vector<8x8x128xf32>
    %216 = arith.addf %200, %215 : vector<8x8x128xf32>
    %c126_i32 = arith.constant 126 : i32
    %217 = tpu.dynamic_rotate %137 by %c126_i32 dim 2 : vector<10x8x128xf32>, i32 -> vector<10x8x128xf32>
    %218 = vector.extract_strided_slice %217 {offsets = [0, 0, 0], sizes = [8, 8, 128], strides = [1, 1, 1]} : vector<10x8x128xf32> to vector<8x8x128xf32>
    %219 = vector.extract_strided_slice %43 {offsets = [0, 5, 0], sizes = [1, 1, 128], strides = [1, 1, 1]} : vector<9x7x128xf32> to vector<1x1x128xf32>
    %220 = vector.broadcast %219 : vector<1x1x128xf32> to vector<8x8x128xf32>
    %221 = arith.mulf %218, %220 : vector<8x8x128xf32>
    %222 = arith.addf %206, %221 : vector<8x8x128xf32>
    %223 = vector.extract_strided_slice %217 {offsets = [1, 0, 0], sizes = [8, 8, 128], strides = [1, 1, 1]} : vector<10x8x128xf32> to vector<8x8x128xf32>
    %224 = vector.extract_strided_slice %43 {offsets = [3, 5, 0], sizes = [1, 1, 128], strides = [1, 1, 1]} : vector<9x7x128xf32> to vector<1x1x128xf32>
    %225 = vector.broadcast %224 : vector<1x1x128xf32> to vector<8x8x128xf32>
    %226 = arith.mulf %223, %225 : vector<8x8x128xf32>
    %227 = arith.addf %211, %226 : vector<8x8x128xf32>
    %228 = vector.extract_strided_slice %217 {offsets = [2, 0, 0], sizes = [8, 8, 128], strides = [1, 1, 1]} : vector<10x8x128xf32> to vector<8x8x128xf32>
    %229 = vector.extract_strided_slice %43 {offsets = [6, 5, 0], sizes = [1, 1, 128], strides = [1, 1, 1]} : vector<9x7x128xf32> to vector<1x1x128xf32>
    %230 = vector.broadcast %229 : vector<1x1x128xf32> to vector<8x8x128xf32>
    %231 = arith.mulf %228, %230 : vector<8x8x128xf32>
    %232 = arith.addf %216, %231 : vector<8x8x128xf32>
    %c125_i32 = arith.constant 125 : i32
    %233 = tpu.dynamic_rotate %137 by %c125_i32 dim 2 : vector<10x8x128xf32>, i32 -> vector<10x8x128xf32>
    %234 = vector.extract_strided_slice %233 {offsets = [0, 0, 0], sizes = [8, 8, 128], strides = [1, 1, 1]} : vector<10x8x128xf32> to vector<8x8x128xf32>
    %235 = vector.extract_strided_slice %43 {offsets = [0, 6, 0], sizes = [1, 1, 128], strides = [1, 1, 1]} : vector<9x7x128xf32> to vector<1x1x128xf32>
    %236 = vector.broadcast %235 : vector<1x1x128xf32> to vector<8x8x128xf32>
    %237 = arith.mulf %234, %236 : vector<8x8x128xf32>
    %238 = arith.addf %222, %237 : vector<8x8x128xf32>
    %239 = vector.extract_strided_slice %233 {offsets = [1, 0, 0], sizes = [8, 8, 128], strides = [1, 1, 1]} : vector<10x8x128xf32> to vector<8x8x128xf32>
    %240 = vector.extract_strided_slice %43 {offsets = [3, 6, 0], sizes = [1, 1, 128], strides = [1, 1, 1]} : vector<9x7x128xf32> to vector<1x1x128xf32>
    %241 = vector.broadcast %240 : vector<1x1x128xf32> to vector<8x8x128xf32>
    %242 = arith.mulf %239, %241 : vector<8x8x128xf32>
    %243 = arith.addf %227, %242 : vector<8x8x128xf32>
    %244 = vector.extract_strided_slice %233 {offsets = [2, 0, 0], sizes = [8, 8, 128], strides = [1, 1, 1]} : vector<10x8x128xf32> to vector<8x8x128xf32>
    %245 = vector.extract_strided_slice %43 {offsets = [6, 6, 0], sizes = [1, 1, 128], strides = [1, 1, 1]} : vector<9x7x128xf32> to vector<1x1x128xf32>
    %246 = vector.broadcast %245 : vector<1x1x128xf32> to vector<8x8x128xf32>
    %247 = arith.mulf %244, %246 : vector<8x8x128xf32>
    %248 = arith.addf %232, %247 : vector<8x8x128xf32>
    %c0_74 = arith.constant 0 : index
    %c1_75 = arith.constant 1 : index
    %c0_76 = arith.constant 0 : index
    %249 = vector.load %arg21[%c0_74, %c1_75, %c0_76] : memref<10x10x128xf32, #tpu.memory_space<vmem>>, vector<10x8x128xf32>
    %c3_i32_77 = arith.constant 3 : i32
    %250 = tpu.dynamic_rotate %249 by %c3_i32_77 dim 2 : vector<10x8x128xf32>, i32 -> vector<10x8x128xf32>
    %251 = vector.extract_strided_slice %250 {offsets = [0, 0, 0], sizes = [8, 8, 128], strides = [1, 1, 1]} : vector<10x8x128xf32> to vector<8x8x128xf32>
    %252 = vector.extract_strided_slice %43 {offsets = [1, 0, 0], sizes = [1, 1, 128], strides = [1, 1, 1]} : vector<9x7x128xf32> to vector<1x1x128xf32>
    %253 = vector.broadcast %252 : vector<1x1x128xf32> to vector<8x8x128xf32>
    %254 = arith.mulf %251, %253 : vector<8x8x128xf32>
    %255 = arith.addf %238, %254 : vector<8x8x128xf32>
    %256 = vector.extract_strided_slice %250 {offsets = [1, 0, 0], sizes = [8, 8, 128], strides = [1, 1, 1]} : vector<10x8x128xf32> to vector<8x8x128xf32>
    %257 = vector.extract_strided_slice %43 {offsets = [4, 0, 0], sizes = [1, 1, 128], strides = [1, 1, 1]} : vector<9x7x128xf32> to vector<1x1x128xf32>
    %258 = vector.broadcast %257 : vector<1x1x128xf32> to vector<8x8x128xf32>
    %259 = arith.mulf %256, %258 : vector<8x8x128xf32>
    %260 = arith.addf %243, %259 : vector<8x8x128xf32>
    %261 = vector.extract_strided_slice %250 {offsets = [2, 0, 0], sizes = [8, 8, 128], strides = [1, 1, 1]} : vector<10x8x128xf32> to vector<8x8x128xf32>
    %262 = vector.extract_strided_slice %43 {offsets = [7, 0, 0], sizes = [1, 1, 128], strides = [1, 1, 1]} : vector<9x7x128xf32> to vector<1x1x128xf32>
    %263 = vector.broadcast %262 : vector<1x1x128xf32> to vector<8x8x128xf32>
    %264 = arith.mulf %261, %263 : vector<8x8x128xf32>
    %265 = arith.addf %248, %264 : vector<8x8x128xf32>
    %c2_i32_78 = arith.constant 2 : i32
    %266 = tpu.dynamic_rotate %249 by %c2_i32_78 dim 2 : vector<10x8x128xf32>, i32 -> vector<10x8x128xf32>
    %267 = vector.extract_strided_slice %266 {offsets = [0, 0, 0], sizes = [8, 8, 128], strides = [1, 1, 1]} : vector<10x8x128xf32> to vector<8x8x128xf32>
    %268 = vector.extract_strided_slice %43 {offsets = [1, 1, 0], sizes = [1, 1, 128], strides = [1, 1, 1]} : vector<9x7x128xf32> to vector<1x1x128xf32>
    %269 = vector.broadcast %268 : vector<1x1x128xf32> to vector<8x8x128xf32>
    %270 = arith.mulf %267, %269 : vector<8x8x128xf32>
    %271 = arith.addf %255, %270 : vector<8x8x128xf32>
    %272 = vector.extract_strided_slice %266 {offsets = [1, 0, 0], sizes = [8, 8, 128], strides = [1, 1, 1]} : vector<10x8x128xf32> to vector<8x8x128xf32>
    %273 = vector.extract_strided_slice %43 {offsets = [4, 1, 0], sizes = [1, 1, 128], strides = [1, 1, 1]} : vector<9x7x128xf32> to vector<1x1x128xf32>
    %274 = vector.broadcast %273 : vector<1x1x128xf32> to vector<8x8x128xf32>
    %275 = arith.mulf %272, %274 : vector<8x8x128xf32>
    %276 = arith.addf %260, %275 : vector<8x8x128xf32>
    %277 = vector.extract_strided_slice %266 {offsets = [2, 0, 0], sizes = [8, 8, 128], strides = [1, 1, 1]} : vector<10x8x128xf32> to vector<8x8x128xf32>
    %278 = vector.extract_strided_slice %43 {offsets = [7, 1, 0], sizes = [1, 1, 128], strides = [1, 1, 1]} : vector<9x7x128xf32> to vector<1x1x128xf32>
    %279 = vector.broadcast %278 : vector<1x1x128xf32> to vector<8x8x128xf32>
    %280 = arith.mulf %277, %279 : vector<8x8x128xf32>
    %281 = arith.addf %265, %280 : vector<8x8x128xf32>
    %c1_i32_79 = arith.constant 1 : i32
    %282 = tpu.dynamic_rotate %249 by %c1_i32_79 dim 2 : vector<10x8x128xf32>, i32 -> vector<10x8x128xf32>
    %283 = vector.extract_strided_slice %282 {offsets = [0, 0, 0], sizes = [8, 8, 128], strides = [1, 1, 1]} : vector<10x8x128xf32> to vector<8x8x128xf32>
    %284 = vector.extract_strided_slice %43 {offsets = [1, 2, 0], sizes = [1, 1, 128], strides = [1, 1, 1]} : vector<9x7x128xf32> to vector<1x1x128xf32>
    %285 = vector.broadcast %284 : vector<1x1x128xf32> to vector<8x8x128xf32>
    %286 = arith.mulf %283, %285 : vector<8x8x128xf32>
    %287 = arith.addf %271, %286 : vector<8x8x128xf32>
    %288 = vector.extract_strided_slice %282 {offsets = [1, 0, 0], sizes = [8, 8, 128], strides = [1, 1, 1]} : vector<10x8x128xf32> to vector<8x8x128xf32>
    %289 = vector.extract_strided_slice %43 {offsets = [4, 2, 0], sizes = [1, 1, 128], strides = [1, 1, 1]} : vector<9x7x128xf32> to vector<1x1x128xf32>
    %290 = vector.broadcast %289 : vector<1x1x128xf32> to vector<8x8x128xf32>
    %291 = arith.mulf %288, %290 : vector<8x8x128xf32>
    %292 = arith.addf %276, %291 : vector<8x8x128xf32>
    %293 = vector.extract_strided_slice %282 {offsets = [2, 0, 0], sizes = [8, 8, 128], strides = [1, 1, 1]} : vector<10x8x128xf32> to vector<8x8x128xf32>
    %294 = vector.extract_strided_slice %43 {offsets = [7, 2, 0], sizes = [1, 1, 128], strides = [1, 1, 1]} : vector<9x7x128xf32> to vector<1x1x128xf32>
    %295 = vector.broadcast %294 : vector<1x1x128xf32> to vector<8x8x128xf32>
    %296 = arith.mulf %293, %295 : vector<8x8x128xf32>
    %297 = arith.addf %281, %296 : vector<8x8x128xf32>
    %298 = vector.extract_strided_slice %249 {offsets = [0, 0, 0], sizes = [8, 8, 128], strides = [1, 1, 1]} : vector<10x8x128xf32> to vector<8x8x128xf32>
    %299 = vector.extract_strided_slice %43 {offsets = [1, 3, 0], sizes = [1, 1, 128], strides = [1, 1, 1]} : vector<9x7x128xf32> to vector<1x1x128xf32>
    %300 = vector.broadcast %299 : vector<1x1x128xf32> to vector<8x8x128xf32>
    %301 = arith.mulf %298, %300 : vector<8x8x128xf32>
    %302 = arith.addf %287, %301 : vector<8x8x128xf32>
    %303 = vector.extract_strided_slice %249 {offsets = [1, 0, 0], sizes = [8, 8, 128], strides = [1, 1, 1]} : vector<10x8x128xf32> to vector<8x8x128xf32>
    %304 = vector.extract_strided_slice %43 {offsets = [4, 3, 0], sizes = [1, 1, 128], strides = [1, 1, 1]} : vector<9x7x128xf32> to vector<1x1x128xf32>
    %305 = vector.broadcast %304 : vector<1x1x128xf32> to vector<8x8x128xf32>
    %306 = arith.mulf %303, %305 : vector<8x8x128xf32>
    %307 = arith.addf %292, %306 : vector<8x8x128xf32>
    %308 = vector.extract_strided_slice %249 {offsets = [2, 0, 0], sizes = [8, 8, 128], strides = [1, 1, 1]} : vector<10x8x128xf32> to vector<8x8x128xf32>
    %309 = vector.extract_strided_slice %43 {offsets = [7, 3, 0], sizes = [1, 1, 128], strides = [1, 1, 1]} : vector<9x7x128xf32> to vector<1x1x128xf32>
    %310 = vector.broadcast %309 : vector<1x1x128xf32> to vector<8x8x128xf32>
    %311 = arith.mulf %308, %310 : vector<8x8x128xf32>
    %312 = arith.addf %297, %311 : vector<8x8x128xf32>
    %c127_i32_80 = arith.constant 127 : i32
    %313 = tpu.dynamic_rotate %249 by %c127_i32_80 dim 2 : vector<10x8x128xf32>, i32 -> vector<10x8x128xf32>
    %314 = vector.extract_strided_slice %313 {offsets = [0, 0, 0], sizes = [8, 8, 128], strides = [1, 1, 1]} : vector<10x8x128xf32> to vector<8x8x128xf32>
    %315 = vector.extract_strided_slice %43 {offsets = [1, 4, 0], sizes = [1, 1, 128], strides = [1, 1, 1]} : vector<9x7x128xf32> to vector<1x1x128xf32>
    %316 = vector.broadcast %315 : vector<1x1x128xf32> to vector<8x8x128xf32>
    %317 = arith.mulf %314, %316 : vector<8x8x128xf32>
    %318 = arith.addf %302, %317 : vector<8x8x128xf32>
    %319 = vector.extract_strided_slice %313 {offsets = [1, 0, 0], sizes = [8, 8, 128], strides = [1, 1, 1]} : vector<10x8x128xf32> to vector<8x8x128xf32>
    %320 = vector.extract_strided_slice %43 {offsets = [4, 4, 0], sizes = [1, 1, 128], strides = [1, 1, 1]} : vector<9x7x128xf32> to vector<1x1x128xf32>
    %321 = vector.broadcast %320 : vector<1x1x128xf32> to vector<8x8x128xf32>
    %322 = arith.mulf %319, %321 : vector<8x8x128xf32>
    %323 = arith.addf %307, %322 : vector<8x8x128xf32>
    %324 = vector.extract_strided_slice %313 {offsets = [2, 0, 0], sizes = [8, 8, 128], strides = [1, 1, 1]} : vector<10x8x128xf32> to vector<8x8x128xf32>
    %325 = vector.extract_strided_slice %43 {offsets = [7, 4, 0], sizes = [1, 1, 128], strides = [1, 1, 1]} : vector<9x7x128xf32> to vector<1x1x128xf32>
    %326 = vector.broadcast %325 : vector<1x1x128xf32> to vector<8x8x128xf32>
    %327 = arith.mulf %324, %326 : vector<8x8x128xf32>
    %328 = arith.addf %312, %327 : vector<8x8x128xf32>
    %c126_i32_81 = arith.constant 126 : i32
    %329 = tpu.dynamic_rotate %249 by %c126_i32_81 dim 2 : vector<10x8x128xf32>, i32 -> vector<10x8x128xf32>
    %330 = vector.extract_strided_slice %329 {offsets = [0, 0, 0], sizes = [8, 8, 128], strides = [1, 1, 1]} : vector<10x8x128xf32> to vector<8x8x128xf32>
    %331 = vector.extract_strided_slice %43 {offsets = [1, 5, 0], sizes = [1, 1, 128], strides = [1, 1, 1]} : vector<9x7x128xf32> to vector<1x1x128xf32>
    %332 = vector.broadcast %331 : vector<1x1x128xf32> to vector<8x8x128xf32>
    %333 = arith.mulf %330, %332 : vector<8x8x128xf32>
    %334 = arith.addf %318, %333 : vector<8x8x128xf32>
    %335 = vector.extract_strided_slice %329 {offsets = [1, 0, 0], sizes = [8, 8, 128], strides = [1, 1, 1]} : vector<10x8x128xf32> to vector<8x8x128xf32>
    %336 = vector.extract_strided_slice %43 {offsets = [4, 5, 0], sizes = [1, 1, 128], strides = [1, 1, 1]} : vector<9x7x128xf32> to vector<1x1x128xf32>
    %337 = vector.broadcast %336 : vector<1x1x128xf32> to vector<8x8x128xf32>
    %338 = arith.mulf %335, %337 : vector<8x8x128xf32>
    %339 = arith.addf %323, %338 : vector<8x8x128xf32>
    %340 = vector.extract_strided_slice %329 {offsets = [2, 0, 0], sizes = [8, 8, 128], strides = [1, 1, 1]} : vector<10x8x128xf32> to vector<8x8x128xf32>
    %341 = vector.extract_strided_slice %43 {offsets = [7, 5, 0], sizes = [1, 1, 128], strides = [1, 1, 1]} : vector<9x7x128xf32> to vector<1x1x128xf32>
    %342 = vector.broadcast %341 : vector<1x1x128xf32> to vector<8x8x128xf32>
    %343 = arith.mulf %340, %342 : vector<8x8x128xf32>
    %344 = arith.addf %328, %343 : vector<8x8x128xf32>
    %c125_i32_82 = arith.constant 125 : i32
    %345 = tpu.dynamic_rotate %249 by %c125_i32_82 dim 2 : vector<10x8x128xf32>, i32 -> vector<10x8x128xf32>
    %346 = vector.extract_strided_slice %345 {offsets = [0, 0, 0], sizes = [8, 8, 128], strides = [1, 1, 1]} : vector<10x8x128xf32> to vector<8x8x128xf32>
    %347 = vector.extract_strided_slice %43 {offsets = [1, 6, 0], sizes = [1, 1, 128], strides = [1, 1, 1]} : vector<9x7x128xf32> to vector<1x1x128xf32>
    %348 = vector.broadcast %347 : vector<1x1x128xf32> to vector<8x8x128xf32>
    %349 = arith.mulf %346, %348 : vector<8x8x128xf32>
    %350 = arith.addf %334, %349 : vector<8x8x128xf32>
    %351 = vector.extract_strided_slice %345 {offsets = [1, 0, 0], sizes = [8, 8, 128], strides = [1, 1, 1]} : vector<10x8x128xf32> to vector<8x8x128xf32>
    %352 = vector.extract_strided_slice %43 {offsets = [4, 6, 0], sizes = [1, 1, 128], strides = [1, 1, 1]} : vector<9x7x128xf32> to vector<1x1x128xf32>
    %353 = vector.broadcast %352 : vector<1x1x128xf32> to vector<8x8x128xf32>
    %354 = arith.mulf %351, %353 : vector<8x8x128xf32>
    %355 = arith.addf %339, %354 : vector<8x8x128xf32>
    %356 = vector.extract_strided_slice %345 {offsets = [2, 0, 0], sizes = [8, 8, 128], strides = [1, 1, 1]} : vector<10x8x128xf32> to vector<8x8x128xf32>
    %357 = vector.extract_strided_slice %43 {offsets = [7, 6, 0], sizes = [1, 1, 128], strides = [1, 1, 1]} : vector<9x7x128xf32> to vector<1x1x128xf32>
    %358 = vector.broadcast %357 : vector<1x1x128xf32> to vector<8x8x128xf32>
    %359 = arith.mulf %356, %358 : vector<8x8x128xf32>
    %360 = arith.addf %344, %359 : vector<8x8x128xf32>
    %c0_83 = arith.constant 0 : index
    %c2_84 = arith.constant 2 : index
    %c0_85 = arith.constant 0 : index
    %361 = vector.load %arg21[%c0_83, %c2_84, %c0_85] : memref<10x10x128xf32, #tpu.memory_space<vmem>>, vector<10x8x128xf32>
    %c3_i32_86 = arith.constant 3 : i32
    %362 = tpu.dynamic_rotate %361 by %c3_i32_86 dim 2 : vector<10x8x128xf32>, i32 -> vector<10x8x128xf32>
    %363 = vector.extract_strided_slice %362 {offsets = [0, 0, 0], sizes = [8, 8, 128], strides = [1, 1, 1]} : vector<10x8x128xf32> to vector<8x8x128xf32>
    %364 = vector.extract_strided_slice %43 {offsets = [2, 0, 0], sizes = [1, 1, 128], strides = [1, 1, 1]} : vector<9x7x128xf32> to vector<1x1x128xf32>
    %365 = vector.broadcast %364 : vector<1x1x128xf32> to vector<8x8x128xf32>
    %366 = arith.mulf %363, %365 : vector<8x8x128xf32>
    %367 = arith.addf %350, %366 : vector<8x8x128xf32>
    %368 = vector.extract_strided_slice %362 {offsets = [1, 0, 0], sizes = [8, 8, 128], strides = [1, 1, 1]} : vector<10x8x128xf32> to vector<8x8x128xf32>
    %369 = vector.extract_strided_slice %43 {offsets = [5, 0, 0], sizes = [1, 1, 128], strides = [1, 1, 1]} : vector<9x7x128xf32> to vector<1x1x128xf32>
    %370 = vector.broadcast %369 : vector<1x1x128xf32> to vector<8x8x128xf32>
    %371 = arith.mulf %368, %370 : vector<8x8x128xf32>
    %372 = arith.addf %355, %371 : vector<8x8x128xf32>
    %373 = vector.extract_strided_slice %362 {offsets = [2, 0, 0], sizes = [8, 8, 128], strides = [1, 1, 1]} : vector<10x8x128xf32> to vector<8x8x128xf32>
    %374 = vector.extract_strided_slice %43 {offsets = [8, 0, 0], sizes = [1, 1, 128], strides = [1, 1, 1]} : vector<9x7x128xf32> to vector<1x1x128xf32>
    %375 = vector.broadcast %374 : vector<1x1x128xf32> to vector<8x8x128xf32>
    %376 = arith.mulf %373, %375 : vector<8x8x128xf32>
    %377 = arith.addf %360, %376 : vector<8x8x128xf32>
    %c2_i32_87 = arith.constant 2 : i32
    %378 = tpu.dynamic_rotate %361 by %c2_i32_87 dim 2 : vector<10x8x128xf32>, i32 -> vector<10x8x128xf32>
    %379 = vector.extract_strided_slice %378 {offsets = [0, 0, 0], sizes = [8, 8, 128], strides = [1, 1, 1]} : vector<10x8x128xf32> to vector<8x8x128xf32>
    %380 = vector.extract_strided_slice %43 {offsets = [2, 1, 0], sizes = [1, 1, 128], strides = [1, 1, 1]} : vector<9x7x128xf32> to vector<1x1x128xf32>
    %381 = vector.broadcast %380 : vector<1x1x128xf32> to vector<8x8x128xf32>
    %382 = arith.mulf %379, %381 : vector<8x8x128xf32>
    %383 = arith.addf %367, %382 : vector<8x8x128xf32>
    %384 = vector.extract_strided_slice %378 {offsets = [1, 0, 0], sizes = [8, 8, 128], strides = [1, 1, 1]} : vector<10x8x128xf32> to vector<8x8x128xf32>
    %385 = vector.extract_strided_slice %43 {offsets = [5, 1, 0], sizes = [1, 1, 128], strides = [1, 1, 1]} : vector<9x7x128xf32> to vector<1x1x128xf32>
    %386 = vector.broadcast %385 : vector<1x1x128xf32> to vector<8x8x128xf32>
    %387 = arith.mulf %384, %386 : vector<8x8x128xf32>
    %388 = arith.addf %372, %387 : vector<8x8x128xf32>
    %389 = vector.extract_strided_slice %378 {offsets = [2, 0, 0], sizes = [8, 8, 128], strides = [1, 1, 1]} : vector<10x8x128xf32> to vector<8x8x128xf32>
    %390 = vector.extract_strided_slice %43 {offsets = [8, 1, 0], sizes = [1, 1, 128], strides = [1, 1, 1]} : vector<9x7x128xf32> to vector<1x1x128xf32>
    %391 = vector.broadcast %390 : vector<1x1x128xf32> to vector<8x8x128xf32>
    %392 = arith.mulf %389, %391 : vector<8x8x128xf32>
    %393 = arith.addf %377, %392 : vector<8x8x128xf32>
    %c1_i32_88 = arith.constant 1 : i32
    %394 = tpu.dynamic_rotate %361 by %c1_i32_88 dim 2 : vector<10x8x128xf32>, i32 -> vector<10x8x128xf32>
    %395 = vector.extract_strided_slice %394 {offsets = [0, 0, 0], sizes = [8, 8, 128], strides = [1, 1, 1]} : vector<10x8x128xf32> to vector<8x8x128xf32>
    %396 = vector.extract_strided_slice %43 {offsets = [2, 2, 0], sizes = [1, 1, 128], strides = [1, 1, 1]} : vector<9x7x128xf32> to vector<1x1x128xf32>
    %397 = vector.broadcast %396 : vector<1x1x128xf32> to vector<8x8x128xf32>
    %398 = arith.mulf %395, %397 : vector<8x8x128xf32>
    %399 = arith.addf %383, %398 : vector<8x8x128xf32>
    %400 = vector.extract_strided_slice %394 {offsets = [1, 0, 0], sizes = [8, 8, 128], strides = [1, 1, 1]} : vector<10x8x128xf32> to vector<8x8x128xf32>
    %401 = vector.extract_strided_slice %43 {offsets = [5, 2, 0], sizes = [1, 1, 128], strides = [1, 1, 1]} : vector<9x7x128xf32> to vector<1x1x128xf32>
    %402 = vector.broadcast %401 : vector<1x1x128xf32> to vector<8x8x128xf32>
    %403 = arith.mulf %400, %402 : vector<8x8x128xf32>
    %404 = arith.addf %388, %403 : vector<8x8x128xf32>
    %405 = vector.extract_strided_slice %394 {offsets = [2, 0, 0], sizes = [8, 8, 128], strides = [1, 1, 1]} : vector<10x8x128xf32> to vector<8x8x128xf32>
    %406 = vector.extract_strided_slice %43 {offsets = [8, 2, 0], sizes = [1, 1, 128], strides = [1, 1, 1]} : vector<9x7x128xf32> to vector<1x1x128xf32>
    %407 = vector.broadcast %406 : vector<1x1x128xf32> to vector<8x8x128xf32>
    %408 = arith.mulf %405, %407 : vector<8x8x128xf32>
    %409 = arith.addf %393, %408 : vector<8x8x128xf32>
    %410 = vector.extract_strided_slice %361 {offsets = [0, 0, 0], sizes = [8, 8, 128], strides = [1, 1, 1]} : vector<10x8x128xf32> to vector<8x8x128xf32>
    %411 = vector.extract_strided_slice %43 {offsets = [2, 3, 0], sizes = [1, 1, 128], strides = [1, 1, 1]} : vector<9x7x128xf32> to vector<1x1x128xf32>
    %412 = vector.broadcast %411 : vector<1x1x128xf32> to vector<8x8x128xf32>
    %413 = arith.mulf %410, %412 : vector<8x8x128xf32>
    %414 = arith.addf %399, %413 : vector<8x8x128xf32>
    %415 = vector.extract_strided_slice %361 {offsets = [1, 0, 0], sizes = [8, 8, 128], strides = [1, 1, 1]} : vector<10x8x128xf32> to vector<8x8x128xf32>
    %416 = vector.extract_strided_slice %43 {offsets = [5, 3, 0], sizes = [1, 1, 128], strides = [1, 1, 1]} : vector<9x7x128xf32> to vector<1x1x128xf32>
    %417 = vector.broadcast %416 : vector<1x1x128xf32> to vector<8x8x128xf32>
    %418 = arith.mulf %415, %417 : vector<8x8x128xf32>
    %419 = arith.addf %404, %418 : vector<8x8x128xf32>
    %420 = vector.extract_strided_slice %361 {offsets = [2, 0, 0], sizes = [8, 8, 128], strides = [1, 1, 1]} : vector<10x8x128xf32> to vector<8x8x128xf32>
    %421 = vector.extract_strided_slice %43 {offsets = [8, 3, 0], sizes = [1, 1, 128], strides = [1, 1, 1]} : vector<9x7x128xf32> to vector<1x1x128xf32>
    %422 = vector.broadcast %421 : vector<1x1x128xf32> to vector<8x8x128xf32>
    %423 = arith.mulf %420, %422 : vector<8x8x128xf32>
    %424 = arith.addf %409, %423 : vector<8x8x128xf32>
    %c127_i32_89 = arith.constant 127 : i32
    %425 = tpu.dynamic_rotate %361 by %c127_i32_89 dim 2 : vector<10x8x128xf32>, i32 -> vector<10x8x128xf32>
    %426 = vector.extract_strided_slice %425 {offsets = [0, 0, 0], sizes = [8, 8, 128], strides = [1, 1, 1]} : vector<10x8x128xf32> to vector<8x8x128xf32>
    %427 = vector.extract_strided_slice %43 {offsets = [2, 4, 0], sizes = [1, 1, 128], strides = [1, 1, 1]} : vector<9x7x128xf32> to vector<1x1x128xf32>
    %428 = vector.broadcast %427 : vector<1x1x128xf32> to vector<8x8x128xf32>
    %429 = arith.mulf %426, %428 : vector<8x8x128xf32>
    %430 = arith.addf %414, %429 : vector<8x8x128xf32>
    %431 = vector.extract_strided_slice %425 {offsets = [1, 0, 0], sizes = [8, 8, 128], strides = [1, 1, 1]} : vector<10x8x128xf32> to vector<8x8x128xf32>
    %432 = vector.extract_strided_slice %43 {offsets = [5, 4, 0], sizes = [1, 1, 128], strides = [1, 1, 1]} : vector<9x7x128xf32> to vector<1x1x128xf32>
    %433 = vector.broadcast %432 : vector<1x1x128xf32> to vector<8x8x128xf32>
    %434 = arith.mulf %431, %433 : vector<8x8x128xf32>
    %435 = arith.addf %419, %434 : vector<8x8x128xf32>
    %436 = vector.extract_strided_slice %425 {offsets = [2, 0, 0], sizes = [8, 8, 128], strides = [1, 1, 1]} : vector<10x8x128xf32> to vector<8x8x128xf32>
    %437 = vector.extract_strided_slice %43 {offsets = [8, 4, 0], sizes = [1, 1, 128], strides = [1, 1, 1]} : vector<9x7x128xf32> to vector<1x1x128xf32>
    %438 = vector.broadcast %437 : vector<1x1x128xf32> to vector<8x8x128xf32>
    %439 = arith.mulf %436, %438 : vector<8x8x128xf32>
    %440 = arith.addf %424, %439 : vector<8x8x128xf32>
    %c126_i32_90 = arith.constant 126 : i32
    %441 = tpu.dynamic_rotate %361 by %c126_i32_90 dim 2 : vector<10x8x128xf32>, i32 -> vector<10x8x128xf32>
    %442 = vector.extract_strided_slice %441 {offsets = [0, 0, 0], sizes = [8, 8, 128], strides = [1, 1, 1]} : vector<10x8x128xf32> to vector<8x8x128xf32>
    %443 = vector.extract_strided_slice %43 {offsets = [2, 5, 0], sizes = [1, 1, 128], strides = [1, 1, 1]} : vector<9x7x128xf32> to vector<1x1x128xf32>
    %444 = vector.broadcast %443 : vector<1x1x128xf32> to vector<8x8x128xf32>
    %445 = arith.mulf %442, %444 : vector<8x8x128xf32>
    %446 = arith.addf %430, %445 : vector<8x8x128xf32>
    %447 = vector.extract_strided_slice %441 {offsets = [1, 0, 0], sizes = [8, 8, 128], strides = [1, 1, 1]} : vector<10x8x128xf32> to vector<8x8x128xf32>
    %448 = vector.extract_strided_slice %43 {offsets = [5, 5, 0], sizes = [1, 1, 128], strides = [1, 1, 1]} : vector<9x7x128xf32> to vector<1x1x128xf32>
    %449 = vector.broadcast %448 : vector<1x1x128xf32> to vector<8x8x128xf32>
    %450 = arith.mulf %447, %449 : vector<8x8x128xf32>
    %451 = arith.addf %435, %450 : vector<8x8x128xf32>
    %452 = vector.extract_strided_slice %441 {offsets = [2, 0, 0], sizes = [8, 8, 128], strides = [1, 1, 1]} : vector<10x8x128xf32> to vector<8x8x128xf32>
    %453 = vector.extract_strided_slice %43 {offsets = [8, 5, 0], sizes = [1, 1, 128], strides = [1, 1, 1]} : vector<9x7x128xf32> to vector<1x1x128xf32>
    %454 = vector.broadcast %453 : vector<1x1x128xf32> to vector<8x8x128xf32>
    %455 = arith.mulf %452, %454 : vector<8x8x128xf32>
    %456 = arith.addf %440, %455 : vector<8x8x128xf32>
    %c125_i32_91 = arith.constant 125 : i32
    %457 = tpu.dynamic_rotate %361 by %c125_i32_91 dim 2 : vector<10x8x128xf32>, i32 -> vector<10x8x128xf32>
    %458 = vector.extract_strided_slice %457 {offsets = [0, 0, 0], sizes = [8, 8, 128], strides = [1, 1, 1]} : vector<10x8x128xf32> to vector<8x8x128xf32>
    %459 = vector.extract_strided_slice %43 {offsets = [2, 6, 0], sizes = [1, 1, 128], strides = [1, 1, 1]} : vector<9x7x128xf32> to vector<1x1x128xf32>
    %460 = vector.broadcast %459 : vector<1x1x128xf32> to vector<8x8x128xf32>
    %461 = arith.mulf %458, %460 : vector<8x8x128xf32>
    %462 = arith.addf %446, %461 : vector<8x8x128xf32>
    %463 = vector.extract_strided_slice %457 {offsets = [1, 0, 0], sizes = [8, 8, 128], strides = [1, 1, 1]} : vector<10x8x128xf32> to vector<8x8x128xf32>
    %464 = vector.extract_strided_slice %43 {offsets = [5, 6, 0], sizes = [1, 1, 128], strides = [1, 1, 1]} : vector<9x7x128xf32> to vector<1x1x128xf32>
    %465 = vector.broadcast %464 : vector<1x1x128xf32> to vector<8x8x128xf32>
    %466 = arith.mulf %463, %465 : vector<8x8x128xf32>
    %467 = arith.addf %451, %466 : vector<8x8x128xf32>
    %468 = vector.extract_strided_slice %457 {offsets = [2, 0, 0], sizes = [8, 8, 128], strides = [1, 1, 1]} : vector<10x8x128xf32> to vector<8x8x128xf32>
    %469 = vector.extract_strided_slice %43 {offsets = [8, 6, 0], sizes = [1, 1, 128], strides = [1, 1, 1]} : vector<9x7x128xf32> to vector<1x1x128xf32>
    %470 = vector.broadcast %469 : vector<1x1x128xf32> to vector<8x8x128xf32>
    %471 = arith.mulf %468, %470 : vector<8x8x128xf32>
    %472 = arith.addf %456, %471 : vector<8x8x128xf32>
    %473 = arith.addf %462, %467 : vector<8x8x128xf32>
    %474 = arith.addf %473, %472 : vector<8x8x128xf32>
    %c0_92 = arith.constant 0 : index
    %c0_93 = arith.constant 0 : index
    %475 = vector.load %arg11[%c0_92, %c0_93] : memref<1x128xf32, #tpu.memory_space<vmem>>, vector<1x128xf32>
    %476 = vector.shape_cast %475 : vector<1x128xf32> to vector<1x1x128xf32>
    %477 = vector.broadcast %476 : vector<1x1x128xf32> to vector<8x8x128xf32>
    %478 = arith.addf %474, %477 : vector<8x8x128xf32>
    %479 = arith.addf %478, %132 : vector<8x8x128xf32>
    %c0_94 = arith.constant 0 : index
    %c0_95 = arith.constant 0 : index
    %480 = vector.load %arg12[%c0_94, %c0_95] : memref<1x128xf32, #tpu.memory_space<vmem>>, vector<1x128xf32>
    %c0_96 = arith.constant 0 : index
    %c0_97 = arith.constant 0 : index
    %481 = vector.load %arg13[%c0_96, %c0_97] : memref<1x128xf32, #tpu.memory_space<vmem>>, vector<1x128xf32>
    %cst_98 = arith.constant dense<0.000000e+00> : vector<8x8xf32>
    %482 = vector.multi_reduction <add>, %479, %cst_98 [2] : vector<8x8x128xf32> to vector<8x8xf32>
    %483 = vector.shape_cast %482 : vector<8x8xf32> to vector<8x8x1xf32>
    %cst_99 = arith.constant 1.280000e+02 : f32
    %484 = vector.broadcast %cst_99 : f32 to vector<8x8x1xf32>
    %485 = arith.divf %483, %484 : vector<8x8x1xf32>
    %486 = arith.mulf %479, %479 : vector<8x8x128xf32>
    %cst_100 = arith.constant dense<0.000000e+00> : vector<8x8xf32>
    %487 = vector.multi_reduction <add>, %486, %cst_100 [2] : vector<8x8x128xf32> to vector<8x8xf32>
    %488 = vector.shape_cast %487 : vector<8x8xf32> to vector<8x8x1xf32>
    %cst_101 = arith.constant 1.280000e+02 : f32
    %489 = vector.broadcast %cst_101 : f32 to vector<8x8x1xf32>
    %490 = arith.divf %488, %489 : vector<8x8x1xf32>
    %491 = arith.mulf %485, %485 : vector<8x8x1xf32>
    %492 = arith.subf %490, %491 : vector<8x8x1xf32>
    %cst_102 = arith.constant 0.000000e+00 : f32
    %493 = vector.broadcast %cst_102 : f32 to vector<8x8x1xf32>
    %494 = arith.maximumf %492, %493 : vector<8x8x1xf32>
    %495 = vector.broadcast %485 : vector<8x8x1xf32> to vector<8x8x128xf32>
    %496 = arith.subf %479, %495 : vector<8x8x128xf32>
    %cst_103 = arith.constant 9.99999974E-6 : f32
    %497 = vector.broadcast %cst_103 : f32 to vector<8x8x1xf32>
    %498 = arith.addf %494, %497 : vector<8x8x1xf32>
    %499 = math.rsqrt %498 : vector<8x8x1xf32>
    %500 = vector.broadcast %499 : vector<8x8x1xf32> to vector<8x8x128xf32>
    %501 = arith.mulf %496, %500 : vector<8x8x128xf32>
    %502 = vector.shape_cast %480 : vector<1x128xf32> to vector<1x1x128xf32>
    %503 = vector.broadcast %502 : vector<1x1x128xf32> to vector<8x8x128xf32>
    %504 = arith.mulf %501, %503 : vector<8x8x128xf32>
    %505 = vector.shape_cast %481 : vector<1x128xf32> to vector<1x1x128xf32>
    %506 = vector.broadcast %505 : vector<1x1x128xf32> to vector<8x8x128xf32>
    %507 = arith.addf %504, %506 : vector<8x8x128xf32>
    %508 = arith.addf %507, %45 : vector<8x8x128xf32>
    %c0_104 = arith.constant 0 : index
    %c0_105 = arith.constant 0 : index
    %509 = vector.load %arg14[%c0_104, %c0_105] : memref<1x128xf32, #tpu.memory_space<vmem>>, vector<1x128xf32>
    %c0_106 = arith.constant 0 : index
    %c0_107 = arith.constant 0 : index
    %510 = vector.load %arg15[%c0_106, %c0_107] : memref<1x128xf32, #tpu.memory_space<vmem>>, vector<1x128xf32>
    %cst_108 = arith.constant dense<0.000000e+00> : vector<8x8xf32>
    %511 = vector.multi_reduction <add>, %508, %cst_108 [2] : vector<8x8x128xf32> to vector<8x8xf32>
    %512 = vector.shape_cast %511 : vector<8x8xf32> to vector<8x8x1xf32>
    %cst_109 = arith.constant 1.280000e+02 : f32
    %513 = vector.broadcast %cst_109 : f32 to vector<8x8x1xf32>
    %514 = arith.divf %512, %513 : vector<8x8x1xf32>
    %515 = arith.mulf %508, %508 : vector<8x8x128xf32>
    %cst_110 = arith.constant dense<0.000000e+00> : vector<8x8xf32>
    %516 = vector.multi_reduction <add>, %515, %cst_110 [2] : vector<8x8x128xf32> to vector<8x8xf32>
    %517 = vector.shape_cast %516 : vector<8x8xf32> to vector<8x8x1xf32>
    %cst_111 = arith.constant 1.280000e+02 : f32
    %518 = vector.broadcast %cst_111 : f32 to vector<8x8x1xf32>
    %519 = arith.divf %517, %518 : vector<8x8x1xf32>
    %520 = arith.mulf %514, %514 : vector<8x8x1xf32>
    %521 = arith.subf %519, %520 : vector<8x8x1xf32>
    %cst_112 = arith.constant 0.000000e+00 : f32
    %522 = vector.broadcast %cst_112 : f32 to vector<8x8x1xf32>
    %523 = arith.maximumf %521, %522 : vector<8x8x1xf32>
    %524 = vector.broadcast %514 : vector<8x8x1xf32> to vector<8x8x128xf32>
    %525 = arith.subf %508, %524 : vector<8x8x128xf32>
    %cst_113 = arith.constant 9.99999974E-6 : f32
    %526 = vector.broadcast %cst_113 : f32 to vector<8x8x1xf32>
    %527 = arith.addf %523, %526 : vector<8x8x1xf32>
    %528 = math.rsqrt %527 : vector<8x8x1xf32>
    %529 = vector.broadcast %528 : vector<8x8x1xf32> to vector<8x8x128xf32>
    %530 = arith.mulf %525, %529 : vector<8x8x128xf32>
    %531 = vector.shape_cast %509 : vector<1x128xf32> to vector<1x1x128xf32>
    %532 = vector.broadcast %531 : vector<1x1x128xf32> to vector<8x8x128xf32>
    %533 = arith.mulf %530, %532 : vector<8x8x128xf32>
    %534 = vector.shape_cast %510 : vector<1x128xf32> to vector<1x1x128xf32>
    %535 = vector.broadcast %534 : vector<1x1x128xf32> to vector<8x8x128xf32>
    %536 = arith.addf %533, %535 : vector<8x8x128xf32>
    %cst_114 = arith.constant 0.000000e+00 : f32
    %537 = vector.broadcast %cst_114 : f32 to vector<8x8x128xf32>
    %538 = arith.maximumf %536, %537 : vector<8x8x128xf32>
    %539 = vector.shape_cast %538 : vector<8x8x128xf32> to vector<64x128xf32>
    %c0_115 = arith.constant 0 : index
    %c0_116 = arith.constant 0 : index
    %540 = vector.load %arg22[%c0_115, %c0_116] : memref<128x128xf32, #tpu.memory_space<vmem>>, vector<64x128xf32>
    tpu.vector_store %arg22[%c0_115, %c0_116], %539 {strides = array<i32>} : memref<128x128xf32, #tpu.memory_space<vmem>>, vector<64x128xf32>,
    %c64 = arith.constant 64 : index
    %c0_117 = arith.constant 0 : index
    %541 = vector.load %arg22[%c64, %c0_117] : memref<128x128xf32, #tpu.memory_space<vmem>>, vector<64x128xf32>
    %542 = vector.shape_cast %541 : vector<64x128xf32> to vector<8x8x128xf32>
    %c1_118 = arith.constant 1 : index
    %c1_119 = arith.constant 1 : index
    %c0_120 = arith.constant 0 : index
    %543 = vector.load %arg21[%c1_118, %c1_119, %c0_120] : memref<10x10x128xf32, #tpu.memory_space<vmem>>, vector<8x8x128xf32>
    tpu.vector_store %arg21[%c1_118, %c1_119, %c0_120], %542 {strides = array<i32>} : memref<10x10x128xf32, #tpu.memory_space<vmem>>, vector<8x8x128xf32>,
    %cst_121 = arith.constant 0.000000e+00 : f32
    %544 = vector.broadcast %cst_121 : f32 to vector<8x8x128xf32>
    %cst_122 = arith.constant 0.000000e+00 : f32
    %545 = vector.broadcast %cst_122 : f32 to vector<8x8x128xf32>
    %cst_123 = arith.constant 0.000000e+00 : f32
    %546 = vector.broadcast %cst_123 : f32 to vector<8x8x128xf32>
    %c0_124 = arith.constant 0 : index
    %c0_125 = arith.constant 0 : index
    %c0_126 = arith.constant 0 : index
    %547 = vector.load %arg21[%c0_124, %c0_125, %c0_126] : memref<10x10x128xf32, #tpu.memory_space<vmem>>, vector<10x8x128xf32>
    %548 = vector.extract_strided_slice %547 {offsets = [0, 0, 0], sizes = [8, 8, 128], strides = [1, 1, 1]} : vector<10x8x128xf32> to vector<8x8x128xf32>
    %549 = vector.extract_strided_slice %42 {offsets = [0, 0, 0], sizes = [1, 1, 128], strides = [1, 1, 1]} : vector<3x3x128xf32> to vector<1x1x128xf32>
    %550 = vector.broadcast %549 : vector<1x1x128xf32> to vector<8x8x128xf32>
    %551 = arith.mulf %548, %550 : vector<8x8x128xf32>
    %552 = arith.addf %544, %551 : vector<8x8x128xf32>
    %553 = vector.extract_strided_slice %547 {offsets = [1, 0, 0], sizes = [8, 8, 128], strides = [1, 1, 1]} : vector<10x8x128xf32> to vector<8x8x128xf32>
    %554 = vector.extract_strided_slice %42 {offsets = [1, 0, 0], sizes = [1, 1, 128], strides = [1, 1, 1]} : vector<3x3x128xf32> to vector<1x1x128xf32>
    %555 = vector.broadcast %554 : vector<1x1x128xf32> to vector<8x8x128xf32>
    %556 = arith.mulf %553, %555 : vector<8x8x128xf32>
    %557 = arith.addf %545, %556 : vector<8x8x128xf32>
    %558 = vector.extract_strided_slice %547 {offsets = [2, 0, 0], sizes = [8, 8, 128], strides = [1, 1, 1]} : vector<10x8x128xf32> to vector<8x8x128xf32>
    %559 = vector.extract_strided_slice %42 {offsets = [2, 0, 0], sizes = [1, 1, 128], strides = [1, 1, 1]} : vector<3x3x128xf32> to vector<1x1x128xf32>
    %560 = vector.broadcast %559 : vector<1x1x128xf32> to vector<8x8x128xf32>
    %561 = arith.mulf %558, %560 : vector<8x8x128xf32>
    %562 = arith.addf %546, %561 : vector<8x8x128xf32>
    %c0_127 = arith.constant 0 : index
    %c1_128 = arith.constant 1 : index
    %c0_129 = arith.constant 0 : index
    %563 = vector.load %arg21[%c0_127, %c1_128, %c0_129] : memref<10x10x128xf32, #tpu.memory_space<vmem>>, vector<10x8x128xf32>
    %564 = vector.extract_strided_slice %563 {offsets = [0, 0, 0], sizes = [8, 8, 128], strides = [1, 1, 1]} : vector<10x8x128xf32> to vector<8x8x128xf32>
    %565 = vector.extract_strided_slice %42 {offsets = [0, 1, 0], sizes = [1, 1, 128], strides = [1, 1, 1]} : vector<3x3x128xf32> to vector<1x1x128xf32>
    %566 = vector.broadcast %565 : vector<1x1x128xf32> to vector<8x8x128xf32>
    %567 = arith.mulf %564, %566 : vector<8x8x128xf32>
    %568 = arith.addf %552, %567 : vector<8x8x128xf32>
    %569 = vector.extract_strided_slice %563 {offsets = [1, 0, 0], sizes = [8, 8, 128], strides = [1, 1, 1]} : vector<10x8x128xf32> to vector<8x8x128xf32>
    %570 = vector.extract_strided_slice %42 {offsets = [1, 1, 0], sizes = [1, 1, 128], strides = [1, 1, 1]} : vector<3x3x128xf32> to vector<1x1x128xf32>
    %571 = vector.broadcast %570 : vector<1x1x128xf32> to vector<8x8x128xf32>
    %572 = arith.mulf %569, %571 : vector<8x8x128xf32>
    %573 = arith.addf %557, %572 : vector<8x8x128xf32>
    %574 = vector.extract_strided_slice %563 {offsets = [2, 0, 0], sizes = [8, 8, 128], strides = [1, 1, 1]} : vector<10x8x128xf32> to vector<8x8x128xf32>
    %575 = vector.extract_strided_slice %42 {offsets = [2, 1, 0], sizes = [1, 1, 128], strides = [1, 1, 1]} : vector<3x3x128xf32> to vector<1x1x128xf32>
    %576 = vector.broadcast %575 : vector<1x1x128xf32> to vector<8x8x128xf32>
    %577 = arith.mulf %574, %576 : vector<8x8x128xf32>
    %578 = arith.addf %562, %577 : vector<8x8x128xf32>
    %c0_130 = arith.constant 0 : index
    %c2_131 = arith.constant 2 : index
    %c0_132 = arith.constant 0 : index
    %579 = vector.load %arg21[%c0_130, %c2_131, %c0_132] : memref<10x10x128xf32, #tpu.memory_space<vmem>>, vector<10x8x128xf32>
    %580 = vector.extract_strided_slice %579 {offsets = [0, 0, 0], sizes = [8, 8, 128], strides = [1, 1, 1]} : vector<10x8x128xf32> to vector<8x8x128xf32>
    %581 = vector.extract_strided_slice %42 {offsets = [0, 2, 0], sizes = [1, 1, 128], strides = [1, 1, 1]} : vector<3x3x128xf32> to vector<1x1x128xf32>
    %582 = vector.broadcast %581 : vector<1x1x128xf32> to vector<8x8x128xf32>
    %583 = arith.mulf %580, %582 : vector<8x8x128xf32>
    %584 = arith.addf %568, %583 : vector<8x8x128xf32>
    %585 = vector.extract_strided_slice %579 {offsets = [1, 0, 0], sizes = [8, 8, 128], strides = [1, 1, 1]} : vector<10x8x128xf32> to vector<8x8x128xf32>
    %586 = vector.extract_strided_slice %42 {offsets = [1, 2, 0], sizes = [1, 1, 128], strides = [1, 1, 1]} : vector<3x3x128xf32> to vector<1x1x128xf32>
    %587 = vector.broadcast %586 : vector<1x1x128xf32> to vector<8x8x128xf32>
    %588 = arith.mulf %585, %587 : vector<8x8x128xf32>
    %589 = arith.addf %573, %588 : vector<8x8x128xf32>
    %590 = vector.extract_strided_slice %579 {offsets = [2, 0, 0], sizes = [8, 8, 128], strides = [1, 1, 1]} : vector<10x8x128xf32> to vector<8x8x128xf32>
    %591 = vector.extract_strided_slice %42 {offsets = [2, 2, 0], sizes = [1, 1, 128], strides = [1, 1, 1]} : vector<3x3x128xf32> to vector<1x1x128xf32>
    %592 = vector.broadcast %591 : vector<1x1x128xf32> to vector<8x8x128xf32>
    %593 = arith.mulf %590, %592 : vector<8x8x128xf32>
    %594 = arith.addf %578, %593 : vector<8x8x128xf32>
    %595 = arith.addf %584, %589 : vector<8x8x128xf32>
    %596 = arith.addf %595, %594 : vector<8x8x128xf32>
    %c0_133 = arith.constant 0 : index
    %c0_134 = arith.constant 0 : index
    %597 = vector.load %arg7[%c0_133, %c0_134] : memref<1x128xf32, #tpu.memory_space<vmem>>, vector<1x128xf32>
    %598 = vector.shape_cast %597 : vector<1x128xf32> to vector<1x1x128xf32>
    %599 = vector.broadcast %598 : vector<1x1x128xf32> to vector<8x8x128xf32>
    %600 = arith.addf %596, %599 : vector<8x8x128xf32>
    %601 = arith.addf %600, %542 : vector<8x8x128xf32>
    %c0_135 = arith.constant 0 : index
    %c0_136 = arith.constant 0 : index
    %602 = vector.load %arg8[%c0_135, %c0_136] : memref<1x128xf32, #tpu.memory_space<vmem>>, vector<1x128xf32>
    %c0_137 = arith.constant 0 : index
    %c0_138 = arith.constant 0 : index
    %603 = vector.load %arg9[%c0_137, %c0_138] : memref<1x128xf32, #tpu.memory_space<vmem>>, vector<1x128xf32>
    %cst_139 = arith.constant dense<0.000000e+00> : vector<8x8xf32>
    %604 = vector.multi_reduction <add>, %601, %cst_139 [2] : vector<8x8x128xf32> to vector<8x8xf32>
    %605 = vector.shape_cast %604 : vector<8x8xf32> to vector<8x8x1xf32>
    %cst_140 = arith.constant 1.280000e+02 : f32
    %606 = vector.broadcast %cst_140 : f32 to vector<8x8x1xf32>
    %607 = arith.divf %605, %606 : vector<8x8x1xf32>
    %608 = arith.mulf %601, %601 : vector<8x8x128xf32>
    %cst_141 = arith.constant dense<0.000000e+00> : vector<8x8xf32>
    %609 = vector.multi_reduction <add>, %608, %cst_141 [2] : vector<8x8x128xf32> to vector<8x8xf32>
    %610 = vector.shape_cast %609 : vector<8x8xf32> to vector<8x8x1xf32>
    %cst_142 = arith.constant 1.280000e+02 : f32
    %611 = vector.broadcast %cst_142 : f32 to vector<8x8x1xf32>
    %612 = arith.divf %610, %611 : vector<8x8x1xf32>
    %613 = arith.mulf %607, %607 : vector<8x8x1xf32>
    %614 = arith.subf %612, %613 : vector<8x8x1xf32>
    %cst_143 = arith.constant 0.000000e+00 : f32
    %615 = vector.broadcast %cst_143 : f32 to vector<8x8x1xf32>
    %616 = arith.maximumf %614, %615 : vector<8x8x1xf32>
    %617 = vector.broadcast %607 : vector<8x8x1xf32> to vector<8x8x128xf32>
    %618 = arith.subf %601, %617 : vector<8x8x128xf32>
    %cst_144 = arith.constant 9.99999974E-6 : f32
    %619 = vector.broadcast %cst_144 : f32 to vector<8x8x1xf32>
    %620 = arith.addf %616, %619 : vector<8x8x1xf32>
    %621 = math.rsqrt %620 : vector<8x8x1xf32>
    %622 = vector.broadcast %621 : vector<8x8x1xf32> to vector<8x8x128xf32>
    %623 = arith.mulf %618, %622 : vector<8x8x128xf32>
    %624 = vector.shape_cast %602 : vector<1x128xf32> to vector<1x1x128xf32>
    %625 = vector.broadcast %624 : vector<1x1x128xf32> to vector<8x8x128xf32>
    %626 = arith.mulf %623, %625 : vector<8x8x128xf32>
    %627 = vector.shape_cast %603 : vector<1x128xf32> to vector<1x1x128xf32>
    %628 = vector.broadcast %627 : vector<1x1x128xf32> to vector<8x8x128xf32>
    %629 = arith.addf %626, %628 : vector<8x8x128xf32>
    %c1_145 = arith.constant 1 : index
    %c1_146 = arith.constant 1 : index
    %c0_147 = arith.constant 0 : index
    %630 = vector.load %arg21[%c1_145, %c1_146, %c0_147] : memref<10x10x128xf32, #tpu.memory_space<vmem>>, vector<8x8x128xf32>
    tpu.vector_store %arg21[%c1_145, %c1_146, %c0_147], %629 {strides = array<i32>} : memref<10x10x128xf32, #tpu.memory_space<vmem>>, vector<8x8x128xf32>,
    %cst_148 = arith.constant 0.000000e+00 : f32
    %631 = vector.broadcast %cst_148 : f32 to vector<8x8x128xf32>
    %cst_149 = arith.constant 0.000000e+00 : f32
    %632 = vector.broadcast %cst_149 : f32 to vector<8x8x128xf32>
    %cst_150 = arith.constant 0.000000e+00 : f32
    %633 = vector.broadcast %cst_150 : f32 to vector<8x8x128xf32>
    %c0_151 = arith.constant 0 : index
    %c0_152 = arith.constant 0 : index
    %c0_153 = arith.constant 0 : index
    %634 = vector.load %arg21[%c0_151, %c0_152, %c0_153] : memref<10x10x128xf32, #tpu.memory_space<vmem>>, vector<10x8x128xf32>
    %c3_i32_154 = arith.constant 3 : i32
    %635 = tpu.dynamic_rotate %634 by %c3_i32_154 dim 2 : vector<10x8x128xf32>, i32 -> vector<10x8x128xf32>
    %636 = vector.extract_strided_slice %635 {offsets = [0, 0, 0], sizes = [8, 8, 128], strides = [1, 1, 1]} : vector<10x8x128xf32> to vector<8x8x128xf32>
    %637 = vector.extract_strided_slice %43 {offsets = [0, 0, 0], sizes = [1, 1, 128], strides = [1, 1, 1]} : vector<9x7x128xf32> to vector<1x1x128xf32>
    %638 = vector.broadcast %637 : vector<1x1x128xf32> to vector<8x8x128xf32>
    %639 = arith.mulf %636, %638 : vector<8x8x128xf32>
    %640 = arith.addf %631, %639 : vector<8x8x128xf32>
    %641 = vector.extract_strided_slice %635 {offsets = [1, 0, 0], sizes = [8, 8, 128], strides = [1, 1, 1]} : vector<10x8x128xf32> to vector<8x8x128xf32>
    %642 = vector.extract_strided_slice %43 {offsets = [3, 0, 0], sizes = [1, 1, 128], strides = [1, 1, 1]} : vector<9x7x128xf32> to vector<1x1x128xf32>
    %643 = vector.broadcast %642 : vector<1x1x128xf32> to vector<8x8x128xf32>
    %644 = arith.mulf %641, %643 : vector<8x8x128xf32>
    %645 = arith.addf %632, %644 : vector<8x8x128xf32>
    %646 = vector.extract_strided_slice %635 {offsets = [2, 0, 0], sizes = [8, 8, 128], strides = [1, 1, 1]} : vector<10x8x128xf32> to vector<8x8x128xf32>
    %647 = vector.extract_strided_slice %43 {offsets = [6, 0, 0], sizes = [1, 1, 128], strides = [1, 1, 1]} : vector<9x7x128xf32> to vector<1x1x128xf32>
    %648 = vector.broadcast %647 : vector<1x1x128xf32> to vector<8x8x128xf32>
    %649 = arith.mulf %646, %648 : vector<8x8x128xf32>
    %650 = arith.addf %633, %649 : vector<8x8x128xf32>
    %c2_i32_155 = arith.constant 2 : i32
    %651 = tpu.dynamic_rotate %634 by %c2_i32_155 dim 2 : vector<10x8x128xf32>, i32 -> vector<10x8x128xf32>
    %652 = vector.extract_strided_slice %651 {offsets = [0, 0, 0], sizes = [8, 8, 128], strides = [1, 1, 1]} : vector<10x8x128xf32> to vector<8x8x128xf32>
    %653 = vector.extract_strided_slice %43 {offsets = [0, 1, 0], sizes = [1, 1, 128], strides = [1, 1, 1]} : vector<9x7x128xf32> to vector<1x1x128xf32>
    %654 = vector.broadcast %653 : vector<1x1x128xf32> to vector<8x8x128xf32>
    %655 = arith.mulf %652, %654 : vector<8x8x128xf32>
    %656 = arith.addf %640, %655 : vector<8x8x128xf32>
    %657 = vector.extract_strided_slice %651 {offsets = [1, 0, 0], sizes = [8, 8, 128], strides = [1, 1, 1]} : vector<10x8x128xf32> to vector<8x8x128xf32>
    %658 = vector.extract_strided_slice %43 {offsets = [3, 1, 0], sizes = [1, 1, 128], strides = [1, 1, 1]} : vector<9x7x128xf32> to vector<1x1x128xf32>
    %659 = vector.broadcast %658 : vector<1x1x128xf32> to vector<8x8x128xf32>
    %660 = arith.mulf %657, %659 : vector<8x8x128xf32>
    %661 = arith.addf %645, %660 : vector<8x8x128xf32>
    %662 = vector.extract_strided_slice %651 {offsets = [2, 0, 0], sizes = [8, 8, 128], strides = [1, 1, 1]} : vector<10x8x128xf32> to vector<8x8x128xf32>
    %663 = vector.extract_strided_slice %43 {offsets = [6, 1, 0], sizes = [1, 1, 128], strides = [1, 1, 1]} : vector<9x7x128xf32> to vector<1x1x128xf32>
    %664 = vector.broadcast %663 : vector<1x1x128xf32> to vector<8x8x128xf32>
    %665 = arith.mulf %662, %664 : vector<8x8x128xf32>
    %666 = arith.addf %650, %665 : vector<8x8x128xf32>
    %c1_i32_156 = arith.constant 1 : i32
    %667 = tpu.dynamic_rotate %634 by %c1_i32_156 dim 2 : vector<10x8x128xf32>, i32 -> vector<10x8x128xf32>
    %668 = vector.extract_strided_slice %667 {offsets = [0, 0, 0], sizes = [8, 8, 128], strides = [1, 1, 1]} : vector<10x8x128xf32> to vector<8x8x128xf32>
    %669 = vector.extract_strided_slice %43 {offsets = [0, 2, 0], sizes = [1, 1, 128], strides = [1, 1, 1]} : vector<9x7x128xf32> to vector<1x1x128xf32>
    %670 = vector.broadcast %669 : vector<1x1x128xf32> to vector<8x8x128xf32>
    %671 = arith.mulf %668, %670 : vector<8x8x128xf32>
    %672 = arith.addf %656, %671 : vector<8x8x128xf32>
    %673 = vector.extract_strided_slice %667 {offsets = [1, 0, 0], sizes = [8, 8, 128], strides = [1, 1, 1]} : vector<10x8x128xf32> to vector<8x8x128xf32>
    %674 = vector.extract_strided_slice %43 {offsets = [3, 2, 0], sizes = [1, 1, 128], strides = [1, 1, 1]} : vector<9x7x128xf32> to vector<1x1x128xf32>
    %675 = vector.broadcast %674 : vector<1x1x128xf32> to vector<8x8x128xf32>
    %676 = arith.mulf %673, %675 : vector<8x8x128xf32>
    %677 = arith.addf %661, %676 : vector<8x8x128xf32>
    %678 = vector.extract_strided_slice %667 {offsets = [2, 0, 0], sizes = [8, 8, 128], strides = [1, 1, 1]} : vector<10x8x128xf32> to vector<8x8x128xf32>
    %679 = vector.extract_strided_slice %43 {offsets = [6, 2, 0], sizes = [1, 1, 128], strides = [1, 1, 1]} : vector<9x7x128xf32> to vector<1x1x128xf32>
    %680 = vector.broadcast %679 : vector<1x1x128xf32> to vector<8x8x128xf32>
    %681 = arith.mulf %678, %680 : vector<8x8x128xf32>
    %682 = arith.addf %666, %681 : vector<8x8x128xf32>
    %683 = vector.extract_strided_slice %634 {offsets = [0, 0, 0], sizes = [8, 8, 128], strides = [1, 1, 1]} : vector<10x8x128xf32> to vector<8x8x128xf32>
    %684 = vector.extract_strided_slice %43 {offsets = [0, 3, 0], sizes = [1, 1, 128], strides = [1, 1, 1]} : vector<9x7x128xf32> to vector<1x1x128xf32>
    %685 = vector.broadcast %684 : vector<1x1x128xf32> to vector<8x8x128xf32>
    %686 = arith.mulf %683, %685 : vector<8x8x128xf32>
    %687 = arith.addf %672, %686 : vector<8x8x128xf32>
    %688 = vector.extract_strided_slice %634 {offsets = [1, 0, 0], sizes = [8, 8, 128], strides = [1, 1, 1]} : vector<10x8x128xf32> to vector<8x8x128xf32>
    %689 = vector.extract_strided_slice %43 {offsets = [3, 3, 0], sizes = [1, 1, 128], strides = [1, 1, 1]} : vector<9x7x128xf32> to vector<1x1x128xf32>
    %690 = vector.broadcast %689 : vector<1x1x128xf32> to vector<8x8x128xf32>
    %691 = arith.mulf %688, %690 : vector<8x8x128xf32>
    %692 = arith.addf %677, %691 : vector<8x8x128xf32>
    %693 = vector.extract_strided_slice %634 {offsets = [2, 0, 0], sizes = [8, 8, 128], strides = [1, 1, 1]} : vector<10x8x128xf32> to vector<8x8x128xf32>
    %694 = vector.extract_strided_slice %43 {offsets = [6, 3, 0], sizes = [1, 1, 128], strides = [1, 1, 1]} : vector<9x7x128xf32> to vector<1x1x128xf32>
    %695 = vector.broadcast %694 : vector<1x1x128xf32> to vector<8x8x128xf32>
    %696 = arith.mulf %693, %695 : vector<8x8x128xf32>
    %697 = arith.addf %682, %696 : vector<8x8x128xf32>
    %c127_i32_157 = arith.constant 127 : i32
    %698 = tpu.dynamic_rotate %634 by %c127_i32_157 dim 2 : vector<10x8x128xf32>, i32 -> vector<10x8x128xf32>
    %699 = vector.extract_strided_slice %698 {offsets = [0, 0, 0], sizes = [8, 8, 128], strides = [1, 1, 1]} : vector<10x8x128xf32> to vector<8x8x128xf32>
    %700 = vector.extract_strided_slice %43 {offsets = [0, 4, 0], sizes = [1, 1, 128], strides = [1, 1, 1]} : vector<9x7x128xf32> to vector<1x1x128xf32>
    %701 = vector.broadcast %700 : vector<1x1x128xf32> to vector<8x8x128xf32>
    %702 = arith.mulf %699, %701 : vector<8x8x128xf32>
    %703 = arith.addf %687, %702 : vector<8x8x128xf32>
    %704 = vector.extract_strided_slice %698 {offsets = [1, 0, 0], sizes = [8, 8, 128], strides = [1, 1, 1]} : vector<10x8x128xf32> to vector<8x8x128xf32>
    %705 = vector.extract_strided_slice %43 {offsets = [3, 4, 0], sizes = [1, 1, 128], strides = [1, 1, 1]} : vector<9x7x128xf32> to vector<1x1x128xf32>
    %706 = vector.broadcast %705 : vector<1x1x128xf32> to vector<8x8x128xf32>
    %707 = arith.mulf %704, %706 : vector<8x8x128xf32>
    %708 = arith.addf %692, %707 : vector<8x8x128xf32>
    %709 = vector.extract_strided_slice %698 {offsets = [2, 0, 0], sizes = [8, 8, 128], strides = [1, 1, 1]} : vector<10x8x128xf32> to vector<8x8x128xf32>
    %710 = vector.extract_strided_slice %43 {offsets = [6, 4, 0], sizes = [1, 1, 128], strides = [1, 1, 1]} : vector<9x7x128xf32> to vector<1x1x128xf32>
    %711 = vector.broadcast %710 : vector<1x1x128xf32> to vector<8x8x128xf32>
    %712 = arith.mulf %709, %711 : vector<8x8x128xf32>
    %713 = arith.addf %697, %712 : vector<8x8x128xf32>
    %c126_i32_158 = arith.constant 126 : i32
    %714 = tpu.dynamic_rotate %634 by %c126_i32_158 dim 2 : vector<10x8x128xf32>, i32 -> vector<10x8x128xf32>
    %715 = vector.extract_strided_slice %714 {offsets = [0, 0, 0], sizes = [8, 8, 128], strides = [1, 1, 1]} : vector<10x8x128xf32> to vector<8x8x128xf32>
    %716 = vector.extract_strided_slice %43 {offsets = [0, 5, 0], sizes = [1, 1, 128], strides = [1, 1, 1]} : vector<9x7x128xf32> to vector<1x1x128xf32>
    %717 = vector.broadcast %716 : vector<1x1x128xf32> to vector<8x8x128xf32>
    %718 = arith.mulf %715, %717 : vector<8x8x128xf32>
    %719 = arith.addf %703, %718 : vector<8x8x128xf32>
    %720 = vector.extract_strided_slice %714 {offsets = [1, 0, 0], sizes = [8, 8, 128], strides = [1, 1, 1]} : vector<10x8x128xf32> to vector<8x8x128xf32>
    %721 = vector.extract_strided_slice %43 {offsets = [3, 5, 0], sizes = [1, 1, 128], strides = [1, 1, 1]} : vector<9x7x128xf32> to vector<1x1x128xf32>
    %722 = vector.broadcast %721 : vector<1x1x128xf32> to vector<8x8x128xf32>
    %723 = arith.mulf %720, %722 : vector<8x8x128xf32>
    %724 = arith.addf %708, %723 : vector<8x8x128xf32>
    %725 = vector.extract_strided_slice %714 {offsets = [2, 0, 0], sizes = [8, 8, 128], strides = [1, 1, 1]} : vector<10x8x128xf32> to vector<8x8x128xf32>
    %726 = vector.extract_strided_slice %43 {offsets = [6, 5, 0], sizes = [1, 1, 128], strides = [1, 1, 1]} : vector<9x7x128xf32> to vector<1x1x128xf32>
    %727 = vector.broadcast %726 : vector<1x1x128xf32> to vector<8x8x128xf32>
    %728 = arith.mulf %725, %727 : vector<8x8x128xf32>
    %729 = arith.addf %713, %728 : vector<8x8x128xf32>
    %c125_i32_159 = arith.constant 125 : i32
    %730 = tpu.dynamic_rotate %634 by %c125_i32_159 dim 2 : vector<10x8x128xf32>, i32 -> vector<10x8x128xf32>
    %731 = vector.extract_strided_slice %730 {offsets = [0, 0, 0], sizes = [8, 8, 128], strides = [1, 1, 1]} : vector<10x8x128xf32> to vector<8x8x128xf32>
    %732 = vector.extract_strided_slice %43 {offsets = [0, 6, 0], sizes = [1, 1, 128], strides = [1, 1, 1]} : vector<9x7x128xf32> to vector<1x1x128xf32>
    %733 = vector.broadcast %732 : vector<1x1x128xf32> to vector<8x8x128xf32>
    %734 = arith.mulf %731, %733 : vector<8x8x128xf32>
    %735 = arith.addf %719, %734 : vector<8x8x128xf32>
    %736 = vector.extract_strided_slice %730 {offsets = [1, 0, 0], sizes = [8, 8, 128], strides = [1, 1, 1]} : vector<10x8x128xf32> to vector<8x8x128xf32>
    %737 = vector.extract_strided_slice %43 {offsets = [3, 6, 0], sizes = [1, 1, 128], strides = [1, 1, 1]} : vector<9x7x128xf32> to vector<1x1x128xf32>
    %738 = vector.broadcast %737 : vector<1x1x128xf32> to vector<8x8x128xf32>
    %739 = arith.mulf %736, %738 : vector<8x8x128xf32>
    %740 = arith.addf %724, %739 : vector<8x8x128xf32>
    %741 = vector.extract_strided_slice %730 {offsets = [2, 0, 0], sizes = [8, 8, 128], strides = [1, 1, 1]} : vector<10x8x128xf32> to vector<8x8x128xf32>
    %742 = vector.extract_strided_slice %43 {offsets = [6, 6, 0], sizes = [1, 1, 128], strides = [1, 1, 1]} : vector<9x7x128xf32> to vector<1x1x128xf32>
    %743 = vector.broadcast %742 : vector<1x1x128xf32> to vector<8x8x128xf32>
    %744 = arith.mulf %741, %743 : vector<8x8x128xf32>
    %745 = arith.addf %729, %744 : vector<8x8x128xf32>
    %c0_160 = arith.constant 0 : index
    %c1_161 = arith.constant 1 : index
    %c0_162 = arith.constant 0 : index
    %746 = vector.load %arg21[%c0_160, %c1_161, %c0_162] : memref<10x10x128xf32, #tpu.memory_space<vmem>>, vector<10x8x128xf32>
    %c3_i32_163 = arith.constant 3 : i32
    %747 = tpu.dynamic_rotate %746 by %c3_i32_163 dim 2 : vector<10x8x128xf32>, i32 -> vector<10x8x128xf32>
    %748 = vector.extract_strided_slice %747 {offsets = [0, 0, 0], sizes = [8, 8, 128], strides = [1, 1, 1]} : vector<10x8x128xf32> to vector<8x8x128xf32>
    %749 = vector.extract_strided_slice %43 {offsets = [1, 0, 0], sizes = [1, 1, 128], strides = [1, 1, 1]} : vector<9x7x128xf32> to vector<1x1x128xf32>
    %750 = vector.broadcast %749 : vector<1x1x128xf32> to vector<8x8x128xf32>
    %751 = arith.mulf %748, %750 : vector<8x8x128xf32>
    %752 = arith.addf %735, %751 : vector<8x8x128xf32>
    %753 = vector.extract_strided_slice %747 {offsets = [1, 0, 0], sizes = [8, 8, 128], strides = [1, 1, 1]} : vector<10x8x128xf32> to vector<8x8x128xf32>
    %754 = vector.extract_strided_slice %43 {offsets = [4, 0, 0], sizes = [1, 1, 128], strides = [1, 1, 1]} : vector<9x7x128xf32> to vector<1x1x128xf32>
    %755 = vector.broadcast %754 : vector<1x1x128xf32> to vector<8x8x128xf32>
    %756 = arith.mulf %753, %755 : vector<8x8x128xf32>
    %757 = arith.addf %740, %756 : vector<8x8x128xf32>
    %758 = vector.extract_strided_slice %747 {offsets = [2, 0, 0], sizes = [8, 8, 128], strides = [1, 1, 1]} : vector<10x8x128xf32> to vector<8x8x128xf32>
    %759 = vector.extract_strided_slice %43 {offsets = [7, 0, 0], sizes = [1, 1, 128], strides = [1, 1, 1]} : vector<9x7x128xf32> to vector<1x1x128xf32>
    %760 = vector.broadcast %759 : vector<1x1x128xf32> to vector<8x8x128xf32>
    %761 = arith.mulf %758, %760 : vector<8x8x128xf32>
    %762 = arith.addf %745, %761 : vector<8x8x128xf32>
    %c2_i32_164 = arith.constant 2 : i32
    %763 = tpu.dynamic_rotate %746 by %c2_i32_164 dim 2 : vector<10x8x128xf32>, i32 -> vector<10x8x128xf32>
    %764 = vector.extract_strided_slice %763 {offsets = [0, 0, 0], sizes = [8, 8, 128], strides = [1, 1, 1]} : vector<10x8x128xf32> to vector<8x8x128xf32>
    %765 = vector.extract_strided_slice %43 {offsets = [1, 1, 0], sizes = [1, 1, 128], strides = [1, 1, 1]} : vector<9x7x128xf32> to vector<1x1x128xf32>
    %766 = vector.broadcast %765 : vector<1x1x128xf32> to vector<8x8x128xf32>
    %767 = arith.mulf %764, %766 : vector<8x8x128xf32>
    %768 = arith.addf %752, %767 : vector<8x8x128xf32>
    %769 = vector.extract_strided_slice %763 {offsets = [1, 0, 0], sizes = [8, 8, 128], strides = [1, 1, 1]} : vector<10x8x128xf32> to vector<8x8x128xf32>
    %770 = vector.extract_strided_slice %43 {offsets = [4, 1, 0], sizes = [1, 1, 128], strides = [1, 1, 1]} : vector<9x7x128xf32> to vector<1x1x128xf32>
    %771 = vector.broadcast %770 : vector<1x1x128xf32> to vector<8x8x128xf32>
    %772 = arith.mulf %769, %771 : vector<8x8x128xf32>
    %773 = arith.addf %757, %772 : vector<8x8x128xf32>
    %774 = vector.extract_strided_slice %763 {offsets = [2, 0, 0], sizes = [8, 8, 128], strides = [1, 1, 1]} : vector<10x8x128xf32> to vector<8x8x128xf32>
    %775 = vector.extract_strided_slice %43 {offsets = [7, 1, 0], sizes = [1, 1, 128], strides = [1, 1, 1]} : vector<9x7x128xf32> to vector<1x1x128xf32>
    %776 = vector.broadcast %775 : vector<1x1x128xf32> to vector<8x8x128xf32>
    %777 = arith.mulf %774, %776 : vector<8x8x128xf32>
    %778 = arith.addf %762, %777 : vector<8x8x128xf32>
    %c1_i32_165 = arith.constant 1 : i32
    %779 = tpu.dynamic_rotate %746 by %c1_i32_165 dim 2 : vector<10x8x128xf32>, i32 -> vector<10x8x128xf32>
    %780 = vector.extract_strided_slice %779 {offsets = [0, 0, 0], sizes = [8, 8, 128], strides = [1, 1, 1]} : vector<10x8x128xf32> to vector<8x8x128xf32>
    %781 = vector.extract_strided_slice %43 {offsets = [1, 2, 0], sizes = [1, 1, 128], strides = [1, 1, 1]} : vector<9x7x128xf32> to vector<1x1x128xf32>
    %782 = vector.broadcast %781 : vector<1x1x128xf32> to vector<8x8x128xf32>
    %783 = arith.mulf %780, %782 : vector<8x8x128xf32>
    %784 = arith.addf %768, %783 : vector<8x8x128xf32>
    %785 = vector.extract_strided_slice %779 {offsets = [1, 0, 0], sizes = [8, 8, 128], strides = [1, 1, 1]} : vector<10x8x128xf32> to vector<8x8x128xf32>
    %786 = vector.extract_strided_slice %43 {offsets = [4, 2, 0], sizes = [1, 1, 128], strides = [1, 1, 1]} : vector<9x7x128xf32> to vector<1x1x128xf32>
    %787 = vector.broadcast %786 : vector<1x1x128xf32> to vector<8x8x128xf32>
    %788 = arith.mulf %785, %787 : vector<8x8x128xf32>
    %789 = arith.addf %773, %788 : vector<8x8x128xf32>
    %790 = vector.extract_strided_slice %779 {offsets = [2, 0, 0], sizes = [8, 8, 128], strides = [1, 1, 1]} : vector<10x8x128xf32> to vector<8x8x128xf32>
    %791 = vector.extract_strided_slice %43 {offsets = [7, 2, 0], sizes = [1, 1, 128], strides = [1, 1, 1]} : vector<9x7x128xf32> to vector<1x1x128xf32>
    %792 = vector.broadcast %791 : vector<1x1x128xf32> to vector<8x8x128xf32>
    %793 = arith.mulf %790, %792 : vector<8x8x128xf32>
    %794 = arith.addf %778, %793 : vector<8x8x128xf32>
    %795 = vector.extract_strided_slice %746 {offsets = [0, 0, 0], sizes = [8, 8, 128], strides = [1, 1, 1]} : vector<10x8x128xf32> to vector<8x8x128xf32>
    %796 = vector.extract_strided_slice %43 {offsets = [1, 3, 0], sizes = [1, 1, 128], strides = [1, 1, 1]} : vector<9x7x128xf32> to vector<1x1x128xf32>
    %797 = vector.broadcast %796 : vector<1x1x128xf32> to vector<8x8x128xf32>
    %798 = arith.mulf %795, %797 : vector<8x8x128xf32>
    %799 = arith.addf %784, %798 : vector<8x8x128xf32>
    %800 = vector.extract_strided_slice %746 {offsets = [1, 0, 0], sizes = [8, 8, 128], strides = [1, 1, 1]} : vector<10x8x128xf32> to vector<8x8x128xf32>
    %801 = vector.extract_strided_slice %43 {offsets = [4, 3, 0], sizes = [1, 1, 128], strides = [1, 1, 1]} : vector<9x7x128xf32> to vector<1x1x128xf32>
    %802 = vector.broadcast %801 : vector<1x1x128xf32> to vector<8x8x128xf32>
    %803 = arith.mulf %800, %802 : vector<8x8x128xf32>
    %804 = arith.addf %789, %803 : vector<8x8x128xf32>
    %805 = vector.extract_strided_slice %746 {offsets = [2, 0, 0], sizes = [8, 8, 128], strides = [1, 1, 1]} : vector<10x8x128xf32> to vector<8x8x128xf32>
    %806 = vector.extract_strided_slice %43 {offsets = [7, 3, 0], sizes = [1, 1, 128], strides = [1, 1, 1]} : vector<9x7x128xf32> to vector<1x1x128xf32>
    %807 = vector.broadcast %806 : vector<1x1x128xf32> to vector<8x8x128xf32>
    %808 = arith.mulf %805, %807 : vector<8x8x128xf32>
    %809 = arith.addf %794, %808 : vector<8x8x128xf32>
    %c127_i32_166 = arith.constant 127 : i32
    %810 = tpu.dynamic_rotate %746 by %c127_i32_166 dim 2 : vector<10x8x128xf32>, i32 -> vector<10x8x128xf32>
    %811 = vector.extract_strided_slice %810 {offsets = [0, 0, 0], sizes = [8, 8, 128], strides = [1, 1, 1]} : vector<10x8x128xf32> to vector<8x8x128xf32>
    %812 = vector.extract_strided_slice %43 {offsets = [1, 4, 0], sizes = [1, 1, 128], strides = [1, 1, 1]} : vector<9x7x128xf32> to vector<1x1x128xf32>
    %813 = vector.broadcast %812 : vector<1x1x128xf32> to vector<8x8x128xf32>
    %814 = arith.mulf %811, %813 : vector<8x8x128xf32>
    %815 = arith.addf %799, %814 : vector<8x8x128xf32>
    %816 = vector.extract_strided_slice %810 {offsets = [1, 0, 0], sizes = [8, 8, 128], strides = [1, 1, 1]} : vector<10x8x128xf32> to vector<8x8x128xf32>
    %817 = vector.extract_strided_slice %43 {offsets = [4, 4, 0], sizes = [1, 1, 128], strides = [1, 1, 1]} : vector<9x7x128xf32> to vector<1x1x128xf32>
    %818 = vector.broadcast %817 : vector<1x1x128xf32> to vector<8x8x128xf32>
    %819 = arith.mulf %816, %818 : vector<8x8x128xf32>
    %820 = arith.addf %804, %819 : vector<8x8x128xf32>
    %821 = vector.extract_strided_slice %810 {offsets = [2, 0, 0], sizes = [8, 8, 128], strides = [1, 1, 1]} : vector<10x8x128xf32> to vector<8x8x128xf32>
    %822 = vector.extract_strided_slice %43 {offsets = [7, 4, 0], sizes = [1, 1, 128], strides = [1, 1, 1]} : vector<9x7x128xf32> to vector<1x1x128xf32>
    %823 = vector.broadcast %822 : vector<1x1x128xf32> to vector<8x8x128xf32>
    %824 = arith.mulf %821, %823 : vector<8x8x128xf32>
    %825 = arith.addf %809, %824 : vector<8x8x128xf32>
    %c126_i32_167 = arith.constant 126 : i32
    %826 = tpu.dynamic_rotate %746 by %c126_i32_167 dim 2 : vector<10x8x128xf32>, i32 -> vector<10x8x128xf32>
    %827 = vector.extract_strided_slice %826 {offsets = [0, 0, 0], sizes = [8, 8, 128], strides = [1, 1, 1]} : vector<10x8x128xf32> to vector<8x8x128xf32>
    %828 = vector.extract_strided_slice %43 {offsets = [1, 5, 0], sizes = [1, 1, 128], strides = [1, 1, 1]} : vector<9x7x128xf32> to vector<1x1x128xf32>
    %829 = vector.broadcast %828 : vector<1x1x128xf32> to vector<8x8x128xf32>
    %830 = arith.mulf %827, %829 : vector<8x8x128xf32>
    %831 = arith.addf %815, %830 : vector<8x8x128xf32>
    %832 = vector.extract_strided_slice %826 {offsets = [1, 0, 0], sizes = [8, 8, 128], strides = [1, 1, 1]} : vector<10x8x128xf32> to vector<8x8x128xf32>
    %833 = vector.extract_strided_slice %43 {offsets = [4, 5, 0], sizes = [1, 1, 128], strides = [1, 1, 1]} : vector<9x7x128xf32> to vector<1x1x128xf32>
    %834 = vector.broadcast %833 : vector<1x1x128xf32> to vector<8x8x128xf32>
    %835 = arith.mulf %832, %834 : vector<8x8x128xf32>
    %836 = arith.addf %820, %835 : vector<8x8x128xf32>
    %837 = vector.extract_strided_slice %826 {offsets = [2, 0, 0], sizes = [8, 8, 128], strides = [1, 1, 1]} : vector<10x8x128xf32> to vector<8x8x128xf32>
    %838 = vector.extract_strided_slice %43 {offsets = [7, 5, 0], sizes = [1, 1, 128], strides = [1, 1, 1]} : vector<9x7x128xf32> to vector<1x1x128xf32>
    %839 = vector.broadcast %838 : vector<1x1x128xf32> to vector<8x8x128xf32>
    %840 = arith.mulf %837, %839 : vector<8x8x128xf32>
    %841 = arith.addf %825, %840 : vector<8x8x128xf32>
    %c125_i32_168 = arith.constant 125 : i32
    %842 = tpu.dynamic_rotate %746 by %c125_i32_168 dim 2 : vector<10x8x128xf32>, i32 -> vector<10x8x128xf32>
    %843 = vector.extract_strided_slice %842 {offsets = [0, 0, 0], sizes = [8, 8, 128], strides = [1, 1, 1]} : vector<10x8x128xf32> to vector<8x8x128xf32>
    %844 = vector.extract_strided_slice %43 {offsets = [1, 6, 0], sizes = [1, 1, 128], strides = [1, 1, 1]} : vector<9x7x128xf32> to vector<1x1x128xf32>
    %845 = vector.broadcast %844 : vector<1x1x128xf32> to vector<8x8x128xf32>
    %846 = arith.mulf %843, %845 : vector<8x8x128xf32>
    %847 = arith.addf %831, %846 : vector<8x8x128xf32>
    %848 = vector.extract_strided_slice %842 {offsets = [1, 0, 0], sizes = [8, 8, 128], strides = [1, 1, 1]} : vector<10x8x128xf32> to vector<8x8x128xf32>
    %849 = vector.extract_strided_slice %43 {offsets = [4, 6, 0], sizes = [1, 1, 128], strides = [1, 1, 1]} : vector<9x7x128xf32> to vector<1x1x128xf32>
    %850 = vector.broadcast %849 : vector<1x1x128xf32> to vector<8x8x128xf32>
    %851 = arith.mulf %848, %850 : vector<8x8x128xf32>
    %852 = arith.addf %836, %851 : vector<8x8x128xf32>
    %853 = vector.extract_strided_slice %842 {offsets = [2, 0, 0], sizes = [8, 8, 128], strides = [1, 1, 1]} : vector<10x8x128xf32> to vector<8x8x128xf32>
    %854 = vector.extract_strided_slice %43 {offsets = [7, 6, 0], sizes = [1, 1, 128], strides = [1, 1, 1]} : vector<9x7x128xf32> to vector<1x1x128xf32>
    %855 = vector.broadcast %854 : vector<1x1x128xf32> to vector<8x8x128xf32>
    %856 = arith.mulf %853, %855 : vector<8x8x128xf32>
    %857 = arith.addf %841, %856 : vector<8x8x128xf32>
    %c0_169 = arith.constant 0 : index
    %c2_170 = arith.constant 2 : index
    %c0_171 = arith.constant 0 : index
    %858 = vector.load %arg21[%c0_169, %c2_170, %c0_171] : memref<10x10x128xf32, #tpu.memory_space<vmem>>, vector<10x8x128xf32>
    %c3_i32_172 = arith.constant 3 : i32
    %859 = tpu.dynamic_rotate %858 by %c3_i32_172 dim 2 : vector<10x8x128xf32>, i32 -> vector<10x8x128xf32>
    %860 = vector.extract_strided_slice %859 {offsets = [0, 0, 0], sizes = [8, 8, 128], strides = [1, 1, 1]} : vector<10x8x128xf32> to vector<8x8x128xf32>
    %861 = vector.extract_strided_slice %43 {offsets = [2, 0, 0], sizes = [1, 1, 128], strides = [1, 1, 1]} : vector<9x7x128xf32> to vector<1x1x128xf32>
    %862 = vector.broadcast %861 : vector<1x1x128xf32> to vector<8x8x128xf32>
    %863 = arith.mulf %860, %862 : vector<8x8x128xf32>
    %864 = arith.addf %847, %863 : vector<8x8x128xf32>
    %865 = vector.extract_strided_slice %859 {offsets = [1, 0, 0], sizes = [8, 8, 128], strides = [1, 1, 1]} : vector<10x8x128xf32> to vector<8x8x128xf32>
    %866 = vector.extract_strided_slice %43 {offsets = [5, 0, 0], sizes = [1, 1, 128], strides = [1, 1, 1]} : vector<9x7x128xf32> to vector<1x1x128xf32>
    %867 = vector.broadcast %866 : vector<1x1x128xf32> to vector<8x8x128xf32>
    %868 = arith.mulf %865, %867 : vector<8x8x128xf32>
    %869 = arith.addf %852, %868 : vector<8x8x128xf32>
    %870 = vector.extract_strided_slice %859 {offsets = [2, 0, 0], sizes = [8, 8, 128], strides = [1, 1, 1]} : vector<10x8x128xf32> to vector<8x8x128xf32>
    %871 = vector.extract_strided_slice %43 {offsets = [8, 0, 0], sizes = [1, 1, 128], strides = [1, 1, 1]} : vector<9x7x128xf32> to vector<1x1x128xf32>
    %872 = vector.broadcast %871 : vector<1x1x128xf32> to vector<8x8x128xf32>
    %873 = arith.mulf %870, %872 : vector<8x8x128xf32>
    %874 = arith.addf %857, %873 : vector<8x8x128xf32>
    %c2_i32_173 = arith.constant 2 : i32
    %875 = tpu.dynamic_rotate %858 by %c2_i32_173 dim 2 : vector<10x8x128xf32>, i32 -> vector<10x8x128xf32>
    %876 = vector.extract_strided_slice %875 {offsets = [0, 0, 0], sizes = [8, 8, 128], strides = [1, 1, 1]} : vector<10x8x128xf32> to vector<8x8x128xf32>
    %877 = vector.extract_strided_slice %43 {offsets = [2, 1, 0], sizes = [1, 1, 128], strides = [1, 1, 1]} : vector<9x7x128xf32> to vector<1x1x128xf32>
    %878 = vector.broadcast %877 : vector<1x1x128xf32> to vector<8x8x128xf32>
    %879 = arith.mulf %876, %878 : vector<8x8x128xf32>
    %880 = arith.addf %864, %879 : vector<8x8x128xf32>
    %881 = vector.extract_strided_slice %875 {offsets = [1, 0, 0], sizes = [8, 8, 128], strides = [1, 1, 1]} : vector<10x8x128xf32> to vector<8x8x128xf32>
    %882 = vector.extract_strided_slice %43 {offsets = [5, 1, 0], sizes = [1, 1, 128], strides = [1, 1, 1]} : vector<9x7x128xf32> to vector<1x1x128xf32>
    %883 = vector.broadcast %882 : vector<1x1x128xf32> to vector<8x8x128xf32>
    %884 = arith.mulf %881, %883 : vector<8x8x128xf32>
    %885 = arith.addf %869, %884 : vector<8x8x128xf32>
    %886 = vector.extract_strided_slice %875 {offsets = [2, 0, 0], sizes = [8, 8, 128], strides = [1, 1, 1]} : vector<10x8x128xf32> to vector<8x8x128xf32>
    %887 = vector.extract_strided_slice %43 {offsets = [8, 1, 0], sizes = [1, 1, 128], strides = [1, 1, 1]} : vector<9x7x128xf32> to vector<1x1x128xf32>
    %888 = vector.broadcast %887 : vector<1x1x128xf32> to vector<8x8x128xf32>
    %889 = arith.mulf %886, %888 : vector<8x8x128xf32>
    %890 = arith.addf %874, %889 : vector<8x8x128xf32>
    %c1_i32_174 = arith.constant 1 : i32
    %891 = tpu.dynamic_rotate %858 by %c1_i32_174 dim 2 : vector<10x8x128xf32>, i32 -> vector<10x8x128xf32>
    %892 = vector.extract_strided_slice %891 {offsets = [0, 0, 0], sizes = [8, 8, 128], strides = [1, 1, 1]} : vector<10x8x128xf32> to vector<8x8x128xf32>
    %893 = vector.extract_strided_slice %43 {offsets = [2, 2, 0], sizes = [1, 1, 128], strides = [1, 1, 1]} : vector<9x7x128xf32> to vector<1x1x128xf32>
    %894 = vector.broadcast %893 : vector<1x1x128xf32> to vector<8x8x128xf32>
    %895 = arith.mulf %892, %894 : vector<8x8x128xf32>
    %896 = arith.addf %880, %895 : vector<8x8x128xf32>
    %897 = vector.extract_strided_slice %891 {offsets = [1, 0, 0], sizes = [8, 8, 128], strides = [1, 1, 1]} : vector<10x8x128xf32> to vector<8x8x128xf32>
    %898 = vector.extract_strided_slice %43 {offsets = [5, 2, 0], sizes = [1, 1, 128], strides = [1, 1, 1]} : vector<9x7x128xf32> to vector<1x1x128xf32>
    %899 = vector.broadcast %898 : vector<1x1x128xf32> to vector<8x8x128xf32>
    %900 = arith.mulf %897, %899 : vector<8x8x128xf32>
    %901 = arith.addf %885, %900 : vector<8x8x128xf32>
    %902 = vector.extract_strided_slice %891 {offsets = [2, 0, 0], sizes = [8, 8, 128], strides = [1, 1, 1]} : vector<10x8x128xf32> to vector<8x8x128xf32>
    %903 = vector.extract_strided_slice %43 {offsets = [8, 2, 0], sizes = [1, 1, 128], strides = [1, 1, 1]} : vector<9x7x128xf32> to vector<1x1x128xf32>
    %904 = vector.broadcast %903 : vector<1x1x128xf32> to vector<8x8x128xf32>
    %905 = arith.mulf %902, %904 : vector<8x8x128xf32>
    %906 = arith.addf %890, %905 : vector<8x8x128xf32>
    %907 = vector.extract_strided_slice %858 {offsets = [0, 0, 0], sizes = [8, 8, 128], strides = [1, 1, 1]} : vector<10x8x128xf32> to vector<8x8x128xf32>
    %908 = vector.extract_strided_slice %43 {offsets = [2, 3, 0], sizes = [1, 1, 128], strides = [1, 1, 1]} : vector<9x7x128xf32> to vector<1x1x128xf32>
    %909 = vector.broadcast %908 : vector<1x1x128xf32> to vector<8x8x128xf32>
    %910 = arith.mulf %907, %909 : vector<8x8x128xf32>
    %911 = arith.addf %896, %910 : vector<8x8x128xf32>
    %912 = vector.extract_strided_slice %858 {offsets = [1, 0, 0], sizes = [8, 8, 128], strides = [1, 1, 1]} : vector<10x8x128xf32> to vector<8x8x128xf32>
    %913 = vector.extract_strided_slice %43 {offsets = [5, 3, 0], sizes = [1, 1, 128], strides = [1, 1, 1]} : vector<9x7x128xf32> to vector<1x1x128xf32>
    %914 = vector.broadcast %913 : vector<1x1x128xf32> to vector<8x8x128xf32>
    %915 = arith.mulf %912, %914 : vector<8x8x128xf32>
    %916 = arith.addf %901, %915 : vector<8x8x128xf32>
    %917 = vector.extract_strided_slice %858 {offsets = [2, 0, 0], sizes = [8, 8, 128], strides = [1, 1, 1]} : vector<10x8x128xf32> to vector<8x8x128xf32>
    %918 = vector.extract_strided_slice %43 {offsets = [8, 3, 0], sizes = [1, 1, 128], strides = [1, 1, 1]} : vector<9x7x128xf32> to vector<1x1x128xf32>
    %919 = vector.broadcast %918 : vector<1x1x128xf32> to vector<8x8x128xf32>
    %920 = arith.mulf %917, %919 : vector<8x8x128xf32>
    %921 = arith.addf %906, %920 : vector<8x8x128xf32>
    %c127_i32_175 = arith.constant 127 : i32
    %922 = tpu.dynamic_rotate %858 by %c127_i32_175 dim 2 : vector<10x8x128xf32>, i32 -> vector<10x8x128xf32>
    %923 = vector.extract_strided_slice %922 {offsets = [0, 0, 0], sizes = [8, 8, 128], strides = [1, 1, 1]} : vector<10x8x128xf32> to vector<8x8x128xf32>
    %924 = vector.extract_strided_slice %43 {offsets = [2, 4, 0], sizes = [1, 1, 128], strides = [1, 1, 1]} : vector<9x7x128xf32> to vector<1x1x128xf32>
    %925 = vector.broadcast %924 : vector<1x1x128xf32> to vector<8x8x128xf32>
    %926 = arith.mulf %923, %925 : vector<8x8x128xf32>
    %927 = arith.addf %911, %926 : vector<8x8x128xf32>
    %928 = vector.extract_strided_slice %922 {offsets = [1, 0, 0], sizes = [8, 8, 128], strides = [1, 1, 1]} : vector<10x8x128xf32> to vector<8x8x128xf32>
    %929 = vector.extract_strided_slice %43 {offsets = [5, 4, 0], sizes = [1, 1, 128], strides = [1, 1, 1]} : vector<9x7x128xf32> to vector<1x1x128xf32>
    %930 = vector.broadcast %929 : vector<1x1x128xf32> to vector<8x8x128xf32>
    %931 = arith.mulf %928, %930 : vector<8x8x128xf32>
    %932 = arith.addf %916, %931 : vector<8x8x128xf32>
    %933 = vector.extract_strided_slice %922 {offsets = [2, 0, 0], sizes = [8, 8, 128], strides = [1, 1, 1]} : vector<10x8x128xf32> to vector<8x8x128xf32>
    %934 = vector.extract_strided_slice %43 {offsets = [8, 4, 0], sizes = [1, 1, 128], strides = [1, 1, 1]} : vector<9x7x128xf32> to vector<1x1x128xf32>
    %935 = vector.broadcast %934 : vector<1x1x128xf32> to vector<8x8x128xf32>
    %936 = arith.mulf %933, %935 : vector<8x8x128xf32>
    %937 = arith.addf %921, %936 : vector<8x8x128xf32>
    %c126_i32_176 = arith.constant 126 : i32
    %938 = tpu.dynamic_rotate %858 by %c126_i32_176 dim 2 : vector<10x8x128xf32>, i32 -> vector<10x8x128xf32>
    %939 = vector.extract_strided_slice %938 {offsets = [0, 0, 0], sizes = [8, 8, 128], strides = [1, 1, 1]} : vector<10x8x128xf32> to vector<8x8x128xf32>
    %940 = vector.extract_strided_slice %43 {offsets = [2, 5, 0], sizes = [1, 1, 128], strides = [1, 1, 1]} : vector<9x7x128xf32> to vector<1x1x128xf32>
    %941 = vector.broadcast %940 : vector<1x1x128xf32> to vector<8x8x128xf32>
    %942 = arith.mulf %939, %941 : vector<8x8x128xf32>
    %943 = arith.addf %927, %942 : vector<8x8x128xf32>
    %944 = vector.extract_strided_slice %938 {offsets = [1, 0, 0], sizes = [8, 8, 128], strides = [1, 1, 1]} : vector<10x8x128xf32> to vector<8x8x128xf32>
    %945 = vector.extract_strided_slice %43 {offsets = [5, 5, 0], sizes = [1, 1, 128], strides = [1, 1, 1]} : vector<9x7x128xf32> to vector<1x1x128xf32>
    %946 = vector.broadcast %945 : vector<1x1x128xf32> to vector<8x8x128xf32>
    %947 = arith.mulf %944, %946 : vector<8x8x128xf32>
    %948 = arith.addf %932, %947 : vector<8x8x128xf32>
    %949 = vector.extract_strided_slice %938 {offsets = [2, 0, 0], sizes = [8, 8, 128], strides = [1, 1, 1]} : vector<10x8x128xf32> to vector<8x8x128xf32>
    %950 = vector.extract_strided_slice %43 {offsets = [8, 5, 0], sizes = [1, 1, 128], strides = [1, 1, 1]} : vector<9x7x128xf32> to vector<1x1x128xf32>
    %951 = vector.broadcast %950 : vector<1x1x128xf32> to vector<8x8x128xf32>
    %952 = arith.mulf %949, %951 : vector<8x8x128xf32>
    %953 = arith.addf %937, %952 : vector<8x8x128xf32>
    %c125_i32_177 = arith.constant 125 : i32
    %954 = tpu.dynamic_rotate %858 by %c125_i32_177 dim 2 : vector<10x8x128xf32>, i32 -> vector<10x8x128xf32>
    %955 = vector.extract_strided_slice %954 {offsets = [0, 0, 0], sizes = [8, 8, 128], strides = [1, 1, 1]} : vector<10x8x128xf32> to vector<8x8x128xf32>
    %956 = vector.extract_strided_slice %43 {offsets = [2, 6, 0], sizes = [1, 1, 128], strides = [1, 1, 1]} : vector<9x7x128xf32> to vector<1x1x128xf32>
    %957 = vector.broadcast %956 : vector<1x1x128xf32> to vector<8x8x128xf32>
    %958 = arith.mulf %955, %957 : vector<8x8x128xf32>
    %959 = arith.addf %943, %958 : vector<8x8x128xf32>
    %960 = vector.extract_strided_slice %954 {offsets = [1, 0, 0], sizes = [8, 8, 128], strides = [1, 1, 1]} : vector<10x8x128xf32> to vector<8x8x128xf32>
    %961 = vector.extract_strided_slice %43 {offsets = [5, 6, 0], sizes = [1, 1, 128], strides = [1, 1, 1]} : vector<9x7x128xf32> to vector<1x1x128xf32>
    %962 = vector.broadcast %961 : vector<1x1x128xf32> to vector<8x8x128xf32>
    %963 = arith.mulf %960, %962 : vector<8x8x128xf32>
    %964 = arith.addf %948, %963 : vector<8x8x128xf32>
    %965 = vector.extract_strided_slice %954 {offsets = [2, 0, 0], sizes = [8, 8, 128], strides = [1, 1, 1]} : vector<10x8x128xf32> to vector<8x8x128xf32>
    %966 = vector.extract_strided_slice %43 {offsets = [8, 6, 0], sizes = [1, 1, 128], strides = [1, 1, 1]} : vector<9x7x128xf32> to vector<1x1x128xf32>
    %967 = vector.broadcast %966 : vector<1x1x128xf32> to vector<8x8x128xf32>
    %968 = arith.mulf %965, %967 : vector<8x8x128xf32>
    %969 = arith.addf %953, %968 : vector<8x8x128xf32>
    %970 = arith.addf %959, %964 : vector<8x8x128xf32>
    %971 = arith.addf %970, %969 : vector<8x8x128xf32>
    %c0_178 = arith.constant 0 : index
    %c0_179 = arith.constant 0 : index
    %972 = vector.load %arg11[%c0_178, %c0_179] : memref<1x128xf32, #tpu.memory_space<vmem>>, vector<1x128xf32>
    %973 = vector.shape_cast %972 : vector<1x128xf32> to vector<1x1x128xf32>
    %974 = vector.broadcast %973 : vector<1x1x128xf32> to vector<8x8x128xf32>
    %975 = arith.addf %971, %974 : vector<8x8x128xf32>
    %976 = arith.addf %975, %629 : vector<8x8x128xf32>
    %c0_180 = arith.constant 0 : index
    %c0_181 = arith.constant 0 : index
    %977 = vector.load %arg12[%c0_180, %c0_181] : memref<1x128xf32, #tpu.memory_space<vmem>>, vector<1x128xf32>
    %c0_182 = arith.constant 0 : index
    %c0_183 = arith.constant 0 : index
    %978 = vector.load %arg13[%c0_182, %c0_183] : memref<1x128xf32, #tpu.memory_space<vmem>>, vector<1x128xf32>
    %cst_184 = arith.constant dense<0.000000e+00> : vector<8x8xf32>
    %979 = vector.multi_reduction <add>, %976, %cst_184 [2] : vector<8x8x128xf32> to vector<8x8xf32>
    %980 = vector.shape_cast %979 : vector<8x8xf32> to vector<8x8x1xf32>
    %cst_185 = arith.constant 1.280000e+02 : f32
    %981 = vector.broadcast %cst_185 : f32 to vector<8x8x1xf32>
    %982 = arith.divf %980, %981 : vector<8x8x1xf32>
    %983 = arith.mulf %976, %976 : vector<8x8x128xf32>
    %cst_186 = arith.constant dense<0.000000e+00> : vector<8x8xf32>
    %984 = vector.multi_reduction <add>, %983, %cst_186 [2] : vector<8x8x128xf32> to vector<8x8xf32>
    %985 = vector.shape_cast %984 : vector<8x8xf32> to vector<8x8x1xf32>
    %cst_187 = arith.constant 1.280000e+02 : f32
    %986 = vector.broadcast %cst_187 : f32 to vector<8x8x1xf32>
    %987 = arith.divf %985, %986 : vector<8x8x1xf32>
    %988 = arith.mulf %982, %982 : vector<8x8x1xf32>
    %989 = arith.subf %987, %988 : vector<8x8x1xf32>
    %cst_188 = arith.constant 0.000000e+00 : f32
    %990 = vector.broadcast %cst_188 : f32 to vector<8x8x1xf32>
    %991 = arith.maximumf %989, %990 : vector<8x8x1xf32>
    %992 = vector.broadcast %982 : vector<8x8x1xf32> to vector<8x8x128xf32>
    %993 = arith.subf %976, %992 : vector<8x8x128xf32>
    %cst_189 = arith.constant 9.99999974E-6 : f32
    %994 = vector.broadcast %cst_189 : f32 to vector<8x8x1xf32>
    %995 = arith.addf %991, %994 : vector<8x8x1xf32>
    %996 = math.rsqrt %995 : vector<8x8x1xf32>
    %997 = vector.broadcast %996 : vector<8x8x1xf32> to vector<8x8x128xf32>
    %998 = arith.mulf %993, %997 : vector<8x8x128xf32>
    %999 = vector.shape_cast %977 : vector<1x128xf32> to vector<1x1x128xf32>
    %1000 = vector.broadcast %999 : vector<1x1x128xf32> to vector<8x8x128xf32>
    %1001 = arith.mulf %998, %1000 : vector<8x8x128xf32>
    %1002 = vector.shape_cast %978 : vector<1x128xf32> to vector<1x1x128xf32>
    %1003 = vector.broadcast %1002 : vector<1x1x128xf32> to vector<8x8x128xf32>
    %1004 = arith.addf %1001, %1003 : vector<8x8x128xf32>
    %1005 = arith.addf %1004, %542 : vector<8x8x128xf32>
    %c0_190 = arith.constant 0 : index
    %c0_191 = arith.constant 0 : index
    %1006 = vector.load %arg14[%c0_190, %c0_191] : memref<1x128xf32, #tpu.memory_space<vmem>>, vector<1x128xf32>
    %c0_192 = arith.constant 0 : index
    %c0_193 = arith.constant 0 : index
    %1007 = vector.load %arg15[%c0_192, %c0_193] : memref<1x128xf32, #tpu.memory_space<vmem>>, vector<1x128xf32>
    %cst_194 = arith.constant dense<0.000000e+00> : vector<8x8xf32>
    %1008 = vector.multi_reduction <add>, %1005, %cst_194 [2] : vector<8x8x128xf32> to vector<8x8xf32>
    %1009 = vector.shape_cast %1008 : vector<8x8xf32> to vector<8x8x1xf32>
    %cst_195 = arith.constant 1.280000e+02 : f32
    %1010 = vector.broadcast %cst_195 : f32 to vector<8x8x1xf32>
    %1011 = arith.divf %1009, %1010 : vector<8x8x1xf32>
    %1012 = arith.mulf %1005, %1005 : vector<8x8x128xf32>
    %cst_196 = arith.constant dense<0.000000e+00> : vector<8x8xf32>
    %1013 = vector.multi_reduction <add>, %1012, %cst_196 [2] : vector<8x8x128xf32> to vector<8x8xf32>
    %1014 = vector.shape_cast %1013 : vector<8x8xf32> to vector<8x8x1xf32>
    %cst_197 = arith.constant 1.280000e+02 : f32
    %1015 = vector.broadcast %cst_197 : f32 to vector<8x8x1xf32>
    %1016 = arith.divf %1014, %1015 : vector<8x8x1xf32>
    %1017 = arith.mulf %1011, %1011 : vector<8x8x1xf32>
    %1018 = arith.subf %1016, %1017 : vector<8x8x1xf32>
    %cst_198 = arith.constant 0.000000e+00 : f32
    %1019 = vector.broadcast %cst_198 : f32 to vector<8x8x1xf32>
    %1020 = arith.maximumf %1018, %1019 : vector<8x8x1xf32>
    %1021 = vector.broadcast %1011 : vector<8x8x1xf32> to vector<8x8x128xf32>
    %1022 = arith.subf %1005, %1021 : vector<8x8x128xf32>
    %cst_199 = arith.constant 9.99999974E-6 : f32
    %1023 = vector.broadcast %cst_199 : f32 to vector<8x8x1xf32>
    %1024 = arith.addf %1020, %1023 : vector<8x8x1xf32>
    %1025 = math.rsqrt %1024 : vector<8x8x1xf32>
    %1026 = vector.broadcast %1025 : vector<8x8x1xf32> to vector<8x8x128xf32>
    %1027 = arith.mulf %1022, %1026 : vector<8x8x128xf32>
    %1028 = vector.shape_cast %1006 : vector<1x128xf32> to vector<1x1x128xf32>
    %1029 = vector.broadcast %1028 : vector<1x1x128xf32> to vector<8x8x128xf32>
    %1030 = arith.mulf %1027, %1029 : vector<8x8x128xf32>
    %1031 = vector.shape_cast %1007 : vector<1x128xf32> to vector<1x1x128xf32>
    %1032 = vector.broadcast %1031 : vector<1x1x128xf32> to vector<8x8x128xf32>
    %1033 = arith.addf %1030, %1032 : vector<8x8x128xf32>
    %cst_200 = arith.constant 0.000000e+00 : f32
    %1034 = vector.broadcast %cst_200 : f32 to vector<8x8x128xf32>
    %1035 = arith.maximumf %1033, %1034 : vector<8x8x128xf32>
    %1036 = vector.shape_cast %1035 : vector<8x8x128xf32> to vector<64x128xf32>
    %c64_201 = arith.constant 64 : index
    %c0_202 = arith.constant 0 : index
    %1037 = vector.load %arg22[%c64_201, %c0_202] : memref<128x128xf32, #tpu.memory_space<vmem>>, vector<64x128xf32>
    tpu.vector_store %arg22[%c64_201, %c0_202], %1036 {strides = array<i32>} : memref<128x128xf32, #tpu.memory_space<vmem>>, vector<64x128xf32>,
    %c0_203 = arith.constant 0 : index
    %c0_204 = arith.constant 0 : index
    %1038 = vector.load %arg22[%c0_203, %c0_204] : memref<128x128xf32, #tpu.memory_space<vmem>>, vector<128x128xf32>
    %1039 = arith.truncf %1038 : vector<128x128xf32> to vector<128x128xbf16>
    %c0_205 = arith.constant 0 : index
    %c0_206 = arith.constant 0 : index
    %1040 = vector.load %arg16[%c0_205, %c0_206] : memref<128x64xbf16, #tpu.memory_space<vmem>>, vector<128x64xbf16>
    %cst_207 = arith.constant dense<0.000000e+00> : vector<128x64xf32>
    %1041 = tpu.matmul %1039, %1040, %cst_207 {dimension_numbers = #tpu.dot_dimension_numbers<[1], [0], [0], [1], [0, 0, 1, 1], [], []>} : vector<128x128xbf16>, vector<128x64xbf16>, vector<128x64xf32> -> vector<128x64xf32>
    %c0_208 = arith.constant 0 : index
    %c0_209 = arith.constant 0 : index
    %1042 = vector.load %arg17[%c0_208, %c0_209] : memref<1x64xf32, #tpu.memory_space<vmem>>, vector<1x64xf32>
    %1043 = vector.broadcast %1042 : vector<1x64xf32> to vector<128x64xf32>
    %1044 = arith.addf %1041, %1043 : vector<128x64xf32>
    %c0_210 = arith.constant 0 : index
    %c0_211 = arith.constant 0 : index
    %1045 = vector.load %arg18[%c0_210, %c0_211] : memref<1x64xf32, #tpu.memory_space<vmem>>, vector<1x64xf32>
    %c0_212 = arith.constant 0 : index
    %c0_213 = arith.constant 0 : index
    %1046 = vector.load %arg19[%c0_212, %c0_213] : memref<1x64xf32, #tpu.memory_space<vmem>>, vector<1x64xf32>
    %cst_214 = arith.constant dense<0.000000e+00> : vector<128xf32>
    %1047 = vector.multi_reduction <add>, %1044, %cst_214 [1] : vector<128x64xf32> to vector<128xf32>
    %1048 = vector.shape_cast %1047 : vector<128xf32> to vector<128x1xf32>
    %cst_215 = arith.constant 6.400000e+01 : f32
    %1049 = vector.broadcast %cst_215 : f32 to vector<128x1xf32>
    %1050 = arith.divf %1048, %1049 : vector<128x1xf32>
    %1051 = arith.mulf %1044, %1044 : vector<128x64xf32>
    %cst_216 = arith.constant dense<0.000000e+00> : vector<128xf32>
    %1052 = vector.multi_reduction <add>, %1051, %cst_216 [1] : vector<128x64xf32> to vector<128xf32>
    %1053 = vector.shape_cast %1052 : vector<128xf32> to vector<128x1xf32>
    %cst_217 = arith.constant 6.400000e+01 : f32
    %1054 = vector.broadcast %cst_217 : f32 to vector<128x1xf32>
    %1055 = arith.divf %1053, %1054 : vector<128x1xf32>
    %1056 = arith.mulf %1050, %1050 : vector<128x1xf32>
    %1057 = arith.subf %1055, %1056 : vector<128x1xf32>
    %cst_218 = arith.constant 0.000000e+00 : f32
    %1058 = vector.broadcast %cst_218 : f32 to vector<128x1xf32>
    %1059 = arith.maximumf %1057, %1058 : vector<128x1xf32>
    %1060 = vector.broadcast %1050 : vector<128x1xf32> to vector<128x64xf32>
    %1061 = arith.subf %1044, %1060 : vector<128x64xf32>
    %cst_219 = arith.constant 9.99999974E-6 : f32
    %1062 = vector.broadcast %cst_219 : f32 to vector<128x1xf32>
    %1063 = arith.addf %1059, %1062 : vector<128x1xf32>
    %1064 = math.rsqrt %1063 : vector<128x1xf32>
    %1065 = vector.broadcast %1064 : vector<128x1xf32> to vector<128x64xf32>
    %1066 = arith.mulf %1061, %1065 : vector<128x64xf32>
    %1067 = vector.broadcast %1045 : vector<1x64xf32> to vector<128x64xf32>
    %1068 = arith.mulf %1066, %1067 : vector<128x64xf32>
    %1069 = vector.broadcast %1046 : vector<1x64xf32> to vector<128x64xf32>
    %1070 = arith.addf %1068, %1069 : vector<128x64xf32>
    %cst_220 = arith.constant 0.000000e+00 : f32
    %1071 = vector.broadcast %cst_220 : f32 to vector<128x64xf32>
    %1072 = arith.maximumf %1070, %1071 : vector<128x64xf32>
    %1073 = vector.shape_cast %1072 : vector<128x64xf32> to vector<2x64x64xf32>
    %c0_221 = arith.constant 0 : index
    %c0_222 = arith.constant 0 : index
    %c0_223 = arith.constant 0 : index
    %1074 = vector.load %arg20[%c0_221, %c0_222, %c0_223] : memref<2x64x64xf32, #tpu.memory_space<vmem>>, vector<2x64x64xf32>
    tpu.vector_store %arg20[%c0_221, %c0_222, %c0_223], %1073 {strides = array<i32>} : memref<2x64x64xf32, #tpu.memory_space<vmem>>, vector<2x64x64xf32>,
    return
  }
  func.func @transform_0(%arg0: i32) -> (i32, i32, i32) {
    %c0_i32 = arith.constant 0 : i32
    %c0_i32_0 = arith.constant 0 : i32
    %c0_i32_1 = arith.constant 0 : i32
    return %arg0, %c0_i32, %c0_i32_0 : i32, i32, i32
  }
  func.func @transform_1(%arg0: i32) -> (i32, i32) {
    %c0_i32 = arith.constant 0 : i32
    %c0_i32_0 = arith.constant 0 : i32
    %c0_i32_1 = arith.constant 0 : i32
    return %c0_i32, %c0_i32_0 : i32, i32
  }
  func.func @transform_2(%arg0: i32) -> (i32, i32) {
    %c0_i32 = arith.constant 0 : i32
    %c0_i32_0 = arith.constant 0 : i32
    %c0_i32_1 = arith.constant 0 : i32
    return %c0_i32, %c0_i32_0 : i32, i32
  }
  func.func @transform_3(%arg0: i32) -> (i32, i32) {
    %c0_i32 = arith.constant 0 : i32
    %c0_i32_0 = arith.constant 0 : i32
    %c0_i32_1 = arith.constant 0 : i32
    return %c0_i32, %c0_i32_0 : i32, i32
  }
  func.func @transform_4(%arg0: i32) -> (i32, i32) {
    %c0_i32 = arith.constant 0 : i32
    %c0_i32_0 = arith.constant 0 : i32
    %c0_i32_1 = arith.constant 0 : i32
    return %c0_i32, %c0_i32_0 : i32, i32
  }
  func.func @transform_5(%arg0: i32) -> (i32, i32, i32) {
    %c0_i32 = arith.constant 0 : i32
    %c0_i32_0 = arith.constant 0 : i32
    %c0_i32_1 = arith.constant 0 : i32
    %c0_i32_2 = arith.constant 0 : i32
    return %c0_i32, %c0_i32_0, %c0_i32_1 : i32, i32, i32
  }
  func.func @transform_6(%arg0: i32) -> (i32, i32) {
    %c0_i32 = arith.constant 0 : i32
    %c0_i32_0 = arith.constant 0 : i32
    %c0_i32_1 = arith.constant 0 : i32
    return %c0_i32, %c0_i32_0 : i32, i32
  }
  func.func @transform_7(%arg0: i32) -> (i32, i32) {
    %c0_i32 = arith.constant 0 : i32
    %c0_i32_0 = arith.constant 0 : i32
    %c0_i32_1 = arith.constant 0 : i32
    return %c0_i32, %c0_i32_0 : i32, i32
  }
  func.func @transform_8(%arg0: i32) -> (i32, i32) {
    %c0_i32 = arith.constant 0 : i32
    %c0_i32_0 = arith.constant 0 : i32
    %c0_i32_1 = arith.constant 0 : i32
    return %c0_i32, %c0_i32_0 : i32, i32
  }
  func.func @transform_9(%arg0: i32) -> (i32, i32, i32) {
    %c0_i32 = arith.constant 0 : i32
    %c0_i32_0 = arith.constant 0 : i32
    %c0_i32_1 = arith.constant 0 : i32
    %c0_i32_2 = arith.constant 0 : i32
    return %c0_i32, %c0_i32_0, %c0_i32_1 : i32, i32, i32
  }
  func.func @transform_10(%arg0: i32) -> (i32, i32) {
    %c0_i32 = arith.constant 0 : i32
    %c0_i32_0 = arith.constant 0 : i32
    %c0_i32_1 = arith.constant 0 : i32
    return %c0_i32, %c0_i32_0 : i32, i32
  }
  func.func @transform_11(%arg0: i32) -> (i32, i32) {
    %c0_i32 = arith.constant 0 : i32
    %c0_i32_0 = arith.constant 0 : i32
    %c0_i32_1 = arith.constant 0 : i32
    return %c0_i32, %c0_i32_0 : i32, i32
  }
  func.func @transform_12(%arg0: i32) -> (i32, i32) {
    %c0_i32 = arith.constant 0 : i32
    %c0_i32_0 = arith.constant 0 : i32
    %c0_i32_1 = arith.constant 0 : i32
    return %c0_i32, %c0_i32_0 : i32, i32
  }
  func.func @transform_13(%arg0: i32) -> (i32, i32) {
    %c0_i32 = arith.constant 0 : i32
    %c0_i32_0 = arith.constant 0 : i32
    %c0_i32_1 = arith.constant 0 : i32
    return %c0_i32, %c0_i32_0 : i32, i32
  }
  func.func @transform_14(%arg0: i32) -> (i32, i32) {
    %c0_i32 = arith.constant 0 : i32
    %c0_i32_0 = arith.constant 0 : i32
    %c0_i32_1 = arith.constant 0 : i32
    return %c0_i32, %c0_i32_0 : i32, i32
  }
  func.func @transform_15(%arg0: i32) -> (i32, i32) {
    %c0_i32 = arith.constant 0 : i32
    %c0_i32_0 = arith.constant 0 : i32
    %c0_i32_1 = arith.constant 0 : i32
    return %c0_i32, %c0_i32_0 : i32, i32
  }
  func.func @transform_16(%arg0: i32) -> (i32, i32) {
    %c0_i32 = arith.constant 0 : i32
    %c0_i32_0 = arith.constant 0 : i32
    %c0_i32_1 = arith.constant 0 : i32
    return %c0_i32, %c0_i32_0 : i32, i32
  }
  func.func @transform_17(%arg0: i32) -> (i32, i32) {
    %c0_i32 = arith.constant 0 : i32
    %c0_i32_0 = arith.constant 0 : i32
    %c0_i32_1 = arith.constant 0 : i32
    return %c0_i32, %c0_i32_0 : i32, i32
  }
  func.func @transform_18(%arg0: i32) -> (i32, i32) {
    %c0_i32 = arith.constant 0 : i32
    %c0_i32_0 = arith.constant 0 : i32
    %c0_i32_1 = arith.constant 0 : i32
    return %c0_i32, %c0_i32_0 : i32, i32
  }
  func.func @transform_19(%arg0: i32) -> (i32, i32, i32) {
    %c0_i32 = arith.constant 0 : i32
    %c0_i32_0 = arith.constant 0 : i32
    %c0_i32_1 = arith.constant 0 : i32
    return %arg0, %c0_i32, %c0_i32_0 : i32, i32, i32
  }
}

</mosaic_0001>

<llo_original>
// kernel: tpu_custom_call.1
$region0: #{tpu_custom_call.1}
  #allocation0 [shape = 'u32[]', space=smem, size = 0x4, offset = 0x4, fixed_abs, tag = 'smem constant byte address 0x4 - core index']
  #allocation1 [shape = 'u32[72,128]{1,0:T(1,128)}', space=vmem, size = 0x9000, scoped, tag = 'internal scratch']
  #allocation2 [shape = 'f32[10,10,128]{2,1,0:T(8,128)}', space=vmem, size = 0x14000, scoped, tag = 'scratch operand']
  #allocation3 [shape = 'f32[128,128]{1,0:T(8,128)}', space=vmem, size = 0x10000, scoped, tag = 'scratch operand']
  %s0 = inlined_call_operand.hbm [shape: bf16[4,64,64], index: 0, kind: input, shape index: {}]
  %s1 = inlined_call_operand.vmem [shape: bf16[64,128], index: 1, kind: input, shape index: {}]
  %s2 = inlined_call_operand.hbm [shape: f32[1,128], index: 2, kind: input, shape index: {}]
  %s3 = inlined_call_operand.hbm [shape: f32[1,128], index: 3, kind: input, shape index: {}]
  %s4 = inlined_call_operand.hbm [shape: f32[1,128], index: 4, kind: input, shape index: {}]
  %s5 = inlined_call_operand.hbm [shape: f32[3,3,128], index: 5, kind: input, shape index: {}]
  %s6 = inlined_call_operand.hbm [shape: f32[1,128], index: 6, kind: input, shape index: {}]
  %s7 = inlined_call_operand.hbm [shape: f32[1,128], index: 7, kind: input, shape index: {}]
  %s8 = inlined_call_operand.hbm [shape: f32[1,128], index: 8, kind: input, shape index: {}]
  %s9 = inlined_call_operand.vmem [shape: f32[9,7,128], index: 9, kind: input, shape index: {}]
  %s10 = inlined_call_operand.vmem [shape: f32[1,128], index: 10, kind: input, shape index: {}]
  %s11 = inlined_call_operand.hbm [shape: f32[1,128], index: 11, kind: input, shape index: {}]
  %s12 = inlined_call_operand.vmem [shape: f32[1,128], index: 12, kind: input, shape index: {}]
  %s13 = inlined_call_operand.vmem [shape: f32[1,128], index: 13, kind: input, shape index: {}]
  %s14 = inlined_call_operand.vmem [shape: f32[1,128], index: 14, kind: input, shape index: {}]
  %s15 = inlined_call_operand.vmem [shape: bf16[128,64], index: 15, kind: input, shape index: {}]
  %s16 = inlined_call_operand.vmem [shape: f32[1,64], index: 16, kind: input, shape index: {}]
  %s17 = inlined_call_operand.vmem [shape: f32[1,64], index: 17, kind: input, shape index: {}]
  %s18 = inlined_call_operand.vmem [shape: f32[1,64], index: 18, kind: input, shape index: {}]
  %s19 = inlined_call_operand.hbm [shape: f32[4,64,64], index: 19, kind: output, shape index: {}]
  %s20 = sld [smem:[#allocation0]]
  $region145: #{tpu_custom_call.1} parent=0
    _
  %s22 = ssub.s32 1, %s20
  %s23 = scalar_select 0, %s22, %s20
  $region1: #{tpu_custom_call.1} parent=0
    #allocation4 [shape = 'u8[65536]{0}', space=vmem, size = 0x10000, scoped, tag = 'input window, operand 0']
    #allocation5 [shape = 's32[2]{0}', space=sflag, size = 0x8, scoped, tag = 'scoped memory for tpu_custom_call.1']
    #allocation6 [shape = 's32[2]{0}', space=sflag, size = 0x8, scoped, tag = 'scoped memory for tpu_custom_call.1']
    #allocation7 [shape = 'u8[512]{0}', space=vmem, size = 0x400, scoped, tag = 'input window, operand 2, single buffered']
    #allocation8 [shape = 's32[1]{0}', space=sflag, size = 0x4, scoped, tag = 'scoped memory for tpu_custom_call.1']
    #allocation9 [shape = 'u8[512]{0}', space=vmem, size = 0x400, scoped, tag = 'input window, operand 3, single buffered']
    #allocation10 [shape = 'u8[512]{0}', space=vmem, size = 0x400, scoped, tag = 'input window, operand 4, single buffered']
    #allocation11 [shape = 's32[1]{0}', space=sflag, size = 0x4, scoped, tag = 'scoped memory for tpu_custom_call.1']
    #allocation12 [shape = 'u8[6144]{0}', space=vmem, size = 0x1800, scoped, tag = 'input window, operand 5, single buffered']
    #allocation13 [shape = 'u8[512]{0}', space=vmem, size = 0x400, scoped, tag = 'input window, operand 6, single buffered']
    #allocation14 [shape = 's32[1]{0}', space=sflag, size = 0x4, scoped, tag = 'scoped memory for tpu_custom_call.1']
    #allocation15 [shape = 'u8[512]{0}', space=vmem, size = 0x400, scoped, tag = 'input window, operand 7, single buffered']
    #allocation16 [shape = 'u8[512]{0}', space=vmem, size = 0x400, scoped, tag = 'input window, operand 8, single buffered']
    #allocation17 [shape = 's32[1]{0}', space=sflag, size = 0x4, scoped, tag = 'scoped memory for tpu_custom_call.1']
    #allocation18 [shape = 'u8[512]{0}', space=vmem, size = 0x400, scoped, tag = 'input window, operand 11, single buffered']
    #allocation19 [shape = 'u8[131072]{0}', space=vmem, size = 0x20000, scoped, tag = 'output window, operand 0']
    %24 = vsyncpa [#allocation5], 0
    %s25 = scalar_lea.sflag [#allocation5], 1
    %26 = vsyncpa %s25, 0
    %27 = vsyncpa [#allocation8], 0
    %28 = vsyncpa [#allocation11], 0
    %29 = vsyncpa [#allocation14], 0
    %30 = vsyncpa [#allocation17], 0
    %31 = vsyncpa [#allocation6], 0
    %s32 = scalar_lea.sflag [#allocation6], 1
    %33 = vsyncpa %s32, 0
    loop: start=0, step=1, limit=4
    $region2: #{tpu_custom_call.1} parent=1 // loop_pre_header
      _
    $region3: #{tpu_custom_call.1} parent=1 // loop_header
      %s35 = sphi 0, %s39
      %p36 = scmp.ge.s32.totalorder %s35, 4
      %s45 = sphi 0, %s47
      %s48 = sphi 0, %s45
      %s49 = sphi 0, %s48
      %s65 = sphi 0, %s49
      %s69 = sphi 0, %s69
      %s71 = sphi 0, %s69
      %s72 = sphi 0, %s71
      %s86 = sphi 0, %s72
      %s90 = sphi 0, %s90
      %s92 = sphi 0, %s90
      %s93 = sphi 0, %s92
      %s107 = sphi 0, %s93
      %s111 = sphi 0, %s111
      %s113 = sphi 0, %s111
      %s114 = sphi 0, %s113
      %s128 = sphi 0, %s114
      %s132 = sphi 0, %s132
      %s134 = sphi 0, %s132
      %s135 = sphi 0, %s134
      %s149 = sphi 0, %s135
      %s153 = sphi 0, %s153
      %s155 = sphi 0, %s153
      %s156 = sphi 0, %s155
      %s170 = sphi 0, %s156
      %s174 = sphi 0, %s174
      %s176 = sphi 0, %s174
      %s177 = sphi 0, %s176
      %s191 = sphi 0, %s177
      %s195 = sphi 0, %s195
      %s197 = sphi 0, %s195
      %s198 = sphi 0, %s197
      %s212 = sphi 0, %s198
      %s216 = sphi 0, %s216
      %s218 = sphi 0, %s216
      %s219 = sphi 0, %s218
      %s233 = sphi 0, %s219
      %s237 = sphi 0, %s237
      %s239 = sphi 0, %s237
      %s240 = sphi 0, %s239
      %s254 = sphi 0, %s240
      %s258 = sphi 0, %s258
      %s260 = sphi 0, %s258
      %s261 = sphi 0, %s260
      %s275 = sphi 0, %s261
      %s279 = sphi 0, %s279
      %s281 = sphi 0, %s279
      %s282 = sphi 0, %s281
      %s296 = sphi 0, %s282
      %s300 = sphi 0, %s300
      %s302 = sphi 0, %s300
      %s303 = sphi 0, %s302
      %s317 = sphi 0, %s303
      %s321 = sphi 0, %s321
      %s323 = sphi 0, %s321
      %s324 = sphi 0, %s323
      %s338 = sphi 0, %s324
      %s342 = sphi 0, %s342
      %s344 = sphi 0, %s342
      %s345 = sphi 0, %s344
      %s359 = sphi 0, %s345
      %s363 = sphi 0, %s363
      %s365 = sphi 0, %s363
      %s366 = sphi 0, %s365
      %s380 = sphi 0, %s366
      %s384 = sphi 0, %s384
      %s386 = sphi 0, %s384
      %s387 = sphi 0, %s386
      %s401 = sphi 0, %s387
      %s405 = sphi 0, %s405
      %s407 = sphi 0, %s405
      %s408 = sphi 0, %s407
      %s422 = sphi 0, %s408
      %s426 = sphi 0, %s426
      %s428 = sphi 0, %s426
      %s429 = sphi 0, %s428
      %s443 = sphi 0, %s429
      %s449 = sphi 0, %s451
      %s452 = sphi 0, %s449
      %s453 = sphi 0, %s452
      %s469 = sphi 0, %s453
    $region4: #{tpu_custom_call.1} parent=1 // loop_header_branch
      %38 = sbr.rel (%p36) target = $region8
    $region5: #{tpu_custom_call.1} parent=1 // loop_body
      %s40 = ssub.s32 %s35, 1
      %s41 = ssub.s32 %s35, 2
      %s42 = sadd.s32 %s35, 1
      %s43 = ssub.s32 %s35, %s42
      %p44 = scmp.eq.s32.totalorder %s43, 0
      %s46 = sadd.s32 %s45, 1
      %s47 = scalar_select %p44, %s45, %s46
      %p50 = pneg %p44
      %p51 = scmp.eq.s32.totalorder %s35, 1
      %p52 = por %p50, %p51
      %p53 = scmp.ne.s32.totalorder %s45, %s48
      %p54 = scmp.eq.s32.totalorder %s35, 0
      %p55 = por %p53, %p54
      %p56 = scmp.ne.s32.totalorder %s45, %s48
      %p57 = scmp.eq.s32.totalorder %s40, 1
      %p58 = por %p56, %p57
      %p59 = scmp.ne.s32.totalorder %s48, %s49
      %p60 = scmp.eq.s32.totalorder %s40, 0
      %p61 = por %p59, %p60
      %p62 = scmp.ne.s32.totalorder %s48, %s49
      %p63 = scmp.eq.s32.totalorder %s41, 1
      %p64 = por %p62, %p63
      %p66 = scmp.ne.s32.totalorder %s49, %s65
      %p67 = scmp.eq.s32.totalorder %s41, 0
      %p68 = por %p66, %p67
      %s70 = sadd.s32 %s69, 1
      %p73 = scmp.eq.s32.totalorder %s35, 1
      %p74 = scmp.ne.s32.totalorder %s69, %s71
      %p75 = scmp.eq.s32.totalorder %s35, 0
      %p76 = por %p74, %p75
      %p77 = scmp.ne.s32.totalorder %s69, %s71
      %p78 = scmp.eq.s32.totalorder %s40, 1
      %p79 = por %p77, %p78
      %p80 = scmp.ne.s32.totalorder %s71, %s72
      %p81 = scmp.eq.s32.totalorder %s40, 0
      %p82 = por %p80, %p81
      %p83 = scmp.ne.s32.totalorder %s71, %s72
      %p84 = scmp.eq.s32.totalorder %s41, 1
      %p85 = por %p83, %p84
      %p87 = scmp.ne.s32.totalorder %s72, %s86
      %p88 = scmp.eq.s32.totalorder %s41, 0
      %p89 = por %p87, %p88
      %s91 = sadd.s32 %s90, 1
      %p94 = scmp.eq.s32.totalorder %s35, 1
      %p95 = scmp.ne.s32.totalorder %s90, %s92
      %p96 = scmp.eq.s32.totalorder %s35, 0
      %p97 = por %p95, %p96
      %p98 = scmp.ne.s32.totalorder %s90, %s92
      %p99 = scmp.eq.s32.totalorder %s40, 1
      %p100 = por %p98, %p99
      %p101 = scmp.ne.s32.totalorder %s92, %s93
      %p102 = scmp.eq.s32.totalorder %s40, 0
      %p103 = por %p101, %p102
      %p104 = scmp.ne.s32.totalorder %s92, %s93
      %p105 = scmp.eq.s32.totalorder %s41, 1
      %p106 = por %p104, %p105
      %p108 = scmp.ne.s32.totalorder %s93, %s107
      %p109 = scmp.eq.s32.totalorder %s41, 0
      %p110 = por %p108, %p109
      %s112 = sadd.s32 %s111, 1
      %p115 = scmp.eq.s32.totalorder %s35, 1
      %p116 = scmp.ne.s32.totalorder %s111, %s113
      %p117 = scmp.eq.s32.totalorder %s35, 0
      %p118 = por %p116, %p117
      %p119 = scmp.ne.s32.totalorder %s111, %s113
      %p120 = scmp.eq.s32.totalorder %s40, 1
      %p121 = por %p119, %p120
      %p122 = scmp.ne.s32.totalorder %s113, %s114
      %p123 = scmp.eq.s32.totalorder %s40, 0
      %p124 = por %p122, %p123
      %p125 = scmp.ne.s32.totalorder %s113, %s114
      %p126 = scmp.eq.s32.totalorder %s41, 1
      %p127 = por %p125, %p126
      %p129 = scmp.ne.s32.totalorder %s114, %s128
      %p130 = scmp.eq.s32.totalorder %s41, 0
      %p131 = por %p129, %p130
      %s133 = sadd.s32 %s132, 1
      %p136 = scmp.eq.s32.totalorder %s35, 1
      %p137 = scmp.ne.s32.totalorder %s132, %s134
      %p138 = scmp.eq.s32.totalorder %s35, 0
      %p139 = por %p137, %p138
      %p140 = scmp.ne.s32.totalorder %s132, %s134
      %p141 = scmp.eq.s32.totalorder %s40, 1
      %p142 = por %p140, %p141
      %p143 = scmp.ne.s32.totalorder %s134, %s135
      %p144 = scmp.eq.s32.totalorder %s40, 0
      %p145 = por %p143, %p144
      %p146 = scmp.ne.s32.totalorder %s134, %s135
      %p147 = scmp.eq.s32.totalorder %s41, 1
      %p148 = por %p146, %p147
      %p150 = scmp.ne.s32.totalorder %s135, %s149
      %p151 = scmp.eq.s32.totalorder %s41, 0
      %p152 = por %p150, %p151
      %s154 = sadd.s32 %s153, 1
      %p157 = scmp.eq.s32.totalorder %s35, 1
      %p158 = scmp.ne.s32.totalorder %s153, %s155
      %p159 = scmp.eq.s32.totalorder %s35, 0
      %p160 = por %p158, %p159
      %p161 = scmp.ne.s32.totalorder %s153, %s155
      %p162 = scmp.eq.s32.totalorder %s40, 1
      %p163 = por %p161, %p162
      %p164 = scmp.ne.s32.totalorder %s155, %s156
      %p165 = scmp.eq.s32.totalorder %s40, 0
      %p166 = por %p164, %p165
      %p167 = scmp.ne.s32.totalorder %s155, %s156
      %p168 = scmp.eq.s32.totalorder %s41, 1
      %p169 = por %p167, %p168
      %p171 = scmp.ne.s32.totalorder %s156, %s170
      %p172 = scmp.eq.s32.totalorder %s41, 0
      %p173 = por %p171, %p172
      %s175 = sadd.s32 %s174, 1
      %p178 = scmp.eq.s32.totalorder %s35, 1
      %p179 = scmp.ne.s32.totalorder %s174, %s176
      %p180 = scmp.eq.s32.totalorder %s35, 0
      %p181 = por %p179, %p180
      %p182 = scmp.ne.s32.totalorder %s174, %s176
      %p183 = scmp.eq.s32.totalorder %s40, 1
      %p184 = por %p182, %p183
      %p185 = scmp.ne.s32.totalorder %s176, %s177
      %p186 = scmp.eq.s32.totalorder %s40, 0
      %p187 = por %p185, %p186
      %p188 = scmp.ne.s32.totalorder %s176, %s177
      %p189 = scmp.eq.s32.totalorder %s41, 1
      %p190 = por %p188, %p189
      %p192 = scmp.ne.s32.totalorder %s177, %s191
      %p193 = scmp.eq.s32.totalorder %s41, 0
      %p194 = por %p192, %p193
      %s196 = sadd.s32 %s195, 1
      %p199 = scmp.eq.s32.totalorder %s35, 1
      %p200 = scmp.ne.s32.totalorder %s195, %s197
      %p201 = scmp.eq.s32.totalorder %s35, 0
      %p202 = por %p200, %p201
      %p203 = scmp.ne.s32.totalorder %s195, %s197
      %p204 = scmp.eq.s32.totalorder %s40, 1
      %p205 = por %p203, %p204
      %p206 = scmp.ne.s32.totalorder %s197, %s198
      %p207 = scmp.eq.s32.totalorder %s40, 0
      %p208 = por %p206, %p207
      %p209 = scmp.ne.s32.totalorder %s197, %s198
      %p210 = scmp.eq.s32.totalorder %s41, 1
      %p211 = por %p209, %p210
      %p213 = scmp.ne.s32.totalorder %s198, %s212
      %p214 = scmp.eq.s32.totalorder %s41, 0
      %p215 = por %p213, %p214
      %s217 = sadd.s32 %s216, 1
      %p220 = scmp.eq.s32.totalorder %s35, 1
      %p221 = scmp.ne.s32.totalorder %s216, %s218
      %p222 = scmp.eq.s32.totalorder %s35, 0
      %p223 = por %p221, %p222
      %p224 = scmp.ne.s32.totalorder %s216, %s218
      %p225 = scmp.eq.s32.totalorder %s40, 1
      %p226 = por %p224, %p225
      %p227 = scmp.ne.s32.totalorder %s218, %s219
      %p228 = scmp.eq.s32.totalorder %s40, 0
      %p229 = por %p227, %p228
      %p230 = scmp.ne.s32.totalorder %s218, %s219
      %p231 = scmp.eq.s32.totalorder %s41, 1
      %p232 = por %p230, %p231
      %p234 = scmp.ne.s32.totalorder %s219, %s233
      %p235 = scmp.eq.s32.totalorder %s41, 0
      %p236 = por %p234, %p235
      %s238 = sadd.s32 %s237, 1
      %p241 = scmp.eq.s32.totalorder %s35, 1
      %p242 = scmp.ne.s32.totalorder %s237, %s239
      %p243 = scmp.eq.s32.totalorder %s35, 0
      %p244 = por %p242, %p243
      %p245 = scmp.ne.s32.totalorder %s237, %s239
      %p246 = scmp.eq.s32.totalorder %s40, 1
      %p247 = por %p245, %p246
      %p248 = scmp.ne.s32.totalorder %s239, %s240
      %p249 = scmp.eq.s32.totalorder %s40, 0
      %p250 = por %p248, %p249
      %p251 = scmp.ne.s32.totalorder %s239, %s240
      %p252 = scmp.eq.s32.totalorder %s41, 1
      %p253 = por %p251, %p252
      %p255 = scmp.ne.s32.totalorder %s240, %s254
      %p256 = scmp.eq.s32.totalorder %s41, 0
      %p257 = por %p255, %p256
      %s259 = sadd.s32 %s258, 1
      %p262 = scmp.eq.s32.totalorder %s35, 1
      %p263 = scmp.ne.s32.totalorder %s258, %s260
      %p264 = scmp.eq.s32.totalorder %s35, 0
      %p265 = por %p263, %p264
      %p266 = scmp.ne.s32.totalorder %s258, %s260
      %p267 = scmp.eq.s32.totalorder %s40, 1
      %p268 = por %p266, %p267
      %p269 = scmp.ne.s32.totalorder %s260, %s261
      %p270 = scmp.eq.s32.totalorder %s40, 0
      %p271 = por %p269, %p270
      %p272 = scmp.ne.s32.totalorder %s260, %s261
      %p273 = scmp.eq.s32.totalorder %s41, 1
      %p274 = por %p272, %p273
      %p276 = scmp.ne.s32.totalorder %s261, %s275
      %p277 = scmp.eq.s32.totalorder %s41, 0
      %p278 = por %p276, %p277
      %s280 = sadd.s32 %s279, 1
      %p283 = scmp.eq.s32.totalorder %s35, 1
      %p284 = scmp.ne.s32.totalorder %s279, %s281
      %p285 = scmp.eq.s32.totalorder %s35, 0
      %p286 = por %p284, %p285
      %p287 = scmp.ne.s32.totalorder %s279, %s281
      %p288 = scmp.eq.s32.totalorder %s40, 1
      %p289 = por %p287, %p288
      %p290 = scmp.ne.s32.totalorder %s281, %s282
      %p291 = scmp.eq.s32.totalorder %s40, 0
      %p292 = por %p290, %p291
      %p293 = scmp.ne.s32.totalorder %s281, %s282
      %p294 = scmp.eq.s32.totalorder %s41, 1
      %p295 = por %p293, %p294
      %p297 = scmp.ne.s32.totalorder %s282, %s296
      %p298 = scmp.eq.s32.totalorder %s41, 0
      %p299 = por %p297, %p298
      %s301 = sadd.s32 %s300, 1
      %p304 = scmp.eq.s32.totalorder %s35, 1
      %p305 = scmp.ne.s32.totalorder %s300, %s302
      %p306 = scmp.eq.s32.totalorder %s35, 0
      %p307 = por %p305, %p306
      %p308 = scmp.ne.s32.totalorder %s300, %s302
      %p309 = scmp.eq.s32.totalorder %s40, 1
      %p310 = por %p308, %p309
      %p311 = scmp.ne.s32.totalorder %s302, %s303
      %p312 = scmp.eq.s32.totalorder %s40, 0
      %p313 = por %p311, %p312
      %p314 = scmp.ne.s32.totalorder %s302, %s303
      %p315 = scmp.eq.s32.totalorder %s41, 1
      %p316 = por %p314, %p315
      %p318 = scmp.ne.s32.totalorder %s303, %s317
      %p319 = scmp.eq.s32.totalorder %s41, 0
      %p320 = por %p318, %p319
      %s322 = sadd.s32 %s321, 1
      %p325 = scmp.eq.s32.totalorder %s35, 1
      %p326 = scmp.ne.s32.totalorder %s321, %s323
      %p327 = scmp.eq.s32.totalorder %s35, 0
      %p328 = por %p326, %p327
      %p329 = scmp.ne.s32.totalorder %s321, %s323
      %p330 = scmp.eq.s32.totalorder %s40, 1
      %p331 = por %p329, %p330
      %p332 = scmp.ne.s32.totalorder %s323, %s324
      %p333 = scmp.eq.s32.totalorder %s40, 0
      %p334 = por %p332, %p333
      %p335 = scmp.ne.s32.totalorder %s323, %s324
      %p336 = scmp.eq.s32.totalorder %s41, 1
      %p337 = por %p335, %p336
      %p339 = scmp.ne.s32.totalorder %s324, %s338
      %p340 = scmp.eq.s32.totalorder %s41, 0
      %p341 = por %p339, %p340
      %s343 = sadd.s32 %s342, 1
      %p346 = scmp.eq.s32.totalorder %s35, 1
      %p347 = scmp.ne.s32.totalorder %s342, %s344
      %p348 = scmp.eq.s32.totalorder %s35, 0
      %p349 = por %p347, %p348
      %p350 = scmp.ne.s32.totalorder %s342, %s344
      %p351 = scmp.eq.s32.totalorder %s40, 1
      %p352 = por %p350, %p351
      %p353 = scmp.ne.s32.totalorder %s344, %s345
      %p354 = scmp.eq.s32.totalorder %s40, 0
      %p355 = por %p353, %p354
      %p356 = scmp.ne.s32.totalorder %s344, %s345
      %p357 = scmp.eq.s32.totalorder %s41, 1
      %p358 = por %p356, %p357
      %p360 = scmp.ne.s32.totalorder %s345, %s359
      %p361 = scmp.eq.s32.totalorder %s41, 0
      %p362 = por %p360, %p361
      %s364 = sadd.s32 %s363, 1
      %p367 = scmp.eq.s32.totalorder %s35, 1
      %p368 = scmp.ne.s32.totalorder %s363, %s365
      %p369 = scmp.eq.s32.totalorder %s35, 0
      %p370 = por %p368, %p369
      %p371 = scmp.ne.s32.totalorder %s363, %s365
      %p372 = scmp.eq.s32.totalorder %s40, 1
      %p373 = por %p371, %p372
      %p374 = scmp.ne.s32.totalorder %s365, %s366
      %p375 = scmp.eq.s32.totalorder %s40, 0
      %p376 = por %p374, %p375
      %p377 = scmp.ne.s32.totalorder %s365, %s366
      %p378 = scmp.eq.s32.totalorder %s41, 1
      %p379 = por %p377, %p378
      %p381 = scmp.ne.s32.totalorder %s366, %s380
      %p382 = scmp.eq.s32.totalorder %s41, 0
      %p383 = por %p381, %p382
      %s385 = sadd.s32 %s384, 1
      %p388 = scmp.eq.s32.totalorder %s35, 1
      %p389 = scmp.ne.s32.totalorder %s384, %s386
      %p390 = scmp.eq.s32.totalorder %s35, 0
      %p391 = por %p389, %p390
      %p392 = scmp.ne.s32.totalorder %s384, %s386
      %p393 = scmp.eq.s32.totalorder %s40, 1
      %p394 = por %p392, %p393
      %p395 = scmp.ne.s32.totalorder %s386, %s387
      %p396 = scmp.eq.s32.totalorder %s40, 0
      %p397 = por %p395, %p396
      %p398 = scmp.ne.s32.totalorder %s386, %s387
      %p399 = scmp.eq.s32.totalorder %s41, 1
      %p400 = por %p398, %p399
      %p402 = scmp.ne.s32.totalorder %s387, %s401
      %p403 = scmp.eq.s32.totalorder %s41, 0
      %p404 = por %p402, %p403
      %s406 = sadd.s32 %s405, 1
      %p409 = scmp.eq.s32.totalorder %s35, 1
      %p410 = scmp.ne.s32.totalorder %s405, %s407
      %p411 = scmp.eq.s32.totalorder %s35, 0
      %p412 = por %p410, %p411
      %p413 = scmp.ne.s32.totalorder %s405, %s407
      %p414 = scmp.eq.s32.totalorder %s40, 1
      %p415 = por %p413, %p414
      %p416 = scmp.ne.s32.totalorder %s407, %s408
      %p417 = scmp.eq.s32.totalorder %s40, 0
      %p418 = por %p416, %p417
      %p419 = scmp.ne.s32.totalorder %s407, %s408
      %p420 = scmp.eq.s32.totalorder %s41, 1
      %p421 = por %p419, %p420
      %p423 = scmp.ne.s32.totalorder %s408, %s422
      %p424 = scmp.eq.s32.totalorder %s41, 0
      %p425 = por %p423, %p424
      %s427 = sadd.s32 %s426, 1
      %p430 = scmp.eq.s32.totalorder %s35, 1
      %p431 = scmp.ne.s32.totalorder %s426, %s428
      %p432 = scmp.eq.s32.totalorder %s35, 0
      %p433 = por %p431, %p432
      %p434 = scmp.ne.s32.totalorder %s426, %s428
      %p435 = scmp.eq.s32.totalorder %s40, 1
      %p436 = por %p434, %p435
      %p437 = scmp.ne.s32.totalorder %s428, %s429
      %p438 = scmp.eq.s32.totalorder %s40, 0
      %p439 = por %p437, %p438
      %p440 = scmp.ne.s32.totalorder %s428, %s429
      %p441 = scmp.eq.s32.totalorder %s41, 1
      %p442 = por %p440, %p441
      %p444 = scmp.ne.s32.totalorder %s429, %s443
      %p445 = scmp.eq.s32.totalorder %s41, 0
      %p446 = por %p444, %p445
      %s447 = ssub.s32 %s35, %s42
      %p448 = scmp.eq.s32.totalorder %s447, 0
      %s450 = sadd.s32 %s449, 1
      %s451 = scalar_select %p448, %s449, %s450
      %p454 = pneg %p448
      %p455 = scmp.eq.s32.totalorder %s35, 1
      %p456 = por %p454, %p455
      %p457 = scmp.ne.s32.totalorder %s449, %s452
      %p458 = scmp.eq.s32.totalorder %s35, 0
      %p459 = por %p457, %p458
      %p460 = scmp.ne.s32.totalorder %s449, %s452
      %p461 = scmp.eq.s32.totalorder %s40, 1
      %p462 = por %p460, %p461
      %p463 = scmp.ne.s32.totalorder %s452, %s453
      %p464 = scmp.eq.s32.totalorder %s40, 0
      %p465 = por %p463, %p464
      %p466 = scmp.ne.s32.totalorder %s452, %s453
      %p467 = scmp.eq.s32.totalorder %s41, 1
      %p468 = por %p466, %p467
      %p470 = scmp.ne.s32.totalorder %s453, %s469
      %p471 = scmp.eq.s32.totalorder %s41, 0
      %p472 = por %p470, %p471
      %p473 = scmp.le.s32.totalorder 1, %s35
      %p474 = scmp.lt.s32.totalorder %s35, 3
      %p475 = pnand %p473, %p474
      %p476 = pneg %p475
      // Predicated region
      $region9: #{tpu_custom_call.1} parent=5 // pred_check
        _
      $region10: #{tpu_custom_call.1} parent=5 // pred_check_branch
        %478 = sbr.rel (%p475) target = $region12
      $region11: #{tpu_custom_call.1} parent=5 // pred_region
        %s479 = ssub.s32 %s35, 1
        // Predicated region
        $region13: #{tpu_custom_call.1} parent=11 // pred_check
          %p480 = pneg %p82
        $region14: #{tpu_custom_call.1} parent=11 // pred_check_branch
          %482 = sbr.rel (%p480) target = $region16
        $region15: #{tpu_custom_call.1} parent=11 // pred_region
          _
        $region16: #{tpu_custom_call.1} parent=11 // pred_fallthru
          _
        // Predicated region
        $region17: #{tpu_custom_call.1} parent=11 // pred_check
          %p483 = pneg %p103
        $region18: #{tpu_custom_call.1} parent=11 // pred_check_branch
          %485 = sbr.rel (%p483) target = $region20
        $region19: #{tpu_custom_call.1} parent=11 // pred_region
          %487 = vsyncadd [#allocation8], 0
          %s489 = sshll.u32 %s2, 4
          %s490 = int_to_ptr.hbm [resolvable:$true] %s489
          %s491 = sshll.u32 [#allocation7], 4
          %s492 = int_to_ptr.vmem [resolvable:$true] %s491
          %494 = dma.hbm_to_vmem [thread:$0]  %s490, 16, %s492, [#allocation8]
        $region20: #{tpu_custom_call.1} parent=11 // pred_fallthru
          _
        // Predicated region
        $region21: #{tpu_custom_call.1} parent=11 // pred_check
          %p495 = pneg %p124
        $region22: #{tpu_custom_call.1} parent=11 // pred_check_branch
          %497 = sbr.rel (%p495) target = $region24
        $region23: #{tpu_custom_call.1} parent=11 // pred_region
          %499 = vsyncadd [#allocation8], 0
          %s501 = sshll.u32 %s3, 4
          %s502 = int_to_ptr.hbm [resolvable:$true] %s501
          %s503 = sshll.u32 [#allocation9], 4
          %s504 = int_to_ptr.vmem [resolvable:$true] %s503
          %506 = dma.hbm_to_vmem [thread:$0]  %s502, 16, %s504, [#allocation8]
        $region24: #{tpu_custom_call.1} parent=11 // pred_fallthru
          _
        // Predicated region
        $region25: #{tpu_custom_call.1} parent=11 // pred_check
          %p507 = pneg %p145
        $region26: #{tpu_custom_call.1} parent=11 // pred_check_branch
          %509 = sbr.rel (%p507) target = $region28
        $region27: #{tpu_custom_call.1} parent=11 // pred_region
          %511 = vsyncadd [#allocation11], 0
          %s513 = sshll.u32 %s4, 4
          %s514 = int_to_ptr.hbm [resolvable:$true] %s513
          %s515 = sshll.u32 [#allocation10], 4
          %s516 = int_to_ptr.vmem [resolvable:$true] %s515
          %518 = dma.hbm_to_vmem [thread:$0]  %s514, 16, %s516, [#allocation11]
        $region28: #{tpu_custom_call.1} parent=11 // pred_fallthru
          _
        // Predicated region
        $region29: #{tpu_custom_call.1} parent=11 // pred_check
          %p519 = pneg %p166
        $region30: #{tpu_custom_call.1} parent=11 // pred_check_branch
          %521 = sbr.rel (%p519) target = $region32
        $region31: #{tpu_custom_call.1} parent=11 // pred_region
          %523 = vsyncadd [#allocation11], 0
          %s524 = sshll.u32 %s5, 4
          %s525 = int_to_ptr.hbm [resolvable:$true] %s524
          %s526 = sshll.u32 [#allocation12], 4
          %s527 = int_to_ptr.vmem [resolvable:$true] %s526
          %532 = dma.hbm_to_vmem [thread:$0]  %s525, 192, %s527, [#allocation11], 64, 64, 4
        $region32: #{tpu_custom_call.1} parent=11 // pred_fallthru
          _
        // Predicated region
        $region33: #{tpu_custom_call.1} parent=11 // pred_check
          %p533 = pneg %p187
        $region34: #{tpu_custom_call.1} parent=11 // pred_check_branch
          %535 = sbr.rel (%p533) target = $region36
        $region35: #{tpu_custom_call.1} parent=11 // pred_region
          %537 = vsyncadd [#allocation14], 0
          %s539 = sshll.u32 %s6, 4
          %s540 = int_to_ptr.hbm [resolvable:$true] %s539
          %s541 = sshll.u32 [#allocation13], 4
          %s542 = int_to_ptr.vmem [resolvable:$true] %s541
          %544 = dma.hbm_to_vmem [thread:$0]  %s540, 16, %s542, [#allocation14]
        $region36: #{tpu_custom_call.1} parent=11 // pred_fallthru
          _
        // Predicated region
        $region37: #{tpu_custom_call.1} parent=11 // pred_check
          %p545 = pneg %p208
        $region38: #{tpu_custom_call.1} parent=11 // pred_check_branch
          %547 = sbr.rel (%p545) target = $region40
        $region39: #{tpu_custom_call.1} parent=11 // pred_region
          %549 = vsyncadd [#allocation14], 0
          %s551 = sshll.u32 %s7, 4
          %s552 = int_to_ptr.hbm [resolvable:$true] %s551
          %s553 = sshll.u32 [#allocation15], 4
          %s554 = int_to_ptr.vmem [resolvable:$true] %s553
          %556 = dma.hbm_to_vmem [thread:$0]  %s552, 16, %s554, [#allocation14]
        $region40: #{tpu_custom_call.1} parent=11 // pred_fallthru
          _
        // Predicated region
        $region41: #{tpu_custom_call.1} parent=11 // pred_check
          %p557 = pneg %p229
        $region42: #{tpu_custom_call.1} parent=11 // pred_check_branch
          %559 = sbr.rel (%p557) target = $region44
        $region43: #{tpu_custom_call.1} parent=11 // pred_region
          %561 = vsyncadd [#allocation17], 0
          %s563 = sshll.u32 %s8, 4
          %s564 = int_to_ptr.hbm [resolvable:$true] %s563
          %s565 = sshll.u32 [#allocation16], 4
          %s566 = int_to_ptr.vmem [resolvable:$true] %s565
          %568 = dma.hbm_to_vmem [thread:$0]  %s564, 16, %s566, [#allocation17]
        $region44: #{tpu_custom_call.1} parent=11 // pred_fallthru
          _
        // Predicated region
        $region45: #{tpu_custom_call.1} parent=11 // pred_check
          %p569 = pneg %p250
        $region46: #{tpu_custom_call.1} parent=11 // pred_check_branch
          %571 = sbr.rel (%p569) target = $region48
        $region47: #{tpu_custom_call.1} parent=11 // pred_region
          _
        $region48: #{tpu_custom_call.1} parent=11 // pred_fallthru
          _
        // Predicated region
        $region49: #{tpu_custom_call.1} parent=11 // pred_check
          %p572 = pneg %p271
        $region50: #{tpu_custom_call.1} parent=11 // pred_check_branch
          %574 = sbr.rel (%p572) target = $region52
        $region51: #{tpu_custom_call.1} parent=11 // pred_region
          _
        $region52: #{tpu_custom_call.1} parent=11 // pred_fallthru
          _
        // Predicated region
        $region53: #{tpu_custom_call.1} parent=11 // pred_check
          %p575 = pneg %p292
        $region54: #{tpu_custom_call.1} parent=11 // pred_check_branch
          %577 = sbr.rel (%p575) target = $region56
        $region55: #{tpu_custom_call.1} parent=11 // pred_region
          %579 = vsyncadd [#allocation17], 0
          %s581 = sshll.u32 %s11, 4
          %s582 = int_to_ptr.hbm [resolvable:$true] %s581
          %s583 = sshll.u32 [#allocation18], 4
          %s584 = int_to_ptr.vmem [resolvable:$true] %s583
          %586 = dma.hbm_to_vmem [thread:$0]  %s582, 16, %s584, [#allocation17]
        $region56: #{tpu_custom_call.1} parent=11 // pred_fallthru
          _
        // Predicated region
        $region57: #{tpu_custom_call.1} parent=11 // pred_check
          %p587 = pneg %p313
        $region58: #{tpu_custom_call.1} parent=11 // pred_check_branch
          %589 = sbr.rel (%p587) target = $region60
        $region59: #{tpu_custom_call.1} parent=11 // pred_region
          _
        $region60: #{tpu_custom_call.1} parent=11 // pred_fallthru
          _
        // Predicated region
        $region61: #{tpu_custom_call.1} parent=11 // pred_check
          %p590 = pneg %p334
        $region62: #{tpu_custom_call.1} parent=11 // pred_check_branch
          %592 = sbr.rel (%p590) target = $region64
        $region63: #{tpu_custom_call.1} parent=11 // pred_region
          _
        $region64: #{tpu_custom_call.1} parent=11 // pred_fallthru
          _
        // Predicated region
        $region65: #{tpu_custom_call.1} parent=11 // pred_check
          %p593 = pneg %p355
        $region66: #{tpu_custom_call.1} parent=11 // pred_check_branch
          %595 = sbr.rel (%p593) target = $region68
        $region67: #{tpu_custom_call.1} parent=11 // pred_region
          _
        $region68: #{tpu_custom_call.1} parent=11 // pred_fallthru
          _
        // Predicated region
        $region69: #{tpu_custom_call.1} parent=11 // pred_check
          %p596 = pneg %p376
        $region70: #{tpu_custom_call.1} parent=11 // pred_check_branch
          %598 = sbr.rel (%p596) target = $region72
        $region71: #{tpu_custom_call.1} parent=11 // pred_region
          _
        $region72: #{tpu_custom_call.1} parent=11 // pred_fallthru
          _
        // Predicated region
        $region73: #{tpu_custom_call.1} parent=11 // pred_check
          %p599 = pneg %p397
        $region74: #{tpu_custom_call.1} parent=11 // pred_check_branch
          %601 = sbr.rel (%p599) target = $region76
        $region75: #{tpu_custom_call.1} parent=11 // pred_region
          _
        $region76: #{tpu_custom_call.1} parent=11 // pred_fallthru
          _
        // Predicated region
        $region77: #{tpu_custom_call.1} parent=11 // pred_check
          %p602 = pneg %p418
        $region78: #{tpu_custom_call.1} parent=11 // pred_check_branch
          %604 = sbr.rel (%p602) target = $region80
        $region79: #{tpu_custom_call.1} parent=11 // pred_region
          _
        $region80: #{tpu_custom_call.1} parent=11 // pred_fallthru
          _
        // Predicated region
        $region81: #{tpu_custom_call.1} parent=11 // pred_check
          %p605 = pneg %p439
        $region82: #{tpu_custom_call.1} parent=11 // pred_check_branch
          %607 = sbr.rel (%p605) target = $region84
        $region83: #{tpu_custom_call.1} parent=11 // pred_region
          _
        $region84: #{tpu_custom_call.1} parent=11 // pred_fallthru
          _
      $region12: #{tpu_custom_call.1} parent=5 // pred_fallthru
        _
      %p608 = scmp.lt.s32.totalorder %s35, 2
      // Predicated region
      $region85: #{tpu_custom_call.1} parent=5 // pred_check
        %p609 = pneg %p608
      $region86: #{tpu_custom_call.1} parent=5 // pred_check_branch
        %611 = sbr.rel (%p609) target = $region88
      $region87: #{tpu_custom_call.1} parent=5 // pred_region
        // Predicated region
        $region89: #{tpu_custom_call.1} parent=87 // pred_check
          %p612 = pneg %p55
        $region90: #{tpu_custom_call.1} parent=87 // pred_check_branch
          %614 = sbr.rel (%p612) target = $region92
        $region91: #{tpu_custom_call.1} parent=87 // pred_region
          %s615 = sand.u32 %s45, 1
          %s616 = scalar_lea.sflag [#allocation5], %s615
          %s617 = sand.u32 %s45, 1
          %s618 = smul.addr %s617, 64
          %s619 = scalar_lea.vmem [#allocation4], %s618
          %s620 = smul.u32 2, %s35
          %622 = vsyncadd %s616, 0
          %s623 = smul.addr %s620, 8
          %s624 = smul.addr %s623, 4
          %s625 = scalar_lea.hbm %s0, %s624
          %s626 = sshll.u32 %s625, 4
          %s627 = int_to_ptr.hbm [resolvable:$true] %s626
          %s628 = sshll.u32 %s619, 4
          %s629 = int_to_ptr.vmem [resolvable:$true] %s628
          %634 = dma.hbm_to_vmem [thread:$0]  %s627, 1024, %s629, %s616, 64, 64, 4
        $region92: #{tpu_custom_call.1} parent=87 // pred_fallthru
          _
      $region88: #{tpu_custom_call.1} parent=5 // pred_fallthru
        _
      %p635 = scmp.le.s32.totalorder 1, %s35
      %p636 = scmp.lt.s32.totalorder %s35, 3
      %p637 = pnand %p635, %p636
      %p638 = pneg %p637
      // Predicated region
      $region93: #{tpu_custom_call.1} parent=5 // pred_check
        _
      $region94: #{tpu_custom_call.1} parent=5 // pred_check_branch
        %640 = sbr.rel (%p637) target = $region96
      $region95: #{tpu_custom_call.1} parent=5 // pred_region
        %s641 = ssub.s32 %s35, 1
        %s642 = sand.u32 %s48, 1
        %s643 = scalar_lea.sflag [#allocation5], %s642
        %s644 = sand.u32 %s48, 1
        %s645 = smul.addr %s644, 64
        %s646 = scalar_lea.vmem [#allocation4], %s645
        // Predicated region
        $region97: #{tpu_custom_call.1} parent=95 // pred_check
          %p647 = pneg %p61
        $region98: #{tpu_custom_call.1} parent=95 // pred_check_branch
          %649 = sbr.rel (%p647) target = $region100
        $region99: #{tpu_custom_call.1} parent=95 // pred_region
          %651 = dma.done %s643, 1024
        $region100: #{tpu_custom_call.1} parent=95 // pred_fallthru
          _
        // Predicated region
        $region101: #{tpu_custom_call.1} parent=95 // pred_check
          %p652 = pneg %p103
        $region102: #{tpu_custom_call.1} parent=95 // pred_check_branch
          %654 = sbr.rel (%p652) target = $region104
        $region103: #{tpu_custom_call.1} parent=95 // pred_region
          %656 = dma.done [#allocation8], 16
        $region104: #{tpu_custom_call.1} parent=95 // pred_fallthru
          _
        // Predicated region
        $region105: #{tpu_custom_call.1} parent=95 // pred_check
          %p657 = pneg %p124
        $region106: #{tpu_custom_call.1} parent=95 // pred_check_branch
          %659 = sbr.rel (%p657) target = $region108
        $region107: #{tpu_custom_call.1} parent=95 // pred_region
          %661 = dma.done [#allocation8], 16
        $region108: #{tpu_custom_call.1} parent=95 // pred_fallthru
          _
        // Predicated region
        $region109: #{tpu_custom_call.1} parent=95 // pred_check
          %p662 = pneg %p145
        $region110: #{tpu_custom_call.1} parent=95 // pred_check_branch
          %664 = sbr.rel (%p662) target = $region112
        $region111: #{tpu_custom_call.1} parent=95 // pred_region
          %666 = dma.done [#allocation11], 16
        $region112: #{tpu_custom_call.1} parent=95 // pred_fallthru
          _
        // Predicated region
        $region113: #{tpu_custom_call.1} parent=95 // pred_check
          %p667 = pneg %p166
        $region114: #{tpu_custom_call.1} parent=95 // pred_check_branch
          %669 = sbr.rel (%p667) target = $region116
        $region115: #{tpu_custom_call.1} parent=95 // pred_region
          %671 = dma.done [#allocation11], 192
        $region116: #{tpu_custom_call.1} parent=95 // pred_fallthru
          _
        // Predicated region
        $region117: #{tpu_custom_call.1} parent=95 // pred_check
          %p672 = pneg %p187
        $region118: #{tpu_custom_call.1} parent=95 // pred_check_branch
          %674 = sbr.rel (%p672) target = $region120
        $region119: #{tpu_custom_call.1} parent=95 // pred_region
          %676 = dma.done [#allocation14], 16
        $region120: #{tpu_custom_call.1} parent=95 // pred_fallthru
          _
        // Predicated region
        $region121: #{tpu_custom_call.1} parent=95 // pred_check
          %p677 = pneg %p208
        $region122: #{tpu_custom_call.1} parent=95 // pred_check_branch
          %679 = sbr.rel (%p677) target = $region124
        $region123: #{tpu_custom_call.1} parent=95 // pred_region
          %681 = dma.done [#allocation14], 16
        $region124: #{tpu_custom_call.1} parent=95 // pred_fallthru
          _
        // Predicated region
        $region125: #{tpu_custom_call.1} parent=95 // pred_check
          %p682 = pneg %p229
        $region126: #{tpu_custom_call.1} parent=95 // pred_check_branch
          %684 = sbr.rel (%p682) target = $region128
        $region127: #{tpu_custom_call.1} parent=95 // pred_region
          %686 = dma.done [#allocation17], 16
        $region128: #{tpu_custom_call.1} parent=95 // pred_fallthru
          _
        // Predicated region
        $region129: #{tpu_custom_call.1} parent=95 // pred_check
          %p687 = pneg %p292
        $region130: #{tpu_custom_call.1} parent=95 // pred_check_branch
          %689 = sbr.rel (%p687) target = $region132
        $region131: #{tpu_custom_call.1} parent=95 // pred_region
          %691 = dma.done [#allocation17], 16
        $region132: #{tpu_custom_call.1} parent=95 // pred_fallthru
          _
        %s692 = sand.u32 %s48, 1
        %s693 = scalar_lea.sflag [#allocation5], %s692
        %s694 = sand.u32 %s48, 1
        %s695 = smul.addr %s694, 64
        %s696 = scalar_lea.vmem [#allocation4], %s695
        %p697 = pneg %p61
        %p698 = pneg %p58
        %p699 = pneg %p82
        %p700 = pneg %p79
        %p701 = pneg %p103
        %p702 = pneg %p100
        %p703 = pneg %p124
        %p704 = pneg %p121
        %p705 = pneg %p145
        %p706 = pneg %p142
        %p707 = pneg %p166
        %p708 = pneg %p163
        %p709 = pneg %p187
        %p710 = pneg %p184
        %p711 = pneg %p208
        %p712 = pneg %p205
        %p713 = pneg %p229
        %p714 = pneg %p226
        %p715 = pneg %p250
        %p716 = pneg %p247
        %p717 = pneg %p271
        %p718 = pneg %p268
        %p719 = pneg %p292
        %p720 = pneg %p289
        %p721 = pneg %p313
        %p722 = pneg %p310
        %p723 = pneg %p334
        %p724 = pneg %p331
        %p725 = pneg %p355
        %p726 = pneg %p352
        %p727 = pneg %p376
        %p728 = pneg %p373
        %p729 = pneg %p397
        %p730 = pneg %p394
        %p731 = pneg %p418
        %p732 = pneg %p415
        %p733 = pneg %p439
        %p734 = pneg %p436
        %p735 = pneg %p465
        %p736 = pneg %p462
        %s737 = sand.u32 %s452, 1
        %s738 = scalar_lea.sflag [#allocation6], %s737
        %s739 = sand.u32 %s452, 1
        %s740 = smul.addr %s739, 128
        %s741 = scalar_lea.vmem [#allocation19], %s740
        %s742 = smul.u32 2, %s40
        %s743 = smul.u32 2, %s40
        %v745 = vld [vmem:[%s646] sm:$0xf]
        %v746 = vld [vmem:[%s646 + $0x4] sm:$0xf]
        %v747 = vld [vmem:[%s646 + $0x8] sm:$0xf]
        %v748 = vld [vmem:[%s646 + $0xc] sm:$0xf]
        %v749 = vld [vmem:[%s646 + $0x10] sm:$0xf]
        %v750 = vld [vmem:[%s646 + $0x14] sm:$0xf]
        %v751 = vld [vmem:[%s646 + $0x18] sm:$0xf]
        %v752 = vld [vmem:[%s646 + $0x1c] sm:$0xf]
        %v753 = vld [vmem:[%s646 + $0x20] sm:$0xf]
        %v754 = vld [vmem:[%s646 + $0x24] sm:$0xf]
        %v755 = vld [vmem:[%s646 + $0x28] sm:$0xf]
        %v756 = vld [vmem:[%s646 + $0x2c] sm:$0xf]
        %v757 = vld [vmem:[%s646 + $0x30] sm:$0xf]
        %v758 = vld [vmem:[%s646 + $0x34] sm:$0xf]
        %v759 = vld [vmem:[%s646 + $0x38] sm:$0xf]
        %v760 = vld [vmem:[%s646 + $0x3c] sm:$0xf]
        %v761 = vld [vmem:[%s1] sm:$0xf]
        %v762 = vld [vmem:[%s1 + $0x4] sm:$0xf]
        %v763 = vld [vmem:[%s1 + $0x8] sm:$0xf]
        %v764 = vld [vmem:[%s1 + $0xc] sm:$0xf]
        %v765 = vld [vmem:[%s1 + $0x10] sm:$0xf]
        %v766 = vld [vmem:[%s1 + $0x14] sm:$0xf]
        %v767 = vld [vmem:[%s1 + $0x18] sm:$0xf]
        %v768 = vld [vmem:[%s1 + $0x1c] sm:$0xf]
        %v769 = vld [vmem:[#allocation7] sm:$0x1]
        %v771 = vperm.slane %v769, 0
        %v789 = vunpack.c.l.b16 %v745
        %v790 = vunpack.c.l.b16 %v746
        %v791 = vunpack.c.l.b16 %v747
        %v792 = vunpack.c.l.b16 %v748
        %v793 = vunpack.c.l.b16 %v749
        %v794 = vunpack.c.l.b16 %v750
        %v795 = vunpack.c.l.b16 %v751
        %v796 = vunpack.c.l.b16 %v752
        %v797 = vunpack.c.l.b16 %v753
        %v798 = vunpack.c.l.b16 %v754
        %v799 = vunpack.c.l.b16 %v755
        %v800 = vunpack.c.l.b16 %v756
        %v801 = vunpack.c.l.b16 %v757
        %v802 = vunpack.c.l.b16 %v758
        %v803 = vunpack.c.l.b16 %v759
        %v804 = vunpack.c.l.b16 %v760
        %v805 = vpack.c.b16 %v790, %v789
        %v806 = vpack.c.b16 %v792, %v791
        %v807 = vpack.c.b16 %v794, %v793
        %v808 = vpack.c.b16 %v796, %v795
        %v809 = vpack.c.b16 %v798, %v797
        %v810 = vpack.c.b16 %v800, %v799
        %v811 = vpack.c.b16 %v802, %v801
        %v812 = vpack.c.b16 %v804, %v803
        %v821 = vunpack.c.l.b16 %v761
        %v822 = vunpack.c.l.b16 %v762
        %v823 = vunpack.c.l.b16 %v763
        %v824 = vunpack.c.l.b16 %v764
        %v825 = vunpack.c.l.b16 %v765
        %v826 = vunpack.c.l.b16 %v766
        %v827 = vunpack.c.l.b16 %v767
        %v828 = vunpack.c.l.b16 %v768
        %v829 = vpack.c.b16 %v822, %v821
        %v830 = vpack.c.b16 %v824, %v823
        %v831 = vpack.c.b16 %v826, %v825
        %v832 = vpack.c.b16 %v828, %v827
        %vm837 = vcmask 523264
        %v839 = vsel %vm837, %v805, 0
        %v842 = vsel %vm837, %v806, 0
        %v845 = vsel %vm837, %v807, 0
        %v848 = vsel %vm837, %v808, 0
        %v851 = vsel %vm837, %v809, 0
        %v854 = vsel %vm837, %v810, 0
        %v857 = vsel %vm837, %v811, 0
        %v860 = vsel %vm837, %v812, 0
        %862 = vmatpush.bf16.msra.mxu0 0
        %863 = vmatpush.bf16.msra.mxu0 0
        %864 = vmatpush.bf16.msra.mxu0 0
        %865 = vmatpush.bf16.msra.mxu0 0
        %866 = vmatpush.bf16.msra.mxu0 %v832
        %867 = vmatpush.bf16.msra.mxu0 %v831
        %868 = vmatpush.bf16.msra.mxu0 %v830
        %869 = vmatpush.bf16.msra.mxu0 %v829
        %870 = vmatmul.bf16.gmra.mxu0 %v839
        %v871 = vpop.f32.mrf.mxu0
        %v872 = vadd.f32 %v771, %v871
        %v873 = vpop.f32.mrf.mxu0
        %v874 = vadd.f32 %v771, %v873
        %875 = vmatmul.bf16.gmra.mxu0 %v842
        %v876 = vpop.f32.mrf.mxu0
        %v877 = vadd.f32 %v771, %v876
        %v878 = vpop.f32.mrf.mxu0
        %v879 = vadd.f32 %v771, %v878
        %880 = vmatmul.bf16.gmra.mxu0 %v845
        %v881 = vpop.f32.mrf.mxu0
        %v882 = vadd.f32 %v771, %v881
        %v883 = vpop.f32.mrf.mxu0
        %v884 = vadd.f32 %v771, %v883
        %885 = vmatmul.bf16.gmra.mxu0 %v848
        %v886 = vpop.f32.mrf.mxu0
        %v887 = vadd.f32 %v771, %v886
        %v888 = vpop.f32.mrf.mxu0
        %v889 = vadd.f32 %v771, %v888
        %890 = vmatmul.bf16.gmra.mxu0 %v851
        %v891 = vpop.f32.mrf.mxu0
        %v892 = vadd.f32 %v771, %v891
        %v893 = vpop.f32.mrf.mxu0
        %v894 = vadd.f32 %v771, %v893
        %895 = vmatmul.bf16.gmra.mxu0 %v854
        %v896 = vpop.f32.mrf.mxu0
        %v897 = vadd.f32 %v771, %v896
        %v898 = vpop.f32.mrf.mxu0
        %v899 = vadd.f32 %v771, %v898
        %900 = vmatmul.bf16.gmra.mxu0 %v857
        %v901 = vpop.f32.mrf.mxu0
        %v902 = vadd.f32 %v771, %v901
        %v903 = vpop.f32.mrf.mxu0
        %v904 = vadd.f32 %v771, %v903
        %905 = vmatmul.bf16.gmra.mxu0 %v860
        %v906 = vpop.f32.mrf.mxu0
        %v907 = vadd.f32 %v771, %v906
        %v908 = vpop.f32.mrf.mxu0
        %v909 = vadd.f32 %v771, %v908
        %910 = vdwg.mxu0
        %v911 = vld [vmem:[#allocation9] sm:$0x1]
        %v912 = vld [vmem:[#allocation10] sm:$0x1]
        %913 = vadd.xlane.f32.xlu0 %v872
        %v914 = vpop.xlane.xlu0 %913
        %915 = vadd.xlane.f32.xlu0 %v874
        %v916 = vpop.xlane.xlu0 %915
        %917 = vadd.xlane.f32.xlu0 %v877
        %v918 = vpop.xlane.xlu0 %917
        %919 = vadd.xlane.f32.xlu0 %v879
        %v920 = vpop.xlane.xlu0 %919
        %921 = vadd.xlane.f32.xlu0 %v882
        %v922 = vpop.xlane.xlu0 %921
        %923 = vadd.xlane.f32.xlu0 %v884
        %v924 = vpop.xlane.xlu0 %923
        %925 = vadd.xlane.f32.xlu0 %v887
        %v926 = vpop.xlane.xlu0 %925
        %927 = vadd.xlane.f32.xlu0 %v889
        %v928 = vpop.xlane.xlu0 %927
        %929 = vadd.xlane.f32.xlu0 %v892
        %v930 = vpop.xlane.xlu0 %929
        %931 = vadd.xlane.f32.xlu0 %v894
        %v932 = vpop.xlane.xlu0 %931
        %933 = vadd.xlane.f32.xlu0 %v897
        %v934 = vpop.xlane.xlu0 %933
        %935 = vadd.xlane.f32.xlu0 %v899
        %v936 = vpop.xlane.xlu0 %935
        %937 = vadd.xlane.f32.xlu0 %v902
        %v938 = vpop.xlane.xlu0 %937
        %939 = vadd.xlane.f32.xlu0 %v904
        %v940 = vpop.xlane.xlu0 %939
        %941 = vadd.xlane.f32.xlu0 %v907
        %v942 = vpop.xlane.xlu0 %941
        %943 = vadd.xlane.f32.xlu0 %v909
        %v944 = vpop.xlane.xlu0 %943
        %v945 = vrcp.pop 128.0
        %v946 = vmul.f32 128.0, %v945
        %v947 = vsub.f32 1.0, %v946
        %v948 = vmul.f32 %v945, %v947
        %v949 = vadd.f32 %v945, %v948
        %vm950 = vweird.f32 %v945
        %v951 = vsel %vm950, %v945, %v949
        %v952 = vmul.f32 %v914, %v951
        %v953 = vmul.f32 %v916, %v951
        %v954 = vmul.f32 %v918, %v951
        %v955 = vmul.f32 %v920, %v951
        %v956 = vmul.f32 %v922, %v951
        %v957 = vmul.f32 %v924, %v951
        %v958 = vmul.f32 %v926, %v951
        %v959 = vmul.f32 %v928, %v951
        %v960 = vmul.f32 %v930, %v951
        %v961 = vmul.f32 %v932, %v951
        %v962 = vmul.f32 %v934, %v951
        %v963 = vmul.f32 %v936, %v951
        %v964 = vmul.f32 %v938, %v951
        %v965 = vmul.f32 %v940, %v951
        %v966 = vmul.f32 %v942, %v951
        %v967 = vmul.f32 %v944, %v951
        %v968 = vmul.f32 %v872, %v872
        %v969 = vmul.f32 %v874, %v874
        %v970 = vmul.f32 %v877, %v877
        %v971 = vmul.f32 %v879, %v879
        %v972 = vmul.f32 %v882, %v882
        %v973 = vmul.f32 %v884, %v884
        %v974 = vmul.f32 %v887, %v887
        %v975 = vmul.f32 %v889, %v889
        %v976 = vmul.f32 %v892, %v892
        %v977 = vmul.f32 %v894, %v894
        %v978 = vmul.f32 %v897, %v897
        %v979 = vmul.f32 %v899, %v899
        %v980 = vmul.f32 %v902, %v902
        %v981 = vmul.f32 %v904, %v904
        %v982 = vmul.f32 %v907, %v907
        %v983 = vmul.f32 %v909, %v909
        %984 = vadd.xlane.f32.xlu0 %v968
        %v985 = vpop.xlane.xlu0 %984
        %986 = vadd.xlane.f32.xlu0 %v969
        %v987 = vpop.xlane.xlu0 %986
        %988 = vadd.xlane.f32.xlu0 %v970
        %v989 = vpop.xlane.xlu0 %988
        %990 = vadd.xlane.f32.xlu0 %v971
        %v991 = vpop.xlane.xlu0 %990
        %992 = vadd.xlane.f32.xlu0 %v972
        %v993 = vpop.xlane.xlu0 %992
        %994 = vadd.xlane.f32.xlu0 %v973
        %v995 = vpop.xlane.xlu0 %994
        %996 = vadd.xlane.f32.xlu0 %v974
        %v997 = vpop.xlane.xlu0 %996
        %998 = vadd.xlane.f32.xlu0 %v975
        %v999 = vpop.xlane.xlu0 %998
        %1000 = vadd.xlane.f32.xlu0 %v976
        %v1001 = vpop.xlane.xlu0 %1000
        %1002 = vadd.xlane.f32.xlu0 %v977
        %v1003 = vpop.xlane.xlu0 %1002
        %1004 = vadd.xlane.f32.xlu0 %v978
        %v1005 = vpop.xlane.xlu0 %1004
        %1006 = vadd.xlane.f32.xlu0 %v979
        %v1007 = vpop.xlane.xlu0 %1006
        %1008 = vadd.xlane.f32.xlu0 %v980
        %v1009 = vpop.xlane.xlu0 %1008
        %1010 = vadd.xlane.f32.xlu0 %v981
        %v1011 = vpop.xlane.xlu0 %1010
        %1012 = vadd.xlane.f32.xlu0 %v982
        %v1013 = vpop.xlane.xlu0 %1012
        %1014 = vadd.xlane.f32.xlu0 %v983
        %v1015 = vpop.xlane.xlu0 %1014
        %v1016 = vmul.f32 %v985, %v951
        %v1017 = vmul.f32 %v987, %v951
        %v1018 = vmul.f32 %v989, %v951
        %v1019 = vmul.f32 %v991, %v951
        %v1020 = vmul.f32 %v993, %v951
        %v1021 = vmul.f32 %v995, %v951
        %v1022 = vmul.f32 %v997, %v951
        %v1023 = vmul.f32 %v999, %v951
        %v1024 = vmul.f32 %v1001, %v951
        %v1025 = vmul.f32 %v1003, %v951
        %v1026 = vmul.f32 %v1005, %v951
        %v1027 = vmul.f32 %v1007, %v951
        %v1028 = vmul.f32 %v1009, %v951
        %v1029 = vmul.f32 %v1011, %v951
        %v1030 = vmul.f32 %v1013, %v951
        %v1031 = vmul.f32 %v1015, %v951
        %v1032 = vmul.f32 %v952, %v952
        %v1033 = vmul.f32 %v953, %v953
        %v1034 = vmul.f32 %v954, %v954
        %v1035 = vmul.f32 %v955, %v955
        %v1036 = vmul.f32 %v956, %v956
        %v1037 = vmul.f32 %v957, %v957
        %v1038 = vmul.f32 %v958, %v958
        %v1039 = vmul.f32 %v959, %v959
        %v1040 = vmul.f32 %v960, %v960
        %v1041 = vmul.f32 %v961, %v961
        %v1042 = vmul.f32 %v962, %v962
        %v1043 = vmul.f32 %v963, %v963
        %v1044 = vmul.f32 %v964, %v964
        %v1045 = vmul.f32 %v965, %v965
        %v1046 = vmul.f32 %v966, %v966
        %v1047 = vmul.f32 %v967, %v967
        %v1048 = vsub.f32 %v1016, %v1032
        %v1049 = vsub.f32 %v1017, %v1033
        %v1050 = vsub.f32 %v1018, %v1034
        %v1051 = vsub.f32 %v1019, %v1035
        %v1052 = vsub.f32 %v1020, %v1036
        %v1053 = vsub.f32 %v1021, %v1037
        %v1054 = vsub.f32 %v1022, %v1038
        %v1055 = vsub.f32 %v1023, %v1039
        %v1056 = vsub.f32 %v1024, %v1040
        %v1057 = vsub.f32 %v1025, %v1041
        %v1058 = vsub.f32 %v1026, %v1042
        %v1059 = vsub.f32 %v1027, %v1043
        %v1060 = vsub.f32 %v1028, %v1044
        %v1061 = vsub.f32 %v1029, %v1045
        %v1062 = vsub.f32 %v1030, %v1046
        %v1063 = vsub.f32 %v1031, %v1047
        %v1064 = vmax.f32 %v1048, 0.0
        %v1065 = vmax.f32 %v1049, 0.0
        %v1066 = vmax.f32 %v1050, 0.0
        %v1067 = vmax.f32 %v1051, 0.0
        %v1068 = vmax.f32 %v1052, 0.0
        %v1069 = vmax.f32 %v1053, 0.0
        %v1070 = vmax.f32 %v1054, 0.0
        %v1071 = vmax.f32 %v1055, 0.0
        %v1072 = vmax.f32 %v1056, 0.0
        %v1073 = vmax.f32 %v1057, 0.0
        %v1074 = vmax.f32 %v1058, 0.0
        %v1075 = vmax.f32 %v1059, 0.0
        %v1076 = vmax.f32 %v1060, 0.0
        %v1077 = vmax.f32 %v1061, 0.0
        %v1078 = vmax.f32 %v1062, 0.0
        %v1079 = vmax.f32 %v1063, 0.0
        %v1080 = vsub.f32 %v872, %v952
        %v1081 = vsub.f32 %v874, %v953
        %v1082 = vsub.f32 %v877, %v954
        %v1083 = vsub.f32 %v879, %v955
        %v1084 = vsub.f32 %v882, %v956
        %v1085 = vsub.f32 %v884, %v957
        %v1086 = vsub.f32 %v887, %v958
        %v1087 = vsub.f32 %v889, %v959
        %v1088 = vsub.f32 %v892, %v960
        %v1089 = vsub.f32 %v894, %v961
        %v1090 = vsub.f32 %v897, %v962
        %v1091 = vsub.f32 %v899, %v963
        %v1092 = vsub.f32 %v902, %v964
        %v1093 = vsub.f32 %v904, %v965
        %v1094 = vsub.f32 %v907, %v966
        %v1095 = vsub.f32 %v909, %v967
        %v1096 = vadd.f32 %v1064, 1e-05
        %v1097 = vadd.f32 %v1065, 1e-05
        %v1098 = vadd.f32 %v1066, 1e-05
        %v1099 = vadd.f32 %v1067, 1e-05
        %v1100 = vadd.f32 %v1068, 1e-05
        %v1101 = vadd.f32 %v1069, 1e-05
        %v1102 = vadd.f32 %v1070, 1e-05
        %v1103 = vadd.f32 %v1071, 1e-05
        %v1104 = vadd.f32 %v1072, 1e-05
        %v1105 = vadd.f32 %v1073, 1e-05
        %v1106 = vadd.f32 %v1074, 1e-05
        %v1107 = vadd.f32 %v1075, 1e-05
        %v1108 = vadd.f32 %v1076, 1e-05
        %v1109 = vadd.f32 %v1077, 1e-05
        %v1110 = vadd.f32 %v1078, 1e-05
        %v1111 = vadd.f32 %v1079, 1e-05
        %v1112 = vrsqrt.pop %v1096
        %v1113 = vmul.f32 %v1112, %v1096
        %v1114 = vmul.f32 %v1113, %v1112
        %v1115 = vmul.f32 0.5, %v1114
        %v1116 = vsub.f32 1.5, %v1115
        %v1117 = vmul.f32 %v1112, %v1116
        %vm1118 = vweird.f32 %v1096
        %vm1119 = vweird.f32 %v1112
        %vm1120 = vmor %vm1118, %vm1119
        %v1121 = vsel %vm1120, %v1112, %v1117
        %v1122 = vrsqrt.pop %v1097
        %v1123 = vmul.f32 %v1122, %v1097
        %v1124 = vmul.f32 %v1123, %v1122
        %v1125 = vmul.f32 0.5, %v1124
        %v1126 = vsub.f32 1.5, %v1125
        %v1127 = vmul.f32 %v1122, %v1126
        %vm1128 = vweird.f32 %v1097
        %vm1129 = vweird.f32 %v1122
        %vm1130 = vmor %vm1128, %vm1129
        %v1131 = vsel %vm1130, %v1122, %v1127
        %v1132 = vrsqrt.pop %v1098
        %v1133 = vmul.f32 %v1132, %v1098
        %v1134 = vmul.f32 %v1133, %v1132
        %v1135 = vmul.f32 0.5, %v1134
        %v1136 = vsub.f32 1.5, %v1135
        %v1137 = vmul.f32 %v1132, %v1136
        %vm1138 = vweird.f32 %v1098
        %vm1139 = vweird.f32 %v1132
        %vm1140 = vmor %vm1138, %vm1139
        %v1141 = vsel %vm1140, %v1132, %v1137
        %v1142 = vrsqrt.pop %v1099
        %v1143 = vmul.f32 %v1142, %v1099
        %v1144 = vmul.f32 %v1143, %v1142
        %v1145 = vmul.f32 0.5, %v1144
        %v1146 = vsub.f32 1.5, %v1145
        %v1147 = vmul.f32 %v1142, %v1146
        %vm1148 = vweird.f32 %v1099
        %vm1149 = vweird.f32 %v1142
        %vm1150 = vmor %vm1148, %vm1149
        %v1151 = vsel %vm1150, %v1142, %v1147
        %v1152 = vrsqrt.pop %v1100
        %v1153 = vmul.f32 %v1152, %v1100
        %v1154 = vmul.f32 %v1153, %v1152
        %v1155 = vmul.f32 0.5, %v1154
        %v1156 = vsub.f32 1.5, %v1155
        %v1157 = vmul.f32 %v1152, %v1156
        %vm1158 = vweird.f32 %v1100
        %vm1159 = vweird.f32 %v1152
        %vm1160 = vmor %vm1158, %vm1159
        %v1161 = vsel %vm1160, %v1152, %v1157
        %v1162 = vrsqrt.pop %v1101
        %v1163 = vmul.f32 %v1162, %v1101
        %v1164 = vmul.f32 %v1163, %v1162
        %v1165 = vmul.f32 0.5, %v1164
        %v1166 = vsub.f32 1.5, %v1165
        %v1167 = vmul.f32 %v1162, %v1166
        %vm1168 = vweird.f32 %v1101
        %vm1169 = vweird.f32 %v1162
        %vm1170 = vmor %vm1168, %vm1169
        %v1171 = vsel %vm1170, %v1162, %v1167
        %v1172 = vrsqrt.pop %v1102
        %v1173 = vmul.f32 %v1172, %v1102
        %v1174 = vmul.f32 %v1173, %v1172
        %v1175 = vmul.f32 0.5, %v1174
        %v1176 = vsub.f32 1.5, %v1175
        %v1177 = vmul.f32 %v1172, %v1176
        %vm1178 = vweird.f32 %v1102
        %vm1179 = vweird.f32 %v1172
        %vm1180 = vmor %vm1178, %vm1179
        %v1181 = vsel %vm1180, %v1172, %v1177
        %v1182 = vrsqrt.pop %v1103
        %v1183 = vmul.f32 %v1182, %v1103
        %v1184 = vmul.f32 %v1183, %v1182
        %v1185 = vmul.f32 0.5, %v1184
        %v1186 = vsub.f32 1.5, %v1185
        %v1187 = vmul.f32 %v1182, %v1186
        %vm1188 = vweird.f32 %v1103
        %vm1189 = vweird.f32 %v1182
        %vm1190 = vmor %vm1188, %vm1189
        %v1191 = vsel %vm1190, %v1182, %v1187
        %v1192 = vrsqrt.pop %v1104
        %v1193 = vmul.f32 %v1192, %v1104
        %v1194 = vmul.f32 %v1193, %v1192
        %v1195 = vmul.f32 0.5, %v1194
        %v1196 = vsub.f32 1.5, %v1195
        %v1197 = vmul.f32 %v1192, %v1196
        %vm1198 = vweird.f32 %v1104
        %vm1199 = vweird.f32 %v1192
        %vm1200 = vmor %vm1198, %vm1199
        %v1201 = vsel %vm1200, %v1192, %v1197
        %v1202 = vrsqrt.pop %v1105
        %v1203 = vmul.f32 %v1202, %v1105
        %v1204 = vmul.f32 %v1203, %v1202
        %v1205 = vmul.f32 0.5, %v1204
        %v1206 = vsub.f32 1.5, %v1205
        %v1207 = vmul.f32 %v1202, %v1206
        %vm1208 = vweird.f32 %v1105
        %vm1209 = vweird.f32 %v1202
        %vm1210 = vmor %vm1208, %vm1209
        %v1211 = vsel %vm1210, %v1202, %v1207
        %v1212 = vrsqrt.pop %v1106
        %v1213 = vmul.f32 %v1212, %v1106
        %v1214 = vmul.f32 %v1213, %v1212
        %v1215 = vmul.f32 0.5, %v1214
        %v1216 = vsub.f32 1.5, %v1215
        %v1217 = vmul.f32 %v1212, %v1216
        %vm1218 = vweird.f32 %v1106
        %vm1219 = vweird.f32 %v1212
        %vm1220 = vmor %vm1218, %vm1219
        %v1221 = vsel %vm1220, %v1212, %v1217
        %v1222 = vrsqrt.pop %v1107
        %v1223 = vmul.f32 %v1222, %v1107
        %v1224 = vmul.f32 %v1223, %v1222
        %v1225 = vmul.f32 0.5, %v1224
        %v1226 = vsub.f32 1.5, %v1225
        %v1227 = vmul.f32 %v1222, %v1226
        %vm1228 = vweird.f32 %v1107
        %vm1229 = vweird.f32 %v1222
        %vm1230 = vmor %vm1228, %vm1229
        %v1231 = vsel %vm1230, %v1222, %v1227
        %v1232 = vrsqrt.pop %v1108
        %v1233 = vmul.f32 %v1232, %v1108
        %v1234 = vmul.f32 %v1233, %v1232
        %v1235 = vmul.f32 0.5, %v1234
        %v1236 = vsub.f32 1.5, %v1235
        %v1237 = vmul.f32 %v1232, %v1236
        %vm1238 = vweird.f32 %v1108
        %vm1239 = vweird.f32 %v1232
        %vm1240 = vmor %vm1238, %vm1239
        %v1241 = vsel %vm1240, %v1232, %v1237
        %v1242 = vrsqrt.pop %v1109
        %v1243 = vmul.f32 %v1242, %v1109
        %v1244 = vmul.f32 %v1243, %v1242
        %v1245 = vmul.f32 0.5, %v1244
        %v1246 = vsub.f32 1.5, %v1245
        %v1247 = vmul.f32 %v1242, %v1246
        %vm1248 = vweird.f32 %v1109
        %vm1249 = vweird.f32 %v1242
        %vm1250 = vmor %vm1248, %vm1249
        %v1251 = vsel %vm1250, %v1242, %v1247
        %v1252 = vrsqrt.pop %v1110
        %v1253 = vmul.f32 %v1252, %v1110
        %v1254 = vmul.f32 %v1253, %v1252
        %v1255 = vmul.f32 0.5, %v1254
        %v1256 = vsub.f32 1.5, %v1255
        %v1257 = vmul.f32 %v1252, %v1256
        %vm1258 = vweird.f32 %v1110
        %vm1259 = vweird.f32 %v1252
        %vm1260 = vmor %vm1258, %vm1259
        %v1261 = vsel %vm1260, %v1252, %v1257
        %v1262 = vrsqrt.pop %v1111
        %v1263 = vmul.f32 %v1262, %v1111
        %v1264 = vmul.f32 %v1263, %v1262
        %v1265 = vmul.f32 0.5, %v1264
        %v1266 = vsub.f32 1.5, %v1265
        %v1267 = vmul.f32 %v1262, %v1266
        %vm1268 = vweird.f32 %v1111
        %vm1269 = vweird.f32 %v1262
        %vm1270 = vmor %vm1268, %vm1269
        %v1271 = vsel %vm1270, %v1262, %v1267
        %v1272 = vmul.f32 %v1080, %v1121
        %v1273 = vmul.f32 %v1081, %v1131
        %v1274 = vmul.f32 %v1082, %v1141
        %v1275 = vmul.f32 %v1083, %v1151
        %v1276 = vmul.f32 %v1084, %v1161
        %v1277 = vmul.f32 %v1085, %v1171
        %v1278 = vmul.f32 %v1086, %v1181
        %v1279 = vmul.f32 %v1087, %v1191
        %v1280 = vmul.f32 %v1088, %v1201
        %v1281 = vmul.f32 %v1089, %v1211
        %v1282 = vmul.f32 %v1090, %v1221
        %v1283 = vmul.f32 %v1091, %v1231
        %v1284 = vmul.f32 %v1092, %v1241
        %v1285 = vmul.f32 %v1093, %v1251
        %v1286 = vmul.f32 %v1094, %v1261
        %v1287 = vmul.f32 %v1095, %v1271
        %v1289 = vperm.slane %v911, 0
        %v1291 = vmul.f32 %v1272, %v1289
        %v1292 = vmul.f32 %v1273, %v1289
        %v1293 = vmul.f32 %v1274, %v1289
        %v1294 = vmul.f32 %v1275, %v1289
        %v1295 = vmul.f32 %v1276, %v1289
        %v1296 = vmul.f32 %v1277, %v1289
        %v1297 = vmul.f32 %v1278, %v1289
        %v1298 = vmul.f32 %v1279, %v1289
        %v1299 = vmul.f32 %v1280, %v1289
        %v1300 = vmul.f32 %v1281, %v1289
        %v1301 = vmul.f32 %v1282, %v1289
        %v1302 = vmul.f32 %v1283, %v1289
        %v1303 = vmul.f32 %v1284, %v1289
        %v1304 = vmul.f32 %v1285, %v1289
        %v1305 = vmul.f32 %v1286, %v1289
        %v1306 = vmul.f32 %v1287, %v1289
        %v1308 = vperm.slane %v912, 0
        %v1310 = vadd.f32 %v1291, %v1308
        %v1311 = vadd.f32 %v1292, %v1308
        %v1312 = vadd.f32 %v1293, %v1308
        %v1313 = vadd.f32 %v1294, %v1308
        %v1314 = vadd.f32 %v1295, %v1308
        %v1315 = vadd.f32 %v1296, %v1308
        %v1316 = vadd.f32 %v1297, %v1308
        %v1317 = vadd.f32 %v1298, %v1308
        %v1318 = vadd.f32 %v1299, %v1308
        %v1319 = vadd.f32 %v1300, %v1308
        %v1320 = vadd.f32 %v1301, %v1308
        %v1321 = vadd.f32 %v1302, %v1308
        %v1322 = vadd.f32 %v1303, %v1308
        %v1323 = vadd.f32 %v1304, %v1308
        %v1324 = vadd.f32 %v1305, %v1308
        %v1325 = vadd.f32 %v1306, %v1308
        %v1326 = vmax.f32 %v1310, 0.0
        %v1327 = vmax.f32 %v1311, 0.0
        %v1328 = vmax.f32 %v1312, 0.0
        %v1329 = vmax.f32 %v1313, 0.0
        %v1330 = vmax.f32 %v1314, 0.0
        %v1331 = vmax.f32 %v1315, 0.0
        %v1332 = vmax.f32 %v1316, 0.0
        %v1333 = vmax.f32 %v1317, 0.0
        %v1334 = vmax.f32 %v1318, 0.0
        %v1335 = vmax.f32 %v1319, 0.0
        %v1336 = vmax.f32 %v1320, 0.0
        %v1337 = vmax.f32 %v1321, 0.0
        %v1338 = vmax.f32 %v1322, 0.0
        %v1339 = vmax.f32 %v1323, 0.0
        %v1340 = vmax.f32 %v1324, 0.0
        %v1341 = vmax.f32 %v1325, 0.0
        %1342 = vst [vmem:[#allocation3] sm:$0xff] %v1326
        %1343 = vst [vmem:[#allocation3 + $0x8] sm:$0xff] %v1327
        %1344 = vst [vmem:[#allocation3 + $0x10] sm:$0xff] %v1328
        %1345 = vst [vmem:[#allocation3 + $0x18] sm:$0xff] %v1329
        %1346 = vst [vmem:[#allocation3 + $0x20] sm:$0xff] %v1330
        %1347 = vst [vmem:[#allocation3 + $0x28] sm:$0xff] %v1331
        %1348 = vst [vmem:[#allocation3 + $0x30] sm:$0xff] %v1332
        %1349 = vst [vmem:[#allocation3 + $0x38] sm:$0xff] %v1333
        %1350 = vst [vmem:[#allocation3 + $0x40] sm:$0xff] %v1334
        %1351 = vst [vmem:[#allocation3 + $0x48] sm:$0xff] %v1335
        %1352 = vst [vmem:[#allocation3 + $0x50] sm:$0xff] %v1336
        %1353 = vst [vmem:[#allocation3 + $0x58] sm:$0xff] %v1337
        %1354 = vst [vmem:[#allocation3 + $0x60] sm:$0xff] %v1338
        %1355 = vst [vmem:[#allocation3 + $0x68] sm:$0xff] %v1339
        %1356 = vst [vmem:[#allocation3 + $0x70] sm:$0xff] %v1340
        %1357 = vst [vmem:[#allocation3 + $0x78] sm:$0xff] %v1341
        %1358 = vst [vmem:[#allocation2] sm:$0xff] 0.0
        %1359 = vst [vmem:[#allocation2 + $0x8] sm:$0x3] 0.0
        %s1360 = scalar_lea.vmem [#allocation2], 144
        %1361 = vst [vmem:[%s1360] sm:$0xff] 0.0
        %1362 = vst [vmem:[%s1360 + $0x8] sm:$0x3] 0.0
        %1363 = vst [vmem:[#allocation2] sm:$0x1] 0.0
        %1364 = vst [vmem:[#allocation2 + $0x10] sm:$0x1] 0.0
        %1365 = vst [vmem:[#allocation2 + $0x20] sm:$0x1] 0.0
        %1366 = vst [vmem:[#allocation2 + $0x30] sm:$0x1] 0.0
        %1367 = vst [vmem:[#allocation2 + $0x40] sm:$0x1] 0.0
        %1368 = vst [vmem:[#allocation2 + $0x50] sm:$0x1] 0.0
        %1369 = vst [vmem:[#allocation2 + $0x60] sm:$0x1] 0.0
        %1370 = vst [vmem:[#allocation2 + $0x70] sm:$0x1] 0.0
        %1371 = vst [vmem:[#allocation2 + $0x80] sm:$0x1] 0.0
        %1372 = vst [vmem:[#allocation2 + $0x90] sm:$0x1] 0.0
        %1373 = vst [vmem:[#allocation2 + $0x9] sm:$0x1] 0.0
        %1374 = vst [vmem:[#allocation2 + $0x19] sm:$0x1] 0.0
        %1375 = vst [vmem:[#allocation2 + $0x29] sm:$0x1] 0.0
        %1376 = vst [vmem:[#allocation2 + $0x39] sm:$0x1] 0.0
        %1377 = vst [vmem:[#allocation2 + $0x49] sm:$0x1] 0.0
        %1378 = vst [vmem:[#allocation2 + $0x59] sm:$0x1] 0.0
        %1379 = vst [vmem:[#allocation2 + $0x69] sm:$0x1] 0.0
        %1380 = vst [vmem:[#allocation2 + $0x79] sm:$0x1] 0.0
        %1381 = vst [vmem:[#allocation2 + $0x89] sm:$0x1] 0.0
        %1382 = vst [vmem:[#allocation2 + $0x99] sm:$0x1] 0.0
        %v1383 = vld [vmem:[#allocation12] sm:$0x7]
        %v1384 = vld [vmem:[#allocation12 + $0x4] sm:$0x7]
        %v1385 = vld [vmem:[#allocation12 + $0x8] sm:$0x7]
        %v1386 = vld [vmem:[%s9] sm:$0x7f]
        %v1387 = vld [vmem:[%s9 + $0x8] sm:$0x7f]
        %v1388 = vld [vmem:[%s9 + $0x10] sm:$0x7f]
        %v1389 = vld [vmem:[%s9 + $0x18] sm:$0x7f]
        %v1390 = vld [vmem:[%s9 + $0x20] sm:$0x7f]
        %v1391 = vld [vmem:[%s9 + $0x28] sm:$0x7f]
        %v1392 = vld [vmem:[%s9 + $0x30] sm:$0x7f]
        %v1393 = vld [vmem:[%s9 + $0x38] sm:$0x7f]
        %v1394 = vld [vmem:[%s9 + $0x40] sm:$0x7f]
        %v1395 = vld [vmem:[#allocation3] sm:$0xff]
        %v1396 = vld [vmem:[#allocation3 + $0x8] sm:$0xff]
        %v1397 = vld [vmem:[#allocation3 + $0x10] sm:$0xff]
        %v1398 = vld [vmem:[#allocation3 + $0x18] sm:$0xff]
        %v1399 = vld [vmem:[#allocation3 + $0x20] sm:$0xff]
        %v1400 = vld [vmem:[#allocation3 + $0x28] sm:$0xff]
        %v1401 = vld [vmem:[#allocation3 + $0x30] sm:$0xff]
        %v1402 = vld [vmem:[#allocation3 + $0x38] sm:$0xff]
        %s1403 = scalar_lea.vmem [#allocation2], 16
        %1404 = vst [vmem:[%s1403 + $0x1] sm:$0xff] %v1395
        %1405 = vst [vmem:[%s1403 + $0x11] sm:$0xff] %v1396
        %1406 = vst [vmem:[%s1403 + $0x21] sm:$0xff] %v1397
        %1407 = vst [vmem:[%s1403 + $0x31] sm:$0xff] %v1398
        %1408 = vst [vmem:[%s1403 + $0x41] sm:$0xff] %v1399
        %1409 = vst [vmem:[%s1403 + $0x51] sm:$0xff] %v1400
        %1410 = vst [vmem:[%s1403 + $0x61] sm:$0xff] %v1401
        %1411 = vst [vmem:[%s1403 + $0x71] sm:$0xff] %v1402
        %v1412 = vld [vmem:[#allocation2] sm:$0xff]
        %v1413 = vld [vmem:[#allocation2 + $0x10] sm:$0xff]
        %v1414 = vld [vmem:[#allocation2 + $0x20] sm:$0xff]
        %v1415 = vld [vmem:[#allocation2 + $0x30] sm:$0xff]
        %v1416 = vld [vmem:[#allocation2 + $0x40] sm:$0xff]
        %v1417 = vld [vmem:[#allocation2 + $0x50] sm:$0xff]
        %v1418 = vld [vmem:[#allocation2 + $0x60] sm:$0xff]
        %v1419 = vld [vmem:[#allocation2 + $0x70] sm:$0xff]
        %v1420 = vld [vmem:[#allocation2 + $0x80] sm:$0xff]
        %v1421 = vld [vmem:[#allocation2 + $0x90] sm:$0xff]
        %v1422 = vperm.slane %v1383, 0
        %v1423 = vmul.f32 %v1412, %v1422
        %v1424 = vmul.f32 %v1413, %v1422
        %v1425 = vmul.f32 %v1414, %v1422
        %v1426 = vmul.f32 %v1415, %v1422
        %v1427 = vmul.f32 %v1416, %v1422
        %v1428 = vmul.f32 %v1417, %v1422
        %v1429 = vmul.f32 %v1418, %v1422
        %v1430 = vmul.f32 %v1419, %v1422
        %v1431 = vadd.f32 %v1423, 0.0
        %v1432 = vadd.f32 %v1424, 0.0
        %v1433 = vadd.f32 %v1425, 0.0
        %v1434 = vadd.f32 %v1426, 0.0
        %v1435 = vadd.f32 %v1427, 0.0
        %v1436 = vadd.f32 %v1428, 0.0
        %v1437 = vadd.f32 %v1429, 0.0
        %v1438 = vadd.f32 %v1430, 0.0
        %v1439 = vperm.slane %v1384, 0
        %v1440 = vmul.f32 %v1413, %v1439
        %v1441 = vmul.f32 %v1414, %v1439
        %v1442 = vmul.f32 %v1415, %v1439
        %v1443 = vmul.f32 %v1416, %v1439
        %v1444 = vmul.f32 %v1417, %v1439
        %v1445 = vmul.f32 %v1418, %v1439
        %v1446 = vmul.f32 %v1419, %v1439
        %v1447 = vmul.f32 %v1420, %v1439
        %v1448 = vadd.f32 %v1440, 0.0
        %v1449 = vadd.f32 %v1441, 0.0
        %v1450 = vadd.f32 %v1442, 0.0
        %v1451 = vadd.f32 %v1443, 0.0
        %v1452 = vadd.f32 %v1444, 0.0
        %v1453 = vadd.f32 %v1445, 0.0
        %v1454 = vadd.f32 %v1446, 0.0
        %v1455 = vadd.f32 %v1447, 0.0
        %v1456 = vperm.slane %v1385, 0
        %v1457 = vmul.f32 %v1414, %v1456
        %v1458 = vmul.f32 %v1415, %v1456
        %v1459 = vmul.f32 %v1416, %v1456
        %v1460 = vmul.f32 %v1417, %v1456
        %v1461 = vmul.f32 %v1418, %v1456
        %v1462 = vmul.f32 %v1419, %v1456
        %v1463 = vmul.f32 %v1420, %v1456
        %v1464 = vmul.f32 %v1421, %v1456
        %v1465 = vadd.f32 %v1457, 0.0
        %v1466 = vadd.f32 %v1458, 0.0
        %v1467 = vadd.f32 %v1459, 0.0
        %v1468 = vadd.f32 %v1460, 0.0
        %v1469 = vadd.f32 %v1461, 0.0
        %v1470 = vadd.f32 %v1462, 0.0
        %v1471 = vadd.f32 %v1463, 0.0
        %v1472 = vadd.f32 %v1464, 0.0
        %v1473 = vld [vmem:[#allocation2 + $0x1] sm:$0xff]
        %v1474 = vld [vmem:[#allocation2 + $0x11] sm:$0xff]
        %v1475 = vld [vmem:[#allocation2 + $0x21] sm:$0xff]
        %v1476 = vld [vmem:[#allocation2 + $0x31] sm:$0xff]
        %v1477 = vld [vmem:[#allocation2 + $0x41] sm:$0xff]
        %v1478 = vld [vmem:[#allocation2 + $0x51] sm:$0xff]
        %v1479 = vld [vmem:[#allocation2 + $0x61] sm:$0xff]
        %v1480 = vld [vmem:[#allocation2 + $0x71] sm:$0xff]
        %v1481 = vld [vmem:[#allocation2 + $0x81] sm:$0xff]
        %v1482 = vld [vmem:[#allocation2 + $0x91] sm:$0xff]
        %v1483 = vperm.slane %v1383, 1
        %v1484 = vmul.f32 %v1473, %v1483
        %v1485 = vmul.f32 %v1474, %v1483
        %v1486 = vmul.f32 %v1475, %v1483
        %v1487 = vmul.f32 %v1476, %v1483
        %v1488 = vmul.f32 %v1477, %v1483
        %v1489 = vmul.f32 %v1478, %v1483
        %v1490 = vmul.f32 %v1479, %v1483
        %v1491 = vmul.f32 %v1480, %v1483
        %v1492 = vadd.f32 %v1431, %v1484
        %v1493 = vadd.f32 %v1432, %v1485
        %v1494 = vadd.f32 %v1433, %v1486
        %v1495 = vadd.f32 %v1434, %v1487
        %v1496 = vadd.f32 %v1435, %v1488
        %v1497 = vadd.f32 %v1436, %v1489
        %v1498 = vadd.f32 %v1437, %v1490
        %v1499 = vadd.f32 %v1438, %v1491
        %v1500 = vperm.slane %v1384, 1
        %v1501 = vmul.f32 %v1474, %v1500
        %v1502 = vmul.f32 %v1475, %v1500
        %v1503 = vmul.f32 %v1476, %v1500
        %v1504 = vmul.f32 %v1477, %v1500
        %v1505 = vmul.f32 %v1478, %v1500
        %v1506 = vmul.f32 %v1479, %v1500
        %v1507 = vmul.f32 %v1480, %v1500
        %v1508 = vmul.f32 %v1481, %v1500
        %v1509 = vadd.f32 %v1448, %v1501
        %v1510 = vadd.f32 %v1449, %v1502
        %v1511 = vadd.f32 %v1450, %v1503
        %v1512 = vadd.f32 %v1451, %v1504
        %v1513 = vadd.f32 %v1452, %v1505
        %v1514 = vadd.f32 %v1453, %v1506
        %v1515 = vadd.f32 %v1454, %v1507
        %v1516 = vadd.f32 %v1455, %v1508
        %v1517 = vperm.slane %v1385, 1
        %v1518 = vmul.f32 %v1475, %v1517
        %v1519 = vmul.f32 %v1476, %v1517
        %v1520 = vmul.f32 %v1477, %v1517
        %v1521 = vmul.f32 %v1478, %v1517
        %v1522 = vmul.f32 %v1479, %v1517
        %v1523 = vmul.f32 %v1480, %v1517
        %v1524 = vmul.f32 %v1481, %v1517
        %v1525 = vmul.f32 %v1482, %v1517
        %v1526 = vadd.f32 %v1465, %v1518
        %v1527 = vadd.f32 %v1466, %v1519
        %v1528 = vadd.f32 %v1467, %v1520
        %v1529 = vadd.f32 %v1468, %v1521
        %v1530 = vadd.f32 %v1469, %v1522
        %v1531 = vadd.f32 %v1470, %v1523
        %v1532 = vadd.f32 %v1471, %v1524
        %v1533 = vadd.f32 %v1472, %v1525
        %v1534 = vld [vmem:[#allocation2 + $0x2] sm:$0xff]
        %v1535 = vld [vmem:[#allocation2 + $0x12] sm:$0xff]
        %v1536 = vld [vmem:[#allocation2 + $0x22] sm:$0xff]
        %v1537 = vld [vmem:[#allocation2 + $0x32] sm:$0xff]
        %v1538 = vld [vmem:[#allocation2 + $0x42] sm:$0xff]
        %v1539 = vld [vmem:[#allocation2 + $0x52] sm:$0xff]
        %v1540 = vld [vmem:[#allocation2 + $0x62] sm:$0xff]
        %v1541 = vld [vmem:[#allocation2 + $0x72] sm:$0xff]
        %v1542 = vld [vmem:[#allocation2 + $0x82] sm:$0xff]
        %v1543 = vld [vmem:[#allocation2 + $0x92] sm:$0xff]
        %v1544 = vperm.slane %v1383, 2
        %v1545 = vmul.f32 %v1534, %v1544
        %v1546 = vmul.f32 %v1535, %v1544
        %v1547 = vmul.f32 %v1536, %v1544
        %v1548 = vmul.f32 %v1537, %v1544
        %v1549 = vmul.f32 %v1538, %v1544
        %v1550 = vmul.f32 %v1539, %v1544
        %v1551 = vmul.f32 %v1540, %v1544
        %v1552 = vmul.f32 %v1541, %v1544
        %v1553 = vadd.f32 %v1492, %v1545
        %v1554 = vadd.f32 %v1493, %v1546
        %v1555 = vadd.f32 %v1494, %v1547
        %v1556 = vadd.f32 %v1495, %v1548
        %v1557 = vadd.f32 %v1496, %v1549
        %v1558 = vadd.f32 %v1497, %v1550
        %v1559 = vadd.f32 %v1498, %v1551
        %v1560 = vadd.f32 %v1499, %v1552
        %v1561 = vperm.slane %v1384, 2
        %v1562 = vmul.f32 %v1535, %v1561
        %v1563 = vmul.f32 %v1536, %v1561
        %v1564 = vmul.f32 %v1537, %v1561
        %v1565 = vmul.f32 %v1538, %v1561
        %v1566 = vmul.f32 %v1539, %v1561
        %v1567 = vmul.f32 %v1540, %v1561
        %v1568 = vmul.f32 %v1541, %v1561
        %v1569 = vmul.f32 %v1542, %v1561
        %v1570 = vadd.f32 %v1509, %v1562
        %v1571 = vadd.f32 %v1510, %v1563
        %v1572 = vadd.f32 %v1511, %v1564
        %v1573 = vadd.f32 %v1512, %v1565
        %v1574 = vadd.f32 %v1513, %v1566
        %v1575 = vadd.f32 %v1514, %v1567
        %v1576 = vadd.f32 %v1515, %v1568
        %v1577 = vadd.f32 %v1516, %v1569
        %v1578 = vperm.slane %v1385, 2
        %v1579 = vmul.f32 %v1536, %v1578
        %v1580 = vmul.f32 %v1537, %v1578
        %v1581 = vmul.f32 %v1538, %v1578
        %v1582 = vmul.f32 %v1539, %v1578
        %v1583 = vmul.f32 %v1540, %v1578
        %v1584 = vmul.f32 %v1541, %v1578
        %v1585 = vmul.f32 %v1542, %v1578
        %v1586 = vmul.f32 %v1543, %v1578
        %v1587 = vadd.f32 %v1526, %v1579
        %v1588 = vadd.f32 %v1527, %v1580
        %v1589 = vadd.f32 %v1528, %v1581
        %v1590 = vadd.f32 %v1529, %v1582
        %v1591 = vadd.f32 %v1530, %v1583
        %v1592 = vadd.f32 %v1531, %v1584
        %v1593 = vadd.f32 %v1532, %v1585
        %v1594 = vadd.f32 %v1533, %v1586
        %v1595 = vadd.f32 %v1553, %v1570
        %v1596 = vadd.f32 %v1554, %v1571
        %v1597 = vadd.f32 %v1555, %v1572
        %v1598 = vadd.f32 %v1556, %v1573
        %v1599 = vadd.f32 %v1557, %v1574
        %v1600 = vadd.f32 %v1558, %v1575
        %v1601 = vadd.f32 %v1559, %v1576
        %v1602 = vadd.f32 %v1560, %v1577
        %v1603 = vadd.f32 %v1595, %v1587
        %v1604 = vadd.f32 %v1596, %v1588
        %v1605 = vadd.f32 %v1597, %v1589
        %v1606 = vadd.f32 %v1598, %v1590
        %v1607 = vadd.f32 %v1599, %v1591
        %v1608 = vadd.f32 %v1600, %v1592
        %v1609 = vadd.f32 %v1601, %v1593
        %v1610 = vadd.f32 %v1602, %v1594
        %v1611 = vld [vmem:[#allocation13] sm:$0x1]
        %v1613 = vperm.slane %v1611, 0
        %v1615 = vadd.f32 %v1603, %v1613
        %v1616 = vadd.f32 %v1604, %v1613
        %v1617 = vadd.f32 %v1605, %v1613
        %v1618 = vadd.f32 %v1606, %v1613
        %v1619 = vadd.f32 %v1607, %v1613
        %v1620 = vadd.f32 %v1608, %v1613
        %v1621 = vadd.f32 %v1609, %v1613
        %v1622 = vadd.f32 %v1610, %v1613
        %v1623 = vadd.f32 %v1615, %v1395
        %v1624 = vadd.f32 %v1616, %v1396
        %v1625 = vadd.f32 %v1617, %v1397
        %v1626 = vadd.f32 %v1618, %v1398
        %v1627 = vadd.f32 %v1619, %v1399
        %v1628 = vadd.f32 %v1620, %v1400
        %v1629 = vadd.f32 %v1621, %v1401
        %v1630 = vadd.f32 %v1622, %v1402
        %v1631 = vld [vmem:[#allocation15] sm:$0x1]
        %v1632 = vld [vmem:[#allocation16] sm:$0x1]
        %1633 = vadd.xlane.f32.xlu0 %v1623
        %v1634 = vpop.xlane.xlu0 %1633
        %1635 = vadd.xlane.f32.xlu0 %v1624
        %v1636 = vpop.xlane.xlu0 %1635
        %1637 = vadd.xlane.f32.xlu0 %v1625
        %v1638 = vpop.xlane.xlu0 %1637
        %1639 = vadd.xlane.f32.xlu0 %v1626
        %v1640 = vpop.xlane.xlu0 %1639
        %1641 = vadd.xlane.f32.xlu0 %v1627
        %v1642 = vpop.xlane.xlu0 %1641
        %1643 = vadd.xlane.f32.xlu0 %v1628
        %v1644 = vpop.xlane.xlu0 %1643
        %1645 = vadd.xlane.f32.xlu0 %v1629
        %v1646 = vpop.xlane.xlu0 %1645
        %1647 = vadd.xlane.f32.xlu0 %v1630
        %v1648 = vpop.xlane.xlu0 %1647
        %v1649 = vmul.f32 %v1634, %v951
        %v1650 = vmul.f32 %v1636, %v951
        %v1651 = vmul.f32 %v1638, %v951
        %v1652 = vmul.f32 %v1640, %v951
        %v1653 = vmul.f32 %v1642, %v951
        %v1654 = vmul.f32 %v1644, %v951
        %v1655 = vmul.f32 %v1646, %v951
        %v1656 = vmul.f32 %v1648, %v951
        %v1657 = vmul.f32 %v1623, %v1623
        %v1658 = vmul.f32 %v1624, %v1624
        %v1659 = vmul.f32 %v1625, %v1625
        %v1660 = vmul.f32 %v1626, %v1626
        %v1661 = vmul.f32 %v1627, %v1627
        %v1662 = vmul.f32 %v1628, %v1628
        %v1663 = vmul.f32 %v1629, %v1629
        %v1664 = vmul.f32 %v1630, %v1630
        %1665 = vadd.xlane.f32.xlu0 %v1657
        %v1666 = vpop.xlane.xlu0 %1665
        %1667 = vadd.xlane.f32.xlu0 %v1658
        %v1668 = vpop.xlane.xlu0 %1667
        %1669 = vadd.xlane.f32.xlu0 %v1659
        %v1670 = vpop.xlane.xlu0 %1669
        %1671 = vadd.xlane.f32.xlu0 %v1660
        %v1672 = vpop.xlane.xlu0 %1671
        %1673 = vadd.xlane.f32.xlu0 %v1661
        %v1674 = vpop.xlane.xlu0 %1673
        %1675 = vadd.xlane.f32.xlu0 %v1662
        %v1676 = vpop.xlane.xlu0 %1675
        %1677 = vadd.xlane.f32.xlu0 %v1663
        %v1678 = vpop.xlane.xlu0 %1677
        %1679 = vadd.xlane.f32.xlu0 %v1664
        %v1680 = vpop.xlane.xlu0 %1679
        %v1681 = vmul.f32 %v1666, %v951
        %v1682 = vmul.f32 %v1668, %v951
        %v1683 = vmul.f32 %v1670, %v951
        %v1684 = vmul.f32 %v1672, %v951
        %v1685 = vmul.f32 %v1674, %v951
        %v1686 = vmul.f32 %v1676, %v951
        %v1687 = vmul.f32 %v1678, %v951
        %v1688 = vmul.f32 %v1680, %v951
        %v1689 = vmul.f32 %v1649, %v1649
        %v1690 = vmul.f32 %v1650, %v1650
        %v1691 = vmul.f32 %v1651, %v1651
        %v1692 = vmul.f32 %v1652, %v1652
        %v1693 = vmul.f32 %v1653, %v1653
        %v1694 = vmul.f32 %v1654, %v1654
        %v1695 = vmul.f32 %v1655, %v1655
        %v1696 = vmul.f32 %v1656, %v1656
        %v1697 = vsub.f32 %v1681, %v1689
        %v1698 = vsub.f32 %v1682, %v1690
        %v1699 = vsub.f32 %v1683, %v1691
        %v1700 = vsub.f32 %v1684, %v1692
        %v1701 = vsub.f32 %v1685, %v1693
        %v1702 = vsub.f32 %v1686, %v1694
        %v1703 = vsub.f32 %v1687, %v1695
        %v1704 = vsub.f32 %v1688, %v1696
        %v1705 = vmax.f32 %v1697, 0.0
        %v1706 = vmax.f32 %v1698, 0.0
        %v1707 = vmax.f32 %v1699, 0.0
        %v1708 = vmax.f32 %v1700, 0.0
        %v1709 = vmax.f32 %v1701, 0.0
        %v1710 = vmax.f32 %v1702, 0.0
        %v1711 = vmax.f32 %v1703, 0.0
        %v1712 = vmax.f32 %v1704, 0.0
        %v1713 = vsub.f32 %v1623, %v1649
        %v1714 = vsub.f32 %v1624, %v1650
        %v1715 = vsub.f32 %v1625, %v1651
        %v1716 = vsub.f32 %v1626, %v1652
        %v1717 = vsub.f32 %v1627, %v1653
        %v1718 = vsub.f32 %v1628, %v1654
        %v1719 = vsub.f32 %v1629, %v1655
        %v1720 = vsub.f32 %v1630, %v1656
        %v1721 = vadd.f32 %v1705, 1e-05
        %v1722 = vadd.f32 %v1706, 1e-05
        %v1723 = vadd.f32 %v1707, 1e-05
        %v1724 = vadd.f32 %v1708, 1e-05
        %v1725 = vadd.f32 %v1709, 1e-05
        %v1726 = vadd.f32 %v1710, 1e-05
        %v1727 = vadd.f32 %v1711, 1e-05
        %v1728 = vadd.f32 %v1712, 1e-05
        %v1729 = vrsqrt.pop %v1721
        %v1730 = vmul.f32 %v1729, %v1721
        %v1731 = vmul.f32 %v1730, %v1729
        %v1732 = vmul.f32 0.5, %v1731
        %v1733 = vsub.f32 1.5, %v1732
        %v1734 = vmul.f32 %v1729, %v1733
        %vm1735 = vweird.f32 %v1721
        %vm1736 = vweird.f32 %v1729
        %vm1737 = vmor %vm1735, %vm1736
        %v1738 = vsel %vm1737, %v1729, %v1734
        %v1739 = vrsqrt.pop %v1722
        %v1740 = vmul.f32 %v1739, %v1722
        %v1741 = vmul.f32 %v1740, %v1739
        %v1742 = vmul.f32 0.5, %v1741
        %v1743 = vsub.f32 1.5, %v1742
        %v1744 = vmul.f32 %v1739, %v1743
        %vm1745 = vweird.f32 %v1722
        %vm1746 = vweird.f32 %v1739
        %vm1747 = vmor %vm1745, %vm1746
        %v1748 = vsel %vm1747, %v1739, %v1744
        %v1749 = vrsqrt.pop %v1723
        %v1750 = vmul.f32 %v1749, %v1723
        %v1751 = vmul.f32 %v1750, %v1749
        %v1752 = vmul.f32 0.5, %v1751
        %v1753 = vsub.f32 1.5, %v1752
        %v1754 = vmul.f32 %v1749, %v1753
        %vm1755 = vweird.f32 %v1723
        %vm1756 = vweird.f32 %v1749
        %vm1757 = vmor %vm1755, %vm1756
        %v1758 = vsel %vm1757, %v1749, %v1754
        %v1759 = vrsqrt.pop %v1724
        %v1760 = vmul.f32 %v1759, %v1724
        %v1761 = vmul.f32 %v1760, %v1759
        %v1762 = vmul.f32 0.5, %v1761
        %v1763 = vsub.f32 1.5, %v1762
        %v1764 = vmul.f32 %v1759, %v1763
        %vm1765 = vweird.f32 %v1724
        %vm1766 = vweird.f32 %v1759
        %vm1767 = vmor %vm1765, %vm1766
        %v1768 = vsel %vm1767, %v1759, %v1764
        %v1769 = vrsqrt.pop %v1725
        %v1770 = vmul.f32 %v1769, %v1725
        %v1771 = vmul.f32 %v1770, %v1769
        %v1772 = vmul.f32 0.5, %v1771
        %v1773 = vsub.f32 1.5, %v1772
        %v1774 = vmul.f32 %v1769, %v1773
        %vm1775 = vweird.f32 %v1725
        %vm1776 = vweird.f32 %v1769
        %vm1777 = vmor %vm1775, %vm1776
        %v1778 = vsel %vm1777, %v1769, %v1774
        %v1779 = vrsqrt.pop %v1726
        %v1780 = vmul.f32 %v1779, %v1726
        %v1781 = vmul.f32 %v1780, %v1779
        %v1782 = vmul.f32 0.5, %v1781
        %v1783 = vsub.f32 1.5, %v1782
        %v1784 = vmul.f32 %v1779, %v1783
        %vm1785 = vweird.f32 %v1726
        %vm1786 = vweird.f32 %v1779
        %vm1787 = vmor %vm1785, %vm1786
        %v1788 = vsel %vm1787, %v1779, %v1784
        %v1789 = vrsqrt.pop %v1727
        %v1790 = vmul.f32 %v1789, %v1727
        %v1791 = vmul.f32 %v1790, %v1789
        %v1792 = vmul.f32 0.5, %v1791
        %v1793 = vsub.f32 1.5, %v1792
        %v1794 = vmul.f32 %v1789, %v1793
        %vm1795 = vweird.f32 %v1727
        %vm1796 = vweird.f32 %v1789
        %vm1797 = vmor %vm1795, %vm1796
        %v1798 = vsel %vm1797, %v1789, %v1794
        %v1799 = vrsqrt.pop %v1728
        %v1800 = vmul.f32 %v1799, %v1728
        %v1801 = vmul.f32 %v1800, %v1799
        %v1802 = vmul.f32 0.5, %v1801
        %v1803 = vsub.f32 1.5, %v1802
        %v1804 = vmul.f32 %v1799, %v1803
        %vm1805 = vweird.f32 %v1728
        %vm1806 = vweird.f32 %v1799
        %vm1807 = vmor %vm1805, %vm1806
        %v1808 = vsel %vm1807, %v1799, %v1804
        %v1809 = vmul.f32 %v1713, %v1738
        %v1810 = vmul.f32 %v1714, %v1748
        %v1811 = vmul.f32 %v1715, %v1758
        %v1812 = vmul.f32 %v1716, %v1768
        %v1813 = vmul.f32 %v1717, %v1778
        %v1814 = vmul.f32 %v1718, %v1788
        %v1815 = vmul.f32 %v1719, %v1798
        %v1816 = vmul.f32 %v1720, %v1808
        %v1818 = vperm.slane %v1631, 0
        %v1820 = vmul.f32 %v1809, %v1818
        %v1821 = vmul.f32 %v1810, %v1818
        %v1822 = vmul.f32 %v1811, %v1818
        %v1823 = vmul.f32 %v1812, %v1818
        %v1824 = vmul.f32 %v1813, %v1818
        %v1825 = vmul.f32 %v1814, %v1818
        %v1826 = vmul.f32 %v1815, %v1818
        %v1827 = vmul.f32 %v1816, %v1818
        %v1829 = vperm.slane %v1632, 0
        %v1831 = vadd.f32 %v1820, %v1829
        %v1832 = vadd.f32 %v1821, %v1829
        %v1833 = vadd.f32 %v1822, %v1829
        %v1834 = vadd.f32 %v1823, %v1829
        %v1835 = vadd.f32 %v1824, %v1829
        %v1836 = vadd.f32 %v1825, %v1829
        %v1837 = vadd.f32 %v1826, %v1829
        %v1838 = vadd.f32 %v1827, %v1829
        %1839 = vst [vmem:[%s1403 + $0x1] sm:$0xff] %v1831
        %1840 = vst [vmem:[%s1403 + $0x11] sm:$0xff] %v1832
        %1841 = vst [vmem:[%s1403 + $0x21] sm:$0xff] %v1833
        %1842 = vst [vmem:[%s1403 + $0x31] sm:$0xff] %v1834
        %1843 = vst [vmem:[%s1403 + $0x41] sm:$0xff] %v1835
        %1844 = vst [vmem:[%s1403 + $0x51] sm:$0xff] %v1836
        %1845 = vst [vmem:[%s1403 + $0x61] sm:$0xff] %v1837
        %1846 = vst [vmem:[%s1403 + $0x71] sm:$0xff] %v1838
        %v1847 = vld [vmem:[#allocation2] sm:$0xff]
        %v1848 = vld [vmem:[#allocation2 + $0x10] sm:$0xff]
        %v1849 = vld [vmem:[#allocation2 + $0x20] sm:$0xff]
        %v1850 = vld [vmem:[#allocation2 + $0x30] sm:$0xff]
        %v1851 = vld [vmem:[#allocation2 + $0x40] sm:$0xff]
        %v1852 = vld [vmem:[#allocation2 + $0x50] sm:$0xff]
        %v1853 = vld [vmem:[#allocation2 + $0x60] sm:$0xff]
        %v1854 = vld [vmem:[#allocation2 + $0x70] sm:$0xff]
        %v1855 = vld [vmem:[#allocation2 + $0x80] sm:$0xff]
        %v1856 = vld [vmem:[#allocation2 + $0x90] sm:$0xff]
        %1857 = vrot.lane.b32.xlu0 %v1847, 3
        %v1858 = vpop.permute.xlu0 %1857
        %1859 = vrot.lane.b32.xlu0 %v1848, 3
        %v1860 = vpop.permute.xlu0 %1859
        %1861 = vrot.lane.b32.xlu0 %v1849, 3
        %v1862 = vpop.permute.xlu0 %1861
        %1863 = vrot.lane.b32.xlu0 %v1850, 3
        %v1864 = vpop.permute.xlu0 %1863
        %1865 = vrot.lane.b32.xlu0 %v1851, 3
        %v1866 = vpop.permute.xlu0 %1865
        %1867 = vrot.lane.b32.xlu0 %v1852, 3
        %v1868 = vpop.permute.xlu0 %1867
        %1869 = vrot.lane.b32.xlu0 %v1853, 3
        %v1870 = vpop.permute.xlu0 %1869
        %1871 = vrot.lane.b32.xlu0 %v1854, 3
        %v1872 = vpop.permute.xlu0 %1871
        %1873 = vrot.lane.b32.xlu0 %v1855, 3
        %v1874 = vpop.permute.xlu0 %1873
        %1875 = vrot.lane.b32.xlu0 %v1856, 3
        %v1876 = vpop.permute.xlu0 %1875
        %v1877 = vperm.slane %v1386, 0
        %v1878 = vmul.f32 %v1858, %v1877
        %v1879 = vmul.f32 %v1860, %v1877
        %v1880 = vmul.f32 %v1862, %v1877
        %v1881 = vmul.f32 %v1864, %v1877
        %v1882 = vmul.f32 %v1866, %v1877
        %v1883 = vmul.f32 %v1868, %v1877
        %v1884 = vmul.f32 %v1870, %v1877
        %v1885 = vmul.f32 %v1872, %v1877
        %v1886 = vadd.f32 %v1878, 0.0
        %v1887 = vadd.f32 %v1879, 0.0
        %v1888 = vadd.f32 %v1880, 0.0
        %v1889 = vadd.f32 %v1881, 0.0
        %v1890 = vadd.f32 %v1882, 0.0
        %v1891 = vadd.f32 %v1883, 0.0
        %v1892 = vadd.f32 %v1884, 0.0
        %v1893 = vadd.f32 %v1885, 0.0
        %v1894 = vperm.slane %v1389, 0
        %v1895 = vmul.f32 %v1860, %v1894
        %v1896 = vmul.f32 %v1862, %v1894
        %v1897 = vmul.f32 %v1864, %v1894
        %v1898 = vmul.f32 %v1866, %v1894
        %v1899 = vmul.f32 %v1868, %v1894
        %v1900 = vmul.f32 %v1870, %v1894
        %v1901 = vmul.f32 %v1872, %v1894
        %v1902 = vmul.f32 %v1874, %v1894
        %v1903 = vadd.f32 %v1895, 0.0
        %v1904 = vadd.f32 %v1896, 0.0
        %v1905 = vadd.f32 %v1897, 0.0
        %v1906 = vadd.f32 %v1898, 0.0
        %v1907 = vadd.f32 %v1899, 0.0
        %v1908 = vadd.f32 %v1900, 0.0
        %v1909 = vadd.f32 %v1901, 0.0
        %v1910 = vadd.f32 %v1902, 0.0
        %v1911 = vperm.slane %v1392, 0
        %v1912 = vmul.f32 %v1862, %v1911
        %v1913 = vmul.f32 %v1864, %v1911
        %v1914 = vmul.f32 %v1866, %v1911
        %v1915 = vmul.f32 %v1868, %v1911
        %v1916 = vmul.f32 %v1870, %v1911
        %v1917 = vmul.f32 %v1872, %v1911
        %v1918 = vmul.f32 %v1874, %v1911
        %v1919 = vmul.f32 %v1876, %v1911
        %v1920 = vadd.f32 %v1912, 0.0
        %v1921 = vadd.f32 %v1913, 0.0
        %v1922 = vadd.f32 %v1914, 0.0
        %v1923 = vadd.f32 %v1915, 0.0
        %v1924 = vadd.f32 %v1916, 0.0
        %v1925 = vadd.f32 %v1917, 0.0
        %v1926 = vadd.f32 %v1918, 0.0
        %v1927 = vadd.f32 %v1919, 0.0
        %1928 = vrot.lane.b32.xlu0 %v1847, 2
        %v1929 = vpop.permute.xlu0 %1928
        %1930 = vrot.lane.b32.xlu0 %v1848, 2
        %v1931 = vpop.permute.xlu0 %1930
        %1932 = vrot.lane.b32.xlu0 %v1849, 2
        %v1933 = vpop.permute.xlu0 %1932
        %1934 = vrot.lane.b32.xlu0 %v1850, 2
        %v1935 = vpop.permute.xlu0 %1934
        %1936 = vrot.lane.b32.xlu0 %v1851, 2
        %v1937 = vpop.permute.xlu0 %1936
        %1938 = vrot.lane.b32.xlu0 %v1852, 2
        %v1939 = vpop.permute.xlu0 %1938
        %1940 = vrot.lane.b32.xlu0 %v1853, 2
        %v1941 = vpop.permute.xlu0 %1940
        %1942 = vrot.lane.b32.xlu0 %v1854, 2
        %v1943 = vpop.permute.xlu0 %1942
        %1944 = vrot.lane.b32.xlu0 %v1855, 2
        %v1945 = vpop.permute.xlu0 %1944
        %1946 = vrot.lane.b32.xlu0 %v1856, 2
        %v1947 = vpop.permute.xlu0 %1946
        %v1948 = vperm.slane %v1386, 1
        %v1949 = vmul.f32 %v1929, %v1948
        %v1950 = vmul.f32 %v1931, %v1948
        %v1951 = vmul.f32 %v1933, %v1948
        %v1952 = vmul.f32 %v1935, %v1948
        %v1953 = vmul.f32 %v1937, %v1948
        %v1954 = vmul.f32 %v1939, %v1948
        %v1955 = vmul.f32 %v1941, %v1948
        %v1956 = vmul.f32 %v1943, %v1948
        %v1957 = vadd.f32 %v1886, %v1949
        %v1958 = vadd.f32 %v1887, %v1950
        %v1959 = vadd.f32 %v1888, %v1951
        %v1960 = vadd.f32 %v1889, %v1952
        %v1961 = vadd.f32 %v1890, %v1953
        %v1962 = vadd.f32 %v1891, %v1954
        %v1963 = vadd.f32 %v1892, %v1955
        %v1964 = vadd.f32 %v1893, %v1956
        %v1965 = vperm.slane %v1389, 1
        %v1966 = vmul.f32 %v1931, %v1965
        %v1967 = vmul.f32 %v1933, %v1965
        %v1968 = vmul.f32 %v1935, %v1965
        %v1969 = vmul.f32 %v1937, %v1965
        %v1970 = vmul.f32 %v1939, %v1965
        %v1971 = vmul.f32 %v1941, %v1965
        %v1972 = vmul.f32 %v1943, %v1965
        %v1973 = vmul.f32 %v1945, %v1965
        %v1974 = vadd.f32 %v1903, %v1966
        %v1975 = vadd.f32 %v1904, %v1967
        %v1976 = vadd.f32 %v1905, %v1968
        %v1977 = vadd.f32 %v1906, %v1969
        %v1978 = vadd.f32 %v1907, %v1970
        %v1979 = vadd.f32 %v1908, %v1971
        %v1980 = vadd.f32 %v1909, %v1972
        %v1981 = vadd.f32 %v1910, %v1973
        %v1982 = vperm.slane %v1392, 1
        %v1983 = vmul.f32 %v1933, %v1982
        %v1984 = vmul.f32 %v1935, %v1982
        %v1985 = vmul.f32 %v1937, %v1982
        %v1986 = vmul.f32 %v1939, %v1982
        %v1987 = vmul.f32 %v1941, %v1982
        %v1988 = vmul.f32 %v1943, %v1982
        %v1989 = vmul.f32 %v1945, %v1982
        %v1990 = vmul.f32 %v1947, %v1982
        %v1991 = vadd.f32 %v1920, %v1983
        %v1992 = vadd.f32 %v1921, %v1984
        %v1993 = vadd.f32 %v1922, %v1985
        %v1994 = vadd.f32 %v1923, %v1986
        %v1995 = vadd.f32 %v1924, %v1987
        %v1996 = vadd.f32 %v1925, %v1988
        %v1997 = vadd.f32 %v1926, %v1989
        %v1998 = vadd.f32 %v1927, %v1990
        %1999 = vrot.lane.b32.xlu0 %v1847, 1
        %v2000 = vpop.permute.xlu0 %1999
        %2001 = vrot.lane.b32.xlu0 %v1848, 1
        %v2002 = vpop.permute.xlu0 %2001
        %2003 = vrot.lane.b32.xlu0 %v1849, 1
        %v2004 = vpop.permute.xlu0 %2003
        %2005 = vrot.lane.b32.xlu0 %v1850, 1
        %v2006 = vpop.permute.xlu0 %2005
        %2007 = vrot.lane.b32.xlu0 %v1851, 1
        %v2008 = vpop.permute.xlu0 %2007
        %2009 = vrot.lane.b32.xlu0 %v1852, 1
        %v2010 = vpop.permute.xlu0 %2009
        %2011 = vrot.lane.b32.xlu0 %v1853, 1
        %v2012 = vpop.permute.xlu0 %2011
        %2013 = vrot.lane.b32.xlu0 %v1854, 1
        %v2014 = vpop.permute.xlu0 %2013
        %2015 = vrot.lane.b32.xlu0 %v1855, 1
        %v2016 = vpop.permute.xlu0 %2015
        %2017 = vrot.lane.b32.xlu0 %v1856, 1
        %v2018 = vpop.permute.xlu0 %2017
        %v2019 = vperm.slane %v1386, 2
        %v2020 = vmul.f32 %v2000, %v2019
        %v2021 = vmul.f32 %v2002, %v2019
        %v2022 = vmul.f32 %v2004, %v2019
        %v2023 = vmul.f32 %v2006, %v2019
        %v2024 = vmul.f32 %v2008, %v2019
        %v2025 = vmul.f32 %v2010, %v2019
        %v2026 = vmul.f32 %v2012, %v2019
        %v2027 = vmul.f32 %v2014, %v2019
        %v2028 = vadd.f32 %v1957, %v2020
        %v2029 = vadd.f32 %v1958, %v2021
        %v2030 = vadd.f32 %v1959, %v2022
        %v2031 = vadd.f32 %v1960, %v2023
        %v2032 = vadd.f32 %v1961, %v2024
        %v2033 = vadd.f32 %v1962, %v2025
        %v2034 = vadd.f32 %v1963, %v2026
        %v2035 = vadd.f32 %v1964, %v2027
        %v2036 = vperm.slane %v1389, 2
        %v2037 = vmul.f32 %v2002, %v2036
        %v2038 = vmul.f32 %v2004, %v2036
        %v2039 = vmul.f32 %v2006, %v2036
        %v2040 = vmul.f32 %v2008, %v2036
        %v2041 = vmul.f32 %v2010, %v2036
        %v2042 = vmul.f32 %v2012, %v2036
        %v2043 = vmul.f32 %v2014, %v2036
        %v2044 = vmul.f32 %v2016, %v2036
        %v2045 = vadd.f32 %v1974, %v2037
        %v2046 = vadd.f32 %v1975, %v2038
        %v2047 = vadd.f32 %v1976, %v2039
        %v2048 = vadd.f32 %v1977, %v2040
        %v2049 = vadd.f32 %v1978, %v2041
        %v2050 = vadd.f32 %v1979, %v2042
        %v2051 = vadd.f32 %v1980, %v2043
        %v2052 = vadd.f32 %v1981, %v2044
        %v2053 = vperm.slane %v1392, 2
        %v2054 = vmul.f32 %v2004, %v2053
        %v2055 = vmul.f32 %v2006, %v2053
        %v2056 = vmul.f32 %v2008, %v2053
        %v2057 = vmul.f32 %v2010, %v2053
        %v2058 = vmul.f32 %v2012, %v2053
        %v2059 = vmul.f32 %v2014, %v2053
        %v2060 = vmul.f32 %v2016, %v2053
        %v2061 = vmul.f32 %v2018, %v2053
        %v2062 = vadd.f32 %v1991, %v2054
        %v2063 = vadd.f32 %v1992, %v2055
        %v2064 = vadd.f32 %v1993, %v2056
        %v2065 = vadd.f32 %v1994, %v2057
        %v2066 = vadd.f32 %v1995, %v2058
        %v2067 = vadd.f32 %v1996, %v2059
        %v2068 = vadd.f32 %v1997, %v2060
        %v2069 = vadd.f32 %v1998, %v2061
        %v2070 = vperm.slane %v1386, 3
        %v2071 = vmul.f32 %v1847, %v2070
        %v2072 = vmul.f32 %v1848, %v2070
        %v2073 = vmul.f32 %v1849, %v2070
        %v2074 = vmul.f32 %v1850, %v2070
        %v2075 = vmul.f32 %v1851, %v2070
        %v2076 = vmul.f32 %v1852, %v2070
        %v2077 = vmul.f32 %v1853, %v2070
        %v2078 = vmul.f32 %v1854, %v2070
        %v2079 = vadd.f32 %v2028, %v2071
        %v2080 = vadd.f32 %v2029, %v2072
        %v2081 = vadd.f32 %v2030, %v2073
        %v2082 = vadd.f32 %v2031, %v2074
        %v2083 = vadd.f32 %v2032, %v2075
        %v2084 = vadd.f32 %v2033, %v2076
        %v2085 = vadd.f32 %v2034, %v2077
        %v2086 = vadd.f32 %v2035, %v2078
        %v2087 = vperm.slane %v1389, 3
        %v2088 = vmul.f32 %v1848, %v2087
        %v2089 = vmul.f32 %v1849, %v2087
        %v2090 = vmul.f32 %v1850, %v2087
        %v2091 = vmul.f32 %v1851, %v2087
        %v2092 = vmul.f32 %v1852, %v2087
        %v2093 = vmul.f32 %v1853, %v2087
        %v2094 = vmul.f32 %v1854, %v2087
        %v2095 = vmul.f32 %v1855, %v2087
        %v2096 = vadd.f32 %v2045, %v2088
        %v2097 = vadd.f32 %v2046, %v2089
        %v2098 = vadd.f32 %v2047, %v2090
        %v2099 = vadd.f32 %v2048, %v2091
        %v2100 = vadd.f32 %v2049, %v2092
        %v2101 = vadd.f32 %v2050, %v2093
        %v2102 = vadd.f32 %v2051, %v2094
        %v2103 = vadd.f32 %v2052, %v2095
        %v2104 = vperm.slane %v1392, 3
        %v2105 = vmul.f32 %v1849, %v2104
        %v2106 = vmul.f32 %v1850, %v2104
        %v2107 = vmul.f32 %v1851, %v2104
        %v2108 = vmul.f32 %v1852, %v2104
        %v2109 = vmul.f32 %v1853, %v2104
        %v2110 = vmul.f32 %v1854, %v2104
        %v2111 = vmul.f32 %v1855, %v2104
        %v2112 = vmul.f32 %v1856, %v2104
        %v2113 = vadd.f32 %v2062, %v2105
        %v2114 = vadd.f32 %v2063, %v2106
        %v2115 = vadd.f32 %v2064, %v2107
        %v2116 = vadd.f32 %v2065, %v2108
        %v2117 = vadd.f32 %v2066, %v2109
        %v2118 = vadd.f32 %v2067, %v2110
        %v2119 = vadd.f32 %v2068, %v2111
        %v2120 = vadd.f32 %v2069, %v2112
        %2121 = vrot.lane.b32.xlu0 %v1847, 127
        %v2122 = vpop.permute.xlu0 %2121
        %2123 = vrot.lane.b32.xlu0 %v1848, 127
        %v2124 = vpop.permute.xlu0 %2123
        %2125 = vrot.lane.b32.xlu0 %v1849, 127
        %v2126 = vpop.permute.xlu0 %2125
        %2127 = vrot.lane.b32.xlu0 %v1850, 127
        %v2128 = vpop.permute.xlu0 %2127
        %2129 = vrot.lane.b32.xlu0 %v1851, 127
        %v2130 = vpop.permute.xlu0 %2129
        %2131 = vrot.lane.b32.xlu0 %v1852, 127
        %v2132 = vpop.permute.xlu0 %2131
        %2133 = vrot.lane.b32.xlu0 %v1853, 127
        %v2134 = vpop.permute.xlu0 %2133
        %2135 = vrot.lane.b32.xlu0 %v1854, 127
        %v2136 = vpop.permute.xlu0 %2135
        %2137 = vrot.lane.b32.xlu0 %v1855, 127
        %v2138 = vpop.permute.xlu0 %2137
        %2139 = vrot.lane.b32.xlu0 %v1856, 127
        %v2140 = vpop.permute.xlu0 %2139
        %v2141 = vperm.slane %v1386, 4
        %v2142 = vmul.f32 %v2122, %v2141
        %v2143 = vmul.f32 %v2124, %v2141
        %v2144 = vmul.f32 %v2126, %v2141
        %v2145 = vmul.f32 %v2128, %v2141
        %v2146 = vmul.f32 %v2130, %v2141
        %v2147 = vmul.f32 %v2132, %v2141
        %v2148 = vmul.f32 %v2134, %v2141
        %v2149 = vmul.f32 %v2136, %v2141
        %v2150 = vadd.f32 %v2079, %v2142
        %v2151 = vadd.f32 %v2080, %v2143
        %v2152 = vadd.f32 %v2081, %v2144
        %v2153 = vadd.f32 %v2082, %v2145
        %v2154 = vadd.f32 %v2083, %v2146
        %v2155 = vadd.f32 %v2084, %v2147
        %v2156 = vadd.f32 %v2085, %v2148
        %v2157 = vadd.f32 %v2086, %v2149
        %v2158 = vperm.slane %v1389, 4
        %v2159 = vmul.f32 %v2124, %v2158
        %v2160 = vmul.f32 %v2126, %v2158
        %v2161 = vmul.f32 %v2128, %v2158
        %v2162 = vmul.f32 %v2130, %v2158
        %v2163 = vmul.f32 %v2132, %v2158
        %v2164 = vmul.f32 %v2134, %v2158
        %v2165 = vmul.f32 %v2136, %v2158
        %v2166 = vmul.f32 %v2138, %v2158
        %v2167 = vadd.f32 %v2096, %v2159
        %v2168 = vadd.f32 %v2097, %v2160
        %v2169 = vadd.f32 %v2098, %v2161
        %v2170 = vadd.f32 %v2099, %v2162
        %v2171 = vadd.f32 %v2100, %v2163
        %v2172 = vadd.f32 %v2101, %v2164
        %v2173 = vadd.f32 %v2102, %v2165
        %v2174 = vadd.f32 %v2103, %v2166
        %v2175 = vperm.slane %v1392, 4
        %v2176 = vmul.f32 %v2126, %v2175
        %v2177 = vmul.f32 %v2128, %v2175
        %v2178 = vmul.f32 %v2130, %v2175
        %v2179 = vmul.f32 %v2132, %v2175
        %v2180 = vmul.f32 %v2134, %v2175
        %v2181 = vmul.f32 %v2136, %v2175
        %v2182 = vmul.f32 %v2138, %v2175
        %v2183 = vmul.f32 %v2140, %v2175
        %v2184 = vadd.f32 %v2113, %v2176
        %v2185 = vadd.f32 %v2114, %v2177
        %v2186 = vadd.f32 %v2115, %v2178
        %v2187 = vadd.f32 %v2116, %v2179
        %v2188 = vadd.f32 %v2117, %v2180
        %v2189 = vadd.f32 %v2118, %v2181
        %v2190 = vadd.f32 %v2119, %v2182
        %v2191 = vadd.f32 %v2120, %v2183
        %2192 = vrot.lane.b32.xlu0 %v1847, 126
        %v2193 = vpop.permute.xlu0 %2192
        %2194 = vrot.lane.b32.xlu0 %v1848, 126
        %v2195 = vpop.permute.xlu0 %2194
        %2196 = vrot.lane.b32.xlu0 %v1849, 126
        %v2197 = vpop.permute.xlu0 %2196
        %2198 = vrot.lane.b32.xlu0 %v1850, 126
        %v2199 = vpop.permute.xlu0 %2198
        %2200 = vrot.lane.b32.xlu0 %v1851, 126
        %v2201 = vpop.permute.xlu0 %2200
        %2202 = vrot.lane.b32.xlu0 %v1852, 126
        %v2203 = vpop.permute.xlu0 %2202
        %2204 = vrot.lane.b32.xlu0 %v1853, 126
        %v2205 = vpop.permute.xlu0 %2204
        %2206 = vrot.lane.b32.xlu0 %v1854, 126
        %v2207 = vpop.permute.xlu0 %2206
        %2208 = vrot.lane.b32.xlu0 %v1855, 126
        %v2209 = vpop.permute.xlu0 %2208
        %2210 = vrot.lane.b32.xlu0 %v1856, 126
        %v2211 = vpop.permute.xlu0 %2210
        %v2212 = vperm.slane %v1386, 5
        %v2213 = vmul.f32 %v2193, %v2212
        %v2214 = vmul.f32 %v2195, %v2212
        %v2215 = vmul.f32 %v2197, %v2212
        %v2216 = vmul.f32 %v2199, %v2212
        %v2217 = vmul.f32 %v2201, %v2212
        %v2218 = vmul.f32 %v2203, %v2212
        %v2219 = vmul.f32 %v2205, %v2212
        %v2220 = vmul.f32 %v2207, %v2212
        %v2221 = vadd.f32 %v2150, %v2213
        %v2222 = vadd.f32 %v2151, %v2214
        %v2223 = vadd.f32 %v2152, %v2215
        %v2224 = vadd.f32 %v2153, %v2216
        %v2225 = vadd.f32 %v2154, %v2217
        %v2226 = vadd.f32 %v2155, %v2218
        %v2227 = vadd.f32 %v2156, %v2219
        %v2228 = vadd.f32 %v2157, %v2220
        %v2229 = vperm.slane %v1389, 5
        %v2230 = vmul.f32 %v2195, %v2229
        %v2231 = vmul.f32 %v2197, %v2229
        %v2232 = vmul.f32 %v2199, %v2229
        %v2233 = vmul.f32 %v2201, %v2229
        %v2234 = vmul.f32 %v2203, %v2229
        %v2235 = vmul.f32 %v2205, %v2229
        %v2236 = vmul.f32 %v2207, %v2229
        %v2237 = vmul.f32 %v2209, %v2229
        %v2238 = vadd.f32 %v2167, %v2230
        %v2239 = vadd.f32 %v2168, %v2231
        %v2240 = vadd.f32 %v2169, %v2232
        %v2241 = vadd.f32 %v2170, %v2233
        %v2242 = vadd.f32 %v2171, %v2234
        %v2243 = vadd.f32 %v2172, %v2235
        %v2244 = vadd.f32 %v2173, %v2236
        %v2245 = vadd.f32 %v2174, %v2237
        %v2246 = vperm.slane %v1392, 5
        %v2247 = vmul.f32 %v2197, %v2246
        %v2248 = vmul.f32 %v2199, %v2246
        %v2249 = vmul.f32 %v2201, %v2246
        %v2250 = vmul.f32 %v2203, %v2246
        %v2251 = vmul.f32 %v2205, %v2246
        %v2252 = vmul.f32 %v2207, %v2246
        %v2253 = vmul.f32 %v2209, %v2246
        %v2254 = vmul.f32 %v2211, %v2246
        %v2255 = vadd.f32 %v2184, %v2247
        %v2256 = vadd.f32 %v2185, %v2248
        %v2257 = vadd.f32 %v2186, %v2249
        %v2258 = vadd.f32 %v2187, %v2250
        %v2259 = vadd.f32 %v2188, %v2251
        %v2260 = vadd.f32 %v2189, %v2252
        %v2261 = vadd.f32 %v2190, %v2253
        %v2262 = vadd.f32 %v2191, %v2254
        %2263 = vrot.lane.b32.xlu0 %v1847, 125
        %v2264 = vpop.permute.xlu0 %2263
        %2265 = vrot.lane.b32.xlu0 %v1848, 125
        %v2266 = vpop.permute.xlu0 %2265
        %2267 = vrot.lane.b32.xlu0 %v1849, 125
        %v2268 = vpop.permute.xlu0 %2267
        %2269 = vrot.lane.b32.xlu0 %v1850, 125
        %v2270 = vpop.permute.xlu0 %2269
        %2271 = vrot.lane.b32.xlu0 %v1851, 125
        %v2272 = vpop.permute.xlu0 %2271
        %2273 = vrot.lane.b32.xlu0 %v1852, 125
        %v2274 = vpop.permute.xlu0 %2273
        %2275 = vrot.lane.b32.xlu0 %v1853, 125
        %v2276 = vpop.permute.xlu0 %2275
        %2277 = vrot.lane.b32.xlu0 %v1854, 125
        %v2278 = vpop.permute.xlu0 %2277
        %2279 = vrot.lane.b32.xlu0 %v1855, 125
        %v2280 = vpop.permute.xlu0 %2279
        %2281 = vrot.lane.b32.xlu0 %v1856, 125
        %v2282 = vpop.permute.xlu0 %2281
        %v2283 = vperm.slane %v1386, 6
        %v2284 = vmul.f32 %v2264, %v2283
        %v2285 = vmul.f32 %v2266, %v2283
        %v2286 = vmul.f32 %v2268, %v2283
        %v2287 = vmul.f32 %v2270, %v2283
        %v2288 = vmul.f32 %v2272, %v2283
        %v2289 = vmul.f32 %v2274, %v2283
        %v2290 = vmul.f32 %v2276, %v2283
        %v2291 = vmul.f32 %v2278, %v2283
        %v2292 = vadd.f32 %v2221, %v2284
        %v2293 = vadd.f32 %v2222, %v2285
        %v2294 = vadd.f32 %v2223, %v2286
        %v2295 = vadd.f32 %v2224, %v2287
        %v2296 = vadd.f32 %v2225, %v2288
        %v2297 = vadd.f32 %v2226, %v2289
        %v2298 = vadd.f32 %v2227, %v2290
        %v2299 = vadd.f32 %v2228, %v2291
        %v2300 = vperm.slane %v1389, 6
        %v2301 = vmul.f32 %v2266, %v2300
        %v2302 = vmul.f32 %v2268, %v2300
        %v2303 = vmul.f32 %v2270, %v2300
        %v2304 = vmul.f32 %v2272, %v2300
        %v2305 = vmul.f32 %v2274, %v2300
        %v2306 = vmul.f32 %v2276, %v2300
        %v2307 = vmul.f32 %v2278, %v2300
        %v2308 = vmul.f32 %v2280, %v2300
        %v2309 = vadd.f32 %v2238, %v2301
        %v2310 = vadd.f32 %v2239, %v2302
        %v2311 = vadd.f32 %v2240, %v2303
        %v2312 = vadd.f32 %v2241, %v2304
        %v2313 = vadd.f32 %v2242, %v2305
        %v2314 = vadd.f32 %v2243, %v2306
        %v2315 = vadd.f32 %v2244, %v2307
        %v2316 = vadd.f32 %v2245, %v2308
        %v2317 = vperm.slane %v1392, 6
        %v2318 = vmul.f32 %v2268, %v2317
        %v2319 = vmul.f32 %v2270, %v2317
        %v2320 = vmul.f32 %v2272, %v2317
        %v2321 = vmul.f32 %v2274, %v2317
        %v2322 = vmul.f32 %v2276, %v2317
        %v2323 = vmul.f32 %v2278, %v2317
        %v2324 = vmul.f32 %v2280, %v2317
        %v2325 = vmul.f32 %v2282, %v2317
        %v2326 = vadd.f32 %v2255, %v2318
        %v2327 = vadd.f32 %v2256, %v2319
        %v2328 = vadd.f32 %v2257, %v2320
        %v2329 = vadd.f32 %v2258, %v2321
        %v2330 = vadd.f32 %v2259, %v2322
        %v2331 = vadd.f32 %v2260, %v2323
        %v2332 = vadd.f32 %v2261, %v2324
        %v2333 = vadd.f32 %v2262, %v2325
        %v2334 = vld [vmem:[#allocation2 + $0x1] sm:$0xff]
        %v2335 = vld [vmem:[#allocation2 + $0x11] sm:$0xff]
        %v2336 = vld [vmem:[#allocation2 + $0x21] sm:$0xff]
        %v2337 = vld [vmem:[#allocation2 + $0x31] sm:$0xff]
        %v2338 = vld [vmem:[#allocation2 + $0x41] sm:$0xff]
        %v2339 = vld [vmem:[#allocation2 + $0x51] sm:$0xff]
        %v2340 = vld [vmem:[#allocation2 + $0x61] sm:$0xff]
        %v2341 = vld [vmem:[#allocation2 + $0x71] sm:$0xff]
        %v2342 = vld [vmem:[#allocation2 + $0x81] sm:$0xff]
        %v2343 = vld [vmem:[#allocation2 + $0x91] sm:$0xff]
        %2344 = vrot.lane.b32.xlu0 %v2334, 3
        %v2345 = vpop.permute.xlu0 %2344
        %2346 = vrot.lane.b32.xlu0 %v2335, 3
        %v2347 = vpop.permute.xlu0 %2346
        %2348 = vrot.lane.b32.xlu0 %v2336, 3
        %v2349 = vpop.permute.xlu0 %2348
        %2350 = vrot.lane.b32.xlu0 %v2337, 3
        %v2351 = vpop.permute.xlu0 %2350
        %2352 = vrot.lane.b32.xlu0 %v2338, 3
        %v2353 = vpop.permute.xlu0 %2352
        %2354 = vrot.lane.b32.xlu0 %v2339, 3
        %v2355 = vpop.permute.xlu0 %2354
        %2356 = vrot.lane.b32.xlu0 %v2340, 3
        %v2357 = vpop.permute.xlu0 %2356
        %2358 = vrot.lane.b32.xlu0 %v2341, 3
        %v2359 = vpop.permute.xlu0 %2358
        %2360 = vrot.lane.b32.xlu0 %v2342, 3
        %v2361 = vpop.permute.xlu0 %2360
        %2362 = vrot.lane.b32.xlu0 %v2343, 3
        %v2363 = vpop.permute.xlu0 %2362
        %v2364 = vperm.slane %v1387, 0
        %v2365 = vmul.f32 %v2345, %v2364
        %v2366 = vmul.f32 %v2347, %v2364
        %v2367 = vmul.f32 %v2349, %v2364
        %v2368 = vmul.f32 %v2351, %v2364
        %v2369 = vmul.f32 %v2353, %v2364
        %v2370 = vmul.f32 %v2355, %v2364
        %v2371 = vmul.f32 %v2357, %v2364
        %v2372 = vmul.f32 %v2359, %v2364
        %v2373 = vadd.f32 %v2292, %v2365
        %v2374 = vadd.f32 %v2293, %v2366
        %v2375 = vadd.f32 %v2294, %v2367
        %v2376 = vadd.f32 %v2295, %v2368
        %v2377 = vadd.f32 %v2296, %v2369
        %v2378 = vadd.f32 %v2297, %v2370
        %v2379 = vadd.f32 %v2298, %v2371
        %v2380 = vadd.f32 %v2299, %v2372
        %v2381 = vperm.slane %v1390, 0
        %v2382 = vmul.f32 %v2347, %v2381
        %v2383 = vmul.f32 %v2349, %v2381
        %v2384 = vmul.f32 %v2351, %v2381
        %v2385 = vmul.f32 %v2353, %v2381
        %v2386 = vmul.f32 %v2355, %v2381
        %v2387 = vmul.f32 %v2357, %v2381
        %v2388 = vmul.f32 %v2359, %v2381
        %v2389 = vmul.f32 %v2361, %v2381
        %v2390 = vadd.f32 %v2309, %v2382
        %v2391 = vadd.f32 %v2310, %v2383
        %v2392 = vadd.f32 %v2311, %v2384
        %v2393 = vadd.f32 %v2312, %v2385
        %v2394 = vadd.f32 %v2313, %v2386
        %v2395 = vadd.f32 %v2314, %v2387
        %v2396 = vadd.f32 %v2315, %v2388
        %v2397 = vadd.f32 %v2316, %v2389
        %v2398 = vperm.slane %v1393, 0
        %v2399 = vmul.f32 %v2349, %v2398
        %v2400 = vmul.f32 %v2351, %v2398
        %v2401 = vmul.f32 %v2353, %v2398
        %v2402 = vmul.f32 %v2355, %v2398
        %v2403 = vmul.f32 %v2357, %v2398
        %v2404 = vmul.f32 %v2359, %v2398
        %v2405 = vmul.f32 %v2361, %v2398
        %v2406 = vmul.f32 %v2363, %v2398
        %v2407 = vadd.f32 %v2326, %v2399
        %v2408 = vadd.f32 %v2327, %v2400
        %v2409 = vadd.f32 %v2328, %v2401
        %v2410 = vadd.f32 %v2329, %v2402
        %v2411 = vadd.f32 %v2330, %v2403
        %v2412 = vadd.f32 %v2331, %v2404
        %v2413 = vadd.f32 %v2332, %v2405
        %v2414 = vadd.f32 %v2333, %v2406
        %2415 = vrot.lane.b32.xlu0 %v2334, 2
        %v2416 = vpop.permute.xlu0 %2415
        %2417 = vrot.lane.b32.xlu0 %v2335, 2
        %v2418 = vpop.permute.xlu0 %2417
        %2419 = vrot.lane.b32.xlu0 %v2336, 2
        %v2420 = vpop.permute.xlu0 %2419
        %2421 = vrot.lane.b32.xlu0 %v2337, 2
        %v2422 = vpop.permute.xlu0 %2421
        %2423 = vrot.lane.b32.xlu0 %v2338, 2
        %v2424 = vpop.permute.xlu0 %2423
        %2425 = vrot.lane.b32.xlu0 %v2339, 2
        %v2426 = vpop.permute.xlu0 %2425
        %2427 = vrot.lane.b32.xlu0 %v2340, 2
        %v2428 = vpop.permute.xlu0 %2427
        %2429 = vrot.lane.b32.xlu0 %v2341, 2
        %v2430 = vpop.permute.xlu0 %2429
        %2431 = vrot.lane.b32.xlu0 %v2342, 2
        %v2432 = vpop.permute.xlu0 %2431
        %2433 = vrot.lane.b32.xlu0 %v2343, 2
        %v2434 = vpop.permute.xlu0 %2433
        %v2435 = vperm.slane %v1387, 1
        %v2436 = vmul.f32 %v2416, %v2435
        %v2437 = vmul.f32 %v2418, %v2435
        %v2438 = vmul.f32 %v2420, %v2435
        %v2439 = vmul.f32 %v2422, %v2435
        %v2440 = vmul.f32 %v2424, %v2435
        %v2441 = vmul.f32 %v2426, %v2435
        %v2442 = vmul.f32 %v2428, %v2435
        %v2443 = vmul.f32 %v2430, %v2435
        %v2444 = vadd.f32 %v2373, %v2436
        %v2445 = vadd.f32 %v2374, %v2437
        %v2446 = vadd.f32 %v2375, %v2438
        %v2447 = vadd.f32 %v2376, %v2439
        %v2448 = vadd.f32 %v2377, %v2440
        %v2449 = vadd.f32 %v2378, %v2441
        %v2450 = vadd.f32 %v2379, %v2442
        %v2451 = vadd.f32 %v2380, %v2443
        %v2452 = vperm.slane %v1390, 1
        %v2453 = vmul.f32 %v2418, %v2452
        %v2454 = vmul.f32 %v2420, %v2452
        %v2455 = vmul.f32 %v2422, %v2452
        %v2456 = vmul.f32 %v2424, %v2452
        %v2457 = vmul.f32 %v2426, %v2452
        %v2458 = vmul.f32 %v2428, %v2452
        %v2459 = vmul.f32 %v2430, %v2452
        %v2460 = vmul.f32 %v2432, %v2452
        %v2461 = vadd.f32 %v2390, %v2453
        %v2462 = vadd.f32 %v2391, %v2454
        %v2463 = vadd.f32 %v2392, %v2455
        %v2464 = vadd.f32 %v2393, %v2456
        %v2465 = vadd.f32 %v2394, %v2457
        %v2466 = vadd.f32 %v2395, %v2458
        %v2467 = vadd.f32 %v2396, %v2459
        %v2468 = vadd.f32 %v2397, %v2460
        %v2469 = vperm.slane %v1393, 1
        %v2470 = vmul.f32 %v2420, %v2469
        %v2471 = vmul.f32 %v2422, %v2469
        %v2472 = vmul.f32 %v2424, %v2469
        %v2473 = vmul.f32 %v2426, %v2469
        %v2474 = vmul.f32 %v2428, %v2469
        %v2475 = vmul.f32 %v2430, %v2469
        %v2476 = vmul.f32 %v2432, %v2469
        %v2477 = vmul.f32 %v2434, %v2469
        %v2478 = vadd.f32 %v2407, %v2470
        %v2479 = vadd.f32 %v2408, %v2471
        %v2480 = vadd.f32 %v2409, %v2472
        %v2481 = vadd.f32 %v2410, %v2473
        %v2482 = vadd.f32 %v2411, %v2474
        %v2483 = vadd.f32 %v2412, %v2475
        %v2484 = vadd.f32 %v2413, %v2476
        %v2485 = vadd.f32 %v2414, %v2477
        %2486 = vrot.lane.b32.xlu0 %v2334, 1
        %v2487 = vpop.permute.xlu0 %2486
        %2488 = vrot.lane.b32.xlu0 %v2335, 1
        %v2489 = vpop.permute.xlu0 %2488
        %2490 = vrot.lane.b32.xlu0 %v2336, 1
        %v2491 = vpop.permute.xlu0 %2490
        %2492 = vrot.lane.b32.xlu0 %v2337, 1
        %v2493 = vpop.permute.xlu0 %2492
        %2494 = vrot.lane.b32.xlu0 %v2338, 1
        %v2495 = vpop.permute.xlu0 %2494
        %2496 = vrot.lane.b32.xlu0 %v2339, 1
        %v2497 = vpop.permute.xlu0 %2496
        %2498 = vrot.lane.b32.xlu0 %v2340, 1
        %v2499 = vpop.permute.xlu0 %2498
        %2500 = vrot.lane.b32.xlu0 %v2341, 1
        %v2501 = vpop.permute.xlu0 %2500
        %2502 = vrot.lane.b32.xlu0 %v2342, 1
        %v2503 = vpop.permute.xlu0 %2502
        %2504 = vrot.lane.b32.xlu0 %v2343, 1
        %v2505 = vpop.permute.xlu0 %2504
        %v2506 = vperm.slane %v1387, 2
        %v2507 = vmul.f32 %v2487, %v2506
        %v2508 = vmul.f32 %v2489, %v2506
        %v2509 = vmul.f32 %v2491, %v2506
        %v2510 = vmul.f32 %v2493, %v2506
        %v2511 = vmul.f32 %v2495, %v2506
        %v2512 = vmul.f32 %v2497, %v2506
        %v2513 = vmul.f32 %v2499, %v2506
        %v2514 = vmul.f32 %v2501, %v2506
        %v2515 = vadd.f32 %v2444, %v2507
        %v2516 = vadd.f32 %v2445, %v2508
        %v2517 = vadd.f32 %v2446, %v2509
        %v2518 = vadd.f32 %v2447, %v2510
        %v2519 = vadd.f32 %v2448, %v2511
        %v2520 = vadd.f32 %v2449, %v2512
        %v2521 = vadd.f32 %v2450, %v2513
        %v2522 = vadd.f32 %v2451, %v2514
        %v2523 = vperm.slane %v1390, 2
        %v2524 = vmul.f32 %v2489, %v2523
        %v2525 = vmul.f32 %v2491, %v2523
        %v2526 = vmul.f32 %v2493, %v2523
        %v2527 = vmul.f32 %v2495, %v2523
        %v2528 = vmul.f32 %v2497, %v2523
        %v2529 = vmul.f32 %v2499, %v2523
        %v2530 = vmul.f32 %v2501, %v2523
        %v2531 = vmul.f32 %v2503, %v2523
        %v2532 = vadd.f32 %v2461, %v2524
        %v2533 = vadd.f32 %v2462, %v2525
        %v2534 = vadd.f32 %v2463, %v2526
        %v2535 = vadd.f32 %v2464, %v2527
        %v2536 = vadd.f32 %v2465, %v2528
        %v2537 = vadd.f32 %v2466, %v2529
        %v2538 = vadd.f32 %v2467, %v2530
        %v2539 = vadd.f32 %v2468, %v2531
        %v2540 = vperm.slane %v1393, 2
        %v2541 = vmul.f32 %v2491, %v2540
        %v2542 = vmul.f32 %v2493, %v2540
        %v2543 = vmul.f32 %v2495, %v2540
        %v2544 = vmul.f32 %v2497, %v2540
        %v2545 = vmul.f32 %v2499, %v2540
        %v2546 = vmul.f32 %v2501, %v2540
        %v2547 = vmul.f32 %v2503, %v2540
        %v2548 = vmul.f32 %v2505, %v2540
        %v2549 = vadd.f32 %v2478, %v2541
        %v2550 = vadd.f32 %v2479, %v2542
        %v2551 = vadd.f32 %v2480, %v2543
        %v2552 = vadd.f32 %v2481, %v2544
        %v2553 = vadd.f32 %v2482, %v2545
        %v2554 = vadd.f32 %v2483, %v2546
        %v2555 = vadd.f32 %v2484, %v2547
        %v2556 = vadd.f32 %v2485, %v2548
        %v2557 = vperm.slane %v1387, 3
        %v2558 = vmul.f32 %v2334, %v2557
        %v2559 = vmul.f32 %v2335, %v2557
        %v2560 = vmul.f32 %v2336, %v2557
        %v2561 = vmul.f32 %v2337, %v2557
        %v2562 = vmul.f32 %v2338, %v2557
        %v2563 = vmul.f32 %v2339, %v2557
        %v2564 = vmul.f32 %v2340, %v2557
        %v2565 = vmul.f32 %v2341, %v2557
        %v2566 = vadd.f32 %v2515, %v2558
        %v2567 = vadd.f32 %v2516, %v2559
        %v2568 = vadd.f32 %v2517, %v2560
        %v2569 = vadd.f32 %v2518, %v2561
        %v2570 = vadd.f32 %v2519, %v2562
        %v2571 = vadd.f32 %v2520, %v2563
        %v2572 = vadd.f32 %v2521, %v2564
        %v2573 = vadd.f32 %v2522, %v2565
        %v2574 = vperm.slane %v1390, 3
        %v2575 = vmul.f32 %v2335, %v2574
        %v2576 = vmul.f32 %v2336, %v2574
        %v2577 = vmul.f32 %v2337, %v2574
        %v2578 = vmul.f32 %v2338, %v2574
        %v2579 = vmul.f32 %v2339, %v2574
        %v2580 = vmul.f32 %v2340, %v2574
        %v2581 = vmul.f32 %v2341, %v2574
        %v2582 = vmul.f32 %v2342, %v2574
        %v2583 = vadd.f32 %v2532, %v2575
        %v2584 = vadd.f32 %v2533, %v2576
        %v2585 = vadd.f32 %v2534, %v2577
        %v2586 = vadd.f32 %v2535, %v2578
        %v2587 = vadd.f32 %v2536, %v2579
        %v2588 = vadd.f32 %v2537, %v2580
        %v2589 = vadd.f32 %v2538, %v2581
        %v2590 = vadd.f32 %v2539, %v2582
        %v2591 = vperm.slane %v1393, 3
        %v2592 = vmul.f32 %v2336, %v2591
        %v2593 = vmul.f32 %v2337, %v2591
        %v2594 = vmul.f32 %v2338, %v2591
        %v2595 = vmul.f32 %v2339, %v2591
        %v2596 = vmul.f32 %v2340, %v2591
        %v2597 = vmul.f32 %v2341, %v2591
        %v2598 = vmul.f32 %v2342, %v2591
        %v2599 = vmul.f32 %v2343, %v2591
        %v2600 = vadd.f32 %v2549, %v2592
        %v2601 = vadd.f32 %v2550, %v2593
        %v2602 = vadd.f32 %v2551, %v2594
        %v2603 = vadd.f32 %v2552, %v2595
        %v2604 = vadd.f32 %v2553, %v2596
        %v2605 = vadd.f32 %v2554, %v2597
        %v2606 = vadd.f32 %v2555, %v2598
        %v2607 = vadd.f32 %v2556, %v2599
        %2608 = vrot.lane.b32.xlu0 %v2334, 127
        %v2609 = vpop.permute.xlu0 %2608
        %2610 = vrot.lane.b32.xlu0 %v2335, 127
        %v2611 = vpop.permute.xlu0 %2610
        %2612 = vrot.lane.b32.xlu0 %v2336, 127
        %v2613 = vpop.permute.xlu0 %2612
        %2614 = vrot.lane.b32.xlu0 %v2337, 127
        %v2615 = vpop.permute.xlu0 %2614
        %2616 = vrot.lane.b32.xlu0 %v2338, 127
        %v2617 = vpop.permute.xlu0 %2616
        %2618 = vrot.lane.b32.xlu0 %v2339, 127
        %v2619 = vpop.permute.xlu0 %2618
        %2620 = vrot.lane.b32.xlu0 %v2340, 127
        %v2621 = vpop.permute.xlu0 %2620
        %2622 = vrot.lane.b32.xlu0 %v2341, 127
        %v2623 = vpop.permute.xlu0 %2622
        %2624 = vrot.lane.b32.xlu0 %v2342, 127
        %v2625 = vpop.permute.xlu0 %2624
        %2626 = vrot.lane.b32.xlu0 %v2343, 127
        %v2627 = vpop.permute.xlu0 %2626
        %v2628 = vperm.slane %v1387, 4
        %v2629 = vmul.f32 %v2609, %v2628
        %v2630 = vmul.f32 %v2611, %v2628
        %v2631 = vmul.f32 %v2613, %v2628
        %v2632 = vmul.f32 %v2615, %v2628
        %v2633 = vmul.f32 %v2617, %v2628
        %v2634 = vmul.f32 %v2619, %v2628
        %v2635 = vmul.f32 %v2621, %v2628
        %v2636 = vmul.f32 %v2623, %v2628
        %v2637 = vadd.f32 %v2566, %v2629
        %v2638 = vadd.f32 %v2567, %v2630
        %v2639 = vadd.f32 %v2568, %v2631
        %v2640 = vadd.f32 %v2569, %v2632
        %v2641 = vadd.f32 %v2570, %v2633
        %v2642 = vadd.f32 %v2571, %v2634
        %v2643 = vadd.f32 %v2572, %v2635
        %v2644 = vadd.f32 %v2573, %v2636
        %v2645 = vperm.slane %v1390, 4
        %v2646 = vmul.f32 %v2611, %v2645
        %v2647 = vmul.f32 %v2613, %v2645
        %v2648 = vmul.f32 %v2615, %v2645
        %v2649 = vmul.f32 %v2617, %v2645
        %v2650 = vmul.f32 %v2619, %v2645
        %v2651 = vmul.f32 %v2621, %v2645
        %v2652 = vmul.f32 %v2623, %v2645
        %v2653 = vmul.f32 %v2625, %v2645
        %v2654 = vadd.f32 %v2583, %v2646
        %v2655 = vadd.f32 %v2584, %v2647
        %v2656 = vadd.f32 %v2585, %v2648
        %v2657 = vadd.f32 %v2586, %v2649
        %v2658 = vadd.f32 %v2587, %v2650
        %v2659 = vadd.f32 %v2588, %v2651
        %v2660 = vadd.f32 %v2589, %v2652
        %v2661 = vadd.f32 %v2590, %v2653
        %v2662 = vperm.slane %v1393, 4
        %v2663 = vmul.f32 %v2613, %v2662
        %v2664 = vmul.f32 %v2615, %v2662
        %v2665 = vmul.f32 %v2617, %v2662
        %v2666 = vmul.f32 %v2619, %v2662
        %v2667 = vmul.f32 %v2621, %v2662
        %v2668 = vmul.f32 %v2623, %v2662
        %v2669 = vmul.f32 %v2625, %v2662
        %v2670 = vmul.f32 %v2627, %v2662
        %v2671 = vadd.f32 %v2600, %v2663
        %v2672 = vadd.f32 %v2601, %v2664
        %v2673 = vadd.f32 %v2602, %v2665
        %v2674 = vadd.f32 %v2603, %v2666
        %v2675 = vadd.f32 %v2604, %v2667
        %v2676 = vadd.f32 %v2605, %v2668
        %v2677 = vadd.f32 %v2606, %v2669
        %v2678 = vadd.f32 %v2607, %v2670
        %2679 = vrot.lane.b32.xlu0 %v2334, 126
        %v2680 = vpop.permute.xlu0 %2679
        %2681 = vrot.lane.b32.xlu0 %v2335, 126
        %v2682 = vpop.permute.xlu0 %2681
        %2683 = vrot.lane.b32.xlu0 %v2336, 126
        %v2684 = vpop.permute.xlu0 %2683
        %2685 = vrot.lane.b32.xlu0 %v2337, 126
        %v2686 = vpop.permute.xlu0 %2685
        %2687 = vrot.lane.b32.xlu0 %v2338, 126
        %v2688 = vpop.permute.xlu0 %2687
        %2689 = vrot.lane.b32.xlu0 %v2339, 126
        %v2690 = vpop.permute.xlu0 %2689
        %2691 = vrot.lane.b32.xlu0 %v2340, 126
        %v2692 = vpop.permute.xlu0 %2691
        %2693 = vrot.lane.b32.xlu0 %v2341, 126
        %v2694 = vpop.permute.xlu0 %2693
        %2695 = vrot.lane.b32.xlu0 %v2342, 126
        %v2696 = vpop.permute.xlu0 %2695
        %2697 = vrot.lane.b32.xlu0 %v2343, 126
        %v2698 = vpop.permute.xlu0 %2697
        %v2699 = vperm.slane %v1387, 5
        %v2700 = vmul.f32 %v2680, %v2699
        %v2701 = vmul.f32 %v2682, %v2699
        %v2702 = vmul.f32 %v2684, %v2699
        %v2703 = vmul.f32 %v2686, %v2699
        %v2704 = vmul.f32 %v2688, %v2699
        %v2705 = vmul.f32 %v2690, %v2699
        %v2706 = vmul.f32 %v2692, %v2699
        %v2707 = vmul.f32 %v2694, %v2699
        %v2708 = vadd.f32 %v2637, %v2700
        %v2709 = vadd.f32 %v2638, %v2701
        %v2710 = vadd.f32 %v2639, %v2702
        %v2711 = vadd.f32 %v2640, %v2703
        %v2712 = vadd.f32 %v2641, %v2704
        %v2713 = vadd.f32 %v2642, %v2705
        %v2714 = vadd.f32 %v2643, %v2706
        %v2715 = vadd.f32 %v2644, %v2707
        %v2716 = vperm.slane %v1390, 5
        %v2717 = vmul.f32 %v2682, %v2716
        %v2718 = vmul.f32 %v2684, %v2716
        %v2719 = vmul.f32 %v2686, %v2716
        %v2720 = vmul.f32 %v2688, %v2716
        %v2721 = vmul.f32 %v2690, %v2716
        %v2722 = vmul.f32 %v2692, %v2716
        %v2723 = vmul.f32 %v2694, %v2716
        %v2724 = vmul.f32 %v2696, %v2716
        %v2725 = vadd.f32 %v2654, %v2717
        %v2726 = vadd.f32 %v2655, %v2718
        %v2727 = vadd.f32 %v2656, %v2719
        %v2728 = vadd.f32 %v2657, %v2720
        %v2729 = vadd.f32 %v2658, %v2721
        %v2730 = vadd.f32 %v2659, %v2722
        %v2731 = vadd.f32 %v2660, %v2723
        %v2732 = vadd.f32 %v2661, %v2724
        %v2733 = vperm.slane %v1393, 5
        %v2734 = vmul.f32 %v2684, %v2733
        %v2735 = vmul.f32 %v2686, %v2733
        %v2736 = vmul.f32 %v2688, %v2733
        %v2737 = vmul.f32 %v2690, %v2733
        %v2738 = vmul.f32 %v2692, %v2733
        %v2739 = vmul.f32 %v2694, %v2733
        %v2740 = vmul.f32 %v2696, %v2733
        %v2741 = vmul.f32 %v2698, %v2733
        %v2742 = vadd.f32 %v2671, %v2734
        %v2743 = vadd.f32 %v2672, %v2735
        %v2744 = vadd.f32 %v2673, %v2736
        %v2745 = vadd.f32 %v2674, %v2737
        %v2746 = vadd.f32 %v2675, %v2738
        %v2747 = vadd.f32 %v2676, %v2739
        %v2748 = vadd.f32 %v2677, %v2740
        %v2749 = vadd.f32 %v2678, %v2741
        %2750 = vrot.lane.b32.xlu0 %v2334, 125
        %v2751 = vpop.permute.xlu0 %2750
        %2752 = vrot.lane.b32.xlu0 %v2335, 125
        %v2753 = vpop.permute.xlu0 %2752
        %2754 = vrot.lane.b32.xlu0 %v2336, 125
        %v2755 = vpop.permute.xlu0 %2754
        %2756 = vrot.lane.b32.xlu0 %v2337, 125
        %v2757 = vpop.permute.xlu0 %2756
        %2758 = vrot.lane.b32.xlu0 %v2338, 125
        %v2759 = vpop.permute.xlu0 %2758
        %2760 = vrot.lane.b32.xlu0 %v2339, 125
        %v2761 = vpop.permute.xlu0 %2760
        %2762 = vrot.lane.b32.xlu0 %v2340, 125
        %v2763 = vpop.permute.xlu0 %2762
        %2764 = vrot.lane.b32.xlu0 %v2341, 125
        %v2765 = vpop.permute.xlu0 %2764
        %2766 = vrot.lane.b32.xlu0 %v2342, 125
        %v2767 = vpop.permute.xlu0 %2766
        %2768 = vrot.lane.b32.xlu0 %v2343, 125
        %v2769 = vpop.permute.xlu0 %2768
        %v2770 = vperm.slane %v1387, 6
        %v2771 = vmul.f32 %v2751, %v2770
        %v2772 = vmul.f32 %v2753, %v2770
        %v2773 = vmul.f32 %v2755, %v2770
        %v2774 = vmul.f32 %v2757, %v2770
        %v2775 = vmul.f32 %v2759, %v2770
        %v2776 = vmul.f32 %v2761, %v2770
        %v2777 = vmul.f32 %v2763, %v2770
        %v2778 = vmul.f32 %v2765, %v2770
        %v2779 = vadd.f32 %v2708, %v2771
        %v2780 = vadd.f32 %v2709, %v2772
        %v2781 = vadd.f32 %v2710, %v2773
        %v2782 = vadd.f32 %v2711, %v2774
        %v2783 = vadd.f32 %v2712, %v2775
        %v2784 = vadd.f32 %v2713, %v2776
        %v2785 = vadd.f32 %v2714, %v2777
        %v2786 = vadd.f32 %v2715, %v2778
        %v2787 = vperm.slane %v1390, 6
        %v2788 = vmul.f32 %v2753, %v2787
        %v2789 = vmul.f32 %v2755, %v2787
        %v2790 = vmul.f32 %v2757, %v2787
        %v2791 = vmul.f32 %v2759, %v2787
        %v2792 = vmul.f32 %v2761, %v2787
        %v2793 = vmul.f32 %v2763, %v2787
        %v2794 = vmul.f32 %v2765, %v2787
        %v2795 = vmul.f32 %v2767, %v2787
        %v2796 = vadd.f32 %v2725, %v2788
        %v2797 = vadd.f32 %v2726, %v2789
        %v2798 = vadd.f32 %v2727, %v2790
        %v2799 = vadd.f32 %v2728, %v2791
        %v2800 = vadd.f32 %v2729, %v2792
        %v2801 = vadd.f32 %v2730, %v2793
        %v2802 = vadd.f32 %v2731, %v2794
        %v2803 = vadd.f32 %v2732, %v2795
        %v2804 = vperm.slane %v1393, 6
        %v2805 = vmul.f32 %v2755, %v2804
        %v2806 = vmul.f32 %v2757, %v2804
        %v2807 = vmul.f32 %v2759, %v2804
        %v2808 = vmul.f32 %v2761, %v2804
        %v2809 = vmul.f32 %v2763, %v2804
        %v2810 = vmul.f32 %v2765, %v2804
        %v2811 = vmul.f32 %v2767, %v2804
        %v2812 = vmul.f32 %v2769, %v2804
        %v2813 = vadd.f32 %v2742, %v2805
        %v2814 = vadd.f32 %v2743, %v2806
        %v2815 = vadd.f32 %v2744, %v2807
        %v2816 = vadd.f32 %v2745, %v2808
        %v2817 = vadd.f32 %v2746, %v2809
        %v2818 = vadd.f32 %v2747, %v2810
        %v2819 = vadd.f32 %v2748, %v2811
        %v2820 = vadd.f32 %v2749, %v2812
        %v2821 = vld [vmem:[#allocation2 + $0x2] sm:$0xff]
        %v2822 = vld [vmem:[#allocation2 + $0x12] sm:$0xff]
        %v2823 = vld [vmem:[#allocation2 + $0x22] sm:$0xff]
        %v2824 = vld [vmem:[#allocation2 + $0x32] sm:$0xff]
        %v2825 = vld [vmem:[#allocation2 + $0x42] sm:$0xff]
        %v2826 = vld [vmem:[#allocation2 + $0x52] sm:$0xff]
        %v2827 = vld [vmem:[#allocation2 + $0x62] sm:$0xff]
        %v2828 = vld [vmem:[#allocation2 + $0x72] sm:$0xff]
        %v2829 = vld [vmem:[#allocation2 + $0x82] sm:$0xff]
        %v2830 = vld [vmem:[#allocation2 + $0x92] sm:$0xff]
        %2831 = vrot.lane.b32.xlu0 %v2821, 3
        %v2832 = vpop.permute.xlu0 %2831
        %2833 = vrot.lane.b32.xlu0 %v2822, 3
        %v2834 = vpop.permute.xlu0 %2833
        %2835 = vrot.lane.b32.xlu0 %v2823, 3
        %v2836 = vpop.permute.xlu0 %2835
        %2837 = vrot.lane.b32.xlu0 %v2824, 3
        %v2838 = vpop.permute.xlu0 %2837
        %2839 = vrot.lane.b32.xlu0 %v2825, 3
        %v2840 = vpop.permute.xlu0 %2839
        %2841 = vrot.lane.b32.xlu0 %v2826, 3
        %v2842 = vpop.permute.xlu0 %2841
        %2843 = vrot.lane.b32.xlu0 %v2827, 3
        %v2844 = vpop.permute.xlu0 %2843
        %2845 = vrot.lane.b32.xlu0 %v2828, 3
        %v2846 = vpop.permute.xlu0 %2845
        %2847 = vrot.lane.b32.xlu0 %v2829, 3
        %v2848 = vpop.permute.xlu0 %2847
        %2849 = vrot.lane.b32.xlu0 %v2830, 3
        %v2850 = vpop.permute.xlu0 %2849
        %v2851 = vperm.slane %v1388, 0
        %v2852 = vmul.f32 %v2832, %v2851
        %v2853 = vmul.f32 %v2834, %v2851
        %v2854 = vmul.f32 %v2836, %v2851
        %v2855 = vmul.f32 %v2838, %v2851
        %v2856 = vmul.f32 %v2840, %v2851
        %v2857 = vmul.f32 %v2842, %v2851
        %v2858 = vmul.f32 %v2844, %v2851
        %v2859 = vmul.f32 %v2846, %v2851
        %v2860 = vadd.f32 %v2779, %v2852
        %v2861 = vadd.f32 %v2780, %v2853
        %v2862 = vadd.f32 %v2781, %v2854
        %v2863 = vadd.f32 %v2782, %v2855
        %v2864 = vadd.f32 %v2783, %v2856
        %v2865 = vadd.f32 %v2784, %v2857
        %v2866 = vadd.f32 %v2785, %v2858
        %v2867 = vadd.f32 %v2786, %v2859
        %v2868 = vperm.slane %v1391, 0
        %v2869 = vmul.f32 %v2834, %v2868
        %v2870 = vmul.f32 %v2836, %v2868
        %v2871 = vmul.f32 %v2838, %v2868
        %v2872 = vmul.f32 %v2840, %v2868
        %v2873 = vmul.f32 %v2842, %v2868
        %v2874 = vmul.f32 %v2844, %v2868
        %v2875 = vmul.f32 %v2846, %v2868
        %v2876 = vmul.f32 %v2848, %v2868
        %v2877 = vadd.f32 %v2796, %v2869
        %v2878 = vadd.f32 %v2797, %v2870
        %v2879 = vadd.f32 %v2798, %v2871
        %v2880 = vadd.f32 %v2799, %v2872
        %v2881 = vadd.f32 %v2800, %v2873
        %v2882 = vadd.f32 %v2801, %v2874
        %v2883 = vadd.f32 %v2802, %v2875
        %v2884 = vadd.f32 %v2803, %v2876
        %v2885 = vperm.slane %v1394, 0
        %v2886 = vmul.f32 %v2836, %v2885
        %v2887 = vmul.f32 %v2838, %v2885
        %v2888 = vmul.f32 %v2840, %v2885
        %v2889 = vmul.f32 %v2842, %v2885
        %v2890 = vmul.f32 %v2844, %v2885
        %v2891 = vmul.f32 %v2846, %v2885
        %v2892 = vmul.f32 %v2848, %v2885
        %v2893 = vmul.f32 %v2850, %v2885
        %v2894 = vadd.f32 %v2813, %v2886
        %v2895 = vadd.f32 %v2814, %v2887
        %v2896 = vadd.f32 %v2815, %v2888
        %v2897 = vadd.f32 %v2816, %v2889
        %v2898 = vadd.f32 %v2817, %v2890
        %v2899 = vadd.f32 %v2818, %v2891
        %v2900 = vadd.f32 %v2819, %v2892
        %v2901 = vadd.f32 %v2820, %v2893
        %2902 = vrot.lane.b32.xlu0 %v2821, 2
        %v2903 = vpop.permute.xlu0 %2902
        %2904 = vrot.lane.b32.xlu0 %v2822, 2
        %v2905 = vpop.permute.xlu0 %2904
        %2906 = vrot.lane.b32.xlu0 %v2823, 2
        %v2907 = vpop.permute.xlu0 %2906
        %2908 = vrot.lane.b32.xlu0 %v2824, 2
        %v2909 = vpop.permute.xlu0 %2908
        %2910 = vrot.lane.b32.xlu0 %v2825, 2
        %v2911 = vpop.permute.xlu0 %2910
        %2912 = vrot.lane.b32.xlu0 %v2826, 2
        %v2913 = vpop.permute.xlu0 %2912
        %2914 = vrot.lane.b32.xlu0 %v2827, 2
        %v2915 = vpop.permute.xlu0 %2914
        %2916 = vrot.lane.b32.xlu0 %v2828, 2
        %v2917 = vpop.permute.xlu0 %2916
        %2918 = vrot.lane.b32.xlu0 %v2829, 2
        %v2919 = vpop.permute.xlu0 %2918
        %2920 = vrot.lane.b32.xlu0 %v2830, 2
        %v2921 = vpop.permute.xlu0 %2920
        %v2922 = vperm.slane %v1388, 1
        %v2923 = vmul.f32 %v2903, %v2922
        %v2924 = vmul.f32 %v2905, %v2922
        %v2925 = vmul.f32 %v2907, %v2922
        %v2926 = vmul.f32 %v2909, %v2922
        %v2927 = vmul.f32 %v2911, %v2922
        %v2928 = vmul.f32 %v2913, %v2922
        %v2929 = vmul.f32 %v2915, %v2922
        %v2930 = vmul.f32 %v2917, %v2922
        %v2931 = vadd.f32 %v2860, %v2923
        %v2932 = vadd.f32 %v2861, %v2924
        %v2933 = vadd.f32 %v2862, %v2925
        %v2934 = vadd.f32 %v2863, %v2926
        %v2935 = vadd.f32 %v2864, %v2927
        %v2936 = vadd.f32 %v2865, %v2928
        %v2937 = vadd.f32 %v2866, %v2929
        %v2938 = vadd.f32 %v2867, %v2930
        %v2939 = vperm.slane %v1391, 1
        %v2940 = vmul.f32 %v2905, %v2939
        %v2941 = vmul.f32 %v2907, %v2939
        %v2942 = vmul.f32 %v2909, %v2939
        %v2943 = vmul.f32 %v2911, %v2939
        %v2944 = vmul.f32 %v2913, %v2939
        %v2945 = vmul.f32 %v2915, %v2939
        %v2946 = vmul.f32 %v2917, %v2939
        %v2947 = vmul.f32 %v2919, %v2939
        %v2948 = vadd.f32 %v2877, %v2940
        %v2949 = vadd.f32 %v2878, %v2941
        %v2950 = vadd.f32 %v2879, %v2942
        %v2951 = vadd.f32 %v2880, %v2943
        %v2952 = vadd.f32 %v2881, %v2944
        %v2953 = vadd.f32 %v2882, %v2945
        %v2954 = vadd.f32 %v2883, %v2946
        %v2955 = vadd.f32 %v2884, %v2947
        %v2956 = vperm.slane %v1394, 1
        %v2957 = vmul.f32 %v2907, %v2956
        %v2958 = vmul.f32 %v2909, %v2956
        %v2959 = vmul.f32 %v2911, %v2956
        %v2960 = vmul.f32 %v2913, %v2956
        %v2961 = vmul.f32 %v2915, %v2956
        %v2962 = vmul.f32 %v2917, %v2956
        %v2963 = vmul.f32 %v2919, %v2956
        %v2964 = vmul.f32 %v2921, %v2956
        %v2965 = vadd.f32 %v2894, %v2957
        %v2966 = vadd.f32 %v2895, %v2958
        %v2967 = vadd.f32 %v2896, %v2959
        %v2968 = vadd.f32 %v2897, %v2960
        %v2969 = vadd.f32 %v2898, %v2961
        %v2970 = vadd.f32 %v2899, %v2962
        %v2971 = vadd.f32 %v2900, %v2963
        %v2972 = vadd.f32 %v2901, %v2964
        %2973 = vrot.lane.b32.xlu0 %v2821, 1
        %v2974 = vpop.permute.xlu0 %2973
        %2975 = vrot.lane.b32.xlu0 %v2822, 1
        %v2976 = vpop.permute.xlu0 %2975
        %2977 = vrot.lane.b32.xlu0 %v2823, 1
        %v2978 = vpop.permute.xlu0 %2977
        %2979 = vrot.lane.b32.xlu0 %v2824, 1
        %v2980 = vpop.permute.xlu0 %2979
        %2981 = vrot.lane.b32.xlu0 %v2825, 1
        %v2982 = vpop.permute.xlu0 %2981
        %2983 = vrot.lane.b32.xlu0 %v2826, 1
        %v2984 = vpop.permute.xlu0 %2983
        %2985 = vrot.lane.b32.xlu0 %v2827, 1
        %v2986 = vpop.permute.xlu0 %2985
        %2987 = vrot.lane.b32.xlu0 %v2828, 1
        %v2988 = vpop.permute.xlu0 %2987
        %2989 = vrot.lane.b32.xlu0 %v2829, 1
        %v2990 = vpop.permute.xlu0 %2989
        %2991 = vrot.lane.b32.xlu0 %v2830, 1
        %v2992 = vpop.permute.xlu0 %2991
        %v2993 = vperm.slane %v1388, 2
        %v2994 = vmul.f32 %v2974, %v2993
        %v2995 = vmul.f32 %v2976, %v2993
        %v2996 = vmul.f32 %v2978, %v2993
        %v2997 = vmul.f32 %v2980, %v2993
        %v2998 = vmul.f32 %v2982, %v2993
        %v2999 = vmul.f32 %v2984, %v2993
        %v3000 = vmul.f32 %v2986, %v2993
        %v3001 = vmul.f32 %v2988, %v2993
        %v3002 = vadd.f32 %v2931, %v2994
        %v3003 = vadd.f32 %v2932, %v2995
        %v3004 = vadd.f32 %v2933, %v2996
        %v3005 = vadd.f32 %v2934, %v2997
        %v3006 = vadd.f32 %v2935, %v2998
        %v3007 = vadd.f32 %v2936, %v2999
        %v3008 = vadd.f32 %v2937, %v3000
        %v3009 = vadd.f32 %v2938, %v3001
        %v3010 = vperm.slane %v1391, 2
        %v3011 = vmul.f32 %v2976, %v3010
        %v3012 = vmul.f32 %v2978, %v3010
        %v3013 = vmul.f32 %v2980, %v3010
        %v3014 = vmul.f32 %v2982, %v3010
        %v3015 = vmul.f32 %v2984, %v3010
        %v3016 = vmul.f32 %v2986, %v3010
        %v3017 = vmul.f32 %v2988, %v3010
        %v3018 = vmul.f32 %v2990, %v3010
        %v3019 = vadd.f32 %v2948, %v3011
        %v3020 = vadd.f32 %v2949, %v3012
        %v3021 = vadd.f32 %v2950, %v3013
        %v3022 = vadd.f32 %v2951, %v3014
        %v3023 = vadd.f32 %v2952, %v3015
        %v3024 = vadd.f32 %v2953, %v3016
        %v3025 = vadd.f32 %v2954, %v3017
        %v3026 = vadd.f32 %v2955, %v3018
        %v3027 = vperm.slane %v1394, 2
        %v3028 = vmul.f32 %v2978, %v3027
        %v3029 = vmul.f32 %v2980, %v3027
        %v3030 = vmul.f32 %v2982, %v3027
        %v3031 = vmul.f32 %v2984, %v3027
        %v3032 = vmul.f32 %v2986, %v3027
        %v3033 = vmul.f32 %v2988, %v3027
        %v3034 = vmul.f32 %v2990, %v3027
        %v3035 = vmul.f32 %v2992, %v3027
        %v3036 = vadd.f32 %v2965, %v3028
        %v3037 = vadd.f32 %v2966, %v3029
        %v3038 = vadd.f32 %v2967, %v3030
        %v3039 = vadd.f32 %v2968, %v3031
        %v3040 = vadd.f32 %v2969, %v3032
        %v3041 = vadd.f32 %v2970, %v3033
        %v3042 = vadd.f32 %v2971, %v3034
        %v3043 = vadd.f32 %v2972, %v3035
        %v3044 = vperm.slane %v1388, 3
        %v3045 = vmul.f32 %v2821, %v3044
        %v3046 = vmul.f32 %v2822, %v3044
        %v3047 = vmul.f32 %v2823, %v3044
        %v3048 = vmul.f32 %v2824, %v3044
        %v3049 = vmul.f32 %v2825, %v3044
        %v3050 = vmul.f32 %v2826, %v3044
        %v3051 = vmul.f32 %v2827, %v3044
        %v3052 = vmul.f32 %v2828, %v3044
        %v3053 = vadd.f32 %v3002, %v3045
        %v3054 = vadd.f32 %v3003, %v3046
        %v3055 = vadd.f32 %v3004, %v3047
        %v3056 = vadd.f32 %v3005, %v3048
        %v3057 = vadd.f32 %v3006, %v3049
        %v3058 = vadd.f32 %v3007, %v3050
        %v3059 = vadd.f32 %v3008, %v3051
        %v3060 = vadd.f32 %v3009, %v3052
        %v3061 = vperm.slane %v1391, 3
        %v3062 = vmul.f32 %v2822, %v3061
        %v3063 = vmul.f32 %v2823, %v3061
        %v3064 = vmul.f32 %v2824, %v3061
        %v3065 = vmul.f32 %v2825, %v3061
        %v3066 = vmul.f32 %v2826, %v3061
        %v3067 = vmul.f32 %v2827, %v3061
        %v3068 = vmul.f32 %v2828, %v3061
        %v3069 = vmul.f32 %v2829, %v3061
        %v3070 = vadd.f32 %v3019, %v3062
        %v3071 = vadd.f32 %v3020, %v3063
        %v3072 = vadd.f32 %v3021, %v3064
        %v3073 = vadd.f32 %v3022, %v3065
        %v3074 = vadd.f32 %v3023, %v3066
        %v3075 = vadd.f32 %v3024, %v3067
        %v3076 = vadd.f32 %v3025, %v3068
        %v3077 = vadd.f32 %v3026, %v3069
        %v3078 = vperm.slane %v1394, 3
        %v3079 = vmul.f32 %v2823, %v3078
        %v3080 = vmul.f32 %v2824, %v3078
        %v3081 = vmul.f32 %v2825, %v3078
        %v3082 = vmul.f32 %v2826, %v3078
        %v3083 = vmul.f32 %v2827, %v3078
        %v3084 = vmul.f32 %v2828, %v3078
        %v3085 = vmul.f32 %v2829, %v3078
        %v3086 = vmul.f32 %v2830, %v3078
        %v3087 = vadd.f32 %v3036, %v3079
        %v3088 = vadd.f32 %v3037, %v3080
        %v3089 = vadd.f32 %v3038, %v3081
        %v3090 = vadd.f32 %v3039, %v3082
        %v3091 = vadd.f32 %v3040, %v3083
        %v3092 = vadd.f32 %v3041, %v3084
        %v3093 = vadd.f32 %v3042, %v3085
        %v3094 = vadd.f32 %v3043, %v3086
        %3095 = vrot.lane.b32.xlu0 %v2821, 127
        %v3096 = vpop.permute.xlu0 %3095
        %3097 = vrot.lane.b32.xlu0 %v2822, 127
        %v3098 = vpop.permute.xlu0 %3097
        %3099 = vrot.lane.b32.xlu0 %v2823, 127
        %v3100 = vpop.permute.xlu0 %3099
        %3101 = vrot.lane.b32.xlu0 %v2824, 127
        %v3102 = vpop.permute.xlu0 %3101
        %3103 = vrot.lane.b32.xlu0 %v2825, 127
        %v3104 = vpop.permute.xlu0 %3103
        %3105 = vrot.lane.b32.xlu0 %v2826, 127
        %v3106 = vpop.permute.xlu0 %3105
        %3107 = vrot.lane.b32.xlu0 %v2827, 127
        %v3108 = vpop.permute.xlu0 %3107
        %3109 = vrot.lane.b32.xlu0 %v2828, 127
        %v3110 = vpop.permute.xlu0 %3109
        %3111 = vrot.lane.b32.xlu0 %v2829, 127
        %v3112 = vpop.permute.xlu0 %3111
        %3113 = vrot.lane.b32.xlu0 %v2830, 127
        %v3114 = vpop.permute.xlu0 %3113
        %v3115 = vperm.slane %v1388, 4
        %v3116 = vmul.f32 %v3096, %v3115
        %v3117 = vmul.f32 %v3098, %v3115
        %v3118 = vmul.f32 %v3100, %v3115
        %v3119 = vmul.f32 %v3102, %v3115
        %v3120 = vmul.f32 %v3104, %v3115
        %v3121 = vmul.f32 %v3106, %v3115
        %v3122 = vmul.f32 %v3108, %v3115
        %v3123 = vmul.f32 %v3110, %v3115
        %v3124 = vadd.f32 %v3053, %v3116
        %v3125 = vadd.f32 %v3054, %v3117
        %v3126 = vadd.f32 %v3055, %v3118
        %v3127 = vadd.f32 %v3056, %v3119
        %v3128 = vadd.f32 %v3057, %v3120
        %v3129 = vadd.f32 %v3058, %v3121
        %v3130 = vadd.f32 %v3059, %v3122
        %v3131 = vadd.f32 %v3060, %v3123
        %v3132 = vperm.slane %v1391, 4
        %v3133 = vmul.f32 %v3098, %v3132
        %v3134 = vmul.f32 %v3100, %v3132
        %v3135 = vmul.f32 %v3102, %v3132
        %v3136 = vmul.f32 %v3104, %v3132
        %v3137 = vmul.f32 %v3106, %v3132
        %v3138 = vmul.f32 %v3108, %v3132
        %v3139 = vmul.f32 %v3110, %v3132
        %v3140 = vmul.f32 %v3112, %v3132
        %v3141 = vadd.f32 %v3070, %v3133
        %v3142 = vadd.f32 %v3071, %v3134
        %v3143 = vadd.f32 %v3072, %v3135
        %v3144 = vadd.f32 %v3073, %v3136
        %v3145 = vadd.f32 %v3074, %v3137
        %v3146 = vadd.f32 %v3075, %v3138
        %v3147 = vadd.f32 %v3076, %v3139
        %v3148 = vadd.f32 %v3077, %v3140
        %v3149 = vperm.slane %v1394, 4
        %v3150 = vmul.f32 %v3100, %v3149
        %v3151 = vmul.f32 %v3102, %v3149
        %v3152 = vmul.f32 %v3104, %v3149
        %v3153 = vmul.f32 %v3106, %v3149
        %v3154 = vmul.f32 %v3108, %v3149
        %v3155 = vmul.f32 %v3110, %v3149
        %v3156 = vmul.f32 %v3112, %v3149
        %v3157 = vmul.f32 %v3114, %v3149
        %v3158 = vadd.f32 %v3087, %v3150
        %v3159 = vadd.f32 %v3088, %v3151
        %v3160 = vadd.f32 %v3089, %v3152
        %v3161 = vadd.f32 %v3090, %v3153
        %v3162 = vadd.f32 %v3091, %v3154
        %v3163 = vadd.f32 %v3092, %v3155
        %v3164 = vadd.f32 %v3093, %v3156
        %v3165 = vadd.f32 %v3094, %v3157
        %3166 = vrot.lane.b32.xlu0 %v2821, 126
        %v3167 = vpop.permute.xlu0 %3166
        %3168 = vrot.lane.b32.xlu0 %v2822, 126
        %v3169 = vpop.permute.xlu0 %3168
        %3170 = vrot.lane.b32.xlu0 %v2823, 126
        %v3171 = vpop.permute.xlu0 %3170
        %3172 = vrot.lane.b32.xlu0 %v2824, 126
        %v3173 = vpop.permute.xlu0 %3172
        %3174 = vrot.lane.b32.xlu0 %v2825, 126
        %v3175 = vpop.permute.xlu0 %3174
        %3176 = vrot.lane.b32.xlu0 %v2826, 126
        %v3177 = vpop.permute.xlu0 %3176
        %3178 = vrot.lane.b32.xlu0 %v2827, 126
        %v3179 = vpop.permute.xlu0 %3178
        %3180 = vrot.lane.b32.xlu0 %v2828, 126
        %v3181 = vpop.permute.xlu0 %3180
        %3182 = vrot.lane.b32.xlu0 %v2829, 126
        %v3183 = vpop.permute.xlu0 %3182
        %3184 = vrot.lane.b32.xlu0 %v2830, 126
        %v3185 = vpop.permute.xlu0 %3184
        %v3186 = vperm.slane %v1388, 5
        %v3187 = vmul.f32 %v3167, %v3186
        %v3188 = vmul.f32 %v3169, %v3186
        %v3189 = vmul.f32 %v3171, %v3186
        %v3190 = vmul.f32 %v3173, %v3186
        %v3191 = vmul.f32 %v3175, %v3186
        %v3192 = vmul.f32 %v3177, %v3186
        %v3193 = vmul.f32 %v3179, %v3186
        %v3194 = vmul.f32 %v3181, %v3186
        %v3195 = vadd.f32 %v3124, %v3187
        %v3196 = vadd.f32 %v3125, %v3188
        %v3197 = vadd.f32 %v3126, %v3189
        %v3198 = vadd.f32 %v3127, %v3190
        %v3199 = vadd.f32 %v3128, %v3191
        %v3200 = vadd.f32 %v3129, %v3192
        %v3201 = vadd.f32 %v3130, %v3193
        %v3202 = vadd.f32 %v3131, %v3194
        %v3203 = vperm.slane %v1391, 5
        %v3204 = vmul.f32 %v3169, %v3203
        %v3205 = vmul.f32 %v3171, %v3203
        %v3206 = vmul.f32 %v3173, %v3203
        %v3207 = vmul.f32 %v3175, %v3203
        %v3208 = vmul.f32 %v3177, %v3203
        %v3209 = vmul.f32 %v3179, %v3203
        %v3210 = vmul.f32 %v3181, %v3203
        %v3211 = vmul.f32 %v3183, %v3203
        %v3212 = vadd.f32 %v3141, %v3204
        %v3213 = vadd.f32 %v3142, %v3205
        %v3214 = vadd.f32 %v3143, %v3206
        %v3215 = vadd.f32 %v3144, %v3207
        %v3216 = vadd.f32 %v3145, %v3208
        %v3217 = vadd.f32 %v3146, %v3209
        %v3218 = vadd.f32 %v3147, %v3210
        %v3219 = vadd.f32 %v3148, %v3211
        %v3220 = vperm.slane %v1394, 5
        %v3221 = vmul.f32 %v3171, %v3220
        %v3222 = vmul.f32 %v3173, %v3220
        %v3223 = vmul.f32 %v3175, %v3220
        %v3224 = vmul.f32 %v3177, %v3220
        %v3225 = vmul.f32 %v3179, %v3220
        %v3226 = vmul.f32 %v3181, %v3220
        %v3227 = vmul.f32 %v3183, %v3220
        %v3228 = vmul.f32 %v3185, %v3220
        %v3229 = vadd.f32 %v3158, %v3221
        %v3230 = vadd.f32 %v3159, %v3222
        %v3231 = vadd.f32 %v3160, %v3223
        %v3232 = vadd.f32 %v3161, %v3224
        %v3233 = vadd.f32 %v3162, %v3225
        %v3234 = vadd.f32 %v3163, %v3226
        %v3235 = vadd.f32 %v3164, %v3227
        %v3236 = vadd.f32 %v3165, %v3228
        %3237 = vrot.lane.b32.xlu0 %v2821, 125
        %v3238 = vpop.permute.xlu0 %3237
        %3239 = vrot.lane.b32.xlu0 %v2822, 125
        %v3240 = vpop.permute.xlu0 %3239
        %3241 = vrot.lane.b32.xlu0 %v2823, 125
        %v3242 = vpop.permute.xlu0 %3241
        %3243 = vrot.lane.b32.xlu0 %v2824, 125
        %v3244 = vpop.permute.xlu0 %3243
        %3245 = vrot.lane.b32.xlu0 %v2825, 125
        %v3246 = vpop.permute.xlu0 %3245
        %3247 = vrot.lane.b32.xlu0 %v2826, 125
        %v3248 = vpop.permute.xlu0 %3247
        %3249 = vrot.lane.b32.xlu0 %v2827, 125
        %v3250 = vpop.permute.xlu0 %3249
        %3251 = vrot.lane.b32.xlu0 %v2828, 125
        %v3252 = vpop.permute.xlu0 %3251
        %3253 = vrot.lane.b32.xlu0 %v2829, 125
        %v3254 = vpop.permute.xlu0 %3253
        %3255 = vrot.lane.b32.xlu0 %v2830, 125
        %v3256 = vpop.permute.xlu0 %3255
        %v3257 = vperm.slane %v1388, 6
        %v3258 = vmul.f32 %v3238, %v3257
        %v3259 = vmul.f32 %v3240, %v3257
        %v3260 = vmul.f32 %v3242, %v3257
        %v3261 = vmul.f32 %v3244, %v3257
        %v3262 = vmul.f32 %v3246, %v3257
        %v3263 = vmul.f32 %v3248, %v3257
        %v3264 = vmul.f32 %v3250, %v3257
        %v3265 = vmul.f32 %v3252, %v3257
        %v3266 = vadd.f32 %v3195, %v3258
        %v3267 = vadd.f32 %v3196, %v3259
        %v3268 = vadd.f32 %v3197, %v3260
        %v3269 = vadd.f32 %v3198, %v3261
        %v3270 = vadd.f32 %v3199, %v3262
        %v3271 = vadd.f32 %v3200, %v3263
        %v3272 = vadd.f32 %v3201, %v3264
        %v3273 = vadd.f32 %v3202, %v3265
        %v3274 = vperm.slane %v1391, 6
        %v3275 = vmul.f32 %v3240, %v3274
        %v3276 = vmul.f32 %v3242, %v3274
        %v3277 = vmul.f32 %v3244, %v3274
        %v3278 = vmul.f32 %v3246, %v3274
        %v3279 = vmul.f32 %v3248, %v3274
        %v3280 = vmul.f32 %v3250, %v3274
        %v3281 = vmul.f32 %v3252, %v3274
        %v3282 = vmul.f32 %v3254, %v3274
        %v3283 = vadd.f32 %v3212, %v3275
        %v3284 = vadd.f32 %v3213, %v3276
        %v3285 = vadd.f32 %v3214, %v3277
        %v3286 = vadd.f32 %v3215, %v3278
        %v3287 = vadd.f32 %v3216, %v3279
        %v3288 = vadd.f32 %v3217, %v3280
        %v3289 = vadd.f32 %v3218, %v3281
        %v3290 = vadd.f32 %v3219, %v3282
        %v3291 = vperm.slane %v1394, 6
        %v3292 = vmul.f32 %v3242, %v3291
        %v3293 = vmul.f32 %v3244, %v3291
        %v3294 = vmul.f32 %v3246, %v3291
        %v3295 = vmul.f32 %v3248, %v3291
        %v3296 = vmul.f32 %v3250, %v3291
        %v3297 = vmul.f32 %v3252, %v3291
        %v3298 = vmul.f32 %v3254, %v3291
        %v3299 = vmul.f32 %v3256, %v3291
        %v3300 = vadd.f32 %v3229, %v3292
        %v3301 = vadd.f32 %v3230, %v3293
        %v3302 = vadd.f32 %v3231, %v3294
        %v3303 = vadd.f32 %v3232, %v3295
        %v3304 = vadd.f32 %v3233, %v3296
        %v3305 = vadd.f32 %v3234, %v3297
        %v3306 = vadd.f32 %v3235, %v3298
        %v3307 = vadd.f32 %v3236, %v3299
        %v3308 = vadd.f32 %v3266, %v3283
        %v3309 = vadd.f32 %v3267, %v3284
        %v3310 = vadd.f32 %v3268, %v3285
        %v3311 = vadd.f32 %v3269, %v3286
        %v3312 = vadd.f32 %v3270, %v3287
        %v3313 = vadd.f32 %v3271, %v3288
        %v3314 = vadd.f32 %v3272, %v3289
        %v3315 = vadd.f32 %v3273, %v3290
        %v3316 = vadd.f32 %v3308, %v3300
        %v3317 = vadd.f32 %v3309, %v3301
        %v3318 = vadd.f32 %v3310, %v3302
        %v3319 = vadd.f32 %v3311, %v3303
        %v3320 = vadd.f32 %v3312, %v3304
        %v3321 = vadd.f32 %v3313, %v3305
        %v3322 = vadd.f32 %v3314, %v3306
        %v3323 = vadd.f32 %v3315, %v3307
        %v3324 = vld [vmem:[%s10] sm:$0x1]
        %v3326 = vperm.slane %v3324, 0
        %v3328 = vadd.f32 %v3316, %v3326
        %v3329 = vadd.f32 %v3317, %v3326
        %v3330 = vadd.f32 %v3318, %v3326
        %v3331 = vadd.f32 %v3319, %v3326
        %v3332 = vadd.f32 %v3320, %v3326
        %v3333 = vadd.f32 %v3321, %v3326
        %v3334 = vadd.f32 %v3322, %v3326
        %v3335 = vadd.f32 %v3323, %v3326
        %v3336 = vadd.f32 %v3328, %v1831
        %v3337 = vadd.f32 %v3329, %v1832
        %v3338 = vadd.f32 %v3330, %v1833
        %v3339 = vadd.f32 %v3331, %v1834
        %v3340 = vadd.f32 %v3332, %v1835
        %v3341 = vadd.f32 %v3333, %v1836
        %v3342 = vadd.f32 %v3334, %v1837
        %v3343 = vadd.f32 %v3335, %v1838
        %v3344 = vld [vmem:[#allocation18] sm:$0x1]
        %v3345 = vld [vmem:[%s12] sm:$0x1]
        %3346 = vadd.xlane.f32.xlu0 %v3336
        %v3347 = vpop.xlane.xlu0 %3346
        %3348 = vadd.xlane.f32.xlu0 %v3337
        %v3349 = vpop.xlane.xlu0 %3348
        %3350 = vadd.xlane.f32.xlu0 %v3338
        %v3351 = vpop.xlane.xlu0 %3350
        %3352 = vadd.xlane.f32.xlu0 %v3339
        %v3353 = vpop.xlane.xlu0 %3352
        %3354 = vadd.xlane.f32.xlu0 %v3340
        %v3355 = vpop.xlane.xlu0 %3354
        %3356 = vadd.xlane.f32.xlu0 %v3341
        %v3357 = vpop.xlane.xlu0 %3356
        %3358 = vadd.xlane.f32.xlu0 %v3342
        %v3359 = vpop.xlane.xlu0 %3358
        %3360 = vadd.xlane.f32.xlu0 %v3343
        %v3361 = vpop.xlane.xlu0 %3360
        %v3362 = vmul.f32 %v3347, %v951
        %v3363 = vmul.f32 %v3349, %v951
        %v3364 = vmul.f32 %v3351, %v951
        %v3365 = vmul.f32 %v3353, %v951
        %v3366 = vmul.f32 %v3355, %v951
        %v3367 = vmul.f32 %v3357, %v951
        %v3368 = vmul.f32 %v3359, %v951
        %v3369 = vmul.f32 %v3361, %v951
        %v3370 = vmul.f32 %v3336, %v3336
        %v3371 = vmul.f32 %v3337, %v3337
        %v3372 = vmul.f32 %v3338, %v3338
        %v3373 = vmul.f32 %v3339, %v3339
        %v3374 = vmul.f32 %v3340, %v3340
        %v3375 = vmul.f32 %v3341, %v3341
        %v3376 = vmul.f32 %v3342, %v3342
        %v3377 = vmul.f32 %v3343, %v3343
        %3378 = vadd.xlane.f32.xlu0 %v3370
        %v3379 = vpop.xlane.xlu0 %3378
        %3380 = vadd.xlane.f32.xlu0 %v3371
        %v3381 = vpop.xlane.xlu0 %3380
        %3382 = vadd.xlane.f32.xlu0 %v3372
        %v3383 = vpop.xlane.xlu0 %3382
        %3384 = vadd.xlane.f32.xlu0 %v3373
        %v3385 = vpop.xlane.xlu0 %3384
        %3386 = vadd.xlane.f32.xlu0 %v3374
        %v3387 = vpop.xlane.xlu0 %3386
        %3388 = vadd.xlane.f32.xlu0 %v3375
        %v3389 = vpop.xlane.xlu0 %3388
        %3390 = vadd.xlane.f32.xlu0 %v3376
        %v3391 = vpop.xlane.xlu0 %3390
        %3392 = vadd.xlane.f32.xlu0 %v3377
        %v3393 = vpop.xlane.xlu0 %3392
        %v3394 = vmul.f32 %v3379, %v951
        %v3395 = vmul.f32 %v3381, %v951
        %v3396 = vmul.f32 %v3383, %v951
        %v3397 = vmul.f32 %v3385, %v951
        %v3398 = vmul.f32 %v3387, %v951
        %v3399 = vmul.f32 %v3389, %v951
        %v3400 = vmul.f32 %v3391, %v951
        %v3401 = vmul.f32 %v3393, %v951
        %v3402 = vmul.f32 %v3362, %v3362
        %v3403 = vmul.f32 %v3363, %v3363
        %v3404 = vmul.f32 %v3364, %v3364
        %v3405 = vmul.f32 %v3365, %v3365
        %v3406 = vmul.f32 %v3366, %v3366
        %v3407 = vmul.f32 %v3367, %v3367
        %v3408 = vmul.f32 %v3368, %v3368
        %v3409 = vmul.f32 %v3369, %v3369
        %v3410 = vsub.f32 %v3394, %v3402
        %v3411 = vsub.f32 %v3395, %v3403
        %v3412 = vsub.f32 %v3396, %v3404
        %v3413 = vsub.f32 %v3397, %v3405
        %v3414 = vsub.f32 %v3398, %v3406
        %v3415 = vsub.f32 %v3399, %v3407
        %v3416 = vsub.f32 %v3400, %v3408
        %v3417 = vsub.f32 %v3401, %v3409
        %v3418 = vmax.f32 %v3410, 0.0
        %v3419 = vmax.f32 %v3411, 0.0
        %v3420 = vmax.f32 %v3412, 0.0
        %v3421 = vmax.f32 %v3413, 0.0
        %v3422 = vmax.f32 %v3414, 0.0
        %v3423 = vmax.f32 %v3415, 0.0
        %v3424 = vmax.f32 %v3416, 0.0
        %v3425 = vmax.f32 %v3417, 0.0
        %v3426 = vsub.f32 %v3336, %v3362
        %v3427 = vsub.f32 %v3337, %v3363
        %v3428 = vsub.f32 %v3338, %v3364
        %v3429 = vsub.f32 %v3339, %v3365
        %v3430 = vsub.f32 %v3340, %v3366
        %v3431 = vsub.f32 %v3341, %v3367
        %v3432 = vsub.f32 %v3342, %v3368
        %v3433 = vsub.f32 %v3343, %v3369
        %v3434 = vadd.f32 %v3418, 1e-05
        %v3435 = vadd.f32 %v3419, 1e-05
        %v3436 = vadd.f32 %v3420, 1e-05
        %v3437 = vadd.f32 %v3421, 1e-05
        %v3438 = vadd.f32 %v3422, 1e-05
        %v3439 = vadd.f32 %v3423, 1e-05
        %v3440 = vadd.f32 %v3424, 1e-05
        %v3441 = vadd.f32 %v3425, 1e-05
        %v3442 = vrsqrt.pop %v3434
        %v3443 = vmul.f32 %v3442, %v3434
        %v3444 = vmul.f32 %v3443, %v3442
        %v3445 = vmul.f32 0.5, %v3444
        %v3446 = vsub.f32 1.5, %v3445
        %v3447 = vmul.f32 %v3442, %v3446
        %vm3448 = vweird.f32 %v3434
        %vm3449 = vweird.f32 %v3442
        %vm3450 = vmor %vm3448, %vm3449
        %v3451 = vsel %vm3450, %v3442, %v3447
        %v3452 = vrsqrt.pop %v3435
        %v3453 = vmul.f32 %v3452, %v3435
        %v3454 = vmul.f32 %v3453, %v3452
        %v3455 = vmul.f32 0.5, %v3454
        %v3456 = vsub.f32 1.5, %v3455
        %v3457 = vmul.f32 %v3452, %v3456
        %vm3458 = vweird.f32 %v3435
        %vm3459 = vweird.f32 %v3452
        %vm3460 = vmor %vm3458, %vm3459
        %v3461 = vsel %vm3460, %v3452, %v3457
        %v3462 = vrsqrt.pop %v3436
        %v3463 = vmul.f32 %v3462, %v3436
        %v3464 = vmul.f32 %v3463, %v3462
        %v3465 = vmul.f32 0.5, %v3464
        %v3466 = vsub.f32 1.5, %v3465
        %v3467 = vmul.f32 %v3462, %v3466
        %vm3468 = vweird.f32 %v3436
        %vm3469 = vweird.f32 %v3462
        %vm3470 = vmor %vm3468, %vm3469
        %v3471 = vsel %vm3470, %v3462, %v3467
        %v3472 = vrsqrt.pop %v3437
        %v3473 = vmul.f32 %v3472, %v3437
        %v3474 = vmul.f32 %v3473, %v3472
        %v3475 = vmul.f32 0.5, %v3474
        %v3476 = vsub.f32 1.5, %v3475
        %v3477 = vmul.f32 %v3472, %v3476
        %vm3478 = vweird.f32 %v3437
        %vm3479 = vweird.f32 %v3472
        %vm3480 = vmor %vm3478, %vm3479
        %v3481 = vsel %vm3480, %v3472, %v3477
        %v3482 = vrsqrt.pop %v3438
        %v3483 = vmul.f32 %v3482, %v3438
        %v3484 = vmul.f32 %v3483, %v3482
        %v3485 = vmul.f32 0.5, %v3484
        %v3486 = vsub.f32 1.5, %v3485
        %v3487 = vmul.f32 %v3482, %v3486
        %vm3488 = vweird.f32 %v3438
        %vm3489 = vweird.f32 %v3482
        %vm3490 = vmor %vm3488, %vm3489
        %v3491 = vsel %vm3490, %v3482, %v3487
        %v3492 = vrsqrt.pop %v3439
        %v3493 = vmul.f32 %v3492, %v3439
        %v3494 = vmul.f32 %v3493, %v3492
        %v3495 = vmul.f32 0.5, %v3494
        %v3496 = vsub.f32 1.5, %v3495
        %v3497 = vmul.f32 %v3492, %v3496
        %vm3498 = vweird.f32 %v3439
        %vm3499 = vweird.f32 %v3492
        %vm3500 = vmor %vm3498, %vm3499
        %v3501 = vsel %vm3500, %v3492, %v3497
        %v3502 = vrsqrt.pop %v3440
        %v3503 = vmul.f32 %v3502, %v3440
        %v3504 = vmul.f32 %v3503, %v3502
        %v3505 = vmul.f32 0.5, %v3504
        %v3506 = vsub.f32 1.5, %v3505
        %v3507 = vmul.f32 %v3502, %v3506
        %vm3508 = vweird.f32 %v3440
        %vm3509 = vweird.f32 %v3502
        %vm3510 = vmor %vm3508, %vm3509
        %v3511 = vsel %vm3510, %v3502, %v3507
        %v3512 = vrsqrt.pop %v3441
        %v3513 = vmul.f32 %v3512, %v3441
        %v3514 = vmul.f32 %v3513, %v3512
        %v3515 = vmul.f32 0.5, %v3514
        %v3516 = vsub.f32 1.5, %v3515
        %v3517 = vmul.f32 %v3512, %v3516
        %vm3518 = vweird.f32 %v3441
        %vm3519 = vweird.f32 %v3512
        %vm3520 = vmor %vm3518, %vm3519
        %v3521 = vsel %vm3520, %v3512, %v3517
        %v3522 = vmul.f32 %v3426, %v3451
        %v3523 = vmul.f32 %v3427, %v3461
        %v3524 = vmul.f32 %v3428, %v3471
        %v3525 = vmul.f32 %v3429, %v3481
        %v3526 = vmul.f32 %v3430, %v3491
        %v3527 = vmul.f32 %v3431, %v3501
        %v3528 = vmul.f32 %v3432, %v3511
        %v3529 = vmul.f32 %v3433, %v3521
        %v3531 = vperm.slane %v3344, 0
        %v3533 = vmul.f32 %v3522, %v3531
        %v3534 = vmul.f32 %v3523, %v3531
        %v3535 = vmul.f32 %v3524, %v3531
        %v3536 = vmul.f32 %v3525, %v3531
        %v3537 = vmul.f32 %v3526, %v3531
        %v3538 = vmul.f32 %v3527, %v3531
        %v3539 = vmul.f32 %v3528, %v3531
        %v3540 = vmul.f32 %v3529, %v3531
        %v3542 = vperm.slane %v3345, 0
        %v3544 = vadd.f32 %v3533, %v3542
        %v3545 = vadd.f32 %v3534, %v3542
        %v3546 = vadd.f32 %v3535, %v3542
        %v3547 = vadd.f32 %v3536, %v3542
        %v3548 = vadd.f32 %v3537, %v3542
        %v3549 = vadd.f32 %v3538, %v3542
        %v3550 = vadd.f32 %v3539, %v3542
        %v3551 = vadd.f32 %v3540, %v3542
        %v3552 = vadd.f32 %v3544, %v1395
        %v3553 = vadd.f32 %v3545, %v1396
        %v3554 = vadd.f32 %v3546, %v1397
        %v3555 = vadd.f32 %v3547, %v1398
        %v3556 = vadd.f32 %v3548, %v1399
        %v3557 = vadd.f32 %v3549, %v1400
        %v3558 = vadd.f32 %v3550, %v1401
        %v3559 = vadd.f32 %v3551, %v1402
        %v3560 = vld [vmem:[%s13] sm:$0x1]
        %v3561 = vld [vmem:[%s14] sm:$0x1]
        %3562 = vadd.xlane.f32.xlu0 %v3552
        %v3563 = vpop.xlane.xlu0 %3562
        %3564 = vadd.xlane.f32.xlu0 %v3553
        %v3565 = vpop.xlane.xlu0 %3564
        %3566 = vadd.xlane.f32.xlu0 %v3554
        %v3567 = vpop.xlane.xlu0 %3566
        %3568 = vadd.xlane.f32.xlu0 %v3555
        %v3569 = vpop.xlane.xlu0 %3568
        %3570 = vadd.xlane.f32.xlu0 %v3556
        %v3571 = vpop.xlane.xlu0 %3570
        %3572 = vadd.xlane.f32.xlu0 %v3557
        %v3573 = vpop.xlane.xlu0 %3572
        %3574 = vadd.xlane.f32.xlu0 %v3558
        %v3575 = vpop.xlane.xlu0 %3574
        %3576 = vadd.xlane.f32.xlu0 %v3559
        %v3577 = vpop.xlane.xlu0 %3576
        %v3578 = vmul.f32 %v3563, %v951
        %v3579 = vmul.f32 %v3565, %v951
        %v3580 = vmul.f32 %v3567, %v951
        %v3581 = vmul.f32 %v3569, %v951
        %v3582 = vmul.f32 %v3571, %v951
        %v3583 = vmul.f32 %v3573, %v951
        %v3584 = vmul.f32 %v3575, %v951
        %v3585 = vmul.f32 %v3577, %v951
        %v3586 = vmul.f32 %v3552, %v3552
        %v3587 = vmul.f32 %v3553, %v3553
        %v3588 = vmul.f32 %v3554, %v3554
        %v3589 = vmul.f32 %v3555, %v3555
        %v3590 = vmul.f32 %v3556, %v3556
        %v3591 = vmul.f32 %v3557, %v3557
        %v3592 = vmul.f32 %v3558, %v3558
        %v3593 = vmul.f32 %v3559, %v3559
        %3594 = vadd.xlane.f32.xlu0 %v3586
        %v3595 = vpop.xlane.xlu0 %3594
        %3596 = vadd.xlane.f32.xlu0 %v3587
        %v3597 = vpop.xlane.xlu0 %3596
        %3598 = vadd.xlane.f32.xlu0 %v3588
        %v3599 = vpop.xlane.xlu0 %3598
        %3600 = vadd.xlane.f32.xlu0 %v3589
        %v3601 = vpop.xlane.xlu0 %3600
        %3602 = vadd.xlane.f32.xlu0 %v3590
        %v3603 = vpop.xlane.xlu0 %3602
        %3604 = vadd.xlane.f32.xlu0 %v3591
        %v3605 = vpop.xlane.xlu0 %3604
        %3606 = vadd.xlane.f32.xlu0 %v3592
        %v3607 = vpop.xlane.xlu0 %3606
        %3608 = vadd.xlane.f32.xlu0 %v3593
        %v3609 = vpop.xlane.xlu0 %3608
        %v3610 = vmul.f32 %v3595, %v951
        %v3611 = vmul.f32 %v3597, %v951
        %v3612 = vmul.f32 %v3599, %v951
        %v3613 = vmul.f32 %v3601, %v951
        %v3614 = vmul.f32 %v3603, %v951
        %v3615 = vmul.f32 %v3605, %v951
        %v3616 = vmul.f32 %v3607, %v951
        %v3617 = vmul.f32 %v3609, %v951
        %v3618 = vmul.f32 %v3578, %v3578
        %v3619 = vmul.f32 %v3579, %v3579
        %v3620 = vmul.f32 %v3580, %v3580
        %v3621 = vmul.f32 %v3581, %v3581
        %v3622 = vmul.f32 %v3582, %v3582
        %v3623 = vmul.f32 %v3583, %v3583
        %v3624 = vmul.f32 %v3584, %v3584
        %v3625 = vmul.f32 %v3585, %v3585
        %v3626 = vsub.f32 %v3610, %v3618
        %v3627 = vsub.f32 %v3611, %v3619
        %v3628 = vsub.f32 %v3612, %v3620
        %v3629 = vsub.f32 %v3613, %v3621
        %v3630 = vsub.f32 %v3614, %v3622
        %v3631 = vsub.f32 %v3615, %v3623
        %v3632 = vsub.f32 %v3616, %v3624
        %v3633 = vsub.f32 %v3617, %v3625
        %v3634 = vmax.f32 %v3626, 0.0
        %v3635 = vmax.f32 %v3627, 0.0
        %v3636 = vmax.f32 %v3628, 0.0
        %v3637 = vmax.f32 %v3629, 0.0
        %v3638 = vmax.f32 %v3630, 0.0
        %v3639 = vmax.f32 %v3631, 0.0
        %v3640 = vmax.f32 %v3632, 0.0
        %v3641 = vmax.f32 %v3633, 0.0
        %v3642 = vsub.f32 %v3552, %v3578
        %v3643 = vsub.f32 %v3553, %v3579
        %v3644 = vsub.f32 %v3554, %v3580
        %v3645 = vsub.f32 %v3555, %v3581
        %v3646 = vsub.f32 %v3556, %v3582
        %v3647 = vsub.f32 %v3557, %v3583
        %v3648 = vsub.f32 %v3558, %v3584
        %v3649 = vsub.f32 %v3559, %v3585
        %v3650 = vadd.f32 %v3634, 1e-05
        %v3651 = vadd.f32 %v3635, 1e-05
        %v3652 = vadd.f32 %v3636, 1e-05
        %v3653 = vadd.f32 %v3637, 1e-05
        %v3654 = vadd.f32 %v3638, 1e-05
        %v3655 = vadd.f32 %v3639, 1e-05
        %v3656 = vadd.f32 %v3640, 1e-05
        %v3657 = vadd.f32 %v3641, 1e-05
        %v3658 = vrsqrt.pop %v3650
        %v3659 = vmul.f32 %v3658, %v3650
        %v3660 = vmul.f32 %v3659, %v3658
        %v3661 = vmul.f32 0.5, %v3660
        %v3662 = vsub.f32 1.5, %v3661
        %v3663 = vmul.f32 %v3658, %v3662
        %vm3664 = vweird.f32 %v3650
        %vm3665 = vweird.f32 %v3658
        %vm3666 = vmor %vm3664, %vm3665
        %v3667 = vsel %vm3666, %v3658, %v3663
        %v3668 = vrsqrt.pop %v3651
        %v3669 = vmul.f32 %v3668, %v3651
        %v3670 = vmul.f32 %v3669, %v3668
        %v3671 = vmul.f32 0.5, %v3670
        %v3672 = vsub.f32 1.5, %v3671
        %v3673 = vmul.f32 %v3668, %v3672
        %vm3674 = vweird.f32 %v3651
        %vm3675 = vweird.f32 %v3668
        %vm3676 = vmor %vm3674, %vm3675
        %v3677 = vsel %vm3676, %v3668, %v3673
        %v3678 = vrsqrt.pop %v3652
        %v3679 = vmul.f32 %v3678, %v3652
        %v3680 = vmul.f32 %v3679, %v3678
        %v3681 = vmul.f32 0.5, %v3680
        %v3682 = vsub.f32 1.5, %v3681
        %v3683 = vmul.f32 %v3678, %v3682
        %vm3684 = vweird.f32 %v3652
        %vm3685 = vweird.f32 %v3678
        %vm3686 = vmor %vm3684, %vm3685
        %v3687 = vsel %vm3686, %v3678, %v3683
        %v3688 = vrsqrt.pop %v3653
        %v3689 = vmul.f32 %v3688, %v3653
        %v3690 = vmul.f32 %v3689, %v3688
        %v3691 = vmul.f32 0.5, %v3690
        %v3692 = vsub.f32 1.5, %v3691
        %v3693 = vmul.f32 %v3688, %v3692
        %vm3694 = vweird.f32 %v3653
        %vm3695 = vweird.f32 %v3688
        %vm3696 = vmor %vm3694, %vm3695
        %v3697 = vsel %vm3696, %v3688, %v3693
        %v3698 = vrsqrt.pop %v3654
        %v3699 = vmul.f32 %v3698, %v3654
        %v3700 = vmul.f32 %v3699, %v3698
        %v3701 = vmul.f32 0.5, %v3700
        %v3702 = vsub.f32 1.5, %v3701
        %v3703 = vmul.f32 %v3698, %v3702
        %vm3704 = vweird.f32 %v3654
        %vm3705 = vweird.f32 %v3698
        %vm3706 = vmor %vm3704, %vm3705
        %v3707 = vsel %vm3706, %v3698, %v3703
        %v3708 = vrsqrt.pop %v3655
        %v3709 = vmul.f32 %v3708, %v3655
        %v3710 = vmul.f32 %v3709, %v3708
        %v3711 = vmul.f32 0.5, %v3710
        %v3712 = vsub.f32 1.5, %v3711
        %v3713 = vmul.f32 %v3708, %v3712
        %vm3714 = vweird.f32 %v3655
        %vm3715 = vweird.f32 %v3708
        %vm3716 = vmor %vm3714, %vm3715
        %v3717 = vsel %vm3716, %v3708, %v3713
        %v3718 = vrsqrt.pop %v3656
        %v3719 = vmul.f32 %v3718, %v3656
        %v3720 = vmul.f32 %v3719, %v3718
        %v3721 = vmul.f32 0.5, %v3720
        %v3722 = vsub.f32 1.5, %v3721
        %v3723 = vmul.f32 %v3718, %v3722
        %vm3724 = vweird.f32 %v3656
        %vm3725 = vweird.f32 %v3718
        %vm3726 = vmor %vm3724, %vm3725
        %v3727 = vsel %vm3726, %v3718, %v3723
        %v3728 = vrsqrt.pop %v3657
        %v3729 = vmul.f32 %v3728, %v3657
        %v3730 = vmul.f32 %v3729, %v3728
        %v3731 = vmul.f32 0.5, %v3730
        %v3732 = vsub.f32 1.5, %v3731
        %v3733 = vmul.f32 %v3728, %v3732
        %vm3734 = vweird.f32 %v3657
        %vm3735 = vweird.f32 %v3728
        %vm3736 = vmor %vm3734, %vm3735
        %v3737 = vsel %vm3736, %v3728, %v3733
        %v3738 = vmul.f32 %v3642, %v3667
        %v3739 = vmul.f32 %v3643, %v3677
        %v3740 = vmul.f32 %v3644, %v3687
        %v3741 = vmul.f32 %v3645, %v3697
        %v3742 = vmul.f32 %v3646, %v3707
        %v3743 = vmul.f32 %v3647, %v3717
        %v3744 = vmul.f32 %v3648, %v3727
        %v3745 = vmul.f32 %v3649, %v3737
        %v3747 = vperm.slane %v3560, 0
        %v3749 = vmul.f32 %v3738, %v3747
        %v3750 = vmul.f32 %v3739, %v3747
        %v3751 = vmul.f32 %v3740, %v3747
        %v3752 = vmul.f32 %v3741, %v3747
        %v3753 = vmul.f32 %v3742, %v3747
        %v3754 = vmul.f32 %v3743, %v3747
        %v3755 = vmul.f32 %v3744, %v3747
        %v3756 = vmul.f32 %v3745, %v3747
        %v3758 = vperm.slane %v3561, 0
        %v3760 = vadd.f32 %v3749, %v3758
        %v3761 = vadd.f32 %v3750, %v3758
        %v3762 = vadd.f32 %v3751, %v3758
        %v3763 = vadd.f32 %v3752, %v3758
        %v3764 = vadd.f32 %v3753, %v3758
        %v3765 = vadd.f32 %v3754, %v3758
        %v3766 = vadd.f32 %v3755, %v3758
        %v3767 = vadd.f32 %v3756, %v3758
        %v3768 = vmax.f32 %v3760, 0.0
        %v3769 = vmax.f32 %v3761, 0.0
        %v3770 = vmax.f32 %v3762, 0.0
        %v3771 = vmax.f32 %v3763, 0.0
        %v3772 = vmax.f32 %v3764, 0.0
        %v3773 = vmax.f32 %v3765, 0.0
        %v3774 = vmax.f32 %v3766, 0.0
        %v3775 = vmax.f32 %v3767, 0.0
        %3776 = vst [vmem:[#allocation3] sm:$0xff] %v3768
        %3777 = vst [vmem:[#allocation3 + $0x8] sm:$0xff] %v3769
        %3778 = vst [vmem:[#allocation3 + $0x10] sm:$0xff] %v3770
        %3779 = vst [vmem:[#allocation3 + $0x18] sm:$0xff] %v3771
        %3780 = vst [vmem:[#allocation3 + $0x20] sm:$0xff] %v3772
        %3781 = vst [vmem:[#allocation3 + $0x28] sm:$0xff] %v3773
        %3782 = vst [vmem:[#allocation3 + $0x30] sm:$0xff] %v3774
        %3783 = vst [vmem:[#allocation3 + $0x38] sm:$0xff] %v3775
        %v3784 = vld [vmem:[#allocation3 + $0x40] sm:$0xff]
        %v3785 = vld [vmem:[#allocation3 + $0x48] sm:$0xff]
        %v3786 = vld [vmem:[#allocation3 + $0x50] sm:$0xff]
        %v3787 = vld [vmem:[#allocation3 + $0x58] sm:$0xff]
        %v3788 = vld [vmem:[#allocation3 + $0x60] sm:$0xff]
        %v3789 = vld [vmem:[#allocation3 + $0x68] sm:$0xff]
        %v3790 = vld [vmem:[#allocation3 + $0x70] sm:$0xff]
        %v3791 = vld [vmem:[#allocation3 + $0x78] sm:$0xff]
        %3792 = vst [vmem:[%s1403 + $0x1] sm:$0xff] %v3784
        %3793 = vst [vmem:[%s1403 + $0x11] sm:$0xff] %v3785
        %3794 = vst [vmem:[%s1403 + $0x21] sm:$0xff] %v3786
        %3795 = vst [vmem:[%s1403 + $0x31] sm:$0xff] %v3787
        %3796 = vst [vmem:[%s1403 + $0x41] sm:$0xff] %v3788
        %3797 = vst [vmem:[%s1403 + $0x51] sm:$0xff] %v3789
        %3798 = vst [vmem:[%s1403 + $0x61] sm:$0xff] %v3790
        %3799 = vst [vmem:[%s1403 + $0x71] sm:$0xff] %v3791
        %v3800 = vld [vmem:[#allocation2] sm:$0xff]
        %v3801 = vld [vmem:[#allocation2 + $0x10] sm:$0xff]
        %v3802 = vld [vmem:[#allocation2 + $0x20] sm:$0xff]
        %v3803 = vld [vmem:[#allocation2 + $0x30] sm:$0xff]
        %v3804 = vld [vmem:[#allocation2 + $0x40] sm:$0xff]
        %v3805 = vld [vmem:[#allocation2 + $0x50] sm:$0xff]
        %v3806 = vld [vmem:[#allocation2 + $0x60] sm:$0xff]
        %v3807 = vld [vmem:[#allocation2 + $0x70] sm:$0xff]
        %v3808 = vld [vmem:[#allocation2 + $0x80] sm:$0xff]
        %v3809 = vld [vmem:[#allocation2 + $0x90] sm:$0xff]
        %v3810 = vmul.f32 %v3800, %v1422
        %v3811 = vmul.f32 %v3801, %v1422
        %v3812 = vmul.f32 %v3802, %v1422
        %v3813 = vmul.f32 %v3803, %v1422
        %v3814 = vmul.f32 %v3804, %v1422
        %v3815 = vmul.f32 %v3805, %v1422
        %v3816 = vmul.f32 %v3806, %v1422
        %v3817 = vmul.f32 %v3807, %v1422
        %v3818 = vadd.f32 %v3810, 0.0
        %v3819 = vadd.f32 %v3811, 0.0
        %v3820 = vadd.f32 %v3812, 0.0
        %v3821 = vadd.f32 %v3813, 0.0
        %v3822 = vadd.f32 %v3814, 0.0
        %v3823 = vadd.f32 %v3815, 0.0
        %v3824 = vadd.f32 %v3816, 0.0
        %v3825 = vadd.f32 %v3817, 0.0
        %v3826 = vmul.f32 %v3801, %v1439
        %v3827 = vmul.f32 %v3802, %v1439
        %v3828 = vmul.f32 %v3803, %v1439
        %v3829 = vmul.f32 %v3804, %v1439
        %v3830 = vmul.f32 %v3805, %v1439
        %v3831 = vmul.f32 %v3806, %v1439
        %v3832 = vmul.f32 %v3807, %v1439
        %v3833 = vmul.f32 %v3808, %v1439
        %v3834 = vadd.f32 %v3826, 0.0
        %v3835 = vadd.f32 %v3827, 0.0
        %v3836 = vadd.f32 %v3828, 0.0
        %v3837 = vadd.f32 %v3829, 0.0
        %v3838 = vadd.f32 %v3830, 0.0
        %v3839 = vadd.f32 %v3831, 0.0
        %v3840 = vadd.f32 %v3832, 0.0
        %v3841 = vadd.f32 %v3833, 0.0
        %v3842 = vmul.f32 %v3802, %v1456
        %v3843 = vmul.f32 %v3803, %v1456
        %v3844 = vmul.f32 %v3804, %v1456
        %v3845 = vmul.f32 %v3805, %v1456
        %v3846 = vmul.f32 %v3806, %v1456
        %v3847 = vmul.f32 %v3807, %v1456
        %v3848 = vmul.f32 %v3808, %v1456
        %v3849 = vmul.f32 %v3809, %v1456
        %v3850 = vadd.f32 %v3842, 0.0
        %v3851 = vadd.f32 %v3843, 0.0
        %v3852 = vadd.f32 %v3844, 0.0
        %v3853 = vadd.f32 %v3845, 0.0
        %v3854 = vadd.f32 %v3846, 0.0
        %v3855 = vadd.f32 %v3847, 0.0
        %v3856 = vadd.f32 %v3848, 0.0
        %v3857 = vadd.f32 %v3849, 0.0
        %v3858 = vld [vmem:[#allocation2 + $0x1] sm:$0xff]
        %v3859 = vld [vmem:[#allocation2 + $0x11] sm:$0xff]
        %v3860 = vld [vmem:[#allocation2 + $0x21] sm:$0xff]
        %v3861 = vld [vmem:[#allocation2 + $0x31] sm:$0xff]
        %v3862 = vld [vmem:[#allocation2 + $0x41] sm:$0xff]
        %v3863 = vld [vmem:[#allocation2 + $0x51] sm:$0xff]
        %v3864 = vld [vmem:[#allocation2 + $0x61] sm:$0xff]
        %v3865 = vld [vmem:[#allocation2 + $0x71] sm:$0xff]
        %v3866 = vld [vmem:[#allocation2 + $0x81] sm:$0xff]
        %v3867 = vld [vmem:[#allocation2 + $0x91] sm:$0xff]
        %v3868 = vmul.f32 %v3858, %v1483
        %v3869 = vmul.f32 %v3859, %v1483
        %v3870 = vmul.f32 %v3860, %v1483
        %v3871 = vmul.f32 %v3861, %v1483
        %v3872 = vmul.f32 %v3862, %v1483
        %v3873 = vmul.f32 %v3863, %v1483
        %v3874 = vmul.f32 %v3864, %v1483
        %v3875 = vmul.f32 %v3865, %v1483
        %v3876 = vadd.f32 %v3818, %v3868
        %v3877 = vadd.f32 %v3819, %v3869
        %v3878 = vadd.f32 %v3820, %v3870
        %v3879 = vadd.f32 %v3821, %v3871
        %v3880 = vadd.f32 %v3822, %v3872
        %v3881 = vadd.f32 %v3823, %v3873
        %v3882 = vadd.f32 %v3824, %v3874
        %v3883 = vadd.f32 %v3825, %v3875
        %v3884 = vmul.f32 %v3859, %v1500
        %v3885 = vmul.f32 %v3860, %v1500
        %v3886 = vmul.f32 %v3861, %v1500
        %v3887 = vmul.f32 %v3862, %v1500
        %v3888 = vmul.f32 %v3863, %v1500
        %v3889 = vmul.f32 %v3864, %v1500
        %v3890 = vmul.f32 %v3865, %v1500
        %v3891 = vmul.f32 %v3866, %v1500
        %v3892 = vadd.f32 %v3834, %v3884
        %v3893 = vadd.f32 %v3835, %v3885
        %v3894 = vadd.f32 %v3836, %v3886
        %v3895 = vadd.f32 %v3837, %v3887
        %v3896 = vadd.f32 %v3838, %v3888
        %v3897 = vadd.f32 %v3839, %v3889
        %v3898 = vadd.f32 %v3840, %v3890
        %v3899 = vadd.f32 %v3841, %v3891
        %v3900 = vmul.f32 %v3860, %v1517
        %v3901 = vmul.f32 %v3861, %v1517
        %v3902 = vmul.f32 %v3862, %v1517
        %v3903 = vmul.f32 %v3863, %v1517
        %v3904 = vmul.f32 %v3864, %v1517
        %v3905 = vmul.f32 %v3865, %v1517
        %v3906 = vmul.f32 %v3866, %v1517
        %v3907 = vmul.f32 %v3867, %v1517
        %v3908 = vadd.f32 %v3850, %v3900
        %v3909 = vadd.f32 %v3851, %v3901
        %v3910 = vadd.f32 %v3852, %v3902
        %v3911 = vadd.f32 %v3853, %v3903
        %v3912 = vadd.f32 %v3854, %v3904
        %v3913 = vadd.f32 %v3855, %v3905
        %v3914 = vadd.f32 %v3856, %v3906
        %v3915 = vadd.f32 %v3857, %v3907
        %v3916 = vld [vmem:[#allocation2 + $0x2] sm:$0xff]
        %v3917 = vld [vmem:[#allocation2 + $0x12] sm:$0xff]
        %v3918 = vld [vmem:[#allocation2 + $0x22] sm:$0xff]
        %v3919 = vld [vmem:[#allocation2 + $0x32] sm:$0xff]
        %v3920 = vld [vmem:[#allocation2 + $0x42] sm:$0xff]
        %v3921 = vld [vmem:[#allocation2 + $0x52] sm:$0xff]
        %v3922 = vld [vmem:[#allocation2 + $0x62] sm:$0xff]
        %v3923 = vld [vmem:[#allocation2 + $0x72] sm:$0xff]
        %v3924 = vld [vmem:[#allocation2 + $0x82] sm:$0xff]
        %v3925 = vld [vmem:[#allocation2 + $0x92] sm:$0xff]
        %v3926 = vmul.f32 %v3916, %v1544
        %v3927 = vmul.f32 %v3917, %v1544
        %v3928 = vmul.f32 %v3918, %v1544
        %v3929 = vmul.f32 %v3919, %v1544
        %v3930 = vmul.f32 %v3920, %v1544
        %v3931 = vmul.f32 %v3921, %v1544
        %v3932 = vmul.f32 %v3922, %v1544
        %v3933 = vmul.f32 %v3923, %v1544
        %v3934 = vadd.f32 %v3876, %v3926
        %v3935 = vadd.f32 %v3877, %v3927
        %v3936 = vadd.f32 %v3878, %v3928
        %v3937 = vadd.f32 %v3879, %v3929
        %v3938 = vadd.f32 %v3880, %v3930
        %v3939 = vadd.f32 %v3881, %v3931
        %v3940 = vadd.f32 %v3882, %v3932
        %v3941 = vadd.f32 %v3883, %v3933
        %v3942 = vmul.f32 %v3917, %v1561
        %v3943 = vmul.f32 %v3918, %v1561
        %v3944 = vmul.f32 %v3919, %v1561
        %v3945 = vmul.f32 %v3920, %v1561
        %v3946 = vmul.f32 %v3921, %v1561
        %v3947 = vmul.f32 %v3922, %v1561
        %v3948 = vmul.f32 %v3923, %v1561
        %v3949 = vmul.f32 %v3924, %v1561
        %v3950 = vadd.f32 %v3892, %v3942
        %v3951 = vadd.f32 %v3893, %v3943
        %v3952 = vadd.f32 %v3894, %v3944
        %v3953 = vadd.f32 %v3895, %v3945
        %v3954 = vadd.f32 %v3896, %v3946
        %v3955 = vadd.f32 %v3897, %v3947
        %v3956 = vadd.f32 %v3898, %v3948
        %v3957 = vadd.f32 %v3899, %v3949
        %v3958 = vmul.f32 %v3918, %v1578
        %v3959 = vmul.f32 %v3919, %v1578
        %v3960 = vmul.f32 %v3920, %v1578
        %v3961 = vmul.f32 %v3921, %v1578
        %v3962 = vmul.f32 %v3922, %v1578
        %v3963 = vmul.f32 %v3923, %v1578
        %v3964 = vmul.f32 %v3924, %v1578
        %v3965 = vmul.f32 %v3925, %v1578
        %v3966 = vadd.f32 %v3908, %v3958
        %v3967 = vadd.f32 %v3909, %v3959
        %v3968 = vadd.f32 %v3910, %v3960
        %v3969 = vadd.f32 %v3911, %v3961
        %v3970 = vadd.f32 %v3912, %v3962
        %v3971 = vadd.f32 %v3913, %v3963
        %v3972 = vadd.f32 %v3914, %v3964
        %v3973 = vadd.f32 %v3915, %v3965
        %v3974 = vadd.f32 %v3934, %v3950
        %v3975 = vadd.f32 %v3935, %v3951
        %v3976 = vadd.f32 %v3936, %v3952
        %v3977 = vadd.f32 %v3937, %v3953
        %v3978 = vadd.f32 %v3938, %v3954
        %v3979 = vadd.f32 %v3939, %v3955
        %v3980 = vadd.f32 %v3940, %v3956
        %v3981 = vadd.f32 %v3941, %v3957
        %v3982 = vadd.f32 %v3974, %v3966
        %v3983 = vadd.f32 %v3975, %v3967
        %v3984 = vadd.f32 %v3976, %v3968
        %v3985 = vadd.f32 %v3977, %v3969
        %v3986 = vadd.f32 %v3978, %v3970
        %v3987 = vadd.f32 %v3979, %v3971
        %v3988 = vadd.f32 %v3980, %v3972
        %v3989 = vadd.f32 %v3981, %v3973
        %v3990 = vld [vmem:[#allocation13] sm:$0x1]
        %v3992 = vperm.slane %v3990, 0
        %v3994 = vadd.f32 %v3982, %v3992
        %v3995 = vadd.f32 %v3983, %v3992
        %v3996 = vadd.f32 %v3984, %v3992
        %v3997 = vadd.f32 %v3985, %v3992
        %v3998 = vadd.f32 %v3986, %v3992
        %v3999 = vadd.f32 %v3987, %v3992
        %v4000 = vadd.f32 %v3988, %v3992
        %v4001 = vadd.f32 %v3989, %v3992
        %v4002 = vadd.f32 %v3994, %v3784
        %v4003 = vadd.f32 %v3995, %v3785
        %v4004 = vadd.f32 %v3996, %v3786
        %v4005 = vadd.f32 %v3997, %v3787
        %v4006 = vadd.f32 %v3998, %v3788
        %v4007 = vadd.f32 %v3999, %v3789
        %v4008 = vadd.f32 %v4000, %v3790
        %v4009 = vadd.f32 %v4001, %v3791
        %v4010 = vld [vmem:[#allocation15] sm:$0x1]
        %v4011 = vld [vmem:[#allocation16] sm:$0x1]
        %4012 = vadd.xlane.f32.xlu0 %v4002
        %v4013 = vpop.xlane.xlu0 %4012
        %4014 = vadd.xlane.f32.xlu0 %v4003
        %v4015 = vpop.xlane.xlu0 %4014
        %4016 = vadd.xlane.f32.xlu0 %v4004
        %v4017 = vpop.xlane.xlu0 %4016
        %4018 = vadd.xlane.f32.xlu0 %v4005
        %v4019 = vpop.xlane.xlu0 %4018
        %4020 = vadd.xlane.f32.xlu0 %v4006
        %v4021 = vpop.xlane.xlu0 %4020
        %4022 = vadd.xlane.f32.xlu0 %v4007
        %v4023 = vpop.xlane.xlu0 %4022
        %4024 = vadd.xlane.f32.xlu0 %v4008
        %v4025 = vpop.xlane.xlu0 %4024
        %4026 = vadd.xlane.f32.xlu0 %v4009
        %v4027 = vpop.xlane.xlu0 %4026
        %v4028 = vmul.f32 %v4013, %v951
        %v4029 = vmul.f32 %v4015, %v951
        %v4030 = vmul.f32 %v4017, %v951
        %v4031 = vmul.f32 %v4019, %v951
        %v4032 = vmul.f32 %v4021, %v951
        %v4033 = vmul.f32 %v4023, %v951
        %v4034 = vmul.f32 %v4025, %v951
        %v4035 = vmul.f32 %v4027, %v951
        %v4036 = vmul.f32 %v4002, %v4002
        %v4037 = vmul.f32 %v4003, %v4003
        %v4038 = vmul.f32 %v4004, %v4004
        %v4039 = vmul.f32 %v4005, %v4005
        %v4040 = vmul.f32 %v4006, %v4006
        %v4041 = vmul.f32 %v4007, %v4007
        %v4042 = vmul.f32 %v4008, %v4008
        %v4043 = vmul.f32 %v4009, %v4009
        %4044 = vadd.xlane.f32.xlu0 %v4036
        %v4045 = vpop.xlane.xlu0 %4044
        %4046 = vadd.xlane.f32.xlu0 %v4037
        %v4047 = vpop.xlane.xlu0 %4046
        %4048 = vadd.xlane.f32.xlu0 %v4038
        %v4049 = vpop.xlane.xlu0 %4048
        %4050 = vadd.xlane.f32.xlu0 %v4039
        %v4051 = vpop.xlane.xlu0 %4050
        %4052 = vadd.xlane.f32.xlu0 %v4040
        %v4053 = vpop.xlane.xlu0 %4052
        %4054 = vadd.xlane.f32.xlu0 %v4041
        %v4055 = vpop.xlane.xlu0 %4054
        %4056 = vadd.xlane.f32.xlu0 %v4042
        %v4057 = vpop.xlane.xlu0 %4056
        %4058 = vadd.xlane.f32.xlu0 %v4043
        %v4059 = vpop.xlane.xlu0 %4058
        %v4060 = vmul.f32 %v4045, %v951
        %v4061 = vmul.f32 %v4047, %v951
        %v4062 = vmul.f32 %v4049, %v951
        %v4063 = vmul.f32 %v4051, %v951
        %v4064 = vmul.f32 %v4053, %v951
        %v4065 = vmul.f32 %v4055, %v951
        %v4066 = vmul.f32 %v4057, %v951
        %v4067 = vmul.f32 %v4059, %v951
        %v4068 = vmul.f32 %v4028, %v4028
        %v4069 = vmul.f32 %v4029, %v4029
        %v4070 = vmul.f32 %v4030, %v4030
        %v4071 = vmul.f32 %v4031, %v4031
        %v4072 = vmul.f32 %v4032, %v4032
        %v4073 = vmul.f32 %v4033, %v4033
        %v4074 = vmul.f32 %v4034, %v4034
        %v4075 = vmul.f32 %v4035, %v4035
        %v4076 = vsub.f32 %v4060, %v4068
        %v4077 = vsub.f32 %v4061, %v4069
        %v4078 = vsub.f32 %v4062, %v4070
        %v4079 = vsub.f32 %v4063, %v4071
        %v4080 = vsub.f32 %v4064, %v4072
        %v4081 = vsub.f32 %v4065, %v4073
        %v4082 = vsub.f32 %v4066, %v4074
        %v4083 = vsub.f32 %v4067, %v4075
        %v4084 = vmax.f32 %v4076, 0.0
        %v4085 = vmax.f32 %v4077, 0.0
        %v4086 = vmax.f32 %v4078, 0.0
        %v4087 = vmax.f32 %v4079, 0.0
        %v4088 = vmax.f32 %v4080, 0.0
        %v4089 = vmax.f32 %v4081, 0.0
        %v4090 = vmax.f32 %v4082, 0.0
        %v4091 = vmax.f32 %v4083, 0.0
        %v4092 = vsub.f32 %v4002, %v4028
        %v4093 = vsub.f32 %v4003, %v4029
        %v4094 = vsub.f32 %v4004, %v4030
        %v4095 = vsub.f32 %v4005, %v4031
        %v4096 = vsub.f32 %v4006, %v4032
        %v4097 = vsub.f32 %v4007, %v4033
        %v4098 = vsub.f32 %v4008, %v4034
        %v4099 = vsub.f32 %v4009, %v4035
        %v4100 = vadd.f32 %v4084, 1e-05
        %v4101 = vadd.f32 %v4085, 1e-05
        %v4102 = vadd.f32 %v4086, 1e-05
        %v4103 = vadd.f32 %v4087, 1e-05
        %v4104 = vadd.f32 %v4088, 1e-05
        %v4105 = vadd.f32 %v4089, 1e-05
        %v4106 = vadd.f32 %v4090, 1e-05
        %v4107 = vadd.f32 %v4091, 1e-05
        %v4108 = vrsqrt.pop %v4100
        %v4109 = vmul.f32 %v4108, %v4100
        %v4110 = vmul.f32 %v4109, %v4108
        %v4111 = vmul.f32 0.5, %v4110
        %v4112 = vsub.f32 1.5, %v4111
        %v4113 = vmul.f32 %v4108, %v4112
        %vm4114 = vweird.f32 %v4100
        %vm4115 = vweird.f32 %v4108
        %vm4116 = vmor %vm4114, %vm4115
        %v4117 = vsel %vm4116, %v4108, %v4113
        %v4118 = vrsqrt.pop %v4101
        %v4119 = vmul.f32 %v4118, %v4101
        %v4120 = vmul.f32 %v4119, %v4118
        %v4121 = vmul.f32 0.5, %v4120
        %v4122 = vsub.f32 1.5, %v4121
        %v4123 = vmul.f32 %v4118, %v4122
        %vm4124 = vweird.f32 %v4101
        %vm4125 = vweird.f32 %v4118
        %vm4126 = vmor %vm4124, %vm4125
        %v4127 = vsel %vm4126, %v4118, %v4123
        %v4128 = vrsqrt.pop %v4102
        %v4129 = vmul.f32 %v4128, %v4102
        %v4130 = vmul.f32 %v4129, %v4128
        %v4131 = vmul.f32 0.5, %v4130
        %v4132 = vsub.f32 1.5, %v4131
        %v4133 = vmul.f32 %v4128, %v4132
        %vm4134 = vweird.f32 %v4102
        %vm4135 = vweird.f32 %v4128
        %vm4136 = vmor %vm4134, %vm4135
        %v4137 = vsel %vm4136, %v4128, %v4133
        %v4138 = vrsqrt.pop %v4103
        %v4139 = vmul.f32 %v4138, %v4103
        %v4140 = vmul.f32 %v4139, %v4138
        %v4141 = vmul.f32 0.5, %v4140
        %v4142 = vsub.f32 1.5, %v4141
        %v4143 = vmul.f32 %v4138, %v4142
        %vm4144 = vweird.f32 %v4103
        %vm4145 = vweird.f32 %v4138
        %vm4146 = vmor %vm4144, %vm4145
        %v4147 = vsel %vm4146, %v4138, %v4143
        %v4148 = vrsqrt.pop %v4104
        %v4149 = vmul.f32 %v4148, %v4104
        %v4150 = vmul.f32 %v4149, %v4148
        %v4151 = vmul.f32 0.5, %v4150
        %v4152 = vsub.f32 1.5, %v4151
        %v4153 = vmul.f32 %v4148, %v4152
        %vm4154 = vweird.f32 %v4104
        %vm4155 = vweird.f32 %v4148
        %vm4156 = vmor %vm4154, %vm4155
        %v4157 = vsel %vm4156, %v4148, %v4153
        %v4158 = vrsqrt.pop %v4105
        %v4159 = vmul.f32 %v4158, %v4105
        %v4160 = vmul.f32 %v4159, %v4158
        %v4161 = vmul.f32 0.5, %v4160
        %v4162 = vsub.f32 1.5, %v4161
        %v4163 = vmul.f32 %v4158, %v4162
        %vm4164 = vweird.f32 %v4105
        %vm4165 = vweird.f32 %v4158
        %vm4166 = vmor %vm4164, %vm4165
        %v4167 = vsel %vm4166, %v4158, %v4163
        %v4168 = vrsqrt.pop %v4106
        %v4169 = vmul.f32 %v4168, %v4106
        %v4170 = vmul.f32 %v4169, %v4168
        %v4171 = vmul.f32 0.5, %v4170
        %v4172 = vsub.f32 1.5, %v4171
        %v4173 = vmul.f32 %v4168, %v4172
        %vm4174 = vweird.f32 %v4106
        %vm4175 = vweird.f32 %v4168
        %vm4176 = vmor %vm4174, %vm4175
        %v4177 = vsel %vm4176, %v4168, %v4173
        %v4178 = vrsqrt.pop %v4107
        %v4179 = vmul.f32 %v4178, %v4107
        %v4180 = vmul.f32 %v4179, %v4178
        %v4181 = vmul.f32 0.5, %v4180
        %v4182 = vsub.f32 1.5, %v4181
        %v4183 = vmul.f32 %v4178, %v4182
        %vm4184 = vweird.f32 %v4107
        %vm4185 = vweird.f32 %v4178
        %vm4186 = vmor %vm4184, %vm4185
        %v4187 = vsel %vm4186, %v4178, %v4183
        %v4188 = vmul.f32 %v4092, %v4117
        %v4189 = vmul.f32 %v4093, %v4127
        %v4190 = vmul.f32 %v4094, %v4137
        %v4191 = vmul.f32 %v4095, %v4147
        %v4192 = vmul.f32 %v4096, %v4157
        %v4193 = vmul.f32 %v4097, %v4167
        %v4194 = vmul.f32 %v4098, %v4177
        %v4195 = vmul.f32 %v4099, %v4187
        %v4197 = vperm.slane %v4010, 0
        %v4199 = vmul.f32 %v4188, %v4197
        %v4200 = vmul.f32 %v4189, %v4197
        %v4201 = vmul.f32 %v4190, %v4197
        %v4202 = vmul.f32 %v4191, %v4197
        %v4203 = vmul.f32 %v4192, %v4197
        %v4204 = vmul.f32 %v4193, %v4197
        %v4205 = vmul.f32 %v4194, %v4197
        %v4206 = vmul.f32 %v4195, %v4197
        %v4208 = vperm.slane %v4011, 0
        %v4210 = vadd.f32 %v4199, %v4208
        %v4211 = vadd.f32 %v4200, %v4208
        %v4212 = vadd.f32 %v4201, %v4208
        %v4213 = vadd.f32 %v4202, %v4208
        %v4214 = vadd.f32 %v4203, %v4208
        %v4215 = vadd.f32 %v4204, %v4208
        %v4216 = vadd.f32 %v4205, %v4208
        %v4217 = vadd.f32 %v4206, %v4208
        %4218 = vst [vmem:[%s1403 + $0x1] sm:$0xff] %v4210
        %4219 = vst [vmem:[%s1403 + $0x11] sm:$0xff] %v4211
        %4220 = vst [vmem:[%s1403 + $0x21] sm:$0xff] %v4212
        %4221 = vst [vmem:[%s1403 + $0x31] sm:$0xff] %v4213
        %4222 = vst [vmem:[%s1403 + $0x41] sm:$0xff] %v4214
        %4223 = vst [vmem:[%s1403 + $0x51] sm:$0xff] %v4215
        %4224 = vst [vmem:[%s1403 + $0x61] sm:$0xff] %v4216
        %4225 = vst [vmem:[%s1403 + $0x71] sm:$0xff] %v4217
        %v4226 = vld [vmem:[#allocation2] sm:$0xff]
        %v4227 = vld [vmem:[#allocation2 + $0x10] sm:$0xff]
        %v4228 = vld [vmem:[#allocation2 + $0x20] sm:$0xff]
        %v4229 = vld [vmem:[#allocation2 + $0x30] sm:$0xff]
        %v4230 = vld [vmem:[#allocation2 + $0x40] sm:$0xff]
        %v4231 = vld [vmem:[#allocation2 + $0x50] sm:$0xff]
        %v4232 = vld [vmem:[#allocation2 + $0x60] sm:$0xff]
        %v4233 = vld [vmem:[#allocation2 + $0x70] sm:$0xff]
        %v4234 = vld [vmem:[#allocation2 + $0x80] sm:$0xff]
        %v4235 = vld [vmem:[#allocation2 + $0x90] sm:$0xff]
        %4236 = vrot.lane.b32.xlu0 %v4226, 3
        %v4237 = vpop.permute.xlu0 %4236
        %4238 = vrot.lane.b32.xlu0 %v4227, 3
        %v4239 = vpop.permute.xlu0 %4238
        %4240 = vrot.lane.b32.xlu0 %v4228, 3
        %v4241 = vpop.permute.xlu0 %4240
        %4242 = vrot.lane.b32.xlu0 %v4229, 3
        %v4243 = vpop.permute.xlu0 %4242
        %4244 = vrot.lane.b32.xlu0 %v4230, 3
        %v4245 = vpop.permute.xlu0 %4244
        %4246 = vrot.lane.b32.xlu0 %v4231, 3
        %v4247 = vpop.permute.xlu0 %4246
        %4248 = vrot.lane.b32.xlu0 %v4232, 3
        %v4249 = vpop.permute.xlu0 %4248
        %4250 = vrot.lane.b32.xlu0 %v4233, 3
        %v4251 = vpop.permute.xlu0 %4250
        %4252 = vrot.lane.b32.xlu0 %v4234, 3
        %v4253 = vpop.permute.xlu0 %4252
        %4254 = vrot.lane.b32.xlu0 %v4235, 3
        %v4255 = vpop.permute.xlu0 %4254
        %v4256 = vmul.f32 %v4237, %v1877
        %v4257 = vmul.f32 %v4239, %v1877
        %v4258 = vmul.f32 %v4241, %v1877
        %v4259 = vmul.f32 %v4243, %v1877
        %v4260 = vmul.f32 %v4245, %v1877
        %v4261 = vmul.f32 %v4247, %v1877
        %v4262 = vmul.f32 %v4249, %v1877
        %v4263 = vmul.f32 %v4251, %v1877
        %v4264 = vadd.f32 %v4256, 0.0
        %v4265 = vadd.f32 %v4257, 0.0
        %v4266 = vadd.f32 %v4258, 0.0
        %v4267 = vadd.f32 %v4259, 0.0
        %v4268 = vadd.f32 %v4260, 0.0
        %v4269 = vadd.f32 %v4261, 0.0
        %v4270 = vadd.f32 %v4262, 0.0
        %v4271 = vadd.f32 %v4263, 0.0
        %v4272 = vmul.f32 %v4239, %v1894
        %v4273 = vmul.f32 %v4241, %v1894
        %v4274 = vmul.f32 %v4243, %v1894
        %v4275 = vmul.f32 %v4245, %v1894
        %v4276 = vmul.f32 %v4247, %v1894
        %v4277 = vmul.f32 %v4249, %v1894
        %v4278 = vmul.f32 %v4251, %v1894
        %v4279 = vmul.f32 %v4253, %v1894
        %v4280 = vadd.f32 %v4272, 0.0
        %v4281 = vadd.f32 %v4273, 0.0
        %v4282 = vadd.f32 %v4274, 0.0
        %v4283 = vadd.f32 %v4275, 0.0
        %v4284 = vadd.f32 %v4276, 0.0
        %v4285 = vadd.f32 %v4277, 0.0
        %v4286 = vadd.f32 %v4278, 0.0
        %v4287 = vadd.f32 %v4279, 0.0
        %v4288 = vmul.f32 %v4241, %v1911
        %v4289 = vmul.f32 %v4243, %v1911
        %v4290 = vmul.f32 %v4245, %v1911
        %v4291 = vmul.f32 %v4247, %v1911
        %v4292 = vmul.f32 %v4249, %v1911
        %v4293 = vmul.f32 %v4251, %v1911
        %v4294 = vmul.f32 %v4253, %v1911
        %v4295 = vmul.f32 %v4255, %v1911
        %v4296 = vadd.f32 %v4288, 0.0
        %v4297 = vadd.f32 %v4289, 0.0
        %v4298 = vadd.f32 %v4290, 0.0
        %v4299 = vadd.f32 %v4291, 0.0
        %v4300 = vadd.f32 %v4292, 0.0
        %v4301 = vadd.f32 %v4293, 0.0
        %v4302 = vadd.f32 %v4294, 0.0
        %v4303 = vadd.f32 %v4295, 0.0
        %4304 = vrot.lane.b32.xlu0 %v4226, 2
        %v4305 = vpop.permute.xlu0 %4304
        %4306 = vrot.lane.b32.xlu0 %v4227, 2
        %v4307 = vpop.permute.xlu0 %4306
        %4308 = vrot.lane.b32.xlu0 %v4228, 2
        %v4309 = vpop.permute.xlu0 %4308
        %4310 = vrot.lane.b32.xlu0 %v4229, 2
        %v4311 = vpop.permute.xlu0 %4310
        %4312 = vrot.lane.b32.xlu0 %v4230, 2
        %v4313 = vpop.permute.xlu0 %4312
        %4314 = vrot.lane.b32.xlu0 %v4231, 2
        %v4315 = vpop.permute.xlu0 %4314
        %4316 = vrot.lane.b32.xlu0 %v4232, 2
        %v4317 = vpop.permute.xlu0 %4316
        %4318 = vrot.lane.b32.xlu0 %v4233, 2
        %v4319 = vpop.permute.xlu0 %4318
        %4320 = vrot.lane.b32.xlu0 %v4234, 2
        %v4321 = vpop.permute.xlu0 %4320
        %4322 = vrot.lane.b32.xlu0 %v4235, 2
        %v4323 = vpop.permute.xlu0 %4322
        %v4324 = vmul.f32 %v4305, %v1948
        %v4325 = vmul.f32 %v4307, %v1948
        %v4326 = vmul.f32 %v4309, %v1948
        %v4327 = vmul.f32 %v4311, %v1948
        %v4328 = vmul.f32 %v4313, %v1948
        %v4329 = vmul.f32 %v4315, %v1948
        %v4330 = vmul.f32 %v4317, %v1948
        %v4331 = vmul.f32 %v4319, %v1948
        %v4332 = vadd.f32 %v4264, %v4324
        %v4333 = vadd.f32 %v4265, %v4325
        %v4334 = vadd.f32 %v4266, %v4326
        %v4335 = vadd.f32 %v4267, %v4327
        %v4336 = vadd.f32 %v4268, %v4328
        %v4337 = vadd.f32 %v4269, %v4329
        %v4338 = vadd.f32 %v4270, %v4330
        %v4339 = vadd.f32 %v4271, %v4331
        %v4340 = vmul.f32 %v4307, %v1965
        %v4341 = vmul.f32 %v4309, %v1965
        %v4342 = vmul.f32 %v4311, %v1965
        %v4343 = vmul.f32 %v4313, %v1965
        %v4344 = vmul.f32 %v4315, %v1965
        %v4345 = vmul.f32 %v4317, %v1965
        %v4346 = vmul.f32 %v4319, %v1965
        %v4347 = vmul.f32 %v4321, %v1965
        %v4348 = vadd.f32 %v4280, %v4340
        %v4349 = vadd.f32 %v4281, %v4341
        %v4350 = vadd.f32 %v4282, %v4342
        %v4351 = vadd.f32 %v4283, %v4343
        %v4352 = vadd.f32 %v4284, %v4344
        %v4353 = vadd.f32 %v4285, %v4345
        %v4354 = vadd.f32 %v4286, %v4346
        %v4355 = vadd.f32 %v4287, %v4347
        %v4356 = vmul.f32 %v4309, %v1982
        %v4357 = vmul.f32 %v4311, %v1982
        %v4358 = vmul.f32 %v4313, %v1982
        %v4359 = vmul.f32 %v4315, %v1982
        %v4360 = vmul.f32 %v4317, %v1982
        %v4361 = vmul.f32 %v4319, %v1982
        %v4362 = vmul.f32 %v4321, %v1982
        %v4363 = vmul.f32 %v4323, %v1982
        %v4364 = vadd.f32 %v4296, %v4356
        %v4365 = vadd.f32 %v4297, %v4357
        %v4366 = vadd.f32 %v4298, %v4358
        %v4367 = vadd.f32 %v4299, %v4359
        %v4368 = vadd.f32 %v4300, %v4360
        %v4369 = vadd.f32 %v4301, %v4361
        %v4370 = vadd.f32 %v4302, %v4362
        %v4371 = vadd.f32 %v4303, %v4363
        %4372 = vrot.lane.b32.xlu0 %v4226, 1
        %v4373 = vpop.permute.xlu0 %4372
        %4374 = vrot.lane.b32.xlu0 %v4227, 1
        %v4375 = vpop.permute.xlu0 %4374
        %4376 = vrot.lane.b32.xlu0 %v4228, 1
        %v4377 = vpop.permute.xlu0 %4376
        %4378 = vrot.lane.b32.xlu0 %v4229, 1
        %v4379 = vpop.permute.xlu0 %4378
        %4380 = vrot.lane.b32.xlu0 %v4230, 1
        %v4381 = vpop.permute.xlu0 %4380
        %4382 = vrot.lane.b32.xlu0 %v4231, 1
        %v4383 = vpop.permute.xlu0 %4382
        %4384 = vrot.lane.b32.xlu0 %v4232, 1
        %v4385 = vpop.permute.xlu0 %4384
        %4386 = vrot.lane.b32.xlu0 %v4233, 1
        %v4387 = vpop.permute.xlu0 %4386
        %4388 = vrot.lane.b32.xlu0 %v4234, 1
        %v4389 = vpop.permute.xlu0 %4388
        %4390 = vrot.lane.b32.xlu0 %v4235, 1
        %v4391 = vpop.permute.xlu0 %4390
        %v4392 = vmul.f32 %v4373, %v2019
        %v4393 = vmul.f32 %v4375, %v2019
        %v4394 = vmul.f32 %v4377, %v2019
        %v4395 = vmul.f32 %v4379, %v2019
        %v4396 = vmul.f32 %v4381, %v2019
        %v4397 = vmul.f32 %v4383, %v2019
        %v4398 = vmul.f32 %v4385, %v2019
        %v4399 = vmul.f32 %v4387, %v2019
        %v4400 = vadd.f32 %v4332, %v4392
        %v4401 = vadd.f32 %v4333, %v4393
        %v4402 = vadd.f32 %v4334, %v4394
        %v4403 = vadd.f32 %v4335, %v4395
        %v4404 = vadd.f32 %v4336, %v4396
        %v4405 = vadd.f32 %v4337, %v4397
        %v4406 = vadd.f32 %v4338, %v4398
        %v4407 = vadd.f32 %v4339, %v4399
        %v4408 = vmul.f32 %v4375, %v2036
        %v4409 = vmul.f32 %v4377, %v2036
        %v4410 = vmul.f32 %v4379, %v2036
        %v4411 = vmul.f32 %v4381, %v2036
        %v4412 = vmul.f32 %v4383, %v2036
        %v4413 = vmul.f32 %v4385, %v2036
        %v4414 = vmul.f32 %v4387, %v2036
        %v4415 = vmul.f32 %v4389, %v2036
        %v4416 = vadd.f32 %v4348, %v4408
        %v4417 = vadd.f32 %v4349, %v4409
        %v4418 = vadd.f32 %v4350, %v4410
        %v4419 = vadd.f32 %v4351, %v4411
        %v4420 = vadd.f32 %v4352, %v4412
        %v4421 = vadd.f32 %v4353, %v4413
        %v4422 = vadd.f32 %v4354, %v4414
        %v4423 = vadd.f32 %v4355, %v4415
        %v4424 = vmul.f32 %v4377, %v2053
        %v4425 = vmul.f32 %v4379, %v2053
        %v4426 = vmul.f32 %v4381, %v2053
        %v4427 = vmul.f32 %v4383, %v2053
        %v4428 = vmul.f32 %v4385, %v2053
        %v4429 = vmul.f32 %v4387, %v2053
        %v4430 = vmul.f32 %v4389, %v2053
        %v4431 = vmul.f32 %v4391, %v2053
        %v4432 = vadd.f32 %v4364, %v4424
        %v4433 = vadd.f32 %v4365, %v4425
        %v4434 = vadd.f32 %v4366, %v4426
        %v4435 = vadd.f32 %v4367, %v4427
        %v4436 = vadd.f32 %v4368, %v4428
        %v4437 = vadd.f32 %v4369, %v4429
        %v4438 = vadd.f32 %v4370, %v4430
        %v4439 = vadd.f32 %v4371, %v4431
        %v4440 = vmul.f32 %v4226, %v2070
        %v4441 = vmul.f32 %v4227, %v2070
        %v4442 = vmul.f32 %v4228, %v2070
        %v4443 = vmul.f32 %v4229, %v2070
        %v4444 = vmul.f32 %v4230, %v2070
        %v4445 = vmul.f32 %v4231, %v2070
        %v4446 = vmul.f32 %v4232, %v2070
        %v4447 = vmul.f32 %v4233, %v2070
        %v4448 = vadd.f32 %v4400, %v4440
        %v4449 = vadd.f32 %v4401, %v4441
        %v4450 = vadd.f32 %v4402, %v4442
        %v4451 = vadd.f32 %v4403, %v4443
        %v4452 = vadd.f32 %v4404, %v4444
        %v4453 = vadd.f32 %v4405, %v4445
        %v4454 = vadd.f32 %v4406, %v4446
        %v4455 = vadd.f32 %v4407, %v4447
        %v4456 = vmul.f32 %v4227, %v2087
        %v4457 = vmul.f32 %v4228, %v2087
        %v4458 = vmul.f32 %v4229, %v2087
        %v4459 = vmul.f32 %v4230, %v2087
        %v4460 = vmul.f32 %v4231, %v2087
        %v4461 = vmul.f32 %v4232, %v2087
        %v4462 = vmul.f32 %v4233, %v2087
        %v4463 = vmul.f32 %v4234, %v2087
        %v4464 = vadd.f32 %v4416, %v4456
        %v4465 = vadd.f32 %v4417, %v4457
        %v4466 = vadd.f32 %v4418, %v4458
        %v4467 = vadd.f32 %v4419, %v4459
        %v4468 = vadd.f32 %v4420, %v4460
        %v4469 = vadd.f32 %v4421, %v4461
        %v4470 = vadd.f32 %v4422, %v4462
        %v4471 = vadd.f32 %v4423, %v4463
        %v4472 = vmul.f32 %v4228, %v2104
        %v4473 = vmul.f32 %v4229, %v2104
        %v4474 = vmul.f32 %v4230, %v2104
        %v4475 = vmul.f32 %v4231, %v2104
        %v4476 = vmul.f32 %v4232, %v2104
        %v4477 = vmul.f32 %v4233, %v2104
        %v4478 = vmul.f32 %v4234, %v2104
        %v4479 = vmul.f32 %v4235, %v2104
        %v4480 = vadd.f32 %v4432, %v4472
        %v4481 = vadd.f32 %v4433, %v4473
        %v4482 = vadd.f32 %v4434, %v4474
        %v4483 = vadd.f32 %v4435, %v4475
        %v4484 = vadd.f32 %v4436, %v4476
        %v4485 = vadd.f32 %v4437, %v4477
        %v4486 = vadd.f32 %v4438, %v4478
        %v4487 = vadd.f32 %v4439, %v4479
        %4488 = vrot.lane.b32.xlu0 %v4226, 127
        %v4489 = vpop.permute.xlu0 %4488
        %4490 = vrot.lane.b32.xlu0 %v4227, 127
        %v4491 = vpop.permute.xlu0 %4490
        %4492 = vrot.lane.b32.xlu0 %v4228, 127
        %v4493 = vpop.permute.xlu0 %4492
        %4494 = vrot.lane.b32.xlu0 %v4229, 127
        %v4495 = vpop.permute.xlu0 %4494
        %4496 = vrot.lane.b32.xlu0 %v4230, 127
        %v4497 = vpop.permute.xlu0 %4496
        %4498 = vrot.lane.b32.xlu0 %v4231, 127
        %v4499 = vpop.permute.xlu0 %4498
        %4500 = vrot.lane.b32.xlu0 %v4232, 127
        %v4501 = vpop.permute.xlu0 %4500
        %4502 = vrot.lane.b32.xlu0 %v4233, 127
        %v4503 = vpop.permute.xlu0 %4502
        %4504 = vrot.lane.b32.xlu0 %v4234, 127
        %v4505 = vpop.permute.xlu0 %4504
        %4506 = vrot.lane.b32.xlu0 %v4235, 127
        %v4507 = vpop.permute.xlu0 %4506
        %v4508 = vmul.f32 %v4489, %v2141
        %v4509 = vmul.f32 %v4491, %v2141
        %v4510 = vmul.f32 %v4493, %v2141
        %v4511 = vmul.f32 %v4495, %v2141
        %v4512 = vmul.f32 %v4497, %v2141
        %v4513 = vmul.f32 %v4499, %v2141
        %v4514 = vmul.f32 %v4501, %v2141
        %v4515 = vmul.f32 %v4503, %v2141
        %v4516 = vadd.f32 %v4448, %v4508
        %v4517 = vadd.f32 %v4449, %v4509
        %v4518 = vadd.f32 %v4450, %v4510
        %v4519 = vadd.f32 %v4451, %v4511
        %v4520 = vadd.f32 %v4452, %v4512
        %v4521 = vadd.f32 %v4453, %v4513
        %v4522 = vadd.f32 %v4454, %v4514
        %v4523 = vadd.f32 %v4455, %v4515
        %v4524 = vmul.f32 %v4491, %v2158
        %v4525 = vmul.f32 %v4493, %v2158
        %v4526 = vmul.f32 %v4495, %v2158
        %v4527 = vmul.f32 %v4497, %v2158
        %v4528 = vmul.f32 %v4499, %v2158
        %v4529 = vmul.f32 %v4501, %v2158
        %v4530 = vmul.f32 %v4503, %v2158
        %v4531 = vmul.f32 %v4505, %v2158
        %v4532 = vadd.f32 %v4464, %v4524
        %v4533 = vadd.f32 %v4465, %v4525
        %v4534 = vadd.f32 %v4466, %v4526
        %v4535 = vadd.f32 %v4467, %v4527
        %v4536 = vadd.f32 %v4468, %v4528
        %v4537 = vadd.f32 %v4469, %v4529
        %v4538 = vadd.f32 %v4470, %v4530
        %v4539 = vadd.f32 %v4471, %v4531
        %v4540 = vmul.f32 %v4493, %v2175
        %v4541 = vmul.f32 %v4495, %v2175
        %v4542 = vmul.f32 %v4497, %v2175
        %v4543 = vmul.f32 %v4499, %v2175
        %v4544 = vmul.f32 %v4501, %v2175
        %v4545 = vmul.f32 %v4503, %v2175
        %v4546 = vmul.f32 %v4505, %v2175
        %v4547 = vmul.f32 %v4507, %v2175
        %v4548 = vadd.f32 %v4480, %v4540
        %v4549 = vadd.f32 %v4481, %v4541
        %v4550 = vadd.f32 %v4482, %v4542
        %v4551 = vadd.f32 %v4483, %v4543
        %v4552 = vadd.f32 %v4484, %v4544
        %v4553 = vadd.f32 %v4485, %v4545
        %v4554 = vadd.f32 %v4486, %v4546
        %v4555 = vadd.f32 %v4487, %v4547
        %4556 = vrot.lane.b32.xlu0 %v4226, 126
        %v4557 = vpop.permute.xlu0 %4556
        %4558 = vrot.lane.b32.xlu0 %v4227, 126
        %v4559 = vpop.permute.xlu0 %4558
        %4560 = vrot.lane.b32.xlu0 %v4228, 126
        %v4561 = vpop.permute.xlu0 %4560
        %4562 = vrot.lane.b32.xlu0 %v4229, 126
        %v4563 = vpop.permute.xlu0 %4562
        %4564 = vrot.lane.b32.xlu0 %v4230, 126
        %v4565 = vpop.permute.xlu0 %4564
        %4566 = vrot.lane.b32.xlu0 %v4231, 126
        %v4567 = vpop.permute.xlu0 %4566
        %4568 = vrot.lane.b32.xlu0 %v4232, 126
        %v4569 = vpop.permute.xlu0 %4568
        %4570 = vrot.lane.b32.xlu0 %v4233, 126
        %v4571 = vpop.permute.xlu0 %4570
        %4572 = vrot.lane.b32.xlu0 %v4234, 126
        %v4573 = vpop.permute.xlu0 %4572
        %4574 = vrot.lane.b32.xlu0 %v4235, 126
        %v4575 = vpop.permute.xlu0 %4574
        %v4576 = vmul.f32 %v4557, %v2212
        %v4577 = vmul.f32 %v4559, %v2212
        %v4578 = vmul.f32 %v4561, %v2212
        %v4579 = vmul.f32 %v4563, %v2212
        %v4580 = vmul.f32 %v4565, %v2212
        %v4581 = vmul.f32 %v4567, %v2212
        %v4582 = vmul.f32 %v4569, %v2212
        %v4583 = vmul.f32 %v4571, %v2212
        %v4584 = vadd.f32 %v4516, %v4576
        %v4585 = vadd.f32 %v4517, %v4577
        %v4586 = vadd.f32 %v4518, %v4578
        %v4587 = vadd.f32 %v4519, %v4579
        %v4588 = vadd.f32 %v4520, %v4580
        %v4589 = vadd.f32 %v4521, %v4581
        %v4590 = vadd.f32 %v4522, %v4582
        %v4591 = vadd.f32 %v4523, %v4583
        %v4592 = vmul.f32 %v4559, %v2229
        %v4593 = vmul.f32 %v4561, %v2229
        %v4594 = vmul.f32 %v4563, %v2229
        %v4595 = vmul.f32 %v4565, %v2229
        %v4596 = vmul.f32 %v4567, %v2229
        %v4597 = vmul.f32 %v4569, %v2229
        %v4598 = vmul.f32 %v4571, %v2229
        %v4599 = vmul.f32 %v4573, %v2229
        %v4600 = vadd.f32 %v4532, %v4592
        %v4601 = vadd.f32 %v4533, %v4593
        %v4602 = vadd.f32 %v4534, %v4594
        %v4603 = vadd.f32 %v4535, %v4595
        %v4604 = vadd.f32 %v4536, %v4596
        %v4605 = vadd.f32 %v4537, %v4597
        %v4606 = vadd.f32 %v4538, %v4598
        %v4607 = vadd.f32 %v4539, %v4599
        %v4608 = vmul.f32 %v4561, %v2246
        %v4609 = vmul.f32 %v4563, %v2246
        %v4610 = vmul.f32 %v4565, %v2246
        %v4611 = vmul.f32 %v4567, %v2246
        %v4612 = vmul.f32 %v4569, %v2246
        %v4613 = vmul.f32 %v4571, %v2246
        %v4614 = vmul.f32 %v4573, %v2246
        %v4615 = vmul.f32 %v4575, %v2246
        %v4616 = vadd.f32 %v4548, %v4608
        %v4617 = vadd.f32 %v4549, %v4609
        %v4618 = vadd.f32 %v4550, %v4610
        %v4619 = vadd.f32 %v4551, %v4611
        %v4620 = vadd.f32 %v4552, %v4612
        %v4621 = vadd.f32 %v4553, %v4613
        %v4622 = vadd.f32 %v4554, %v4614
        %v4623 = vadd.f32 %v4555, %v4615
        %4624 = vrot.lane.b32.xlu0 %v4226, 125
        %v4625 = vpop.permute.xlu0 %4624
        %4626 = vrot.lane.b32.xlu0 %v4227, 125
        %v4627 = vpop.permute.xlu0 %4626
        %4628 = vrot.lane.b32.xlu0 %v4228, 125
        %v4629 = vpop.permute.xlu0 %4628
        %4630 = vrot.lane.b32.xlu0 %v4229, 125
        %v4631 = vpop.permute.xlu0 %4630
        %4632 = vrot.lane.b32.xlu0 %v4230, 125
        %v4633 = vpop.permute.xlu0 %4632
        %4634 = vrot.lane.b32.xlu0 %v4231, 125
        %v4635 = vpop.permute.xlu0 %4634
        %4636 = vrot.lane.b32.xlu0 %v4232, 125
        %v4637 = vpop.permute.xlu0 %4636
        %4638 = vrot.lane.b32.xlu0 %v4233, 125
        %v4639 = vpop.permute.xlu0 %4638
        %4640 = vrot.lane.b32.xlu0 %v4234, 125
        %v4641 = vpop.permute.xlu0 %4640
        %4642 = vrot.lane.b32.xlu0 %v4235, 125
        %v4643 = vpop.permute.xlu0 %4642
        %v4644 = vmul.f32 %v4625, %v2283
        %v4645 = vmul.f32 %v4627, %v2283
        %v4646 = vmul.f32 %v4629, %v2283
        %v4647 = vmul.f32 %v4631, %v2283
        %v4648 = vmul.f32 %v4633, %v2283
        %v4649 = vmul.f32 %v4635, %v2283
        %v4650 = vmul.f32 %v4637, %v2283
        %v4651 = vmul.f32 %v4639, %v2283
        %v4652 = vadd.f32 %v4584, %v4644
        %v4653 = vadd.f32 %v4585, %v4645
        %v4654 = vadd.f32 %v4586, %v4646
        %v4655 = vadd.f32 %v4587, %v4647
        %v4656 = vadd.f32 %v4588, %v4648
        %v4657 = vadd.f32 %v4589, %v4649
        %v4658 = vadd.f32 %v4590, %v4650
        %v4659 = vadd.f32 %v4591, %v4651
        %v4660 = vmul.f32 %v4627, %v2300
        %v4661 = vmul.f32 %v4629, %v2300
        %v4662 = vmul.f32 %v4631, %v2300
        %v4663 = vmul.f32 %v4633, %v2300
        %v4664 = vmul.f32 %v4635, %v2300
        %v4665 = vmul.f32 %v4637, %v2300
        %v4666 = vmul.f32 %v4639, %v2300
        %v4667 = vmul.f32 %v4641, %v2300
        %v4668 = vadd.f32 %v4600, %v4660
        %v4669 = vadd.f32 %v4601, %v4661
        %v4670 = vadd.f32 %v4602, %v4662
        %v4671 = vadd.f32 %v4603, %v4663
        %v4672 = vadd.f32 %v4604, %v4664
        %v4673 = vadd.f32 %v4605, %v4665
        %v4674 = vadd.f32 %v4606, %v4666
        %v4675 = vadd.f32 %v4607, %v4667
        %v4676 = vmul.f32 %v4629, %v2317
        %v4677 = vmul.f32 %v4631, %v2317
        %v4678 = vmul.f32 %v4633, %v2317
        %v4679 = vmul.f32 %v4635, %v2317
        %v4680 = vmul.f32 %v4637, %v2317
        %v4681 = vmul.f32 %v4639, %v2317
        %v4682 = vmul.f32 %v4641, %v2317
        %v4683 = vmul.f32 %v4643, %v2317
        %v4684 = vadd.f32 %v4616, %v4676
        %v4685 = vadd.f32 %v4617, %v4677
        %v4686 = vadd.f32 %v4618, %v4678
        %v4687 = vadd.f32 %v4619, %v4679
        %v4688 = vadd.f32 %v4620, %v4680
        %v4689 = vadd.f32 %v4621, %v4681
        %v4690 = vadd.f32 %v4622, %v4682
        %v4691 = vadd.f32 %v4623, %v4683
        %v4692 = vld [vmem:[#allocation2 + $0x1] sm:$0xff]
        %v4693 = vld [vmem:[#allocation2 + $0x11] sm:$0xff]
        %v4694 = vld [vmem:[#allocation2 + $0x21] sm:$0xff]
        %v4695 = vld [vmem:[#allocation2 + $0x31] sm:$0xff]
        %v4696 = vld [vmem:[#allocation2 + $0x41] sm:$0xff]
        %v4697 = vld [vmem:[#allocation2 + $0x51] sm:$0xff]
        %v4698 = vld [vmem:[#allocation2 + $0x61] sm:$0xff]
        %v4699 = vld [vmem:[#allocation2 + $0x71] sm:$0xff]
        %v4700 = vld [vmem:[#allocation2 + $0x81] sm:$0xff]
        %v4701 = vld [vmem:[#allocation2 + $0x91] sm:$0xff]
        %4702 = vrot.lane.b32.xlu0 %v4692, 3
        %v4703 = vpop.permute.xlu0 %4702
        %4704 = vrot.lane.b32.xlu0 %v4693, 3
        %v4705 = vpop.permute.xlu0 %4704
        %4706 = vrot.lane.b32.xlu0 %v4694, 3
        %v4707 = vpop.permute.xlu0 %4706
        %4708 = vrot.lane.b32.xlu0 %v4695, 3
        %v4709 = vpop.permute.xlu0 %4708
        %4710 = vrot.lane.b32.xlu0 %v4696, 3
        %v4711 = vpop.permute.xlu0 %4710
        %4712 = vrot.lane.b32.xlu0 %v4697, 3
        %v4713 = vpop.permute.xlu0 %4712
        %4714 = vrot.lane.b32.xlu0 %v4698, 3
        %v4715 = vpop.permute.xlu0 %4714
        %4716 = vrot.lane.b32.xlu0 %v4699, 3
        %v4717 = vpop.permute.xlu0 %4716
        %4718 = vrot.lane.b32.xlu0 %v4700, 3
        %v4719 = vpop.permute.xlu0 %4718
        %4720 = vrot.lane.b32.xlu0 %v4701, 3
        %v4721 = vpop.permute.xlu0 %4720
        %v4722 = vmul.f32 %v4703, %v2364
        %v4723 = vmul.f32 %v4705, %v2364
        %v4724 = vmul.f32 %v4707, %v2364
        %v4725 = vmul.f32 %v4709, %v2364
        %v4726 = vmul.f32 %v4711, %v2364
        %v4727 = vmul.f32 %v4713, %v2364
        %v4728 = vmul.f32 %v4715, %v2364
        %v4729 = vmul.f32 %v4717, %v2364
        %v4730 = vadd.f32 %v4652, %v4722
        %v4731 = vadd.f32 %v4653, %v4723
        %v4732 = vadd.f32 %v4654, %v4724
        %v4733 = vadd.f32 %v4655, %v4725
        %v4734 = vadd.f32 %v4656, %v4726
        %v4735 = vadd.f32 %v4657, %v4727
        %v4736 = vadd.f32 %v4658, %v4728
        %v4737 = vadd.f32 %v4659, %v4729
        %v4738 = vmul.f32 %v4705, %v2381
        %v4739 = vmul.f32 %v4707, %v2381
        %v4740 = vmul.f32 %v4709, %v2381
        %v4741 = vmul.f32 %v4711, %v2381
        %v4742 = vmul.f32 %v4713, %v2381
        %v4743 = vmul.f32 %v4715, %v2381
        %v4744 = vmul.f32 %v4717, %v2381
        %v4745 = vmul.f32 %v4719, %v2381
        %v4746 = vadd.f32 %v4668, %v4738
        %v4747 = vadd.f32 %v4669, %v4739
        %v4748 = vadd.f32 %v4670, %v4740
        %v4749 = vadd.f32 %v4671, %v4741
        %v4750 = vadd.f32 %v4672, %v4742
        %v4751 = vadd.f32 %v4673, %v4743
        %v4752 = vadd.f32 %v4674, %v4744
        %v4753 = vadd.f32 %v4675, %v4745
        %v4754 = vmul.f32 %v4707, %v2398
        %v4755 = vmul.f32 %v4709, %v2398
        %v4756 = vmul.f32 %v4711, %v2398
        %v4757 = vmul.f32 %v4713, %v2398
        %v4758 = vmul.f32 %v4715, %v2398
        %v4759 = vmul.f32 %v4717, %v2398
        %v4760 = vmul.f32 %v4719, %v2398
        %v4761 = vmul.f32 %v4721, %v2398
        %v4762 = vadd.f32 %v4684, %v4754
        %v4763 = vadd.f32 %v4685, %v4755
        %v4764 = vadd.f32 %v4686, %v4756
        %v4765 = vadd.f32 %v4687, %v4757
        %v4766 = vadd.f32 %v4688, %v4758
        %v4767 = vadd.f32 %v4689, %v4759
        %v4768 = vadd.f32 %v4690, %v4760
        %v4769 = vadd.f32 %v4691, %v4761
        %4770 = vrot.lane.b32.xlu0 %v4692, 2
        %v4771 = vpop.permute.xlu0 %4770
        %4772 = vrot.lane.b32.xlu0 %v4693, 2
        %v4773 = vpop.permute.xlu0 %4772
        %4774 = vrot.lane.b32.xlu0 %v4694, 2
        %v4775 = vpop.permute.xlu0 %4774
        %4776 = vrot.lane.b32.xlu0 %v4695, 2
        %v4777 = vpop.permute.xlu0 %4776
        %4778 = vrot.lane.b32.xlu0 %v4696, 2
        %v4779 = vpop.permute.xlu0 %4778
        %4780 = vrot.lane.b32.xlu0 %v4697, 2
        %v4781 = vpop.permute.xlu0 %4780
        %4782 = vrot.lane.b32.xlu0 %v4698, 2
        %v4783 = vpop.permute.xlu0 %4782
        %4784 = vrot.lane.b32.xlu0 %v4699, 2
        %v4785 = vpop.permute.xlu0 %4784
        %4786 = vrot.lane.b32.xlu0 %v4700, 2
        %v4787 = vpop.permute.xlu0 %4786
        %4788 = vrot.lane.b32.xlu0 %v4701, 2
        %v4789 = vpop.permute.xlu0 %4788
        %v4790 = vmul.f32 %v4771, %v2435
        %v4791 = vmul.f32 %v4773, %v2435
        %v4792 = vmul.f32 %v4775, %v2435
        %v4793 = vmul.f32 %v4777, %v2435
        %v4794 = vmul.f32 %v4779, %v2435
        %v4795 = vmul.f32 %v4781, %v2435
        %v4796 = vmul.f32 %v4783, %v2435
        %v4797 = vmul.f32 %v4785, %v2435
        %v4798 = vadd.f32 %v4730, %v4790
        %v4799 = vadd.f32 %v4731, %v4791
        %v4800 = vadd.f32 %v4732, %v4792
        %v4801 = vadd.f32 %v4733, %v4793
        %v4802 = vadd.f32 %v4734, %v4794
        %v4803 = vadd.f32 %v4735, %v4795
        %v4804 = vadd.f32 %v4736, %v4796
        %v4805 = vadd.f32 %v4737, %v4797
        %v4806 = vmul.f32 %v4773, %v2452
        %v4807 = vmul.f32 %v4775, %v2452
        %v4808 = vmul.f32 %v4777, %v2452
        %v4809 = vmul.f32 %v4779, %v2452
        %v4810 = vmul.f32 %v4781, %v2452
        %v4811 = vmul.f32 %v4783, %v2452
        %v4812 = vmul.f32 %v4785, %v2452
        %v4813 = vmul.f32 %v4787, %v2452
        %v4814 = vadd.f32 %v4746, %v4806
        %v4815 = vadd.f32 %v4747, %v4807
        %v4816 = vadd.f32 %v4748, %v4808
        %v4817 = vadd.f32 %v4749, %v4809
        %v4818 = vadd.f32 %v4750, %v4810
        %v4819 = vadd.f32 %v4751, %v4811
        %v4820 = vadd.f32 %v4752, %v4812
        %v4821 = vadd.f32 %v4753, %v4813
        %v4822 = vmul.f32 %v4775, %v2469
        %v4823 = vmul.f32 %v4777, %v2469
        %v4824 = vmul.f32 %v4779, %v2469
        %v4825 = vmul.f32 %v4781, %v2469
        %v4826 = vmul.f32 %v4783, %v2469
        %v4827 = vmul.f32 %v4785, %v2469
        %v4828 = vmul.f32 %v4787, %v2469
        %v4829 = vmul.f32 %v4789, %v2469
        %v4830 = vadd.f32 %v4762, %v4822
        %v4831 = vadd.f32 %v4763, %v4823
        %v4832 = vadd.f32 %v4764, %v4824
        %v4833 = vadd.f32 %v4765, %v4825
        %v4834 = vadd.f32 %v4766, %v4826
        %v4835 = vadd.f32 %v4767, %v4827
        %v4836 = vadd.f32 %v4768, %v4828
        %v4837 = vadd.f32 %v4769, %v4829
        %4838 = vrot.lane.b32.xlu0 %v4692, 1
        %v4839 = vpop.permute.xlu0 %4838
        %4840 = vrot.lane.b32.xlu0 %v4693, 1
        %v4841 = vpop.permute.xlu0 %4840
        %4842 = vrot.lane.b32.xlu0 %v4694, 1
        %v4843 = vpop.permute.xlu0 %4842
        %4844 = vrot.lane.b32.xlu0 %v4695, 1
        %v4845 = vpop.permute.xlu0 %4844
        %4846 = vrot.lane.b32.xlu0 %v4696, 1
        %v4847 = vpop.permute.xlu0 %4846
        %4848 = vrot.lane.b32.xlu0 %v4697, 1
        %v4849 = vpop.permute.xlu0 %4848
        %4850 = vrot.lane.b32.xlu0 %v4698, 1
        %v4851 = vpop.permute.xlu0 %4850
        %4852 = vrot.lane.b32.xlu0 %v4699, 1
        %v4853 = vpop.permute.xlu0 %4852
        %4854 = vrot.lane.b32.xlu0 %v4700, 1
        %v4855 = vpop.permute.xlu0 %4854
        %4856 = vrot.lane.b32.xlu0 %v4701, 1
        %v4857 = vpop.permute.xlu0 %4856
        %v4858 = vmul.f32 %v4839, %v2506
        %v4859 = vmul.f32 %v4841, %v2506
        %v4860 = vmul.f32 %v4843, %v2506
        %v4861 = vmul.f32 %v4845, %v2506
        %v4862 = vmul.f32 %v4847, %v2506
        %v4863 = vmul.f32 %v4849, %v2506
        %v4864 = vmul.f32 %v4851, %v2506
        %v4865 = vmul.f32 %v4853, %v2506
        %v4866 = vadd.f32 %v4798, %v4858
        %v4867 = vadd.f32 %v4799, %v4859
        %v4868 = vadd.f32 %v4800, %v4860
        %v4869 = vadd.f32 %v4801, %v4861
        %v4870 = vadd.f32 %v4802, %v4862
        %v4871 = vadd.f32 %v4803, %v4863
        %v4872 = vadd.f32 %v4804, %v4864
        %v4873 = vadd.f32 %v4805, %v4865
        %v4874 = vmul.f32 %v4841, %v2523
        %v4875 = vmul.f32 %v4843, %v2523
        %v4876 = vmul.f32 %v4845, %v2523
        %v4877 = vmul.f32 %v4847, %v2523
        %v4878 = vmul.f32 %v4849, %v2523
        %v4879 = vmul.f32 %v4851, %v2523
        %v4880 = vmul.f32 %v4853, %v2523
        %v4881 = vmul.f32 %v4855, %v2523
        %v4882 = vadd.f32 %v4814, %v4874
        %v4883 = vadd.f32 %v4815, %v4875
        %v4884 = vadd.f32 %v4816, %v4876
        %v4885 = vadd.f32 %v4817, %v4877
        %v4886 = vadd.f32 %v4818, %v4878
        %v4887 = vadd.f32 %v4819, %v4879
        %v4888 = vadd.f32 %v4820, %v4880
        %v4889 = vadd.f32 %v4821, %v4881
        %v4890 = vmul.f32 %v4843, %v2540
        %v4891 = vmul.f32 %v4845, %v2540
        %v4892 = vmul.f32 %v4847, %v2540
        %v4893 = vmul.f32 %v4849, %v2540
        %v4894 = vmul.f32 %v4851, %v2540
        %v4895 = vmul.f32 %v4853, %v2540
        %v4896 = vmul.f32 %v4855, %v2540
        %v4897 = vmul.f32 %v4857, %v2540
        %v4898 = vadd.f32 %v4830, %v4890
        %v4899 = vadd.f32 %v4831, %v4891
        %v4900 = vadd.f32 %v4832, %v4892
        %v4901 = vadd.f32 %v4833, %v4893
        %v4902 = vadd.f32 %v4834, %v4894
        %v4903 = vadd.f32 %v4835, %v4895
        %v4904 = vadd.f32 %v4836, %v4896
        %v4905 = vadd.f32 %v4837, %v4897
        %v4906 = vmul.f32 %v4692, %v2557
        %v4907 = vmul.f32 %v4693, %v2557
        %v4908 = vmul.f32 %v4694, %v2557
        %v4909 = vmul.f32 %v4695, %v2557
        %v4910 = vmul.f32 %v4696, %v2557
        %v4911 = vmul.f32 %v4697, %v2557
        %v4912 = vmul.f32 %v4698, %v2557
        %v4913 = vmul.f32 %v4699, %v2557
        %v4914 = vadd.f32 %v4866, %v4906
        %v4915 = vadd.f32 %v4867, %v4907
        %v4916 = vadd.f32 %v4868, %v4908
        %v4917 = vadd.f32 %v4869, %v4909
        %v4918 = vadd.f32 %v4870, %v4910
        %v4919 = vadd.f32 %v4871, %v4911
        %v4920 = vadd.f32 %v4872, %v4912
        %v4921 = vadd.f32 %v4873, %v4913
        %v4922 = vmul.f32 %v4693, %v2574
        %v4923 = vmul.f32 %v4694, %v2574
        %v4924 = vmul.f32 %v4695, %v2574
        %v4925 = vmul.f32 %v4696, %v2574
        %v4926 = vmul.f32 %v4697, %v2574
        %v4927 = vmul.f32 %v4698, %v2574
        %v4928 = vmul.f32 %v4699, %v2574
        %v4929 = vmul.f32 %v4700, %v2574
        %v4930 = vadd.f32 %v4882, %v4922
        %v4931 = vadd.f32 %v4883, %v4923
        %v4932 = vadd.f32 %v4884, %v4924
        %v4933 = vadd.f32 %v4885, %v4925
        %v4934 = vadd.f32 %v4886, %v4926
        %v4935 = vadd.f32 %v4887, %v4927
        %v4936 = vadd.f32 %v4888, %v4928
        %v4937 = vadd.f32 %v4889, %v4929
        %v4938 = vmul.f32 %v4694, %v2591
        %v4939 = vmul.f32 %v4695, %v2591
        %v4940 = vmul.f32 %v4696, %v2591
        %v4941 = vmul.f32 %v4697, %v2591
        %v4942 = vmul.f32 %v4698, %v2591
        %v4943 = vmul.f32 %v4699, %v2591
        %v4944 = vmul.f32 %v4700, %v2591
        %v4945 = vmul.f32 %v4701, %v2591
        %v4946 = vadd.f32 %v4898, %v4938
        %v4947 = vadd.f32 %v4899, %v4939
        %v4948 = vadd.f32 %v4900, %v4940
        %v4949 = vadd.f32 %v4901, %v4941
        %v4950 = vadd.f32 %v4902, %v4942
        %v4951 = vadd.f32 %v4903, %v4943
        %v4952 = vadd.f32 %v4904, %v4944
        %v4953 = vadd.f32 %v4905, %v4945
        %4954 = vrot.lane.b32.xlu0 %v4692, 127
        %v4955 = vpop.permute.xlu0 %4954
        %4956 = vrot.lane.b32.xlu0 %v4693, 127
        %v4957 = vpop.permute.xlu0 %4956
        %4958 = vrot.lane.b32.xlu0 %v4694, 127
        %v4959 = vpop.permute.xlu0 %4958
        %4960 = vrot.lane.b32.xlu0 %v4695, 127
        %v4961 = vpop.permute.xlu0 %4960
        %4962 = vrot.lane.b32.xlu0 %v4696, 127
        %v4963 = vpop.permute.xlu0 %4962
        %4964 = vrot.lane.b32.xlu0 %v4697, 127
        %v4965 = vpop.permute.xlu0 %4964
        %4966 = vrot.lane.b32.xlu0 %v4698, 127
        %v4967 = vpop.permute.xlu0 %4966
        %4968 = vrot.lane.b32.xlu0 %v4699, 127
        %v4969 = vpop.permute.xlu0 %4968
        %4970 = vrot.lane.b32.xlu0 %v4700, 127
        %v4971 = vpop.permute.xlu0 %4970
        %4972 = vrot.lane.b32.xlu0 %v4701, 127
        %v4973 = vpop.permute.xlu0 %4972
        %v4974 = vmul.f32 %v4955, %v2628
        %v4975 = vmul.f32 %v4957, %v2628
        %v4976 = vmul.f32 %v4959, %v2628
        %v4977 = vmul.f32 %v4961, %v2628
        %v4978 = vmul.f32 %v4963, %v2628
        %v4979 = vmul.f32 %v4965, %v2628
        %v4980 = vmul.f32 %v4967, %v2628
        %v4981 = vmul.f32 %v4969, %v2628
        %v4982 = vadd.f32 %v4914, %v4974
        %v4983 = vadd.f32 %v4915, %v4975
        %v4984 = vadd.f32 %v4916, %v4976
        %v4985 = vadd.f32 %v4917, %v4977
        %v4986 = vadd.f32 %v4918, %v4978
        %v4987 = vadd.f32 %v4919, %v4979
        %v4988 = vadd.f32 %v4920, %v4980
        %v4989 = vadd.f32 %v4921, %v4981
        %v4990 = vmul.f32 %v4957, %v2645
        %v4991 = vmul.f32 %v4959, %v2645
        %v4992 = vmul.f32 %v4961, %v2645
        %v4993 = vmul.f32 %v4963, %v2645
        %v4994 = vmul.f32 %v4965, %v2645
        %v4995 = vmul.f32 %v4967, %v2645
        %v4996 = vmul.f32 %v4969, %v2645
        %v4997 = vmul.f32 %v4971, %v2645
        %v4998 = vadd.f32 %v4930, %v4990
        %v4999 = vadd.f32 %v4931, %v4991
        %v5000 = vadd.f32 %v4932, %v4992
        %v5001 = vadd.f32 %v4933, %v4993
        %v5002 = vadd.f32 %v4934, %v4994
        %v5003 = vadd.f32 %v4935, %v4995
        %v5004 = vadd.f32 %v4936, %v4996
        %v5005 = vadd.f32 %v4937, %v4997
        %v5006 = vmul.f32 %v4959, %v2662
        %v5007 = vmul.f32 %v4961, %v2662
        %v5008 = vmul.f32 %v4963, %v2662
        %v5009 = vmul.f32 %v4965, %v2662
        %v5010 = vmul.f32 %v4967, %v2662
        %v5011 = vmul.f32 %v4969, %v2662
        %v5012 = vmul.f32 %v4971, %v2662
        %v5013 = vmul.f32 %v4973, %v2662
        %v5014 = vadd.f32 %v4946, %v5006
        %v5015 = vadd.f32 %v4947, %v5007
        %v5016 = vadd.f32 %v4948, %v5008
        %v5017 = vadd.f32 %v4949, %v5009
        %v5018 = vadd.f32 %v4950, %v5010
        %v5019 = vadd.f32 %v4951, %v5011
        %v5020 = vadd.f32 %v4952, %v5012
        %v5021 = vadd.f32 %v4953, %v5013
        %5022 = vrot.lane.b32.xlu0 %v4692, 126
        %v5023 = vpop.permute.xlu0 %5022
        %5024 = vrot.lane.b32.xlu0 %v4693, 126
        %v5025 = vpop.permute.xlu0 %5024
        %5026 = vrot.lane.b32.xlu0 %v4694, 126
        %v5027 = vpop.permute.xlu0 %5026
        %5028 = vrot.lane.b32.xlu0 %v4695, 126
        %v5029 = vpop.permute.xlu0 %5028
        %5030 = vrot.lane.b32.xlu0 %v4696, 126
        %v5031 = vpop.permute.xlu0 %5030
        %5032 = vrot.lane.b32.xlu0 %v4697, 126
        %v5033 = vpop.permute.xlu0 %5032
        %5034 = vrot.lane.b32.xlu0 %v4698, 126
        %v5035 = vpop.permute.xlu0 %5034
        %5036 = vrot.lane.b32.xlu0 %v4699, 126
        %v5037 = vpop.permute.xlu0 %5036
        %5038 = vrot.lane.b32.xlu0 %v4700, 126
        %v5039 = vpop.permute.xlu0 %5038
        %5040 = vrot.lane.b32.xlu0 %v4701, 126
        %v5041 = vpop.permute.xlu0 %5040
        %v5042 = vmul.f32 %v5023, %v2699
        %v5043 = vmul.f32 %v5025, %v2699
        %v5044 = vmul.f32 %v5027, %v2699
        %v5045 = vmul.f32 %v5029, %v2699
        %v5046 = vmul.f32 %v5031, %v2699
        %v5047 = vmul.f32 %v5033, %v2699
        %v5048 = vmul.f32 %v5035, %v2699
        %v5049 = vmul.f32 %v5037, %v2699
        %v5050 = vadd.f32 %v4982, %v5042
        %v5051 = vadd.f32 %v4983, %v5043
        %v5052 = vadd.f32 %v4984, %v5044
        %v5053 = vadd.f32 %v4985, %v5045
        %v5054 = vadd.f32 %v4986, %v5046
        %v5055 = vadd.f32 %v4987, %v5047
        %v5056 = vadd.f32 %v4988, %v5048
        %v5057 = vadd.f32 %v4989, %v5049
        %v5058 = vmul.f32 %v5025, %v2716
        %v5059 = vmul.f32 %v5027, %v2716
        %v5060 = vmul.f32 %v5029, %v2716
        %v5061 = vmul.f32 %v5031, %v2716
        %v5062 = vmul.f32 %v5033, %v2716
        %v5063 = vmul.f32 %v5035, %v2716
        %v5064 = vmul.f32 %v5037, %v2716
        %v5065 = vmul.f32 %v5039, %v2716
        %v5066 = vadd.f32 %v4998, %v5058
        %v5067 = vadd.f32 %v4999, %v5059
        %v5068 = vadd.f32 %v5000, %v5060
        %v5069 = vadd.f32 %v5001, %v5061
        %v5070 = vadd.f32 %v5002, %v5062
        %v5071 = vadd.f32 %v5003, %v5063
        %v5072 = vadd.f32 %v5004, %v5064
        %v5073 = vadd.f32 %v5005, %v5065
        %v5074 = vmul.f32 %v5027, %v2733
        %v5075 = vmul.f32 %v5029, %v2733
        %v5076 = vmul.f32 %v5031, %v2733
        %v5077 = vmul.f32 %v5033, %v2733
        %v5078 = vmul.f32 %v5035, %v2733
        %v5079 = vmul.f32 %v5037, %v2733
        %v5080 = vmul.f32 %v5039, %v2733
        %v5081 = vmul.f32 %v5041, %v2733
        %v5082 = vadd.f32 %v5014, %v5074
        %v5083 = vadd.f32 %v5015, %v5075
        %v5084 = vadd.f32 %v5016, %v5076
        %v5085 = vadd.f32 %v5017, %v5077
        %v5086 = vadd.f32 %v5018, %v5078
        %v5087 = vadd.f32 %v5019, %v5079
        %v5088 = vadd.f32 %v5020, %v5080
        %v5089 = vadd.f32 %v5021, %v5081
        %5090 = vrot.lane.b32.xlu0 %v4692, 125
        %v5091 = vpop.permute.xlu0 %5090
        %5092 = vrot.lane.b32.xlu0 %v4693, 125
        %v5093 = vpop.permute.xlu0 %5092
        %5094 = vrot.lane.b32.xlu0 %v4694, 125
        %v5095 = vpop.permute.xlu0 %5094
        %5096 = vrot.lane.b32.xlu0 %v4695, 125
        %v5097 = vpop.permute.xlu0 %5096
        %5098 = vrot.lane.b32.xlu0 %v4696, 125
        %v5099 = vpop.permute.xlu0 %5098
        %5100 = vrot.lane.b32.xlu0 %v4697, 125
        %v5101 = vpop.permute.xlu0 %5100
        %5102 = vrot.lane.b32.xlu0 %v4698, 125
        %v5103 = vpop.permute.xlu0 %5102
        %5104 = vrot.lane.b32.xlu0 %v4699, 125
        %v5105 = vpop.permute.xlu0 %5104
        %5106 = vrot.lane.b32.xlu0 %v4700, 125
        %v5107 = vpop.permute.xlu0 %5106
        %5108 = vrot.lane.b32.xlu0 %v4701, 125
        %v5109 = vpop.permute.xlu0 %5108
        %v5110 = vmul.f32 %v5091, %v2770
        %v5111 = vmul.f32 %v5093, %v2770
        %v5112 = vmul.f32 %v5095, %v2770
        %v5113 = vmul.f32 %v5097, %v2770
        %v5114 = vmul.f32 %v5099, %v2770
        %v5115 = vmul.f32 %v5101, %v2770
        %v5116 = vmul.f32 %v5103, %v2770
        %v5117 = vmul.f32 %v5105, %v2770
        %v5118 = vadd.f32 %v5050, %v5110
        %v5119 = vadd.f32 %v5051, %v5111
        %v5120 = vadd.f32 %v5052, %v5112
        %v5121 = vadd.f32 %v5053, %v5113
        %v5122 = vadd.f32 %v5054, %v5114
        %v5123 = vadd.f32 %v5055, %v5115
        %v5124 = vadd.f32 %v5056, %v5116
        %v5125 = vadd.f32 %v5057, %v5117
        %v5126 = vmul.f32 %v5093, %v2787
        %v5127 = vmul.f32 %v5095, %v2787
        %v5128 = vmul.f32 %v5097, %v2787
        %v5129 = vmul.f32 %v5099, %v2787
        %v5130 = vmul.f32 %v5101, %v2787
        %v5131 = vmul.f32 %v5103, %v2787
        %v5132 = vmul.f32 %v5105, %v2787
        %v5133 = vmul.f32 %v5107, %v2787
        %v5134 = vadd.f32 %v5066, %v5126
        %v5135 = vadd.f32 %v5067, %v5127
        %v5136 = vadd.f32 %v5068, %v5128
        %v5137 = vadd.f32 %v5069, %v5129
        %v5138 = vadd.f32 %v5070, %v5130
        %v5139 = vadd.f32 %v5071, %v5131
        %v5140 = vadd.f32 %v5072, %v5132
        %v5141 = vadd.f32 %v5073, %v5133
        %v5142 = vmul.f32 %v5095, %v2804
        %v5143 = vmul.f32 %v5097, %v2804
        %v5144 = vmul.f32 %v5099, %v2804
        %v5145 = vmul.f32 %v5101, %v2804
        %v5146 = vmul.f32 %v5103, %v2804
        %v5147 = vmul.f32 %v5105, %v2804
        %v5148 = vmul.f32 %v5107, %v2804
        %v5149 = vmul.f32 %v5109, %v2804
        %v5150 = vadd.f32 %v5082, %v5142
        %v5151 = vadd.f32 %v5083, %v5143
        %v5152 = vadd.f32 %v5084, %v5144
        %v5153 = vadd.f32 %v5085, %v5145
        %v5154 = vadd.f32 %v5086, %v5146
        %v5155 = vadd.f32 %v5087, %v5147
        %v5156 = vadd.f32 %v5088, %v5148
        %v5157 = vadd.f32 %v5089, %v5149
        %v5158 = vld [vmem:[#allocation2 + $0x2] sm:$0xff]
        %v5159 = vld [vmem:[#allocation2 + $0x12] sm:$0xff]
        %v5160 = vld [vmem:[#allocation2 + $0x22] sm:$0xff]
        %v5161 = vld [vmem:[#allocation2 + $0x32] sm:$0xff]
        %v5162 = vld [vmem:[#allocation2 + $0x42] sm:$0xff]
        %v5163 = vld [vmem:[#allocation2 + $0x52] sm:$0xff]
        %v5164 = vld [vmem:[#allocation2 + $0x62] sm:$0xff]
        %v5165 = vld [vmem:[#allocation2 + $0x72] sm:$0xff]
        %v5166 = vld [vmem:[#allocation2 + $0x82] sm:$0xff]
        %v5167 = vld [vmem:[#allocation2 + $0x92] sm:$0xff]
        %5168 = vrot.lane.b32.xlu0 %v5158, 3
        %v5169 = vpop.permute.xlu0 %5168
        %5170 = vrot.lane.b32.xlu0 %v5159, 3
        %v5171 = vpop.permute.xlu0 %5170
        %5172 = vrot.lane.b32.xlu0 %v5160, 3
        %v5173 = vpop.permute.xlu0 %5172
        %5174 = vrot.lane.b32.xlu0 %v5161, 3
        %v5175 = vpop.permute.xlu0 %5174
        %5176 = vrot.lane.b32.xlu0 %v5162, 3
        %v5177 = vpop.permute.xlu0 %5176
        %5178 = vrot.lane.b32.xlu0 %v5163, 3
        %v5179 = vpop.permute.xlu0 %5178
        %5180 = vrot.lane.b32.xlu0 %v5164, 3
        %v5181 = vpop.permute.xlu0 %5180
        %5182 = vrot.lane.b32.xlu0 %v5165, 3
        %v5183 = vpop.permute.xlu0 %5182
        %5184 = vrot.lane.b32.xlu0 %v5166, 3
        %v5185 = vpop.permute.xlu0 %5184
        %5186 = vrot.lane.b32.xlu0 %v5167, 3
        %v5187 = vpop.permute.xlu0 %5186
        %v5188 = vmul.f32 %v5169, %v2851
        %v5189 = vmul.f32 %v5171, %v2851
        %v5190 = vmul.f32 %v5173, %v2851
        %v5191 = vmul.f32 %v5175, %v2851
        %v5192 = vmul.f32 %v5177, %v2851
        %v5193 = vmul.f32 %v5179, %v2851
        %v5194 = vmul.f32 %v5181, %v2851
        %v5195 = vmul.f32 %v5183, %v2851
        %v5196 = vadd.f32 %v5118, %v5188
        %v5197 = vadd.f32 %v5119, %v5189
        %v5198 = vadd.f32 %v5120, %v5190
        %v5199 = vadd.f32 %v5121, %v5191
        %v5200 = vadd.f32 %v5122, %v5192
        %v5201 = vadd.f32 %v5123, %v5193
        %v5202 = vadd.f32 %v5124, %v5194
        %v5203 = vadd.f32 %v5125, %v5195
        %v5204 = vmul.f32 %v5171, %v2868
        %v5205 = vmul.f32 %v5173, %v2868
        %v5206 = vmul.f32 %v5175, %v2868
        %v5207 = vmul.f32 %v5177, %v2868
        %v5208 = vmul.f32 %v5179, %v2868
        %v5209 = vmul.f32 %v5181, %v2868
        %v5210 = vmul.f32 %v5183, %v2868
        %v5211 = vmul.f32 %v5185, %v2868
        %v5212 = vadd.f32 %v5134, %v5204
        %v5213 = vadd.f32 %v5135, %v5205
        %v5214 = vadd.f32 %v5136, %v5206
        %v5215 = vadd.f32 %v5137, %v5207
        %v5216 = vadd.f32 %v5138, %v5208
        %v5217 = vadd.f32 %v5139, %v5209
        %v5218 = vadd.f32 %v5140, %v5210
        %v5219 = vadd.f32 %v5141, %v5211
        %v5220 = vmul.f32 %v5173, %v2885
        %v5221 = vmul.f32 %v5175, %v2885
        %v5222 = vmul.f32 %v5177, %v2885
        %v5223 = vmul.f32 %v5179, %v2885
        %v5224 = vmul.f32 %v5181, %v2885
        %v5225 = vmul.f32 %v5183, %v2885
        %v5226 = vmul.f32 %v5185, %v2885
        %v5227 = vmul.f32 %v5187, %v2885
        %v5228 = vadd.f32 %v5150, %v5220
        %v5229 = vadd.f32 %v5151, %v5221
        %v5230 = vadd.f32 %v5152, %v5222
        %v5231 = vadd.f32 %v5153, %v5223
        %v5232 = vadd.f32 %v5154, %v5224
        %v5233 = vadd.f32 %v5155, %v5225
        %v5234 = vadd.f32 %v5156, %v5226
        %v5235 = vadd.f32 %v5157, %v5227
        %5236 = vrot.lane.b32.xlu0 %v5158, 2
        %v5237 = vpop.permute.xlu0 %5236
        %5238 = vrot.lane.b32.xlu0 %v5159, 2
        %v5239 = vpop.permute.xlu0 %5238
        %5240 = vrot.lane.b32.xlu0 %v5160, 2
        %v5241 = vpop.permute.xlu0 %5240
        %5242 = vrot.lane.b32.xlu0 %v5161, 2
        %v5243 = vpop.permute.xlu0 %5242
        %5244 = vrot.lane.b32.xlu0 %v5162, 2
        %v5245 = vpop.permute.xlu0 %5244
        %5246 = vrot.lane.b32.xlu0 %v5163, 2
        %v5247 = vpop.permute.xlu0 %5246
        %5248 = vrot.lane.b32.xlu0 %v5164, 2
        %v5249 = vpop.permute.xlu0 %5248
        %5250 = vrot.lane.b32.xlu0 %v5165, 2
        %v5251 = vpop.permute.xlu0 %5250
        %5252 = vrot.lane.b32.xlu0 %v5166, 2
        %v5253 = vpop.permute.xlu0 %5252
        %5254 = vrot.lane.b32.xlu0 %v5167, 2
        %v5255 = vpop.permute.xlu0 %5254
        %v5256 = vmul.f32 %v5237, %v2922
        %v5257 = vmul.f32 %v5239, %v2922
        %v5258 = vmul.f32 %v5241, %v2922
        %v5259 = vmul.f32 %v5243, %v2922
        %v5260 = vmul.f32 %v5245, %v2922
        %v5261 = vmul.f32 %v5247, %v2922
        %v5262 = vmul.f32 %v5249, %v2922
        %v5263 = vmul.f32 %v5251, %v2922
        %v5264 = vadd.f32 %v5196, %v5256
        %v5265 = vadd.f32 %v5197, %v5257
        %v5266 = vadd.f32 %v5198, %v5258
        %v5267 = vadd.f32 %v5199, %v5259
        %v5268 = vadd.f32 %v5200, %v5260
        %v5269 = vadd.f32 %v5201, %v5261
        %v5270 = vadd.f32 %v5202, %v5262
        %v5271 = vadd.f32 %v5203, %v5263
        %v5272 = vmul.f32 %v5239, %v2939
        %v5273 = vmul.f32 %v5241, %v2939
        %v5274 = vmul.f32 %v5243, %v2939
        %v5275 = vmul.f32 %v5245, %v2939
        %v5276 = vmul.f32 %v5247, %v2939
        %v5277 = vmul.f32 %v5249, %v2939
        %v5278 = vmul.f32 %v5251, %v2939
        %v5279 = vmul.f32 %v5253, %v2939
        %v5280 = vadd.f32 %v5212, %v5272
        %v5281 = vadd.f32 %v5213, %v5273
        %v5282 = vadd.f32 %v5214, %v5274
        %v5283 = vadd.f32 %v5215, %v5275
        %v5284 = vadd.f32 %v5216, %v5276
        %v5285 = vadd.f32 %v5217, %v5277
        %v5286 = vadd.f32 %v5218, %v5278
        %v5287 = vadd.f32 %v5219, %v5279
        %v5288 = vmul.f32 %v5241, %v2956
        %v5289 = vmul.f32 %v5243, %v2956
        %v5290 = vmul.f32 %v5245, %v2956
        %v5291 = vmul.f32 %v5247, %v2956
        %v5292 = vmul.f32 %v5249, %v2956
        %v5293 = vmul.f32 %v5251, %v2956
        %v5294 = vmul.f32 %v5253, %v2956
        %v5295 = vmul.f32 %v5255, %v2956
        %v5296 = vadd.f32 %v5228, %v5288
        %v5297 = vadd.f32 %v5229, %v5289
        %v5298 = vadd.f32 %v5230, %v5290
        %v5299 = vadd.f32 %v5231, %v5291
        %v5300 = vadd.f32 %v5232, %v5292
        %v5301 = vadd.f32 %v5233, %v5293
        %v5302 = vadd.f32 %v5234, %v5294
        %v5303 = vadd.f32 %v5235, %v5295
        %5304 = vrot.lane.b32.xlu0 %v5158, 1
        %v5305 = vpop.permute.xlu0 %5304
        %5306 = vrot.lane.b32.xlu0 %v5159, 1
        %v5307 = vpop.permute.xlu0 %5306
        %5308 = vrot.lane.b32.xlu0 %v5160, 1
        %v5309 = vpop.permute.xlu0 %5308
        %5310 = vrot.lane.b32.xlu0 %v5161, 1
        %v5311 = vpop.permute.xlu0 %5310
        %5312 = vrot.lane.b32.xlu0 %v5162, 1
        %v5313 = vpop.permute.xlu0 %5312
        %5314 = vrot.lane.b32.xlu0 %v5163, 1
        %v5315 = vpop.permute.xlu0 %5314
        %5316 = vrot.lane.b32.xlu0 %v5164, 1
        %v5317 = vpop.permute.xlu0 %5316
        %5318 = vrot.lane.b32.xlu0 %v5165, 1
        %v5319 = vpop.permute.xlu0 %5318
        %5320 = vrot.lane.b32.xlu0 %v5166, 1
        %v5321 = vpop.permute.xlu0 %5320
        %5322 = vrot.lane.b32.xlu0 %v5167, 1
        %v5323 = vpop.permute.xlu0 %5322
        %v5324 = vmul.f32 %v5305, %v2993
        %v5325 = vmul.f32 %v5307, %v2993
        %v5326 = vmul.f32 %v5309, %v2993
        %v5327 = vmul.f32 %v5311, %v2993
        %v5328 = vmul.f32 %v5313, %v2993
        %v5329 = vmul.f32 %v5315, %v2993
        %v5330 = vmul.f32 %v5317, %v2993
        %v5331 = vmul.f32 %v5319, %v2993
        %v5332 = vadd.f32 %v5264, %v5324
        %v5333 = vadd.f32 %v5265, %v5325
        %v5334 = vadd.f32 %v5266, %v5326
        %v5335 = vadd.f32 %v5267, %v5327
        %v5336 = vadd.f32 %v5268, %v5328
        %v5337 = vadd.f32 %v5269, %v5329
        %v5338 = vadd.f32 %v5270, %v5330
        %v5339 = vadd.f32 %v5271, %v5331
        %v5340 = vmul.f32 %v5307, %v3010
        %v5341 = vmul.f32 %v5309, %v3010
        %v5342 = vmul.f32 %v5311, %v3010
        %v5343 = vmul.f32 %v5313, %v3010
        %v5344 = vmul.f32 %v5315, %v3010
        %v5345 = vmul.f32 %v5317, %v3010
        %v5346 = vmul.f32 %v5319, %v3010
        %v5347 = vmul.f32 %v5321, %v3010
        %v5348 = vadd.f32 %v5280, %v5340
        %v5349 = vadd.f32 %v5281, %v5341
        %v5350 = vadd.f32 %v5282, %v5342
        %v5351 = vadd.f32 %v5283, %v5343
        %v5352 = vadd.f32 %v5284, %v5344
        %v5353 = vadd.f32 %v5285, %v5345
        %v5354 = vadd.f32 %v5286, %v5346
        %v5355 = vadd.f32 %v5287, %v5347
        %v5356 = vmul.f32 %v5309, %v3027
        %v5357 = vmul.f32 %v5311, %v3027
        %v5358 = vmul.f32 %v5313, %v3027
        %v5359 = vmul.f32 %v5315, %v3027
        %v5360 = vmul.f32 %v5317, %v3027
        %v5361 = vmul.f32 %v5319, %v3027
        %v5362 = vmul.f32 %v5321, %v3027
        %v5363 = vmul.f32 %v5323, %v3027
        %v5364 = vadd.f32 %v5296, %v5356
        %v5365 = vadd.f32 %v5297, %v5357
        %v5366 = vadd.f32 %v5298, %v5358
        %v5367 = vadd.f32 %v5299, %v5359
        %v5368 = vadd.f32 %v5300, %v5360
        %v5369 = vadd.f32 %v5301, %v5361
        %v5370 = vadd.f32 %v5302, %v5362
        %v5371 = vadd.f32 %v5303, %v5363
        %v5372 = vmul.f32 %v5158, %v3044
        %v5373 = vmul.f32 %v5159, %v3044
        %v5374 = vmul.f32 %v5160, %v3044
        %v5375 = vmul.f32 %v5161, %v3044
        %v5376 = vmul.f32 %v5162, %v3044
        %v5377 = vmul.f32 %v5163, %v3044
        %v5378 = vmul.f32 %v5164, %v3044
        %v5379 = vmul.f32 %v5165, %v3044
        %v5380 = vadd.f32 %v5332, %v5372
        %v5381 = vadd.f32 %v5333, %v5373
        %v5382 = vadd.f32 %v5334, %v5374
        %v5383 = vadd.f32 %v5335, %v5375
        %v5384 = vadd.f32 %v5336, %v5376
        %v5385 = vadd.f32 %v5337, %v5377
        %v5386 = vadd.f32 %v5338, %v5378
        %v5387 = vadd.f32 %v5339, %v5379
        %v5388 = vmul.f32 %v5159, %v3061
        %v5389 = vmul.f32 %v5160, %v3061
        %v5390 = vmul.f32 %v5161, %v3061
        %v5391 = vmul.f32 %v5162, %v3061
        %v5392 = vmul.f32 %v5163, %v3061
        %v5393 = vmul.f32 %v5164, %v3061
        %v5394 = vmul.f32 %v5165, %v3061
        %v5395 = vmul.f32 %v5166, %v3061
        %v5396 = vadd.f32 %v5348, %v5388
        %v5397 = vadd.f32 %v5349, %v5389
        %v5398 = vadd.f32 %v5350, %v5390
        %v5399 = vadd.f32 %v5351, %v5391
        %v5400 = vadd.f32 %v5352, %v5392
        %v5401 = vadd.f32 %v5353, %v5393
        %v5402 = vadd.f32 %v5354, %v5394
        %v5403 = vadd.f32 %v5355, %v5395
        %v5404 = vmul.f32 %v5160, %v3078
        %v5405 = vmul.f32 %v5161, %v3078
        %v5406 = vmul.f32 %v5162, %v3078
        %v5407 = vmul.f32 %v5163, %v3078
        %v5408 = vmul.f32 %v5164, %v3078
        %v5409 = vmul.f32 %v5165, %v3078
        %v5410 = vmul.f32 %v5166, %v3078
        %v5411 = vmul.f32 %v5167, %v3078
        %v5412 = vadd.f32 %v5364, %v5404
        %v5413 = vadd.f32 %v5365, %v5405
        %v5414 = vadd.f32 %v5366, %v5406
        %v5415 = vadd.f32 %v5367, %v5407
        %v5416 = vadd.f32 %v5368, %v5408
        %v5417 = vadd.f32 %v5369, %v5409
        %v5418 = vadd.f32 %v5370, %v5410
        %v5419 = vadd.f32 %v5371, %v5411
        %5420 = vrot.lane.b32.xlu0 %v5158, 127
        %v5421 = vpop.permute.xlu0 %5420
        %5422 = vrot.lane.b32.xlu0 %v5159, 127
        %v5423 = vpop.permute.xlu0 %5422
        %5424 = vrot.lane.b32.xlu0 %v5160, 127
        %v5425 = vpop.permute.xlu0 %5424
        %5426 = vrot.lane.b32.xlu0 %v5161, 127
        %v5427 = vpop.permute.xlu0 %5426
        %5428 = vrot.lane.b32.xlu0 %v5162, 127
        %v5429 = vpop.permute.xlu0 %5428
        %5430 = vrot.lane.b32.xlu0 %v5163, 127
        %v5431 = vpop.permute.xlu0 %5430
        %5432 = vrot.lane.b32.xlu0 %v5164, 127
        %v5433 = vpop.permute.xlu0 %5432
        %5434 = vrot.lane.b32.xlu0 %v5165, 127
        %v5435 = vpop.permute.xlu0 %5434
        %5436 = vrot.lane.b32.xlu0 %v5166, 127
        %v5437 = vpop.permute.xlu0 %5436
        %5438 = vrot.lane.b32.xlu0 %v5167, 127
        %v5439 = vpop.permute.xlu0 %5438
        %v5440 = vmul.f32 %v5421, %v3115
        %v5441 = vmul.f32 %v5423, %v3115
        %v5442 = vmul.f32 %v5425, %v3115
        %v5443 = vmul.f32 %v5427, %v3115
        %v5444 = vmul.f32 %v5429, %v3115
        %v5445 = vmul.f32 %v5431, %v3115
        %v5446 = vmul.f32 %v5433, %v3115
        %v5447 = vmul.f32 %v5435, %v3115
        %v5448 = vadd.f32 %v5380, %v5440
        %v5449 = vadd.f32 %v5381, %v5441
        %v5450 = vadd.f32 %v5382, %v5442
        %v5451 = vadd.f32 %v5383, %v5443
        %v5452 = vadd.f32 %v5384, %v5444
        %v5453 = vadd.f32 %v5385, %v5445
        %v5454 = vadd.f32 %v5386, %v5446
        %v5455 = vadd.f32 %v5387, %v5447
        %v5456 = vmul.f32 %v5423, %v3132
        %v5457 = vmul.f32 %v5425, %v3132
        %v5458 = vmul.f32 %v5427, %v3132
        %v5459 = vmul.f32 %v5429, %v3132
        %v5460 = vmul.f32 %v5431, %v3132
        %v5461 = vmul.f32 %v5433, %v3132
        %v5462 = vmul.f32 %v5435, %v3132
        %v5463 = vmul.f32 %v5437, %v3132
        %v5464 = vadd.f32 %v5396, %v5456
        %v5465 = vadd.f32 %v5397, %v5457
        %v5466 = vadd.f32 %v5398, %v5458
        %v5467 = vadd.f32 %v5399, %v5459
        %v5468 = vadd.f32 %v5400, %v5460
        %v5469 = vadd.f32 %v5401, %v5461
        %v5470 = vadd.f32 %v5402, %v5462
        %v5471 = vadd.f32 %v5403, %v5463
        %v5472 = vmul.f32 %v5425, %v3149
        %v5473 = vmul.f32 %v5427, %v3149
        %v5474 = vmul.f32 %v5429, %v3149
        %v5475 = vmul.f32 %v5431, %v3149
        %v5476 = vmul.f32 %v5433, %v3149
        %v5477 = vmul.f32 %v5435, %v3149
        %v5478 = vmul.f32 %v5437, %v3149
        %v5479 = vmul.f32 %v5439, %v3149
        %v5480 = vadd.f32 %v5412, %v5472
        %v5481 = vadd.f32 %v5413, %v5473
        %v5482 = vadd.f32 %v5414, %v5474
        %v5483 = vadd.f32 %v5415, %v5475
        %v5484 = vadd.f32 %v5416, %v5476
        %v5485 = vadd.f32 %v5417, %v5477
        %v5486 = vadd.f32 %v5418, %v5478
        %v5487 = vadd.f32 %v5419, %v5479
        %5488 = vrot.lane.b32.xlu0 %v5158, 126
        %v5489 = vpop.permute.xlu0 %5488
        %5490 = vrot.lane.b32.xlu0 %v5159, 126
        %v5491 = vpop.permute.xlu0 %5490
        %5492 = vrot.lane.b32.xlu0 %v5160, 126
        %v5493 = vpop.permute.xlu0 %5492
        %5494 = vrot.lane.b32.xlu0 %v5161, 126
        %v5495 = vpop.permute.xlu0 %5494
        %5496 = vrot.lane.b32.xlu0 %v5162, 126
        %v5497 = vpop.permute.xlu0 %5496
        %5498 = vrot.lane.b32.xlu0 %v5163, 126
        %v5499 = vpop.permute.xlu0 %5498
        %5500 = vrot.lane.b32.xlu0 %v5164, 126
        %v5501 = vpop.permute.xlu0 %5500
        %5502 = vrot.lane.b32.xlu0 %v5165, 126
        %v5503 = vpop.permute.xlu0 %5502
        %5504 = vrot.lane.b32.xlu0 %v5166, 126
        %v5505 = vpop.permute.xlu0 %5504
        %5506 = vrot.lane.b32.xlu0 %v5167, 126
        %v5507 = vpop.permute.xlu0 %5506
        %v5508 = vmul.f32 %v5489, %v3186
        %v5509 = vmul.f32 %v5491, %v3186
        %v5510 = vmul.f32 %v5493, %v3186
        %v5511 = vmul.f32 %v5495, %v3186
        %v5512 = vmul.f32 %v5497, %v3186
        %v5513 = vmul.f32 %v5499, %v3186
        %v5514 = vmul.f32 %v5501, %v3186
        %v5515 = vmul.f32 %v5503, %v3186
        %v5516 = vadd.f32 %v5448, %v5508
        %v5517 = vadd.f32 %v5449, %v5509
        %v5518 = vadd.f32 %v5450, %v5510
        %v5519 = vadd.f32 %v5451, %v5511
        %v5520 = vadd.f32 %v5452, %v5512
        %v5521 = vadd.f32 %v5453, %v5513
        %v5522 = vadd.f32 %v5454, %v5514
        %v5523 = vadd.f32 %v5455, %v5515
        %v5524 = vmul.f32 %v5491, %v3203
        %v5525 = vmul.f32 %v5493, %v3203
        %v5526 = vmul.f32 %v5495, %v3203
        %v5527 = vmul.f32 %v5497, %v3203
        %v5528 = vmul.f32 %v5499, %v3203
        %v5529 = vmul.f32 %v5501, %v3203
        %v5530 = vmul.f32 %v5503, %v3203
        %v5531 = vmul.f32 %v5505, %v3203
        %v5532 = vadd.f32 %v5464, %v5524
        %v5533 = vadd.f32 %v5465, %v5525
        %v5534 = vadd.f32 %v5466, %v5526
        %v5535 = vadd.f32 %v5467, %v5527
        %v5536 = vadd.f32 %v5468, %v5528
        %v5537 = vadd.f32 %v5469, %v5529
        %v5538 = vadd.f32 %v5470, %v5530
        %v5539 = vadd.f32 %v5471, %v5531
        %v5540 = vmul.f32 %v5493, %v3220
        %v5541 = vmul.f32 %v5495, %v3220
        %v5542 = vmul.f32 %v5497, %v3220
        %v5543 = vmul.f32 %v5499, %v3220
        %v5544 = vmul.f32 %v5501, %v3220
        %v5545 = vmul.f32 %v5503, %v3220
        %v5546 = vmul.f32 %v5505, %v3220
        %v5547 = vmul.f32 %v5507, %v3220
        %v5548 = vadd.f32 %v5480, %v5540
        %v5549 = vadd.f32 %v5481, %v5541
        %v5550 = vadd.f32 %v5482, %v5542
        %v5551 = vadd.f32 %v5483, %v5543
        %v5552 = vadd.f32 %v5484, %v5544
        %v5553 = vadd.f32 %v5485, %v5545
        %v5554 = vadd.f32 %v5486, %v5546
        %v5555 = vadd.f32 %v5487, %v5547
        %5556 = vrot.lane.b32.xlu0 %v5158, 125
        %v5557 = vpop.permute.xlu0 %5556
        %5558 = vrot.lane.b32.xlu0 %v5159, 125
        %v5559 = vpop.permute.xlu0 %5558
        %5560 = vrot.lane.b32.xlu0 %v5160, 125
        %v5561 = vpop.permute.xlu0 %5560
        %5562 = vrot.lane.b32.xlu0 %v5161, 125
        %v5563 = vpop.permute.xlu0 %5562
        %5564 = vrot.lane.b32.xlu0 %v5162, 125
        %v5565 = vpop.permute.xlu0 %5564
        %5566 = vrot.lane.b32.xlu0 %v5163, 125
        %v5567 = vpop.permute.xlu0 %5566
        %5568 = vrot.lane.b32.xlu0 %v5164, 125
        %v5569 = vpop.permute.xlu0 %5568
        %5570 = vrot.lane.b32.xlu0 %v5165, 125
        %v5571 = vpop.permute.xlu0 %5570
        %5572 = vrot.lane.b32.xlu0 %v5166, 125
        %v5573 = vpop.permute.xlu0 %5572
        %5574 = vrot.lane.b32.xlu0 %v5167, 125
        %v5575 = vpop.permute.xlu0 %5574
        %v5576 = vmul.f32 %v5557, %v3257
        %v5577 = vmul.f32 %v5559, %v3257
        %v5578 = vmul.f32 %v5561, %v3257
        %v5579 = vmul.f32 %v5563, %v3257
        %v5580 = vmul.f32 %v5565, %v3257
        %v5581 = vmul.f32 %v5567, %v3257
        %v5582 = vmul.f32 %v5569, %v3257
        %v5583 = vmul.f32 %v5571, %v3257
        %v5584 = vadd.f32 %v5516, %v5576
        %v5585 = vadd.f32 %v5517, %v5577
        %v5586 = vadd.f32 %v5518, %v5578
        %v5587 = vadd.f32 %v5519, %v5579
        %v5588 = vadd.f32 %v5520, %v5580
        %v5589 = vadd.f32 %v5521, %v5581
        %v5590 = vadd.f32 %v5522, %v5582
        %v5591 = vadd.f32 %v5523, %v5583
        %v5592 = vmul.f32 %v5559, %v3274
        %v5593 = vmul.f32 %v5561, %v3274
        %v5594 = vmul.f32 %v5563, %v3274
        %v5595 = vmul.f32 %v5565, %v3274
        %v5596 = vmul.f32 %v5567, %v3274
        %v5597 = vmul.f32 %v5569, %v3274
        %v5598 = vmul.f32 %v5571, %v3274
        %v5599 = vmul.f32 %v5573, %v3274
        %v5600 = vadd.f32 %v5532, %v5592
        %v5601 = vadd.f32 %v5533, %v5593
        %v5602 = vadd.f32 %v5534, %v5594
        %v5603 = vadd.f32 %v5535, %v5595
        %v5604 = vadd.f32 %v5536, %v5596
        %v5605 = vadd.f32 %v5537, %v5597
        %v5606 = vadd.f32 %v5538, %v5598
        %v5607 = vadd.f32 %v5539, %v5599
        %v5608 = vmul.f32 %v5561, %v3291
        %v5609 = vmul.f32 %v5563, %v3291
        %v5610 = vmul.f32 %v5565, %v3291
        %v5611 = vmul.f32 %v5567, %v3291
        %v5612 = vmul.f32 %v5569, %v3291
        %v5613 = vmul.f32 %v5571, %v3291
        %v5614 = vmul.f32 %v5573, %v3291
        %v5615 = vmul.f32 %v5575, %v3291
        %v5616 = vadd.f32 %v5548, %v5608
        %v5617 = vadd.f32 %v5549, %v5609
        %v5618 = vadd.f32 %v5550, %v5610
        %v5619 = vadd.f32 %v5551, %v5611
        %v5620 = vadd.f32 %v5552, %v5612
        %v5621 = vadd.f32 %v5553, %v5613
        %v5622 = vadd.f32 %v5554, %v5614
        %v5623 = vadd.f32 %v5555, %v5615
        %v5624 = vadd.f32 %v5584, %v5600
        %v5625 = vadd.f32 %v5585, %v5601
        %v5626 = vadd.f32 %v5586, %v5602
        %v5627 = vadd.f32 %v5587, %v5603
        %v5628 = vadd.f32 %v5588, %v5604
        %v5629 = vadd.f32 %v5589, %v5605
        %v5630 = vadd.f32 %v5590, %v5606
        %v5631 = vadd.f32 %v5591, %v5607
        %v5632 = vadd.f32 %v5624, %v5616
        %v5633 = vadd.f32 %v5625, %v5617
        %v5634 = vadd.f32 %v5626, %v5618
        %v5635 = vadd.f32 %v5627, %v5619
        %v5636 = vadd.f32 %v5628, %v5620
        %v5637 = vadd.f32 %v5629, %v5621
        %v5638 = vadd.f32 %v5630, %v5622
        %v5639 = vadd.f32 %v5631, %v5623
        %v5640 = vld [vmem:[%s10] sm:$0x1]
        %v5642 = vperm.slane %v5640, 0
        %v5644 = vadd.f32 %v5632, %v5642
        %v5645 = vadd.f32 %v5633, %v5642
        %v5646 = vadd.f32 %v5634, %v5642
        %v5647 = vadd.f32 %v5635, %v5642
        %v5648 = vadd.f32 %v5636, %v5642
        %v5649 = vadd.f32 %v5637, %v5642
        %v5650 = vadd.f32 %v5638, %v5642
        %v5651 = vadd.f32 %v5639, %v5642
        %v5652 = vadd.f32 %v5644, %v4210
        %v5653 = vadd.f32 %v5645, %v4211
        %v5654 = vadd.f32 %v5646, %v4212
        %v5655 = vadd.f32 %v5647, %v4213
        %v5656 = vadd.f32 %v5648, %v4214
        %v5657 = vadd.f32 %v5649, %v4215
        %v5658 = vadd.f32 %v5650, %v4216
        %v5659 = vadd.f32 %v5651, %v4217
        %v5660 = vld [vmem:[#allocation18] sm:$0x1]
        %v5661 = vld [vmem:[%s12] sm:$0x1]
        %5662 = vadd.xlane.f32.xlu0 %v5652
        %v5663 = vpop.xlane.xlu0 %5662
        %5664 = vadd.xlane.f32.xlu0 %v5653
        %v5665 = vpop.xlane.xlu0 %5664
        %5666 = vadd.xlane.f32.xlu0 %v5654
        %v5667 = vpop.xlane.xlu0 %5666
        %5668 = vadd.xlane.f32.xlu0 %v5655
        %v5669 = vpop.xlane.xlu0 %5668
        %5670 = vadd.xlane.f32.xlu0 %v5656
        %v5671 = vpop.xlane.xlu0 %5670
        %5672 = vadd.xlane.f32.xlu0 %v5657
        %v5673 = vpop.xlane.xlu0 %5672
        %5674 = vadd.xlane.f32.xlu0 %v5658
        %v5675 = vpop.xlane.xlu0 %5674
        %5676 = vadd.xlane.f32.xlu0 %v5659
        %v5677 = vpop.xlane.xlu0 %5676
        %v5678 = vmul.f32 %v5663, %v951
        %v5679 = vmul.f32 %v5665, %v951
        %v5680 = vmul.f32 %v5667, %v951
        %v5681 = vmul.f32 %v5669, %v951
        %v5682 = vmul.f32 %v5671, %v951
        %v5683 = vmul.f32 %v5673, %v951
        %v5684 = vmul.f32 %v5675, %v951
        %v5685 = vmul.f32 %v5677, %v951
        %v5686 = vmul.f32 %v5652, %v5652
        %v5687 = vmul.f32 %v5653, %v5653
        %v5688 = vmul.f32 %v5654, %v5654
        %v5689 = vmul.f32 %v5655, %v5655
        %v5690 = vmul.f32 %v5656, %v5656
        %v5691 = vmul.f32 %v5657, %v5657
        %v5692 = vmul.f32 %v5658, %v5658
        %v5693 = vmul.f32 %v5659, %v5659
        %5694 = vadd.xlane.f32.xlu0 %v5686
        %v5695 = vpop.xlane.xlu0 %5694
        %5696 = vadd.xlane.f32.xlu0 %v5687
        %v5697 = vpop.xlane.xlu0 %5696
        %5698 = vadd.xlane.f32.xlu0 %v5688
        %v5699 = vpop.xlane.xlu0 %5698
        %5700 = vadd.xlane.f32.xlu0 %v5689
        %v5701 = vpop.xlane.xlu0 %5700
        %5702 = vadd.xlane.f32.xlu0 %v5690
        %v5703 = vpop.xlane.xlu0 %5702
        %5704 = vadd.xlane.f32.xlu0 %v5691
        %v5705 = vpop.xlane.xlu0 %5704
        %5706 = vadd.xlane.f32.xlu0 %v5692
        %v5707 = vpop.xlane.xlu0 %5706
        %5708 = vadd.xlane.f32.xlu0 %v5693
        %v5709 = vpop.xlane.xlu0 %5708
        %v5710 = vmul.f32 %v5695, %v951
        %v5711 = vmul.f32 %v5697, %v951
        %v5712 = vmul.f32 %v5699, %v951
        %v5713 = vmul.f32 %v5701, %v951
        %v5714 = vmul.f32 %v5703, %v951
        %v5715 = vmul.f32 %v5705, %v951
        %v5716 = vmul.f32 %v5707, %v951
        %v5717 = vmul.f32 %v5709, %v951
        %v5718 = vmul.f32 %v5678, %v5678
        %v5719 = vmul.f32 %v5679, %v5679
        %v5720 = vmul.f32 %v5680, %v5680
        %v5721 = vmul.f32 %v5681, %v5681
        %v5722 = vmul.f32 %v5682, %v5682
        %v5723 = vmul.f32 %v5683, %v5683
        %v5724 = vmul.f32 %v5684, %v5684
        %v5725 = vmul.f32 %v5685, %v5685
        %v5726 = vsub.f32 %v5710, %v5718
        %v5727 = vsub.f32 %v5711, %v5719
        %v5728 = vsub.f32 %v5712, %v5720
        %v5729 = vsub.f32 %v5713, %v5721
        %v5730 = vsub.f32 %v5714, %v5722
        %v5731 = vsub.f32 %v5715, %v5723
        %v5732 = vsub.f32 %v5716, %v5724
        %v5733 = vsub.f32 %v5717, %v5725
        %v5734 = vmax.f32 %v5726, 0.0
        %v5735 = vmax.f32 %v5727, 0.0
        %v5736 = vmax.f32 %v5728, 0.0
        %v5737 = vmax.f32 %v5729, 0.0
        %v5738 = vmax.f32 %v5730, 0.0
        %v5739 = vmax.f32 %v5731, 0.0
        %v5740 = vmax.f32 %v5732, 0.0
        %v5741 = vmax.f32 %v5733, 0.0
        %v5742 = vsub.f32 %v5652, %v5678
        %v5743 = vsub.f32 %v5653, %v5679
        %v5744 = vsub.f32 %v5654, %v5680
        %v5745 = vsub.f32 %v5655, %v5681
        %v5746 = vsub.f32 %v5656, %v5682
        %v5747 = vsub.f32 %v5657, %v5683
        %v5748 = vsub.f32 %v5658, %v5684
        %v5749 = vsub.f32 %v5659, %v5685
        %v5750 = vadd.f32 %v5734, 1e-05
        %v5751 = vadd.f32 %v5735, 1e-05
        %v5752 = vadd.f32 %v5736, 1e-05
        %v5753 = vadd.f32 %v5737, 1e-05
        %v5754 = vadd.f32 %v5738, 1e-05
        %v5755 = vadd.f32 %v5739, 1e-05
        %v5756 = vadd.f32 %v5740, 1e-05
        %v5757 = vadd.f32 %v5741, 1e-05
        %v5758 = vrsqrt.pop %v5750
        %v5759 = vmul.f32 %v5758, %v5750
        %v5760 = vmul.f32 %v5759, %v5758
        %v5761 = vmul.f32 0.5, %v5760
        %v5762 = vsub.f32 1.5, %v5761
        %v5763 = vmul.f32 %v5758, %v5762
        %vm5764 = vweird.f32 %v5750
        %vm5765 = vweird.f32 %v5758
        %vm5766 = vmor %vm5764, %vm5765
        %v5767 = vsel %vm5766, %v5758, %v5763
        %v5768 = vrsqrt.pop %v5751
        %v5769 = vmul.f32 %v5768, %v5751
        %v5770 = vmul.f32 %v5769, %v5768
        %v5771 = vmul.f32 0.5, %v5770
        %v5772 = vsub.f32 1.5, %v5771
        %v5773 = vmul.f32 %v5768, %v5772
        %vm5774 = vweird.f32 %v5751
        %vm5775 = vweird.f32 %v5768
        %vm5776 = vmor %vm5774, %vm5775
        %v5777 = vsel %vm5776, %v5768, %v5773
        %v5778 = vrsqrt.pop %v5752
        %v5779 = vmul.f32 %v5778, %v5752
        %v5780 = vmul.f32 %v5779, %v5778
        %v5781 = vmul.f32 0.5, %v5780
        %v5782 = vsub.f32 1.5, %v5781
        %v5783 = vmul.f32 %v5778, %v5782
        %vm5784 = vweird.f32 %v5752
        %vm5785 = vweird.f32 %v5778
        %vm5786 = vmor %vm5784, %vm5785
        %v5787 = vsel %vm5786, %v5778, %v5783
        %v5788 = vrsqrt.pop %v5753
        %v5789 = vmul.f32 %v5788, %v5753
        %v5790 = vmul.f32 %v5789, %v5788
        %v5791 = vmul.f32 0.5, %v5790
        %v5792 = vsub.f32 1.5, %v5791
        %v5793 = vmul.f32 %v5788, %v5792
        %vm5794 = vweird.f32 %v5753
        %vm5795 = vweird.f32 %v5788
        %vm5796 = vmor %vm5794, %vm5795
        %v5797 = vsel %vm5796, %v5788, %v5793
        %v5798 = vrsqrt.pop %v5754
        %v5799 = vmul.f32 %v5798, %v5754
        %v5800 = vmul.f32 %v5799, %v5798
        %v5801 = vmul.f32 0.5, %v5800
        %v5802 = vsub.f32 1.5, %v5801
        %v5803 = vmul.f32 %v5798, %v5802
        %vm5804 = vweird.f32 %v5754
        %vm5805 = vweird.f32 %v5798
        %vm5806 = vmor %vm5804, %vm5805
        %v5807 = vsel %vm5806, %v5798, %v5803
        %v5808 = vrsqrt.pop %v5755
        %v5809 = vmul.f32 %v5808, %v5755
        %v5810 = vmul.f32 %v5809, %v5808
        %v5811 = vmul.f32 0.5, %v5810
        %v5812 = vsub.f32 1.5, %v5811
        %v5813 = vmul.f32 %v5808, %v5812
        %vm5814 = vweird.f32 %v5755
        %vm5815 = vweird.f32 %v5808
        %vm5816 = vmor %vm5814, %vm5815
        %v5817 = vsel %vm5816, %v5808, %v5813
        %v5818 = vrsqrt.pop %v5756
        %v5819 = vmul.f32 %v5818, %v5756
        %v5820 = vmul.f32 %v5819, %v5818
        %v5821 = vmul.f32 0.5, %v5820
        %v5822 = vsub.f32 1.5, %v5821
        %v5823 = vmul.f32 %v5818, %v5822
        %vm5824 = vweird.f32 %v5756
        %vm5825 = vweird.f32 %v5818
        %vm5826 = vmor %vm5824, %vm5825
        %v5827 = vsel %vm5826, %v5818, %v5823
        %v5828 = vrsqrt.pop %v5757
        %v5829 = vmul.f32 %v5828, %v5757
        %v5830 = vmul.f32 %v5829, %v5828
        %v5831 = vmul.f32 0.5, %v5830
        %v5832 = vsub.f32 1.5, %v5831
        %v5833 = vmul.f32 %v5828, %v5832
        %vm5834 = vweird.f32 %v5757
        %vm5835 = vweird.f32 %v5828
        %vm5836 = vmor %vm5834, %vm5835
        %v5837 = vsel %vm5836, %v5828, %v5833
        %v5838 = vmul.f32 %v5742, %v5767
        %v5839 = vmul.f32 %v5743, %v5777
        %v5840 = vmul.f32 %v5744, %v5787
        %v5841 = vmul.f32 %v5745, %v5797
        %v5842 = vmul.f32 %v5746, %v5807
        %v5843 = vmul.f32 %v5747, %v5817
        %v5844 = vmul.f32 %v5748, %v5827
        %v5845 = vmul.f32 %v5749, %v5837
        %v5847 = vperm.slane %v5660, 0
        %v5849 = vmul.f32 %v5838, %v5847
        %v5850 = vmul.f32 %v5839, %v5847
        %v5851 = vmul.f32 %v5840, %v5847
        %v5852 = vmul.f32 %v5841, %v5847
        %v5853 = vmul.f32 %v5842, %v5847
        %v5854 = vmul.f32 %v5843, %v5847
        %v5855 = vmul.f32 %v5844, %v5847
        %v5856 = vmul.f32 %v5845, %v5847
        %v5858 = vperm.slane %v5661, 0
        %v5860 = vadd.f32 %v5849, %v5858
        %v5861 = vadd.f32 %v5850, %v5858
        %v5862 = vadd.f32 %v5851, %v5858
        %v5863 = vadd.f32 %v5852, %v5858
        %v5864 = vadd.f32 %v5853, %v5858
        %v5865 = vadd.f32 %v5854, %v5858
        %v5866 = vadd.f32 %v5855, %v5858
        %v5867 = vadd.f32 %v5856, %v5858
        %v5868 = vadd.f32 %v5860, %v3784
        %v5869 = vadd.f32 %v5861, %v3785
        %v5870 = vadd.f32 %v5862, %v3786
        %v5871 = vadd.f32 %v5863, %v3787
        %v5872 = vadd.f32 %v5864, %v3788
        %v5873 = vadd.f32 %v5865, %v3789
        %v5874 = vadd.f32 %v5866, %v3790
        %v5875 = vadd.f32 %v5867, %v3791
        %v5876 = vld [vmem:[%s13] sm:$0x1]
        %v5877 = vld [vmem:[%s14] sm:$0x1]
        %5878 = vadd.xlane.f32.xlu0 %v5868
        %v5879 = vpop.xlane.xlu0 %5878
        %5880 = vadd.xlane.f32.xlu0 %v5869
        %v5881 = vpop.xlane.xlu0 %5880
        %5882 = vadd.xlane.f32.xlu0 %v5870
        %v5883 = vpop.xlane.xlu0 %5882
        %5884 = vadd.xlane.f32.xlu0 %v5871
        %v5885 = vpop.xlane.xlu0 %5884
        %5886 = vadd.xlane.f32.xlu0 %v5872
        %v5887 = vpop.xlane.xlu0 %5886
        %5888 = vadd.xlane.f32.xlu0 %v5873
        %v5889 = vpop.xlane.xlu0 %5888
        %5890 = vadd.xlane.f32.xlu0 %v5874
        %v5891 = vpop.xlane.xlu0 %5890
        %5892 = vadd.xlane.f32.xlu0 %v5875
        %v5893 = vpop.xlane.xlu0 %5892
        %v5894 = vmul.f32 %v5879, %v951
        %v5895 = vmul.f32 %v5881, %v951
        %v5896 = vmul.f32 %v5883, %v951
        %v5897 = vmul.f32 %v5885, %v951
        %v5898 = vmul.f32 %v5887, %v951
        %v5899 = vmul.f32 %v5889, %v951
        %v5900 = vmul.f32 %v5891, %v951
        %v5901 = vmul.f32 %v5893, %v951
        %v5902 = vmul.f32 %v5868, %v5868
        %v5903 = vmul.f32 %v5869, %v5869
        %v5904 = vmul.f32 %v5870, %v5870
        %v5905 = vmul.f32 %v5871, %v5871
        %v5906 = vmul.f32 %v5872, %v5872
        %v5907 = vmul.f32 %v5873, %v5873
        %v5908 = vmul.f32 %v5874, %v5874
        %v5909 = vmul.f32 %v5875, %v5875
        %5910 = vadd.xlane.f32.xlu0 %v5902
        %v5911 = vpop.xlane.xlu0 %5910
        %5912 = vadd.xlane.f32.xlu0 %v5903
        %v5913 = vpop.xlane.xlu0 %5912
        %5914 = vadd.xlane.f32.xlu0 %v5904
        %v5915 = vpop.xlane.xlu0 %5914
        %5916 = vadd.xlane.f32.xlu0 %v5905
        %v5917 = vpop.xlane.xlu0 %5916
        %5918 = vadd.xlane.f32.xlu0 %v5906
        %v5919 = vpop.xlane.xlu0 %5918
        %5920 = vadd.xlane.f32.xlu0 %v5907
        %v5921 = vpop.xlane.xlu0 %5920
        %5922 = vadd.xlane.f32.xlu0 %v5908
        %v5923 = vpop.xlane.xlu0 %5922
        %5924 = vadd.xlane.f32.xlu0 %v5909
        %v5925 = vpop.xlane.xlu0 %5924
        %v5926 = vmul.f32 %v5911, %v951
        %v5927 = vmul.f32 %v5913, %v951
        %v5928 = vmul.f32 %v5915, %v951
        %v5929 = vmul.f32 %v5917, %v951
        %v5930 = vmul.f32 %v5919, %v951
        %v5931 = vmul.f32 %v5921, %v951
        %v5932 = vmul.f32 %v5923, %v951
        %v5933 = vmul.f32 %v5925, %v951
        %v5934 = vmul.f32 %v5894, %v5894
        %v5935 = vmul.f32 %v5895, %v5895
        %v5936 = vmul.f32 %v5896, %v5896
        %v5937 = vmul.f32 %v5897, %v5897
        %v5938 = vmul.f32 %v5898, %v5898
        %v5939 = vmul.f32 %v5899, %v5899
        %v5940 = vmul.f32 %v5900, %v5900
        %v5941 = vmul.f32 %v5901, %v5901
        %v5942 = vsub.f32 %v5926, %v5934
        %v5943 = vsub.f32 %v5927, %v5935
        %v5944 = vsub.f32 %v5928, %v5936
        %v5945 = vsub.f32 %v5929, %v5937
        %v5946 = vsub.f32 %v5930, %v5938
        %v5947 = vsub.f32 %v5931, %v5939
        %v5948 = vsub.f32 %v5932, %v5940
        %v5949 = vsub.f32 %v5933, %v5941
        %v5950 = vmax.f32 %v5942, 0.0
        %v5951 = vmax.f32 %v5943, 0.0
        %v5952 = vmax.f32 %v5944, 0.0
        %v5953 = vmax.f32 %v5945, 0.0
        %v5954 = vmax.f32 %v5946, 0.0
        %v5955 = vmax.f32 %v5947, 0.0
        %v5956 = vmax.f32 %v5948, 0.0
        %v5957 = vmax.f32 %v5949, 0.0
        %v5958 = vsub.f32 %v5868, %v5894
        %v5959 = vsub.f32 %v5869, %v5895
        %v5960 = vsub.f32 %v5870, %v5896
        %v5961 = vsub.f32 %v5871, %v5897
        %v5962 = vsub.f32 %v5872, %v5898
        %v5963 = vsub.f32 %v5873, %v5899
        %v5964 = vsub.f32 %v5874, %v5900
        %v5965 = vsub.f32 %v5875, %v5901
        %v5966 = vadd.f32 %v5950, 1e-05
        %v5967 = vadd.f32 %v5951, 1e-05
        %v5968 = vadd.f32 %v5952, 1e-05
        %v5969 = vadd.f32 %v5953, 1e-05
        %v5970 = vadd.f32 %v5954, 1e-05
        %v5971 = vadd.f32 %v5955, 1e-05
        %v5972 = vadd.f32 %v5956, 1e-05
        %v5973 = vadd.f32 %v5957, 1e-05
        %v5974 = vrsqrt.pop %v5966
        %v5975 = vmul.f32 %v5974, %v5966
        %v5976 = vmul.f32 %v5975, %v5974
        %v5977 = vmul.f32 0.5, %v5976
        %v5978 = vsub.f32 1.5, %v5977
        %v5979 = vmul.f32 %v5974, %v5978
        %vm5980 = vweird.f32 %v5966
        %vm5981 = vweird.f32 %v5974
        %vm5982 = vmor %vm5980, %vm5981
        %v5983 = vsel %vm5982, %v5974, %v5979
        %v5984 = vrsqrt.pop %v5967
        %v5985 = vmul.f32 %v5984, %v5967
        %v5986 = vmul.f32 %v5985, %v5984
        %v5987 = vmul.f32 0.5, %v5986
        %v5988 = vsub.f32 1.5, %v5987
        %v5989 = vmul.f32 %v5984, %v5988
        %vm5990 = vweird.f32 %v5967
        %vm5991 = vweird.f32 %v5984
        %vm5992 = vmor %vm5990, %vm5991
        %v5993 = vsel %vm5992, %v5984, %v5989
        %v5994 = vrsqrt.pop %v5968
        %v5995 = vmul.f32 %v5994, %v5968
        %v5996 = vmul.f32 %v5995, %v5994
        %v5997 = vmul.f32 0.5, %v5996
        %v5998 = vsub.f32 1.5, %v5997
        %v5999 = vmul.f32 %v5994, %v5998
        %vm6000 = vweird.f32 %v5968
        %vm6001 = vweird.f32 %v5994
        %vm6002 = vmor %vm6000, %vm6001
        %v6003 = vsel %vm6002, %v5994, %v5999
        %v6004 = vrsqrt.pop %v5969
        %v6005 = vmul.f32 %v6004, %v5969
        %v6006 = vmul.f32 %v6005, %v6004
        %v6007 = vmul.f32 0.5, %v6006
        %v6008 = vsub.f32 1.5, %v6007
        %v6009 = vmul.f32 %v6004, %v6008
        %vm6010 = vweird.f32 %v5969
        %vm6011 = vweird.f32 %v6004
        %vm6012 = vmor %vm6010, %vm6011
        %v6013 = vsel %vm6012, %v6004, %v6009
        %v6014 = vrsqrt.pop %v5970
        %v6015 = vmul.f32 %v6014, %v5970
        %v6016 = vmul.f32 %v6015, %v6014
        %v6017 = vmul.f32 0.5, %v6016
        %v6018 = vsub.f32 1.5, %v6017
        %v6019 = vmul.f32 %v6014, %v6018
        %vm6020 = vweird.f32 %v5970
        %vm6021 = vweird.f32 %v6014
        %vm6022 = vmor %vm6020, %vm6021
        %v6023 = vsel %vm6022, %v6014, %v6019
        %v6024 = vrsqrt.pop %v5971
        %v6025 = vmul.f32 %v6024, %v5971
        %v6026 = vmul.f32 %v6025, %v6024
        %v6027 = vmul.f32 0.5, %v6026
        %v6028 = vsub.f32 1.5, %v6027
        %v6029 = vmul.f32 %v6024, %v6028
        %vm6030 = vweird.f32 %v5971
        %vm6031 = vweird.f32 %v6024
        %vm6032 = vmor %vm6030, %vm6031
        %v6033 = vsel %vm6032, %v6024, %v6029
        %v6034 = vrsqrt.pop %v5972
        %v6035 = vmul.f32 %v6034, %v5972
        %v6036 = vmul.f32 %v6035, %v6034
        %v6037 = vmul.f32 0.5, %v6036
        %v6038 = vsub.f32 1.5, %v6037
        %v6039 = vmul.f32 %v6034, %v6038
        %vm6040 = vweird.f32 %v5972
        %vm6041 = vweird.f32 %v6034
        %vm6042 = vmor %vm6040, %vm6041
        %v6043 = vsel %vm6042, %v6034, %v6039
        %v6044 = vrsqrt.pop %v5973
        %v6045 = vmul.f32 %v6044, %v5973
        %v6046 = vmul.f32 %v6045, %v6044
        %v6047 = vmul.f32 0.5, %v6046
        %v6048 = vsub.f32 1.5, %v6047
        %v6049 = vmul.f32 %v6044, %v6048
        %vm6050 = vweird.f32 %v5973
        %vm6051 = vweird.f32 %v6044
        %vm6052 = vmor %vm6050, %vm6051
        %v6053 = vsel %vm6052, %v6044, %v6049
        %v6054 = vmul.f32 %v5958, %v5983
        %v6055 = vmul.f32 %v5959, %v5993
        %v6056 = vmul.f32 %v5960, %v6003
        %v6057 = vmul.f32 %v5961, %v6013
        %v6058 = vmul.f32 %v5962, %v6023
        %v6059 = vmul.f32 %v5963, %v6033
        %v6060 = vmul.f32 %v5964, %v6043
        %v6061 = vmul.f32 %v5965, %v6053
        %v6063 = vperm.slane %v5876, 0
        %v6065 = vmul.f32 %v6054, %v6063
        %v6066 = vmul.f32 %v6055, %v6063
        %v6067 = vmul.f32 %v6056, %v6063
        %v6068 = vmul.f32 %v6057, %v6063
        %v6069 = vmul.f32 %v6058, %v6063
        %v6070 = vmul.f32 %v6059, %v6063
        %v6071 = vmul.f32 %v6060, %v6063
        %v6072 = vmul.f32 %v6061, %v6063
        %v6074 = vperm.slane %v5877, 0
        %v6076 = vadd.f32 %v6065, %v6074
        %v6077 = vadd.f32 %v6066, %v6074
        %v6078 = vadd.f32 %v6067, %v6074
        %v6079 = vadd.f32 %v6068, %v6074
        %v6080 = vadd.f32 %v6069, %v6074
        %v6081 = vadd.f32 %v6070, %v6074
        %v6082 = vadd.f32 %v6071, %v6074
        %v6083 = vadd.f32 %v6072, %v6074
        %v6084 = vmax.f32 %v6076, 0.0
        %v6085 = vmax.f32 %v6077, 0.0
        %v6086 = vmax.f32 %v6078, 0.0
        %v6087 = vmax.f32 %v6079, 0.0
        %v6088 = vmax.f32 %v6080, 0.0
        %v6089 = vmax.f32 %v6081, 0.0
        %v6090 = vmax.f32 %v6082, 0.0
        %v6091 = vmax.f32 %v6083, 0.0
        %6092 = vst [vmem:[#allocation3 + $0x40] sm:$0xff] %v6084
        %6093 = vst [vmem:[#allocation3 + $0x48] sm:$0xff] %v6085
        %6094 = vst [vmem:[#allocation3 + $0x50] sm:$0xff] %v6086
        %6095 = vst [vmem:[#allocation3 + $0x58] sm:$0xff] %v6087
        %6096 = vst [vmem:[#allocation3 + $0x60] sm:$0xff] %v6088
        %6097 = vst [vmem:[#allocation3 + $0x68] sm:$0xff] %v6089
        %6098 = vst [vmem:[#allocation3 + $0x70] sm:$0xff] %v6090
        %6099 = vst [vmem:[#allocation3 + $0x78] sm:$0xff] %v6091
        %v6100 = vld [vmem:[#allocation3] sm:$0xff]
        %v6101 = vld [vmem:[#allocation3 + $0x8] sm:$0xff]
        %v6102 = vld [vmem:[#allocation3 + $0x10] sm:$0xff]
        %v6103 = vld [vmem:[#allocation3 + $0x18] sm:$0xff]
        %v6104 = vld [vmem:[#allocation3 + $0x20] sm:$0xff]
        %v6105 = vld [vmem:[#allocation3 + $0x28] sm:$0xff]
        %v6106 = vld [vmem:[#allocation3 + $0x30] sm:$0xff]
        %v6107 = vld [vmem:[#allocation3 + $0x38] sm:$0xff]
        %v6108 = vld [vmem:[#allocation3 + $0x40] sm:$0xff]
        %v6109 = vld [vmem:[#allocation3 + $0x48] sm:$0xff]
        %v6110 = vld [vmem:[#allocation3 + $0x50] sm:$0xff]
        %v6111 = vld [vmem:[#allocation3 + $0x58] sm:$0xff]
        %v6112 = vld [vmem:[#allocation3 + $0x60] sm:$0xff]
        %v6113 = vld [vmem:[#allocation3 + $0x68] sm:$0xff]
        %v6114 = vld [vmem:[#allocation3 + $0x70] sm:$0xff]
        %v6115 = vld [vmem:[#allocation3 + $0x78] sm:$0xff]
        %v6116 = vpack.c.bf16 %v6101, %v6100
        %v6117 = vpack.c.bf16 %v6103, %v6102
        %v6118 = vpack.c.bf16 %v6105, %v6104
        %v6119 = vpack.c.bf16 %v6107, %v6106
        %v6120 = vpack.c.bf16 %v6109, %v6108
        %v6121 = vpack.c.bf16 %v6111, %v6110
        %v6122 = vpack.c.bf16 %v6113, %v6112
        %v6123 = vpack.c.bf16 %v6115, %v6114
        %v6124 = vld [vmem:[%s15] sm:$0xf]
        %v6125 = vld [vmem:[%s15 + $0x4] sm:$0xf]
        %v6126 = vld [vmem:[%s15 + $0x8] sm:$0xf]
        %v6127 = vld [vmem:[%s15 + $0xc] sm:$0xf]
        %v6128 = vld [vmem:[%s15 + $0x10] sm:$0xf]
        %v6129 = vld [vmem:[%s15 + $0x14] sm:$0xf]
        %v6130 = vld [vmem:[%s15 + $0x18] sm:$0xf]
        %v6131 = vld [vmem:[%s15 + $0x1c] sm:$0xf]
        %v6132 = vld [vmem:[%s15 + $0x20] sm:$0xf]
        %v6133 = vld [vmem:[%s15 + $0x24] sm:$0xf]
        %v6134 = vld [vmem:[%s15 + $0x28] sm:$0xf]
        %v6135 = vld [vmem:[%s15 + $0x2c] sm:$0xf]
        %v6136 = vld [vmem:[%s15 + $0x30] sm:$0xf]
        %v6137 = vld [vmem:[%s15 + $0x34] sm:$0xf]
        %v6138 = vld [vmem:[%s15 + $0x38] sm:$0xf]
        %v6139 = vld [vmem:[%s15 + $0x3c] sm:$0xf]
        %v6140 = vld [vmem:[%s16] sm:$0x1]
        %v6142 = vperm.slane %v6140, 0
        %v6160 = vunpack.c.l.b16 %v6124
        %v6161 = vunpack.c.l.b16 %v6125
        %v6162 = vunpack.c.l.b16 %v6126
        %v6163 = vunpack.c.l.b16 %v6127
        %v6164 = vunpack.c.l.b16 %v6128
        %v6165 = vunpack.c.l.b16 %v6129
        %v6166 = vunpack.c.l.b16 %v6130
        %v6167 = vunpack.c.l.b16 %v6131
        %v6168 = vunpack.c.l.b16 %v6132
        %v6169 = vunpack.c.l.b16 %v6133
        %v6170 = vunpack.c.l.b16 %v6134
        %v6171 = vunpack.c.l.b16 %v6135
        %v6172 = vunpack.c.l.b16 %v6136
        %v6173 = vunpack.c.l.b16 %v6137
        %v6174 = vunpack.c.l.b16 %v6138
        %v6175 = vunpack.c.l.b16 %v6139
        %v6176 = vpack.c.b16 %v6161, %v6160
        %v6177 = vpack.c.b16 %v6163, %v6162
        %v6178 = vpack.c.b16 %v6165, %v6164
        %v6179 = vpack.c.b16 %v6167, %v6166
        %v6180 = vpack.c.b16 %v6169, %v6168
        %v6181 = vpack.c.b16 %v6171, %v6170
        %v6182 = vpack.c.b16 %v6173, %v6172
        %v6183 = vpack.c.b16 %v6175, %v6174
        %6192 = vmatpush.bf16.msra.mxu0 %v6183
        %6193 = vmatpush.bf16.msra.mxu0 %v6182
        %6194 = vmatpush.bf16.msra.mxu0 %v6181
        %6195 = vmatpush.bf16.msra.mxu0 %v6180
        %6196 = vmatpush.bf16.msra.mxu0 %v6179
        %6197 = vmatpush.bf16.msra.mxu0 %v6178
        %6198 = vmatpush.bf16.msra.mxu0 %v6177
        %6199 = vmatpush.bf16.msra.mxu0 %v6176
        %6200 = vmatmul.bf16.gmra.mxu0 %v6116
        %v6201 = vpop.f32.mrf.mxu0
        %v6202 = vadd.f32 %v6142, %v6201
        %v6203 = vpop.f32.mrf.mxu0
        %v6204 = vadd.f32 %v6142, %v6203
        %6205 = vmatmul.bf16.gmra.mxu0 %v6117
        %v6206 = vpop.f32.mrf.mxu0
        %v6207 = vadd.f32 %v6142, %v6206
        %v6208 = vpop.f32.mrf.mxu0
        %v6209 = vadd.f32 %v6142, %v6208
        %6210 = vmatmul.bf16.gmra.mxu0 %v6118
        %v6211 = vpop.f32.mrf.mxu0
        %v6212 = vadd.f32 %v6142, %v6211
        %v6213 = vpop.f32.mrf.mxu0
        %v6214 = vadd.f32 %v6142, %v6213
        %6215 = vmatmul.bf16.gmra.mxu0 %v6119
        %v6216 = vpop.f32.mrf.mxu0
        %v6217 = vadd.f32 %v6142, %v6216
        %v6218 = vpop.f32.mrf.mxu0
        %v6219 = vadd.f32 %v6142, %v6218
        %6220 = vmatmul.bf16.gmra.mxu0 %v6120
        %v6221 = vpop.f32.mrf.mxu0
        %v6222 = vadd.f32 %v6142, %v6221
        %v6223 = vpop.f32.mrf.mxu0
        %v6224 = vadd.f32 %v6142, %v6223
        %6225 = vmatmul.bf16.gmra.mxu0 %v6121
        %v6226 = vpop.f32.mrf.mxu0
        %v6227 = vadd.f32 %v6142, %v6226
        %v6228 = vpop.f32.mrf.mxu0
        %v6229 = vadd.f32 %v6142, %v6228
        %6230 = vmatmul.bf16.gmra.mxu0 %v6122
        %v6231 = vpop.f32.mrf.mxu0
        %v6232 = vadd.f32 %v6142, %v6231
        %v6233 = vpop.f32.mrf.mxu0
        %v6234 = vadd.f32 %v6142, %v6233
        %6235 = vmatmul.bf16.gmra.mxu0 %v6123
        %v6236 = vpop.f32.mrf.mxu0
        %v6237 = vadd.f32 %v6142, %v6236
        %v6238 = vpop.f32.mrf.mxu0
        %v6239 = vadd.f32 %v6142, %v6238
        %6240 = vdwg.mxu0
        %v6241 = vld [vmem:[%s17] sm:$0x1]
        %v6242 = vld [vmem:[%s18] sm:$0x1]
        %v6243 = vsel %vm837, %v6202, 0.0
        %6244 = vadd.xlane.f32.xlu0 %v6243
        %v6245 = vpop.xlane.xlu0 %6244
        %v6246 = vsel %vm837, %v6204, 0.0
        %6247 = vadd.xlane.f32.xlu0 %v6246
        %v6248 = vpop.xlane.xlu0 %6247
        %v6249 = vsel %vm837, %v6207, 0.0
        %6250 = vadd.xlane.f32.xlu0 %v6249
        %v6251 = vpop.xlane.xlu0 %6250
        %v6252 = vsel %vm837, %v6209, 0.0
        %6253 = vadd.xlane.f32.xlu0 %v6252
        %v6254 = vpop.xlane.xlu0 %6253
        %v6255 = vsel %vm837, %v6212, 0.0
        %6256 = vadd.xlane.f32.xlu0 %v6255
        %v6257 = vpop.xlane.xlu0 %6256
        %v6258 = vsel %vm837, %v6214, 0.0
        %6259 = vadd.xlane.f32.xlu0 %v6258
        %v6260 = vpop.xlane.xlu0 %6259
        %v6261 = vsel %vm837, %v6217, 0.0
        %6262 = vadd.xlane.f32.xlu0 %v6261
        %v6263 = vpop.xlane.xlu0 %6262
        %v6264 = vsel %vm837, %v6219, 0.0
        %6265 = vadd.xlane.f32.xlu0 %v6264
        %v6266 = vpop.xlane.xlu0 %6265
        %v6267 = vsel %vm837, %v6222, 0.0
        %6268 = vadd.xlane.f32.xlu0 %v6267
        %v6269 = vpop.xlane.xlu0 %6268
        %v6270 = vsel %vm837, %v6224, 0.0
        %6271 = vadd.xlane.f32.xlu0 %v6270
        %v6272 = vpop.xlane.xlu0 %6271
        %v6273 = vsel %vm837, %v6227, 0.0
        %6274 = vadd.xlane.f32.xlu0 %v6273
        %v6275 = vpop.xlane.xlu0 %6274
        %v6276 = vsel %vm837, %v6229, 0.0
        %6277 = vadd.xlane.f32.xlu0 %v6276
        %v6278 = vpop.xlane.xlu0 %6277
        %v6279 = vsel %vm837, %v6232, 0.0
        %6280 = vadd.xlane.f32.xlu0 %v6279
        %v6281 = vpop.xlane.xlu0 %6280
        %v6282 = vsel %vm837, %v6234, 0.0
        %6283 = vadd.xlane.f32.xlu0 %v6282
        %v6284 = vpop.xlane.xlu0 %6283
        %v6285 = vsel %vm837, %v6237, 0.0
        %6286 = vadd.xlane.f32.xlu0 %v6285
        %v6287 = vpop.xlane.xlu0 %6286
        %v6288 = vsel %vm837, %v6239, 0.0
        %6289 = vadd.xlane.f32.xlu0 %v6288
        %v6290 = vpop.xlane.xlu0 %6289
        %v6291 = vrcp.pop 64.0
        %v6292 = vmul.f32 64.0, %v6291
        %v6293 = vsub.f32 1.0, %v6292
        %v6294 = vmul.f32 %v6291, %v6293
        %v6295 = vadd.f32 %v6291, %v6294
        %vm6296 = vweird.f32 %v6291
        %v6297 = vsel %vm6296, %v6291, %v6295
        %v6298 = vmul.f32 %v6245, %v6297
        %v6299 = vmul.f32 %v6248, %v6297
        %v6300 = vmul.f32 %v6251, %v6297
        %v6301 = vmul.f32 %v6254, %v6297
        %v6302 = vmul.f32 %v6257, %v6297
        %v6303 = vmul.f32 %v6260, %v6297
        %v6304 = vmul.f32 %v6263, %v6297
        %v6305 = vmul.f32 %v6266, %v6297
        %v6306 = vmul.f32 %v6269, %v6297
        %v6307 = vmul.f32 %v6272, %v6297
        %v6308 = vmul.f32 %v6275, %v6297
        %v6309 = vmul.f32 %v6278, %v6297
        %v6310 = vmul.f32 %v6281, %v6297
        %v6311 = vmul.f32 %v6284, %v6297
        %v6312 = vmul.f32 %v6287, %v6297
        %v6313 = vmul.f32 %v6290, %v6297
        %v6314 = vmul.f32 %v6202, %v6202
        %v6315 = vmul.f32 %v6204, %v6204
        %v6316 = vmul.f32 %v6207, %v6207
        %v6317 = vmul.f32 %v6209, %v6209
        %v6318 = vmul.f32 %v6212, %v6212
        %v6319 = vmul.f32 %v6214, %v6214
        %v6320 = vmul.f32 %v6217, %v6217
        %v6321 = vmul.f32 %v6219, %v6219
        %v6322 = vmul.f32 %v6222, %v6222
        %v6323 = vmul.f32 %v6224, %v6224
        %v6324 = vmul.f32 %v6227, %v6227
        %v6325 = vmul.f32 %v6229, %v6229
        %v6326 = vmul.f32 %v6232, %v6232
        %v6327 = vmul.f32 %v6234, %v6234
        %v6328 = vmul.f32 %v6237, %v6237
        %v6329 = vmul.f32 %v6239, %v6239
        %v6330 = vsel %vm837, %v6314, 0.0
        %6331 = vadd.xlane.f32.xlu0 %v6330
        %v6332 = vpop.xlane.xlu0 %6331
        %v6333 = vsel %vm837, %v6315, 0.0
        %6334 = vadd.xlane.f32.xlu0 %v6333
        %v6335 = vpop.xlane.xlu0 %6334
        %v6336 = vsel %vm837, %v6316, 0.0
        %6337 = vadd.xlane.f32.xlu0 %v6336
        %v6338 = vpop.xlane.xlu0 %6337
        %v6339 = vsel %vm837, %v6317, 0.0
        %6340 = vadd.xlane.f32.xlu0 %v6339
        %v6341 = vpop.xlane.xlu0 %6340
        %v6342 = vsel %vm837, %v6318, 0.0
        %6343 = vadd.xlane.f32.xlu0 %v6342
        %v6344 = vpop.xlane.xlu0 %6343
        %v6345 = vsel %vm837, %v6319, 0.0
        %6346 = vadd.xlane.f32.xlu0 %v6345
        %v6347 = vpop.xlane.xlu0 %6346
        %v6348 = vsel %vm837, %v6320, 0.0
        %6349 = vadd.xlane.f32.xlu0 %v6348
        %v6350 = vpop.xlane.xlu0 %6349
        %v6351 = vsel %vm837, %v6321, 0.0
        %6352 = vadd.xlane.f32.xlu0 %v6351
        %v6353 = vpop.xlane.xlu0 %6352
        %v6354 = vsel %vm837, %v6322, 0.0
        %6355 = vadd.xlane.f32.xlu0 %v6354
        %v6356 = vpop.xlane.xlu0 %6355
        %v6357 = vsel %vm837, %v6323, 0.0
        %6358 = vadd.xlane.f32.xlu0 %v6357
        %v6359 = vpop.xlane.xlu0 %6358
        %v6360 = vsel %vm837, %v6324, 0.0
        %6361 = vadd.xlane.f32.xlu0 %v6360
        %v6362 = vpop.xlane.xlu0 %6361
        %v6363 = vsel %vm837, %v6325, 0.0
        %6364 = vadd.xlane.f32.xlu0 %v6363
        %v6365 = vpop.xlane.xlu0 %6364
        %v6366 = vsel %vm837, %v6326, 0.0
        %6367 = vadd.xlane.f32.xlu0 %v6366
        %v6368 = vpop.xlane.xlu0 %6367
        %v6369 = vsel %vm837, %v6327, 0.0
        %6370 = vadd.xlane.f32.xlu0 %v6369
        %v6371 = vpop.xlane.xlu0 %6370
        %v6372 = vsel %vm837, %v6328, 0.0
        %6373 = vadd.xlane.f32.xlu0 %v6372
        %v6374 = vpop.xlane.xlu0 %6373
        %v6375 = vsel %vm837, %v6329, 0.0
        %6376 = vadd.xlane.f32.xlu0 %v6375
        %v6377 = vpop.xlane.xlu0 %6376
        %v6378 = vmul.f32 %v6332, %v6297
        %v6379 = vmul.f32 %v6335, %v6297
        %v6380 = vmul.f32 %v6338, %v6297
        %v6381 = vmul.f32 %v6341, %v6297
        %v6382 = vmul.f32 %v6344, %v6297
        %v6383 = vmul.f32 %v6347, %v6297
        %v6384 = vmul.f32 %v6350, %v6297
        %v6385 = vmul.f32 %v6353, %v6297
        %v6386 = vmul.f32 %v6356, %v6297
        %v6387 = vmul.f32 %v6359, %v6297
        %v6388 = vmul.f32 %v6362, %v6297
        %v6389 = vmul.f32 %v6365, %v6297
        %v6390 = vmul.f32 %v6368, %v6297
        %v6391 = vmul.f32 %v6371, %v6297
        %v6392 = vmul.f32 %v6374, %v6297
        %v6393 = vmul.f32 %v6377, %v6297
        %v6394 = vmul.f32 %v6298, %v6298
        %v6395 = vmul.f32 %v6299, %v6299
        %v6396 = vmul.f32 %v6300, %v6300
        %v6397 = vmul.f32 %v6301, %v6301
        %v6398 = vmul.f32 %v6302, %v6302
        %v6399 = vmul.f32 %v6303, %v6303
        %v6400 = vmul.f32 %v6304, %v6304
        %v6401 = vmul.f32 %v6305, %v6305
        %v6402 = vmul.f32 %v6306, %v6306
        %v6403 = vmul.f32 %v6307, %v6307
        %v6404 = vmul.f32 %v6308, %v6308
        %v6405 = vmul.f32 %v6309, %v6309
        %v6406 = vmul.f32 %v6310, %v6310
        %v6407 = vmul.f32 %v6311, %v6311
        %v6408 = vmul.f32 %v6312, %v6312
        %v6409 = vmul.f32 %v6313, %v6313
        %v6410 = vsub.f32 %v6378, %v6394
        %v6411 = vsub.f32 %v6379, %v6395
        %v6412 = vsub.f32 %v6380, %v6396
        %v6413 = vsub.f32 %v6381, %v6397
        %v6414 = vsub.f32 %v6382, %v6398
        %v6415 = vsub.f32 %v6383, %v6399
        %v6416 = vsub.f32 %v6384, %v6400
        %v6417 = vsub.f32 %v6385, %v6401
        %v6418 = vsub.f32 %v6386, %v6402
        %v6419 = vsub.f32 %v6387, %v6403
        %v6420 = vsub.f32 %v6388, %v6404
        %v6421 = vsub.f32 %v6389, %v6405
        %v6422 = vsub.f32 %v6390, %v6406
        %v6423 = vsub.f32 %v6391, %v6407
        %v6424 = vsub.f32 %v6392, %v6408
        %v6425 = vsub.f32 %v6393, %v6409
        %v6426 = vmax.f32 %v6410, 0.0
        %v6427 = vmax.f32 %v6411, 0.0
        %v6428 = vmax.f32 %v6412, 0.0
        %v6429 = vmax.f32 %v6413, 0.0
        %v6430 = vmax.f32 %v6414, 0.0
        %v6431 = vmax.f32 %v6415, 0.0
        %v6432 = vmax.f32 %v6416, 0.0
        %v6433 = vmax.f32 %v6417, 0.0
        %v6434 = vmax.f32 %v6418, 0.0
        %v6435 = vmax.f32 %v6419, 0.0
        %v6436 = vmax.f32 %v6420, 0.0
        %v6437 = vmax.f32 %v6421, 0.0
        %v6438 = vmax.f32 %v6422, 0.0
        %v6439 = vmax.f32 %v6423, 0.0
        %v6440 = vmax.f32 %v6424, 0.0
        %v6441 = vmax.f32 %v6425, 0.0
        %v6442 = vsub.f32 %v6202, %v6298
        %v6443 = vsub.f32 %v6204, %v6299
        %v6444 = vsub.f32 %v6207, %v6300
        %v6445 = vsub.f32 %v6209, %v6301
        %v6446 = vsub.f32 %v6212, %v6302
        %v6447 = vsub.f32 %v6214, %v6303
        %v6448 = vsub.f32 %v6217, %v6304
        %v6449 = vsub.f32 %v6219, %v6305
        %v6450 = vsub.f32 %v6222, %v6306
        %v6451 = vsub.f32 %v6224, %v6307
        %v6452 = vsub.f32 %v6227, %v6308
        %v6453 = vsub.f32 %v6229, %v6309
        %v6454 = vsub.f32 %v6232, %v6310
        %v6455 = vsub.f32 %v6234, %v6311
        %v6456 = vsub.f32 %v6237, %v6312
        %v6457 = vsub.f32 %v6239, %v6313
        %v6458 = vadd.f32 %v6426, 1e-05
        %v6459 = vadd.f32 %v6427, 1e-05
        %v6460 = vadd.f32 %v6428, 1e-05
        %v6461 = vadd.f32 %v6429, 1e-05
        %v6462 = vadd.f32 %v6430, 1e-05
        %v6463 = vadd.f32 %v6431, 1e-05
        %v6464 = vadd.f32 %v6432, 1e-05
        %v6465 = vadd.f32 %v6433, 1e-05
        %v6466 = vadd.f32 %v6434, 1e-05
        %v6467 = vadd.f32 %v6435, 1e-05
        %v6468 = vadd.f32 %v6436, 1e-05
        %v6469 = vadd.f32 %v6437, 1e-05
        %v6470 = vadd.f32 %v6438, 1e-05
        %v6471 = vadd.f32 %v6439, 1e-05
        %v6472 = vadd.f32 %v6440, 1e-05
        %v6473 = vadd.f32 %v6441, 1e-05
        %v6474 = vrsqrt.pop %v6458
        %v6475 = vmul.f32 %v6474, %v6458
        %v6476 = vmul.f32 %v6475, %v6474
        %v6477 = vmul.f32 0.5, %v6476
        %v6478 = vsub.f32 1.5, %v6477
        %v6479 = vmul.f32 %v6474, %v6478
        %vm6480 = vweird.f32 %v6458
        %vm6481 = vweird.f32 %v6474
        %vm6482 = vmor %vm6480, %vm6481
        %v6483 = vsel %vm6482, %v6474, %v6479
        %v6484 = vrsqrt.pop %v6459
        %v6485 = vmul.f32 %v6484, %v6459
        %v6486 = vmul.f32 %v6485, %v6484
        %v6487 = vmul.f32 0.5, %v6486
        %v6488 = vsub.f32 1.5, %v6487
        %v6489 = vmul.f32 %v6484, %v6488
        %vm6490 = vweird.f32 %v6459
        %vm6491 = vweird.f32 %v6484
        %vm6492 = vmor %vm6490, %vm6491
        %v6493 = vsel %vm6492, %v6484, %v6489
        %v6494 = vrsqrt.pop %v6460
        %v6495 = vmul.f32 %v6494, %v6460
        %v6496 = vmul.f32 %v6495, %v6494
        %v6497 = vmul.f32 0.5, %v6496
        %v6498 = vsub.f32 1.5, %v6497
        %v6499 = vmul.f32 %v6494, %v6498
        %vm6500 = vweird.f32 %v6460
        %vm6501 = vweird.f32 %v6494
        %vm6502 = vmor %vm6500, %vm6501
        %v6503 = vsel %vm6502, %v6494, %v6499
        %v6504 = vrsqrt.pop %v6461
        %v6505 = vmul.f32 %v6504, %v6461
        %v6506 = vmul.f32 %v6505, %v6504
        %v6507 = vmul.f32 0.5, %v6506
        %v6508 = vsub.f32 1.5, %v6507
        %v6509 = vmul.f32 %v6504, %v6508
        %vm6510 = vweird.f32 %v6461
        %vm6511 = vweird.f32 %v6504
        %vm6512 = vmor %vm6510, %vm6511
        %v6513 = vsel %vm6512, %v6504, %v6509
        %v6514 = vrsqrt.pop %v6462
        %v6515 = vmul.f32 %v6514, %v6462
        %v6516 = vmul.f32 %v6515, %v6514
        %v6517 = vmul.f32 0.5, %v6516
        %v6518 = vsub.f32 1.5, %v6517
        %v6519 = vmul.f32 %v6514, %v6518
        %vm6520 = vweird.f32 %v6462
        %vm6521 = vweird.f32 %v6514
        %vm6522 = vmor %vm6520, %vm6521
        %v6523 = vsel %vm6522, %v6514, %v6519
        %v6524 = vrsqrt.pop %v6463
        %v6525 = vmul.f32 %v6524, %v6463
        %v6526 = vmul.f32 %v6525, %v6524
        %v6527 = vmul.f32 0.5, %v6526
        %v6528 = vsub.f32 1.5, %v6527
        %v6529 = vmul.f32 %v6524, %v6528
        %vm6530 = vweird.f32 %v6463
        %vm6531 = vweird.f32 %v6524
        %vm6532 = vmor %vm6530, %vm6531
        %v6533 = vsel %vm6532, %v6524, %v6529
        %v6534 = vrsqrt.pop %v6464
        %v6535 = vmul.f32 %v6534, %v6464
        %v6536 = vmul.f32 %v6535, %v6534
        %v6537 = vmul.f32 0.5, %v6536
        %v6538 = vsub.f32 1.5, %v6537
        %v6539 = vmul.f32 %v6534, %v6538
        %vm6540 = vweird.f32 %v6464
        %vm6541 = vweird.f32 %v6534
        %vm6542 = vmor %vm6540, %vm6541
        %v6543 = vsel %vm6542, %v6534, %v6539
        %v6544 = vrsqrt.pop %v6465
        %v6545 = vmul.f32 %v6544, %v6465
        %v6546 = vmul.f32 %v6545, %v6544
        %v6547 = vmul.f32 0.5, %v6546
        %v6548 = vsub.f32 1.5, %v6547
        %v6549 = vmul.f32 %v6544, %v6548
        %vm6550 = vweird.f32 %v6465
        %vm6551 = vweird.f32 %v6544
        %vm6552 = vmor %vm6550, %vm6551
        %v6553 = vsel %vm6552, %v6544, %v6549
        %v6554 = vrsqrt.pop %v6466
        %v6555 = vmul.f32 %v6554, %v6466
        %v6556 = vmul.f32 %v6555, %v6554
        %v6557 = vmul.f32 0.5, %v6556
        %v6558 = vsub.f32 1.5, %v6557
        %v6559 = vmul.f32 %v6554, %v6558
        %vm6560 = vweird.f32 %v6466
        %vm6561 = vweird.f32 %v6554
        %vm6562 = vmor %vm6560, %vm6561
        %v6563 = vsel %vm6562, %v6554, %v6559
        %v6564 = vrsqrt.pop %v6467
        %v6565 = vmul.f32 %v6564, %v6467
        %v6566 = vmul.f32 %v6565, %v6564
        %v6567 = vmul.f32 0.5, %v6566
        %v6568 = vsub.f32 1.5, %v6567
        %v6569 = vmul.f32 %v6564, %v6568
        %vm6570 = vweird.f32 %v6467
        %vm6571 = vweird.f32 %v6564
        %vm6572 = vmor %vm6570, %vm6571
        %v6573 = vsel %vm6572, %v6564, %v6569
        %v6574 = vrsqrt.pop %v6468
        %v6575 = vmul.f32 %v6574, %v6468
        %v6576 = vmul.f32 %v6575, %v6574
        %v6577 = vmul.f32 0.5, %v6576
        %v6578 = vsub.f32 1.5, %v6577
        %v6579 = vmul.f32 %v6574, %v6578
        %vm6580 = vweird.f32 %v6468
        %vm6581 = vweird.f32 %v6574
        %vm6582 = vmor %vm6580, %vm6581
        %v6583 = vsel %vm6582, %v6574, %v6579
        %v6584 = vrsqrt.pop %v6469
        %v6585 = vmul.f32 %v6584, %v6469
        %v6586 = vmul.f32 %v6585, %v6584
        %v6587 = vmul.f32 0.5, %v6586
        %v6588 = vsub.f32 1.5, %v6587
        %v6589 = vmul.f32 %v6584, %v6588
        %vm6590 = vweird.f32 %v6469
        %vm6591 = vweird.f32 %v6584
        %vm6592 = vmor %vm6590, %vm6591
        %v6593 = vsel %vm6592, %v6584, %v6589
        %v6594 = vrsqrt.pop %v6470
        %v6595 = vmul.f32 %v6594, %v6470
        %v6596 = vmul.f32 %v6595, %v6594
        %v6597 = vmul.f32 0.5, %v6596
        %v6598 = vsub.f32 1.5, %v6597
        %v6599 = vmul.f32 %v6594, %v6598
        %vm6600 = vweird.f32 %v6470
        %vm6601 = vweird.f32 %v6594
        %vm6602 = vmor %vm6600, %vm6601
        %v6603 = vsel %vm6602, %v6594, %v6599
        %v6604 = vrsqrt.pop %v6471
        %v6605 = vmul.f32 %v6604, %v6471
        %v6606 = vmul.f32 %v6605, %v6604
        %v6607 = vmul.f32 0.5, %v6606
        %v6608 = vsub.f32 1.5, %v6607
        %v6609 = vmul.f32 %v6604, %v6608
        %vm6610 = vweird.f32 %v6471
        %vm6611 = vweird.f32 %v6604
        %vm6612 = vmor %vm6610, %vm6611
        %v6613 = vsel %vm6612, %v6604, %v6609
        %v6614 = vrsqrt.pop %v6472
        %v6615 = vmul.f32 %v6614, %v6472
        %v6616 = vmul.f32 %v6615, %v6614
        %v6617 = vmul.f32 0.5, %v6616
        %v6618 = vsub.f32 1.5, %v6617
        %v6619 = vmul.f32 %v6614, %v6618
        %vm6620 = vweird.f32 %v6472
        %vm6621 = vweird.f32 %v6614
        %vm6622 = vmor %vm6620, %vm6621
        %v6623 = vsel %vm6622, %v6614, %v6619
        %v6624 = vrsqrt.pop %v6473
        %v6625 = vmul.f32 %v6624, %v6473
        %v6626 = vmul.f32 %v6625, %v6624
        %v6627 = vmul.f32 0.5, %v6626
        %v6628 = vsub.f32 1.5, %v6627
        %v6629 = vmul.f32 %v6624, %v6628
        %vm6630 = vweird.f32 %v6473
        %vm6631 = vweird.f32 %v6624
        %vm6632 = vmor %vm6630, %vm6631
        %v6633 = vsel %vm6632, %v6624, %v6629
        %v6634 = vmul.f32 %v6442, %v6483
        %v6635 = vmul.f32 %v6443, %v6493
        %v6636 = vmul.f32 %v6444, %v6503
        %v6637 = vmul.f32 %v6445, %v6513
        %v6638 = vmul.f32 %v6446, %v6523
        %v6639 = vmul.f32 %v6447, %v6533
        %v6640 = vmul.f32 %v6448, %v6543
        %v6641 = vmul.f32 %v6449, %v6553
        %v6642 = vmul.f32 %v6450, %v6563
        %v6643 = vmul.f32 %v6451, %v6573
        %v6644 = vmul.f32 %v6452, %v6583
        %v6645 = vmul.f32 %v6453, %v6593
        %v6646 = vmul.f32 %v6454, %v6603
        %v6647 = vmul.f32 %v6455, %v6613
        %v6648 = vmul.f32 %v6456, %v6623
        %v6649 = vmul.f32 %v6457, %v6633
        %v6651 = vperm.slane %v6241, 0
        %v6653 = vmul.f32 %v6634, %v6651
        %v6654 = vmul.f32 %v6635, %v6651
        %v6655 = vmul.f32 %v6636, %v6651
        %v6656 = vmul.f32 %v6637, %v6651
        %v6657 = vmul.f32 %v6638, %v6651
        %v6658 = vmul.f32 %v6639, %v6651
        %v6659 = vmul.f32 %v6640, %v6651
        %v6660 = vmul.f32 %v6641, %v6651
        %v6661 = vmul.f32 %v6642, %v6651
        %v6662 = vmul.f32 %v6643, %v6651
        %v6663 = vmul.f32 %v6644, %v6651
        %v6664 = vmul.f32 %v6645, %v6651
        %v6665 = vmul.f32 %v6646, %v6651
        %v6666 = vmul.f32 %v6647, %v6651
        %v6667 = vmul.f32 %v6648, %v6651
        %v6668 = vmul.f32 %v6649, %v6651
        %v6670 = vperm.slane %v6242, 0
        %v6672 = vadd.f32 %v6653, %v6670
        %v6673 = vadd.f32 %v6654, %v6670
        %v6674 = vadd.f32 %v6655, %v6670
        %v6675 = vadd.f32 %v6656, %v6670
        %v6676 = vadd.f32 %v6657, %v6670
        %v6677 = vadd.f32 %v6658, %v6670
        %v6678 = vadd.f32 %v6659, %v6670
        %v6679 = vadd.f32 %v6660, %v6670
        %v6680 = vadd.f32 %v6661, %v6670
        %v6681 = vadd.f32 %v6662, %v6670
        %v6682 = vadd.f32 %v6663, %v6670
        %v6683 = vadd.f32 %v6664, %v6670
        %v6684 = vadd.f32 %v6665, %v6670
        %v6685 = vadd.f32 %v6666, %v6670
        %v6686 = vadd.f32 %v6667, %v6670
        %v6687 = vadd.f32 %v6668, %v6670
        %v6688 = vmax.f32 %v6672, 0.0
        %v6689 = vmax.f32 %v6673, 0.0
        %v6690 = vmax.f32 %v6674, 0.0
        %v6691 = vmax.f32 %v6675, 0.0
        %v6692 = vmax.f32 %v6676, 0.0
        %v6693 = vmax.f32 %v6677, 0.0
        %v6694 = vmax.f32 %v6678, 0.0
        %v6695 = vmax.f32 %v6679, 0.0
        %v6696 = vmax.f32 %v6680, 0.0
        %v6697 = vmax.f32 %v6681, 0.0
        %v6698 = vmax.f32 %v6682, 0.0
        %v6699 = vmax.f32 %v6683, 0.0
        %v6700 = vmax.f32 %v6684, 0.0
        %v6701 = vmax.f32 %v6685, 0.0
        %v6702 = vmax.f32 %v6686, 0.0
        %v6703 = vmax.f32 %v6687, 0.0
        %6704 = vst.msk [vmem:[%s741] sm:$0xff] %vm837, %v6688
        %6705 = vst.msk [vmem:[%s741 + $0x8] sm:$0xff] %vm837, %v6689
        %6706 = vst.msk [vmem:[%s741 + $0x10] sm:$0xff] %vm837, %v6690
        %6707 = vst.msk [vmem:[%s741 + $0x18] sm:$0xff] %vm837, %v6691
        %6708 = vst.msk [vmem:[%s741 + $0x20] sm:$0xff] %vm837, %v6692
        %6709 = vst.msk [vmem:[%s741 + $0x28] sm:$0xff] %vm837, %v6693
        %6710 = vst.msk [vmem:[%s741 + $0x30] sm:$0xff] %vm837, %v6694
        %6711 = vst.msk [vmem:[%s741 + $0x38] sm:$0xff] %vm837, %v6695
        %6712 = vst.msk [vmem:[%s741 + $0x40] sm:$0xff] %vm837, %v6696
        %6713 = vst.msk [vmem:[%s741 + $0x48] sm:$0xff] %vm837, %v6697
        %6714 = vst.msk [vmem:[%s741 + $0x50] sm:$0xff] %vm837, %v6698
        %6715 = vst.msk [vmem:[%s741 + $0x58] sm:$0xff] %vm837, %v6699
        %6716 = vst.msk [vmem:[%s741 + $0x60] sm:$0xff] %vm837, %v6700
        %6717 = vst.msk [vmem:[%s741 + $0x68] sm:$0xff] %vm837, %v6701
        %6718 = vst.msk [vmem:[%s741 + $0x70] sm:$0xff] %vm837, %v6702
        %6719 = vst.msk [vmem:[%s741 + $0x78] sm:$0xff] %vm837, %v6703
        %s6720 = sand.u32 %s452, 1
        %s6721 = scalar_lea.sflag [#allocation6], %s6720
        %s6722 = sand.u32 %s452, 1
        %s6723 = smul.addr %s6722, 128
        %s6724 = scalar_lea.vmem [#allocation19], %s6723
        // Predicated region
        $region133: #{tpu_custom_call.1} parent=95 // pred_check
          %p6725 = pneg %p462
        $region134: #{tpu_custom_call.1} parent=95 // pred_check_branch
          %6727 = sbr.rel (%p6725) target = $region136
        $region135: #{tpu_custom_call.1} parent=95 // pred_region
          %s6728 = smul.u32 2, %s40
          %6730 = vsyncadd %s6721, 0
          %s6731 = smul.addr %s6728, 8
          %s6732 = smul.addr %s6731, 8
          %s6733 = scalar_lea.hbm %s19, %s6732
          %s6734 = sshll.u32 %s6724, 4
          %s6735 = int_to_ptr.vmem [resolvable:$true] %s6734
          %s6736 = sshll.u32 %s6733, 4
          %s6737 = int_to_ptr.hbm [resolvable:$true] %s6736
          %6742 = dma.vmem_to_hbm [thread:$0]  %s6735, 2048, %s6737, %s6721, 128, 128, 8
        $region136: #{tpu_custom_call.1} parent=95 // pred_fallthru
          _
      $region96: #{tpu_custom_call.1} parent=5 // pred_fallthru
        _
      %p6743 = scmp.le.s32.totalorder 2, %s35
      // Predicated region
      $region137: #{tpu_custom_call.1} parent=5 // pred_check
        %p6744 = pneg %p6743
      $region138: #{tpu_custom_call.1} parent=5 // pred_check_branch
        %6746 = sbr.rel (%p6744) target = $region140
      $region139: #{tpu_custom_call.1} parent=5 // pred_region
        %s6747 = ssub.s32 %s35, 2
        // Predicated region
        $region141: #{tpu_custom_call.1} parent=139 // pred_check
          %p6748 = pneg %p468
        $region142: #{tpu_custom_call.1} parent=139 // pred_check_branch
          %6750 = sbr.rel (%p6748) target = $region144
        $region143: #{tpu_custom_call.1} parent=139 // pred_region
          %s6751 = sand.u32 %s453, 1
          %s6752 = scalar_lea.sflag [#allocation6], %s6751
          %s6753 = sand.u32 %s453, 1
          %s6754 = smul.addr %s6753, 128
          %s6755 = scalar_lea.vmem [#allocation19], %s6754
          %6757 = dma.done %s6752, 2048
        $region144: #{tpu_custom_call.1} parent=139 // pred_fallthru
          _
      $region140: #{tpu_custom_call.1} parent=5 // pred_fallthru
        _
    $region6: #{tpu_custom_call.1} parent=1 // loop_footer
      %s39 = sadd.s32 1, %s35
    $region7: #{tpu_custom_call.1} parent=1 // loop_footer_branch
      %34 = sbr.rel target = $region3
    $region8: #{tpu_custom_call.1} parent=1 // loop_exit
      _
    %6758 = vsyncpa [#allocation5], 1
    %s6759 = scalar_lea.sflag [#allocation5], 1
    %6760 = vsyncpa %s6759, 1
    %6761 = vsyncpa [#allocation8], 1
    %6762 = vsyncpa [#allocation11], 1
    %6763 = vsyncpa [#allocation14], 1
    %6764 = vsyncpa [#allocation17], 1
    %6765 = vsyncpa [#allocation6], 1
    %s6766 = scalar_lea.sflag [#allocation6], 1
    %6767 = vsyncpa %s6766, 1

</llo_original>
